<compile_context>
chip_gen: v7x
topology: tpu7x:2x2x1
jax: 0.10.0
libtpu: 0.0.40
codegen_flags: <defaults>
</compile_context>

<pallas_src>
import numpy as np
import jax
import jax.numpy as jnp
from jax import lax
from jax.experimental import pallas as pl
from jax.experimental.pallas import tpu as pltpu

# ---- static problem sizes (default sizes=(10,10,10) -> fc1: 1000 -> 500) ----
N = 2                                    # batch
D0 = H = W = 10                          # input depth / height / width
CH = (1, 8, 16, 32, 16, 8)               # channels per stage
DEP = (10, 9, 8, 7, 6, 5)                # depth per stage (shrinks by 1 per conv)
HW = H * W                               # 100 rows per sample on the full grid
PAD = 16                                 # junk rows consumed per conv layer (>= 11)
ROWS = tuple(N * HW + PAD * (5 - l) for l in range(6))   # 280,264,248,232,216,200
TAP_OFF = (0, 1, W, W + 1)               # flat row offset of the (dy,dx) taps
FEAT = CH[5] * DEP[5] * 5 * 5            # 1000
HID = FEAT // 2                          # 500


def sandnet_kernel(x_ref,
                   w1_ref, b1_ref, w2_ref, b2_ref, w3_ref, b3_ref,
                   w4_ref, b4_ref, w5_ref, b5_ref,
                   wf1_ref, bf1_ref, wf2_ref, bf2_ref, out_ref):
    w_refs = (w1_ref, w2_ref, w3_ref, w4_ref, w5_ref)
    b_refs = (b1_ref, b2_ref, b3_ref, b4_ref, b5_ref)

    act = x_ref[...]                                         # (280, 10) f32
    for l in range(5):
        r_out = ROWS[l + 1]
        wb = w_refs[l]                                       # (4, Din*Cin, Dout*Cout)
        acc = jnp.dot(act[0:r_out, :], wb[0],
                      preferred_element_type=jnp.float32)
        for t in range(1, 4):
            off = TAP_OFF[t]
            acc = acc + jnp.dot(act[off:off + r_out, :], wb[t],
                                preferred_element_type=jnp.float32)
        act = jnp.maximum(acc + b_refs[l][...], 0.0)         # (r_out, Dout*Cout)

    # act: (200, 40) = ((n,h,w), (d,c)).  Crop the valid 5x5 (h,w) corner of each
    # sample: 10 contiguous 5-row slices -> (50, 40).
    rows = [act[n * HW + h * W: n * HW + h * W + 5, :]
            for n in range(N) for h in range(5)]
    e = jnp.concatenate(rows, axis=0)                        # (50, 40), rows=(n,h,w)

    # Flatten each sample's (25, 40) block into one lane-dense (1, 1000) row so fc1
    # is a single (N,1000)@(1000,500) MXU matmul.  Mosaic has no general
    # sublane->lane reshape, so this is a small explicit lane concat (2000 elems,
    # a few % of the kernel; the fc1 weight is pre-permuted to this order).
    feats = jnp.concatenate(
        [jnp.concatenate([e[r:r + 1, :] for r in range(n * 25, (n + 1) * 25)],
                         axis=1)
         for n in range(N)], axis=0)                         # (N, 1000), (h,w,d,c)

    # TODO(synk): Dropout(p=0.3) / MaxPool3d exist on the module but are not called
    # in forward(), so nothing is emitted for them.
    h1 = jnp.dot(feats.astype(jnp.bfloat16), wf1_ref[...],
                 preferred_element_type=jnp.float32) + bf1_ref[...]
    h1 = jnp.maximum(h1, 0.0)                                # (N, 500) f32
    out_ref[...] = jnp.dot(h1, wf2_ref[...],
                           preferred_element_type=jnp.float32) + bf2_ref[...]


def _banded_conv_weight(w, d_in):
    """Torch Conv3d weight (Cout, Cin, 2, 2, 2) -> (4, Din*Cin, Dout*Cout).

    Tap t=(dy,dx) maps input lanes (d_in, c_in) to output lanes (d_out, c_out);
    the two kD=2 depth taps are folded in as a block-banded structure
    (nonzero iff d_in == d_out + dz)."""
    c_out, c_in = int(w.shape[0]), int(w.shape[1])
    d_out = d_in - 1
    sel = np.zeros((2, d_out, d_in), np.float32)
    for dz in range(2):
        for do in range(d_out):
            sel[dz, do, do + dz] = 1.0
    sel = jnp.asarray(sel)
    taps = []
    for dy in range(2):
        for dx in range(2):
            wt = w[:, :, :, dy, dx]                          # (Cout, Cin, 2) over dz
            m = jnp.einsum('zoi,pcz->icop', sel, wt)         # (Din, Cin, Dout, Cout)
            taps.append(m.reshape(d_in * c_in, d_out * c_out))
    return jnp.stack(taps, axis=0)


def prepare_params(params):
    """One-time repack of PyTorch-layout parameters into kernel operands."""
    (w1, b1, w2, b2, w3, b3, w4, b4, w5, b5, fw1, fb1, fw2, fb2) = params
    conv_args = []
    for l, (w, b) in enumerate(((w1, b1), (w2, b2), (w3, b3), (w4, b4), (w5, b5))):
        conv_args.append(_banded_conv_weight(w.astype(jnp.float32), DEP[l]))
        conv_args.append(jnp.tile(b.astype(jnp.float32), DEP[l + 1]).reshape(1, -1))
    # fc1: torch flatten order is (c, d, h, w); kernel flatten order is (h, w, d, c).
    wf1 = jnp.transpose(fw1.reshape(HID, CH[5], DEP[5], 5, 5),
                        (3, 4, 2, 1, 0)).reshape(FEAT, HID).astype(jnp.bfloat16)
    bf1 = fb1.reshape(1, HID).astype(jnp.float32)
    wf2 = fw2.reshape(1, HID).T.astype(jnp.float32)          # (500, 1)
    bf2 = fb2.reshape(1, 1).astype(jnp.float32)
    return tuple(conv_args) + (wf1, bf1, wf2, bf2)


def _full_spec(shape):
    nd = len(shape)
    return pl.BlockSpec(shape, lambda i, _nd=nd: (0,) * _nd)


@jax.jit
def sandnet_forward(x, kernel_params):
    # x: (N, 1, D, H, W) torch layout -> rows=(n,h,w), lanes=d, plus zero pad rows.
    xr = jnp.transpose(x[:, 0], (0, 2, 3, 1)).reshape(N * HW, DEP[0])
    x0 = jnp.concatenate(
        [xr.astype(jnp.float32),
         jnp.zeros((ROWS[0] - N * HW, DEP[0]), jnp.float32)], axis=0)
    args = (x0,) + tuple(kernel_params)
    return pl.pallas_call(
        sandnet_kernel,
        out_shape=jax.ShapeDtypeStruct((N, 1), jnp.float32),
        grid=(1,),
        in_specs=[_full_spec(a.shape) for a in args],
        out_specs=_full_spec((N, 1)),
        compiler_params=pltpu.CompilerParams(dimension_semantics=("arbitrary",)),
    )(*args)


def sandnet_reference(x, params):
    """Pure-JAX f32 replica of the PyTorch forward (eval mode), HIGHEST precision."""
    (w1, b1, w2, b2, w3, b3, w4, b4, w5, b5, fw1, fb1, fw2, fb2) = params
    prec = lax.Precision.HIGHEST

    def conv3d(o, w, b):
        o = lax.conv_general_dilated(
            o, w, window_strides=(1, 1, 1), padding='VALID',
            dimension_numbers=('NCDHW', 'OIDHW', 'NCDHW'), precision=prec)
        return jax.nn.relu(o + b[None, :, None, None, None])

    o = x
    for w, b in ((w1, b1), (w2, b2), (w3, b3), (w4, b4), (w5, b5)):
        o = conv3d(o, w, b)
    o = o.reshape(o.shape[0], -1)                            # (N, 1000), (c,d,h,w)
    o = jax.nn.relu(jnp.dot(o, fw1.T, precision=prec) + fb1)
    return jnp.dot(o, fw2.T, precision=prec) + fb2


if __name__ == "__main__":
    key = jax.random.PRNGKey(0)
    ks = jax.random.split(key, 15)
    x = jax.random.normal(ks[0], (N, 1, D0, H, W), jnp.float32)

    def winit(k, shape):
        return 0.1 * jax.random.normal(k, shape, jnp.float32)

    params = (
        winit(ks[1], (CH[1], CH[0], 2, 2, 2)), winit(ks[2], (CH[1],)),    # layer1
        winit(ks[3], (CH[2], CH[1], 2, 2, 2)), winit(ks[4], (CH[2],)),    # layer2
        winit(ks[5], (CH[3], CH[2], 2, 2, 2)), winit(ks[6], (CH[3],)),    # layer3
        winit(ks[7], (CH[4], CH[3], 2, 2, 2)), winit(ks[8], (CH[4],)),    # layer4
        winit(ks[9], (CH[5], CH[4], 2, 2, 2)), winit(ks[10], (CH[5],)),   # layer5
        winit(ks[11], (HID, FEAT)), winit(ks[12], (HID,)),                # fc1
        winit(ks[13], (1, HID)), winit(ks[14], (1,)),                     # fc2
    )

    kparams = prepare_params(params)                         # one-time weight repack
    out = jax.block_until_ready(sandnet_forward(x, kparams))
    ref = jax.block_until_ready(sandnet_reference(x, params))

    # Convs run in f32; only the fc1 operands are bf16, so the deviation from the
    # f32 reference is bf16 rounding of a 1000-term dot (~3e-3 abs at these scales).
    np.testing.assert_allclose(np.asarray(out), np.asarray(ref), rtol=2e-2, atol=2e-2)
    assert out.shape == (N, 1)
    print("KERNEL_OK")
</pallas_src>

<mosaic_0001>
module attributes {stable_mosaic.version = 11 : i64} {
  func.func @sandnet_kernel(%arg0: i32, %arg1: memref<280x10xf32, #tpu.memory_space<vmem>>, %arg2: memref<4x10x72xf32, #tpu.memory_space<vmem>>, %arg3: memref<1x72xf32, #tpu.memory_space<vmem>>, %arg4: memref<4x72x128xf32, #tpu.memory_space<vmem>>, %arg5: memref<1x128xf32, #tpu.memory_space<vmem>>, %arg6: memref<4x128x224xf32, #tpu.memory_space<vmem>>, %arg7: memref<1x224xf32, #tpu.memory_space<vmem>>, %arg8: memref<4x224x96xf32, #tpu.memory_space<vmem>>, %arg9: memref<1x96xf32, #tpu.memory_space<vmem>>, %arg10: memref<4x96x40xf32, #tpu.memory_space<vmem>>, %arg11: memref<1x40xf32, #tpu.memory_space<vmem>>, %arg12: memref<1000x500xbf16, #tpu.memory_space<vmem>>, %arg13: memref<1x500xf32, #tpu.memory_space<vmem>>, %arg14: memref<500x1xf32, #tpu.memory_space<vmem>>, %arg15: memref<1x1xf32, #tpu.memory_space<vmem>>, %arg16: memref<2x1xf32, #tpu.memory_space<vmem>>) attributes {dimension_semantics = [#tpu.dimension_semantics<arbitrary>], iteration_bounds = array<i64: 1>, scalar_prefetch = 0 : i64, scratch_operands = 0 : i64, tpu.core_type = #tpu.core_type<tc>, window_params = [{pipeline_mode = #tpu.pipeline_mode<synchronous>, transform_indices = @transform_0, window_bounds = array<i64: 280, 10>}, {pipeline_mode = #tpu.pipeline_mode<synchronous>, transform_indices = @transform_1, window_bounds = array<i64: 4, 10, 72>}, {pipeline_mode = #tpu.pipeline_mode<synchronous>, transform_indices = @transform_2, window_bounds = array<i64: 1, 72>}, {pipeline_mode = #tpu.pipeline_mode<synchronous>, transform_indices = @transform_3, window_bounds = array<i64: 4, 72, 128>}, {pipeline_mode = #tpu.pipeline_mode<synchronous>, transform_indices = @transform_4, window_bounds = array<i64: 1, 128>}, {pipeline_mode = #tpu.pipeline_mode<synchronous>, transform_indices = @transform_5, window_bounds = array<i64: 4, 128, 224>}, {pipeline_mode = #tpu.pipeline_mode<synchronous>, transform_indices = @transform_6, window_bounds = array<i64: 1, 224>}, {pipeline_mode = #tpu.pipeline_mode<synchronous>, transform_indices = @transform_7, window_bounds = array<i64: 4, 224, 96>}, {pipeline_mode = #tpu.pipeline_mode<synchronous>, transform_indices = @transform_8, window_bounds = array<i64: 1, 96>}, {pipeline_mode = #tpu.pipeline_mode<synchronous>, transform_indices = @transform_9, window_bounds = array<i64: 4, 96, 40>}, {pipeline_mode = #tpu.pipeline_mode<synchronous>, transform_indices = @transform_10, window_bounds = array<i64: 1, 40>}, {pipeline_mode = #tpu.pipeline_mode<synchronous>, transform_indices = @transform_11, window_bounds = array<i64: 1000, 500>}, {pipeline_mode = #tpu.pipeline_mode<synchronous>, transform_indices = @transform_12, window_bounds = array<i64: 1, 500>}, {pipeline_mode = #tpu.pipeline_mode<synchronous>, transform_indices = @transform_13, window_bounds = array<i64: 500, 1>}, {pipeline_mode = #tpu.pipeline_mode<synchronous>, transform_indices = @transform_14, window_bounds = array<i64: 1, 1>}, {pipeline_mode = #tpu.pipeline_mode<synchronous>, transform_indices = @transform_15, window_bounds = array<i64: 2, 1>}]} {
    %c0 = arith.constant 0 : index
    %c0_0 = arith.constant 0 : index
    %0 = vector.load %arg1[%c0, %c0_0] : memref<280x10xf32, #tpu.memory_space<vmem>>, vector<280x10xf32>
    %1 = vector.extract_strided_slice %0 {offsets = [0, 0], sizes = [264, 10], strides = [1, 1]} : vector<280x10xf32> to vector<264x10xf32>
    %c0_1 = arith.constant 0 : index
    %c0_2 = arith.constant 0 : index
    %c0_3 = arith.constant 0 : index
    %2 = vector.load %arg2[%c0_1, %c0_2, %c0_3] : memref<4x10x72xf32, #tpu.memory_space<vmem>>, vector<1x10x72xf32>
    %3 = vector.shape_cast %2 : vector<1x10x72xf32> to vector<10x72xf32>
    %cst = arith.constant dense<0.000000e+00> : vector<264x72xf32>
    %4 = tpu.matmul %1, %3, %cst {dimension_numbers = #tpu.dot_dimension_numbers<[1], [0], [0], [1], [0, 0, 1, 1], [], []>} : vector<264x10xf32>, vector<10x72xf32>, vector<264x72xf32> -> vector<264x72xf32>
    %5 = vector.extract_strided_slice %0 {offsets = [1, 0], sizes = [264, 10], strides = [1, 1]} : vector<280x10xf32> to vector<264x10xf32>
    %c1 = arith.constant 1 : index
    %c0_4 = arith.constant 0 : index
    %c0_5 = arith.constant 0 : index
    %6 = vector.load %arg2[%c1, %c0_4, %c0_5] : memref<4x10x72xf32, #tpu.memory_space<vmem>>, vector<1x10x72xf32>
    %7 = vector.shape_cast %6 : vector<1x10x72xf32> to vector<10x72xf32>
    %cst_6 = arith.constant dense<0.000000e+00> : vector<264x72xf32>
    %8 = tpu.matmul %5, %7, %cst_6 {dimension_numbers = #tpu.dot_dimension_numbers<[1], [0], [0], [1], [0, 0, 1, 1], [], []>} : vector<264x10xf32>, vector<10x72xf32>, vector<264x72xf32> -> vector<264x72xf32>
    %9 = arith.addf %4, %8 : vector<264x72xf32>
    %10 = vector.extract_strided_slice %0 {offsets = [10, 0], sizes = [264, 10], strides = [1, 1]} : vector<280x10xf32> to vector<264x10xf32>
    %c2 = arith.constant 2 : index
    %c0_7 = arith.constant 0 : index
    %c0_8 = arith.constant 0 : index
    %11 = vector.load %arg2[%c2, %c0_7, %c0_8] : memref<4x10x72xf32, #tpu.memory_space<vmem>>, vector<1x10x72xf32>
    %12 = vector.shape_cast %11 : vector<1x10x72xf32> to vector<10x72xf32>
    %cst_9 = arith.constant dense<0.000000e+00> : vector<264x72xf32>
    %13 = tpu.matmul %10, %12, %cst_9 {dimension_numbers = #tpu.dot_dimension_numbers<[1], [0], [0], [1], [0, 0, 1, 1], [], []>} : vector<264x10xf32>, vector<10x72xf32>, vector<264x72xf32> -> vector<264x72xf32>
    %14 = arith.addf %9, %13 : vector<264x72xf32>
    %15 = vector.extract_strided_slice %0 {offsets = [11, 0], sizes = [264, 10], strides = [1, 1]} : vector<280x10xf32> to vector<264x10xf32>
    %c3 = arith.constant 3 : index
    %c0_10 = arith.constant 0 : index
    %c0_11 = arith.constant 0 : index
    %16 = vector.load %arg2[%c3, %c0_10, %c0_11] : memref<4x10x72xf32, #tpu.memory_space<vmem>>, vector<1x10x72xf32>
    %17 = vector.shape_cast %16 : vector<1x10x72xf32> to vector<10x72xf32>
    %cst_12 = arith.constant dense<0.000000e+00> : vector<264x72xf32>
    %18 = tpu.matmul %15, %17, %cst_12 {dimension_numbers = #tpu.dot_dimension_numbers<[1], [0], [0], [1], [0, 0, 1, 1], [], []>} : vector<264x10xf32>, vector<10x72xf32>, vector<264x72xf32> -> vector<264x72xf32>
    %19 = arith.addf %14, %18 : vector<264x72xf32>
    %c0_13 = arith.constant 0 : index
    %c0_14 = arith.constant 0 : index
    %20 = vector.load %arg3[%c0_13, %c0_14] : memref<1x72xf32, #tpu.memory_space<vmem>>, vector<1x72xf32>
    %21 = vector.broadcast %20 : vector<1x72xf32> to vector<264x72xf32>
    %22 = arith.addf %19, %21 : vector<264x72xf32>
    %cst_15 = arith.constant 0.000000e+00 : f32
    %23 = vector.broadcast %cst_15 : f32 to vector<264x72xf32>
    %24 = arith.maximumf %22, %23 : vector<264x72xf32>
    %25 = vector.extract_strided_slice %24 {offsets = [0, 0], sizes = [248, 72], strides = [1, 1]} : vector<264x72xf32> to vector<248x72xf32>
    %c0_16 = arith.constant 0 : index
    %c0_17 = arith.constant 0 : index
    %c0_18 = arith.constant 0 : index
    %26 = vector.load %arg4[%c0_16, %c0_17, %c0_18] : memref<4x72x128xf32, #tpu.memory_space<vmem>>, vector<1x72x128xf32>
    %27 = vector.shape_cast %26 : vector<1x72x128xf32> to vector<72x128xf32>
    %cst_19 = arith.constant dense<0.000000e+00> : vector<248x128xf32>
    %28 = tpu.matmul %25, %27, %cst_19 {dimension_numbers = #tpu.dot_dimension_numbers<[1], [0], [0], [1], [0, 0, 1, 1], [], []>} : vector<248x72xf32>, vector<72x128xf32>, vector<248x128xf32> -> vector<248x128xf32>
    %29 = vector.extract_strided_slice %24 {offsets = [1, 0], sizes = [248, 72], strides = [1, 1]} : vector<264x72xf32> to vector<248x72xf32>
    %c1_20 = arith.constant 1 : index
    %c0_21 = arith.constant 0 : index
    %c0_22 = arith.constant 0 : index
    %30 = vector.load %arg4[%c1_20, %c0_21, %c0_22] : memref<4x72x128xf32, #tpu.memory_space<vmem>>, vector<1x72x128xf32>
    %31 = vector.shape_cast %30 : vector<1x72x128xf32> to vector<72x128xf32>
    %cst_23 = arith.constant dense<0.000000e+00> : vector<248x128xf32>
    %32 = tpu.matmul %29, %31, %cst_23 {dimension_numbers = #tpu.dot_dimension_numbers<[1], [0], [0], [1], [0, 0, 1, 1], [], []>} : vector<248x72xf32>, vector<72x128xf32>, vector<248x128xf32> -> vector<248x128xf32>
    %33 = arith.addf %28, %32 : vector<248x128xf32>
    %34 = vector.extract_strided_slice %24 {offsets = [10, 0], sizes = [248, 72], strides = [1, 1]} : vector<264x72xf32> to vector<248x72xf32>
    %c2_24 = arith.constant 2 : index
    %c0_25 = arith.constant 0 : index
    %c0_26 = arith.constant 0 : index
    %35 = vector.load %arg4[%c2_24, %c0_25, %c0_26] : memref<4x72x128xf32, #tpu.memory_space<vmem>>, vector<1x72x128xf32>
    %36 = vector.shape_cast %35 : vector<1x72x128xf32> to vector<72x128xf32>
    %cst_27 = arith.constant dense<0.000000e+00> : vector<248x128xf32>
    %37 = tpu.matmul %34, %36, %cst_27 {dimension_numbers = #tpu.dot_dimension_numbers<[1], [0], [0], [1], [0, 0, 1, 1], [], []>} : vector<248x72xf32>, vector<72x128xf32>, vector<248x128xf32> -> vector<248x128xf32>
    %38 = arith.addf %33, %37 : vector<248x128xf32>
    %39 = vector.extract_strided_slice %24 {offsets = [11, 0], sizes = [248, 72], strides = [1, 1]} : vector<264x72xf32> to vector<248x72xf32>
    %c3_28 = arith.constant 3 : index
    %c0_29 = arith.constant 0 : index
    %c0_30 = arith.constant 0 : index
    %40 = vector.load %arg4[%c3_28, %c0_29, %c0_30] : memref<4x72x128xf32, #tpu.memory_space<vmem>>, vector<1x72x128xf32>
    %41 = vector.shape_cast %40 : vector<1x72x128xf32> to vector<72x128xf32>
    %cst_31 = arith.constant dense<0.000000e+00> : vector<248x128xf32>
    %42 = tpu.matmul %39, %41, %cst_31 {dimension_numbers = #tpu.dot_dimension_numbers<[1], [0], [0], [1], [0, 0, 1, 1], [], []>} : vector<248x72xf32>, vector<72x128xf32>, vector<248x128xf32> -> vector<248x128xf32>
    %43 = arith.addf %38, %42 : vector<248x128xf32>
    %c0_32 = arith.constant 0 : index
    %c0_33 = arith.constant 0 : index
    %44 = vector.load %arg5[%c0_32, %c0_33] : memref<1x128xf32, #tpu.memory_space<vmem>>, vector<1x128xf32>
    %45 = vector.broadcast %44 : vector<1x128xf32> to vector<248x128xf32>
    %46 = arith.addf %43, %45 : vector<248x128xf32>
    %cst_34 = arith.constant 0.000000e+00 : f32
    %47 = vector.broadcast %cst_34 : f32 to vector<248x128xf32>
    %48 = arith.maximumf %46, %47 : vector<248x128xf32>
    %49 = vector.extract_strided_slice %48 {offsets = [0, 0], sizes = [232, 128], strides = [1, 1]} : vector<248x128xf32> to vector<232x128xf32>
    %c0_35 = arith.constant 0 : index
    %c0_36 = arith.constant 0 : index
    %c0_37 = arith.constant 0 : index
    %50 = vector.load %arg6[%c0_35, %c0_36, %c0_37] : memref<4x128x224xf32, #tpu.memory_space<vmem>>, vector<1x128x224xf32>
    %51 = vector.shape_cast %50 : vector<1x128x224xf32> to vector<128x224xf32>
    %cst_38 = arith.constant dense<0.000000e+00> : vector<232x224xf32>
    %52 = tpu.matmul %49, %51, %cst_38 {dimension_numbers = #tpu.dot_dimension_numbers<[1], [0], [0], [1], [0, 0, 1, 1], [], []>} : vector<232x128xf32>, vector<128x224xf32>, vector<232x224xf32> -> vector<232x224xf32>
    %53 = vector.extract_strided_slice %48 {offsets = [1, 0], sizes = [232, 128], strides = [1, 1]} : vector<248x128xf32> to vector<232x128xf32>
    %c1_39 = arith.constant 1 : index
    %c0_40 = arith.constant 0 : index
    %c0_41 = arith.constant 0 : index
    %54 = vector.load %arg6[%c1_39, %c0_40, %c0_41] : memref<4x128x224xf32, #tpu.memory_space<vmem>>, vector<1x128x224xf32>
    %55 = vector.shape_cast %54 : vector<1x128x224xf32> to vector<128x224xf32>
    %cst_42 = arith.constant dense<0.000000e+00> : vector<232x224xf32>
    %56 = tpu.matmul %53, %55, %cst_42 {dimension_numbers = #tpu.dot_dimension_numbers<[1], [0], [0], [1], [0, 0, 1, 1], [], []>} : vector<232x128xf32>, vector<128x224xf32>, vector<232x224xf32> -> vector<232x224xf32>
    %57 = arith.addf %52, %56 : vector<232x224xf32>
    %58 = vector.extract_strided_slice %48 {offsets = [10, 0], sizes = [232, 128], strides = [1, 1]} : vector<248x128xf32> to vector<232x128xf32>
    %c2_43 = arith.constant 2 : index
    %c0_44 = arith.constant 0 : index
    %c0_45 = arith.constant 0 : index
    %59 = vector.load %arg6[%c2_43, %c0_44, %c0_45] : memref<4x128x224xf32, #tpu.memory_space<vmem>>, vector<1x128x224xf32>
    %60 = vector.shape_cast %59 : vector<1x128x224xf32> to vector<128x224xf32>
    %cst_46 = arith.constant dense<0.000000e+00> : vector<232x224xf32>
    %61 = tpu.matmul %58, %60, %cst_46 {dimension_numbers = #tpu.dot_dimension_numbers<[1], [0], [0], [1], [0, 0, 1, 1], [], []>} : vector<232x128xf32>, vector<128x224xf32>, vector<232x224xf32> -> vector<232x224xf32>
    %62 = arith.addf %57, %61 : vector<232x224xf32>
    %63 = vector.extract_strided_slice %48 {offsets = [11, 0], sizes = [232, 128], strides = [1, 1]} : vector<248x128xf32> to vector<232x128xf32>
    %c3_47 = arith.constant 3 : index
    %c0_48 = arith.constant 0 : index
    %c0_49 = arith.constant 0 : index
    %64 = vector.load %arg6[%c3_47, %c0_48, %c0_49] : memref<4x128x224xf32, #tpu.memory_space<vmem>>, vector<1x128x224xf32>
    %65 = vector.shape_cast %64 : vector<1x128x224xf32> to vector<128x224xf32>
    %cst_50 = arith.constant dense<0.000000e+00> : vector<232x224xf32>
    %66 = tpu.matmul %63, %65, %cst_50 {dimension_numbers = #tpu.dot_dimension_numbers<[1], [0], [0], [1], [0, 0, 1, 1], [], []>} : vector<232x128xf32>, vector<128x224xf32>, vector<232x224xf32> -> vector<232x224xf32>
    %67 = arith.addf %62, %66 : vector<232x224xf32>
    %c0_51 = arith.constant 0 : index
    %c0_52 = arith.constant 0 : index
    %68 = vector.load %arg7[%c0_51, %c0_52] : memref<1x224xf32, #tpu.memory_space<vmem>>, vector<1x224xf32>
    %69 = vector.broadcast %68 : vector<1x224xf32> to vector<232x224xf32>
    %70 = arith.addf %67, %69 : vector<232x224xf32>
    %cst_53 = arith.constant 0.000000e+00 : f32
    %71 = vector.broadcast %cst_53 : f32 to vector<232x224xf32>
    %72 = arith.maximumf %70, %71 : vector<232x224xf32>
    %73 = vector.extract_strided_slice %72 {offsets = [0, 0], sizes = [216, 224], strides = [1, 1]} : vector<232x224xf32> to vector<216x224xf32>
    %c0_54 = arith.constant 0 : index
    %c0_55 = arith.constant 0 : index
    %c0_56 = arith.constant 0 : index
    %74 = vector.load %arg8[%c0_54, %c0_55, %c0_56] : memref<4x224x96xf32, #tpu.memory_space<vmem>>, vector<1x224x96xf32>
    %75 = vector.shape_cast %74 : vector<1x224x96xf32> to vector<224x96xf32>
    %cst_57 = arith.constant dense<0.000000e+00> : vector<216x96xf32>
    %76 = tpu.matmul %73, %75, %cst_57 {dimension_numbers = #tpu.dot_dimension_numbers<[1], [0], [0], [1], [0, 0, 1, 1], [], []>} : vector<216x224xf32>, vector<224x96xf32>, vector<216x96xf32> -> vector<216x96xf32>
    %77 = vector.extract_strided_slice %72 {offsets = [1, 0], sizes = [216, 224], strides = [1, 1]} : vector<232x224xf32> to vector<216x224xf32>
    %c1_58 = arith.constant 1 : index
    %c0_59 = arith.constant 0 : index
    %c0_60 = arith.constant 0 : index
    %78 = vector.load %arg8[%c1_58, %c0_59, %c0_60] : memref<4x224x96xf32, #tpu.memory_space<vmem>>, vector<1x224x96xf32>
    %79 = vector.shape_cast %78 : vector<1x224x96xf32> to vector<224x96xf32>
    %cst_61 = arith.constant dense<0.000000e+00> : vector<216x96xf32>
    %80 = tpu.matmul %77, %79, %cst_61 {dimension_numbers = #tpu.dot_dimension_numbers<[1], [0], [0], [1], [0, 0, 1, 1], [], []>} : vector<216x224xf32>, vector<224x96xf32>, vector<216x96xf32> -> vector<216x96xf32>
    %81 = arith.addf %76, %80 : vector<216x96xf32>
    %82 = vector.extract_strided_slice %72 {offsets = [10, 0], sizes = [216, 224], strides = [1, 1]} : vector<232x224xf32> to vector<216x224xf32>
    %c2_62 = arith.constant 2 : index
    %c0_63 = arith.constant 0 : index
    %c0_64 = arith.constant 0 : index
    %83 = vector.load %arg8[%c2_62, %c0_63, %c0_64] : memref<4x224x96xf32, #tpu.memory_space<vmem>>, vector<1x224x96xf32>
    %84 = vector.shape_cast %83 : vector<1x224x96xf32> to vector<224x96xf32>
    %cst_65 = arith.constant dense<0.000000e+00> : vector<216x96xf32>
    %85 = tpu.matmul %82, %84, %cst_65 {dimension_numbers = #tpu.dot_dimension_numbers<[1], [0], [0], [1], [0, 0, 1, 1], [], []>} : vector<216x224xf32>, vector<224x96xf32>, vector<216x96xf32> -> vector<216x96xf32>
    %86 = arith.addf %81, %85 : vector<216x96xf32>
    %87 = vector.extract_strided_slice %72 {offsets = [11, 0], sizes = [216, 224], strides = [1, 1]} : vector<232x224xf32> to vector<216x224xf32>
    %c3_66 = arith.constant 3 : index
    %c0_67 = arith.constant 0 : index
    %c0_68 = arith.constant 0 : index
    %88 = vector.load %arg8[%c3_66, %c0_67, %c0_68] : memref<4x224x96xf32, #tpu.memory_space<vmem>>, vector<1x224x96xf32>
    %89 = vector.shape_cast %88 : vector<1x224x96xf32> to vector<224x96xf32>
    %cst_69 = arith.constant dense<0.000000e+00> : vector<216x96xf32>
    %90 = tpu.matmul %87, %89, %cst_69 {dimension_numbers = #tpu.dot_dimension_numbers<[1], [0], [0], [1], [0, 0, 1, 1], [], []>} : vector<216x224xf32>, vector<224x96xf32>, vector<216x96xf32> -> vector<216x96xf32>
    %91 = arith.addf %86, %90 : vector<216x96xf32>
    %c0_70 = arith.constant 0 : index
    %c0_71 = arith.constant 0 : index
    %92 = vector.load %arg9[%c0_70, %c0_71] : memref<1x96xf32, #tpu.memory_space<vmem>>, vector<1x96xf32>
    %93 = vector.broadcast %92 : vector<1x96xf32> to vector<216x96xf32>
    %94 = arith.addf %91, %93 : vector<216x96xf32>
    %cst_72 = arith.constant 0.000000e+00 : f32
    %95 = vector.broadcast %cst_72 : f32 to vector<216x96xf32>
    %96 = arith.maximumf %94, %95 : vector<216x96xf32>
    %97 = vector.extract_strided_slice %96 {offsets = [0, 0], sizes = [200, 96], strides = [1, 1]} : vector<216x96xf32> to vector<200x96xf32>
    %c0_73 = arith.constant 0 : index
    %c0_74 = arith.constant 0 : index
    %c0_75 = arith.constant 0 : index
    %98 = vector.load %arg10[%c0_73, %c0_74, %c0_75] : memref<4x96x40xf32, #tpu.memory_space<vmem>>, vector<1x96x40xf32>
    %99 = vector.shape_cast %98 : vector<1x96x40xf32> to vector<96x40xf32>
    %cst_76 = arith.constant dense<0.000000e+00> : vector<200x40xf32>
    %100 = tpu.matmul %97, %99, %cst_76 {dimension_numbers = #tpu.dot_dimension_numbers<[1], [0], [0], [1], [0, 0, 1, 1], [], []>} : vector<200x96xf32>, vector<96x40xf32>, vector<200x40xf32> -> vector<200x40xf32>
    %101 = vector.extract_strided_slice %96 {offsets = [1, 0], sizes = [200, 96], strides = [1, 1]} : vector<216x96xf32> to vector<200x96xf32>
    %c1_77 = arith.constant 1 : index
    %c0_78 = arith.constant 0 : index
    %c0_79 = arith.constant 0 : index
    %102 = vector.load %arg10[%c1_77, %c0_78, %c0_79] : memref<4x96x40xf32, #tpu.memory_space<vmem>>, vector<1x96x40xf32>
    %103 = vector.shape_cast %102 : vector<1x96x40xf32> to vector<96x40xf32>
    %cst_80 = arith.constant dense<0.000000e+00> : vector<200x40xf32>
    %104 = tpu.matmul %101, %103, %cst_80 {dimension_numbers = #tpu.dot_dimension_numbers<[1], [0], [0], [1], [0, 0, 1, 1], [], []>} : vector<200x96xf32>, vector<96x40xf32>, vector<200x40xf32> -> vector<200x40xf32>
    %105 = arith.addf %100, %104 : vector<200x40xf32>
    %106 = vector.extract_strided_slice %96 {offsets = [10, 0], sizes = [200, 96], strides = [1, 1]} : vector<216x96xf32> to vector<200x96xf32>
    %c2_81 = arith.constant 2 : index
    %c0_82 = arith.constant 0 : index
    %c0_83 = arith.constant 0 : index
    %107 = vector.load %arg10[%c2_81, %c0_82, %c0_83] : memref<4x96x40xf32, #tpu.memory_space<vmem>>, vector<1x96x40xf32>
    %108 = vector.shape_cast %107 : vector<1x96x40xf32> to vector<96x40xf32>
    %cst_84 = arith.constant dense<0.000000e+00> : vector<200x40xf32>
    %109 = tpu.matmul %106, %108, %cst_84 {dimension_numbers = #tpu.dot_dimension_numbers<[1], [0], [0], [1], [0, 0, 1, 1], [], []>} : vector<200x96xf32>, vector<96x40xf32>, vector<200x40xf32> -> vector<200x40xf32>
    %110 = arith.addf %105, %109 : vector<200x40xf32>
    %111 = vector.extract_strided_slice %96 {offsets = [11, 0], sizes = [200, 96], strides = [1, 1]} : vector<216x96xf32> to vector<200x96xf32>
    %c3_85 = arith.constant 3 : index
    %c0_86 = arith.constant 0 : index
    %c0_87 = arith.constant 0 : index
    %112 = vector.load %arg10[%c3_85, %c0_86, %c0_87] : memref<4x96x40xf32, #tpu.memory_space<vmem>>, vector<1x96x40xf32>
    %113 = vector.shape_cast %112 : vector<1x96x40xf32> to vector<96x40xf32>
    %cst_88 = arith.constant dense<0.000000e+00> : vector<200x40xf32>
    %114 = tpu.matmul %111, %113, %cst_88 {dimension_numbers = #tpu.dot_dimension_numbers<[1], [0], [0], [1], [0, 0, 1, 1], [], []>} : vector<200x96xf32>, vector<96x40xf32>, vector<200x40xf32> -> vector<200x40xf32>
    %115 = arith.addf %110, %114 : vector<200x40xf32>
    %c0_89 = arith.constant 0 : index
    %c0_90 = arith.constant 0 : index
    %116 = vector.load %arg11[%c0_89, %c0_90] : memref<1x40xf32, #tpu.memory_space<vmem>>, vector<1x40xf32>
    %117 = vector.broadcast %116 : vector<1x40xf32> to vector<200x40xf32>
    %118 = arith.addf %115, %117 : vector<200x40xf32>
    %cst_91 = arith.constant 0.000000e+00 : f32
    %119 = vector.broadcast %cst_91 : f32 to vector<200x40xf32>
    %120 = arith.maximumf %118, %119 : vector<200x40xf32>
    %121 = vector.extract_strided_slice %120 {offsets = [0, 0], sizes = [5, 40], strides = [1, 1]} : vector<200x40xf32> to vector<5x40xf32>
    %122 = vector.extract_strided_slice %120 {offsets = [10, 0], sizes = [5, 40], strides = [1, 1]} : vector<200x40xf32> to vector<5x40xf32>
    %123 = vector.extract_strided_slice %120 {offsets = [20, 0], sizes = [5, 40], strides = [1, 1]} : vector<200x40xf32> to vector<5x40xf32>
    %124 = vector.extract_strided_slice %120 {offsets = [30, 0], sizes = [5, 40], strides = [1, 1]} : vector<200x40xf32> to vector<5x40xf32>
    %125 = vector.extract_strided_slice %120 {offsets = [40, 0], sizes = [5, 40], strides = [1, 1]} : vector<200x40xf32> to vector<5x40xf32>
    %126 = vector.extract_strided_slice %120 {offsets = [100, 0], sizes = [5, 40], strides = [1, 1]} : vector<200x40xf32> to vector<5x40xf32>
    %127 = vector.extract_strided_slice %120 {offsets = [110, 0], sizes = [5, 40], strides = [1, 1]} : vector<200x40xf32> to vector<5x40xf32>
    %128 = vector.extract_strided_slice %120 {offsets = [120, 0], sizes = [5, 40], strides = [1, 1]} : vector<200x40xf32> to vector<5x40xf32>
    %129 = vector.extract_strided_slice %120 {offsets = [130, 0], sizes = [5, 40], strides = [1, 1]} : vector<200x40xf32> to vector<5x40xf32>
    %130 = vector.extract_strided_slice %120 {offsets = [140, 0], sizes = [5, 40], strides = [1, 1]} : vector<200x40xf32> to vector<5x40xf32>
    %131 = tpu.concatenate %121, %122, %123, %124, %125, %126, %127, %128, %129, %130 in 0 : vector<5x40xf32>, vector<5x40xf32>, vector<5x40xf32>, vector<5x40xf32>, vector<5x40xf32>, vector<5x40xf32>, vector<5x40xf32>, vector<5x40xf32>, vector<5x40xf32>, vector<5x40xf32> -> vector<50x40xf32>
    %132 = vector.extract_strided_slice %131 {offsets = [0, 0], sizes = [1, 40], strides = [1, 1]} : vector<50x40xf32> to vector<1x40xf32>
    %133 = vector.extract_strided_slice %131 {offsets = [1, 0], sizes = [1, 40], strides = [1, 1]} : vector<50x40xf32> to vector<1x40xf32>
    %134 = vector.extract_strided_slice %131 {offsets = [2, 0], sizes = [1, 40], strides = [1, 1]} : vector<50x40xf32> to vector<1x40xf32>
    %135 = vector.extract_strided_slice %131 {offsets = [3, 0], sizes = [1, 40], strides = [1, 1]} : vector<50x40xf32> to vector<1x40xf32>
    %136 = vector.extract_strided_slice %131 {offsets = [4, 0], sizes = [1, 40], strides = [1, 1]} : vector<50x40xf32> to vector<1x40xf32>
    %137 = vector.extract_strided_slice %131 {offsets = [5, 0], sizes = [1, 40], strides = [1, 1]} : vector<50x40xf32> to vector<1x40xf32>
    %138 = vector.extract_strided_slice %131 {offsets = [6, 0], sizes = [1, 40], strides = [1, 1]} : vector<50x40xf32> to vector<1x40xf32>
    %139 = vector.extract_strided_slice %131 {offsets = [7, 0], sizes = [1, 40], strides = [1, 1]} : vector<50x40xf32> to vector<1x40xf32>
    %140 = vector.extract_strided_slice %131 {offsets = [8, 0], sizes = [1, 40], strides = [1, 1]} : vector<50x40xf32> to vector<1x40xf32>
    %141 = vector.extract_strided_slice %131 {offsets = [9, 0], sizes = [1, 40], strides = [1, 1]} : vector<50x40xf32> to vector<1x40xf32>
    %142 = vector.extract_strided_slice %131 {offsets = [10, 0], sizes = [1, 40], strides = [1, 1]} : vector<50x40xf32> to vector<1x40xf32>
    %143 = vector.extract_strided_slice %131 {offsets = [11, 0], sizes = [1, 40], strides = [1, 1]} : vector<50x40xf32> to vector<1x40xf32>
    %144 = vector.extract_strided_slice %131 {offsets = [12, 0], sizes = [1, 40], strides = [1, 1]} : vector<50x40xf32> to vector<1x40xf32>
    %145 = vector.extract_strided_slice %131 {offsets = [13, 0], sizes = [1, 40], strides = [1, 1]} : vector<50x40xf32> to vector<1x40xf32>
    %146 = vector.extract_strided_slice %131 {offsets = [14, 0], sizes = [1, 40], strides = [1, 1]} : vector<50x40xf32> to vector<1x40xf32>
    %147 = vector.extract_strided_slice %131 {offsets = [15, 0], sizes = [1, 40], strides = [1, 1]} : vector<50x40xf32> to vector<1x40xf32>
    %148 = vector.extract_strided_slice %131 {offsets = [16, 0], sizes = [1, 40], strides = [1, 1]} : vector<50x40xf32> to vector<1x40xf32>
    %149 = vector.extract_strided_slice %131 {offsets = [17, 0], sizes = [1, 40], strides = [1, 1]} : vector<50x40xf32> to vector<1x40xf32>
    %150 = vector.extract_strided_slice %131 {offsets = [18, 0], sizes = [1, 40], strides = [1, 1]} : vector<50x40xf32> to vector<1x40xf32>
    %151 = vector.extract_strided_slice %131 {offsets = [19, 0], sizes = [1, 40], strides = [1, 1]} : vector<50x40xf32> to vector<1x40xf32>
    %152 = vector.extract_strided_slice %131 {offsets = [20, 0], sizes = [1, 40], strides = [1, 1]} : vector<50x40xf32> to vector<1x40xf32>
    %153 = vector.extract_strided_slice %131 {offsets = [21, 0], sizes = [1, 40], strides = [1, 1]} : vector<50x40xf32> to vector<1x40xf32>
    %154 = vector.extract_strided_slice %131 {offsets = [22, 0], sizes = [1, 40], strides = [1, 1]} : vector<50x40xf32> to vector<1x40xf32>
    %155 = vector.extract_strided_slice %131 {offsets = [23, 0], sizes = [1, 40], strides = [1, 1]} : vector<50x40xf32> to vector<1x40xf32>
    %156 = vector.extract_strided_slice %131 {offsets = [24, 0], sizes = [1, 40], strides = [1, 1]} : vector<50x40xf32> to vector<1x40xf32>
    %157 = tpu.concatenate %132, %133, %134, %135, %136, %137, %138, %139, %140, %141, %142, %143, %144, %145, %146, %147 in 1 : vector<1x40xf32>, vector<1x40xf32>, vector<1x40xf32>, vector<1x40xf32>, vector<1x40xf32>, vector<1x40xf32>, vector<1x40xf32>, vector<1x40xf32>, vector<1x40xf32>, vector<1x40xf32>, vector<1x40xf32>, vector<1x40xf32>, vector<1x40xf32>, vector<1x40xf32>, vector<1x40xf32>, vector<1x40xf32> -> vector<1x640xf32>
    %158 = tpu.concatenate %148, %149, %150, %151, %152, %153, %154, %155, %156 in 1 : vector<1x40xf32>, vector<1x40xf32>, vector<1x40xf32>, vector<1x40xf32>, vector<1x40xf32>, vector<1x40xf32>, vector<1x40xf32>, vector<1x40xf32>, vector<1x40xf32> -> vector<1x360xf32>
    %159 = tpu.concatenate %157, %158 in 1 : vector<1x640xf32>, vector<1x360xf32> -> vector<1x1000xf32>
    %160 = vector.extract_strided_slice %131 {offsets = [25, 0], sizes = [1, 40], strides = [1, 1]} : vector<50x40xf32> to vector<1x40xf32>
    %161 = vector.extract_strided_slice %131 {offsets = [26, 0], sizes = [1, 40], strides = [1, 1]} : vector<50x40xf32> to vector<1x40xf32>
    %162 = vector.extract_strided_slice %131 {offsets = [27, 0], sizes = [1, 40], strides = [1, 1]} : vector<50x40xf32> to vector<1x40xf32>
    %163 = vector.extract_strided_slice %131 {offsets = [28, 0], sizes = [1, 40], strides = [1, 1]} : vector<50x40xf32> to vector<1x40xf32>
    %164 = vector.extract_strided_slice %131 {offsets = [29, 0], sizes = [1, 40], strides = [1, 1]} : vector<50x40xf32> to vector<1x40xf32>
    %165 = vector.extract_strided_slice %131 {offsets = [30, 0], sizes = [1, 40], strides = [1, 1]} : vector<50x40xf32> to vector<1x40xf32>
    %166 = vector.extract_strided_slice %131 {offsets = [31, 0], sizes = [1, 40], strides = [1, 1]} : vector<50x40xf32> to vector<1x40xf32>
    %167 = vector.extract_strided_slice %131 {offsets = [32, 0], sizes = [1, 40], strides = [1, 1]} : vector<50x40xf32> to vector<1x40xf32>
    %168 = vector.extract_strided_slice %131 {offsets = [33, 0], sizes = [1, 40], strides = [1, 1]} : vector<50x40xf32> to vector<1x40xf32>
    %169 = vector.extract_strided_slice %131 {offsets = [34, 0], sizes = [1, 40], strides = [1, 1]} : vector<50x40xf32> to vector<1x40xf32>
    %170 = vector.extract_strided_slice %131 {offsets = [35, 0], sizes = [1, 40], strides = [1, 1]} : vector<50x40xf32> to vector<1x40xf32>
    %171 = vector.extract_strided_slice %131 {offsets = [36, 0], sizes = [1, 40], strides = [1, 1]} : vector<50x40xf32> to vector<1x40xf32>
    %172 = vector.extract_strided_slice %131 {offsets = [37, 0], sizes = [1, 40], strides = [1, 1]} : vector<50x40xf32> to vector<1x40xf32>
    %173 = vector.extract_strided_slice %131 {offsets = [38, 0], sizes = [1, 40], strides = [1, 1]} : vector<50x40xf32> to vector<1x40xf32>
    %174 = vector.extract_strided_slice %131 {offsets = [39, 0], sizes = [1, 40], strides = [1, 1]} : vector<50x40xf32> to vector<1x40xf32>
    %175 = vector.extract_strided_slice %131 {offsets = [40, 0], sizes = [1, 40], strides = [1, 1]} : vector<50x40xf32> to vector<1x40xf32>
    %176 = vector.extract_strided_slice %131 {offsets = [41, 0], sizes = [1, 40], strides = [1, 1]} : vector<50x40xf32> to vector<1x40xf32>
    %177 = vector.extract_strided_slice %131 {offsets = [42, 0], sizes = [1, 40], strides = [1, 1]} : vector<50x40xf32> to vector<1x40xf32>
    %178 = vector.extract_strided_slice %131 {offsets = [43, 0], sizes = [1, 40], strides = [1, 1]} : vector<50x40xf32> to vector<1x40xf32>
    %179 = vector.extract_strided_slice %131 {offsets = [44, 0], sizes = [1, 40], strides = [1, 1]} : vector<50x40xf32> to vector<1x40xf32>
    %180 = vector.extract_strided_slice %131 {offsets = [45, 0], sizes = [1, 40], strides = [1, 1]} : vector<50x40xf32> to vector<1x40xf32>
    %181 = vector.extract_strided_slice %131 {offsets = [46, 0], sizes = [1, 40], strides = [1, 1]} : vector<50x40xf32> to vector<1x40xf32>
    %182 = vector.extract_strided_slice %131 {offsets = [47, 0], sizes = [1, 40], strides = [1, 1]} : vector<50x40xf32> to vector<1x40xf32>
    %183 = vector.extract_strided_slice %131 {offsets = [48, 0], sizes = [1, 40], strides = [1, 1]} : vector<50x40xf32> to vector<1x40xf32>
    %184 = vector.extract_strided_slice %131 {offsets = [49, 0], sizes = [1, 40], strides = [1, 1]} : vector<50x40xf32> to vector<1x40xf32>
    %185 = tpu.concatenate %160, %161, %162, %163, %164, %165, %166, %167, %168, %169, %170, %171, %172, %173, %174, %175 in 1 : vector<1x40xf32>, vector<1x40xf32>, vector<1x40xf32>, vector<1x40xf32>, vector<1x40xf32>, vector<1x40xf32>, vector<1x40xf32>, vector<1x40xf32>, vector<1x40xf32>, vector<1x40xf32>, vector<1x40xf32>, vector<1x40xf32>, vector<1x40xf32>, vector<1x40xf32>, vector<1x40xf32>, vector<1x40xf32> -> vector<1x640xf32>
    %186 = tpu.concatenate %176, %177, %178, %179, %180, %181, %182, %183, %184 in 1 : vector<1x40xf32>, vector<1x40xf32>, vector<1x40xf32>, vector<1x40xf32>, vector<1x40xf32>, vector<1x40xf32>, vector<1x40xf32>, vector<1x40xf32>, vector<1x40xf32> -> vector<1x360xf32>
    %187 = tpu.concatenate %185, %186 in 1 : vector<1x640xf32>, vector<1x360xf32> -> vector<1x1000xf32>
    %188 = tpu.concatenate %159, %187 in 0 : vector<1x1000xf32>, vector<1x1000xf32> -> vector<2x1000xf32>
    %189 = arith.truncf %188 : vector<2x1000xf32> to vector<2x1000xbf16>
    %c0_92 = arith.constant 0 : index
    %c0_93 = arith.constant 0 : index
    %190 = vector.load %arg12[%c0_92, %c0_93] : memref<1000x500xbf16, #tpu.memory_space<vmem>>, vector<1000x500xbf16>
    %cst_94 = arith.constant dense<0.000000e+00> : vector<2x500xf32>
    %191 = tpu.matmul %189, %190, %cst_94 {dimension_numbers = #tpu.dot_dimension_numbers<[1], [0], [0], [1], [0, 0, 1, 1], [], []>} : vector<2x1000xbf16>, vector<1000x500xbf16>, vector<2x500xf32> -> vector<2x500xf32>
    %c0_95 = arith.constant 0 : index
    %c0_96 = arith.constant 0 : index
    %192 = vector.load %arg13[%c0_95, %c0_96] : memref<1x500xf32, #tpu.memory_space<vmem>>, vector<1x500xf32>
    %193 = vector.broadcast %192 : vector<1x500xf32> to vector<2x500xf32>
    %194 = arith.addf %191, %193 : vector<2x500xf32>
    %cst_97 = arith.constant 0.000000e+00 : f32
    %195 = vector.broadcast %cst_97 : f32 to vector<2x500xf32>
    %196 = arith.maximumf %194, %195 : vector<2x500xf32>
    %c0_98 = arith.constant 0 : index
    %c0_99 = arith.constant 0 : index
    %197 = vector.load %arg14[%c0_98, %c0_99] : memref<500x1xf32, #tpu.memory_space<vmem>>, vector<500x1xf32>
    %cst_100 = arith.constant dense<0.000000e+00> : vector<2x1xf32>
    %198 = tpu.matmul %196, %197, %cst_100 {dimension_numbers = #tpu.dot_dimension_numbers<[1], [0], [0], [1], [0, 0, 1, 1], [], []>} : vector<2x500xf32>, vector<500x1xf32>, vector<2x1xf32> -> vector<2x1xf32>
    %c0_101 = arith.constant 0 : index
    %c0_102 = arith.constant 0 : index
    %199 = vector.load %arg15[%c0_101, %c0_102] : memref<1x1xf32, #tpu.memory_space<vmem>>, vector<1x1xf32>
    %200 = vector.broadcast %199 : vector<1x1xf32> to vector<2x1xf32>
    %201 = arith.addf %198, %200 : vector<2x1xf32>
    %c0_103 = arith.constant 0 : index
    %c0_104 = arith.constant 0 : index
    %202 = vector.load %arg16[%c0_103, %c0_104] : memref<2x1xf32, #tpu.memory_space<vmem>>, vector<2x1xf32>
    tpu.vector_store %arg16[%c0_103, %c0_104], %201 {strides = array<i32>} : memref<2x1xf32, #tpu.memory_space<vmem>>, vector<2x1xf32>,
    return
  }
  func.func @transform_0(%arg0: i32) -> (i32, i32) {
    %c0_i32 = arith.constant 0 : i32
    %c0_i32_0 = arith.constant 0 : i32
    %c0_i32_1 = arith.constant 0 : i32
    return %c0_i32, %c0_i32_0 : i32, i32
  }
  func.func @transform_1(%arg0: i32) -> (i32, i32, i32) {
    %c0_i32 = arith.constant 0 : i32
    %c0_i32_0 = arith.constant 0 : i32
    %c0_i32_1 = arith.constant 0 : i32
    %c0_i32_2 = arith.constant 0 : i32
    return %c0_i32, %c0_i32_0, %c0_i32_1 : i32, i32, i32
  }
  func.func @transform_2(%arg0: i32) -> (i32, i32) {
    %c0_i32 = arith.constant 0 : i32
    %c0_i32_0 = arith.constant 0 : i32
    %c0_i32_1 = arith.constant 0 : i32
    return %c0_i32, %c0_i32_0 : i32, i32
  }
  func.func @transform_3(%arg0: i32) -> (i32, i32, i32) {
    %c0_i32 = arith.constant 0 : i32
    %c0_i32_0 = arith.constant 0 : i32
    %c0_i32_1 = arith.constant 0 : i32
    %c0_i32_2 = arith.constant 0 : i32
    return %c0_i32, %c0_i32_0, %c0_i32_1 : i32, i32, i32
  }
  func.func @transform_4(%arg0: i32) -> (i32, i32) {
    %c0_i32 = arith.constant 0 : i32
    %c0_i32_0 = arith.constant 0 : i32
    %c0_i32_1 = arith.constant 0 : i32
    return %c0_i32, %c0_i32_0 : i32, i32
  }
  func.func @transform_5(%arg0: i32) -> (i32, i32, i32) {
    %c0_i32 = arith.constant 0 : i32
    %c0_i32_0 = arith.constant 0 : i32
    %c0_i32_1 = arith.constant 0 : i32
    %c0_i32_2 = arith.constant 0 : i32
    return %c0_i32, %c0_i32_0, %c0_i32_1 : i32, i32, i32
  }
  func.func @transform_6(%arg0: i32) -> (i32, i32) {
    %c0_i32 = arith.constant 0 : i32
    %c0_i32_0 = arith.constant 0 : i32
    %c0_i32_1 = arith.constant 0 : i32
    return %c0_i32, %c0_i32_0 : i32, i32
  }
  func.func @transform_7(%arg0: i32) -> (i32, i32, i32) {
    %c0_i32 = arith.constant 0 : i32
    %c0_i32_0 = arith.constant 0 : i32
    %c0_i32_1 = arith.constant 0 : i32
    %c0_i32_2 = arith.constant 0 : i32
    return %c0_i32, %c0_i32_0, %c0_i32_1 : i32, i32, i32
  }
  func.func @transform_8(%arg0: i32) -> (i32, i32) {
    %c0_i32 = arith.constant 0 : i32
    %c0_i32_0 = arith.constant 0 : i32
    %c0_i32_1 = arith.constant 0 : i32
    return %c0_i32, %c0_i32_0 : i32, i32
  }
  func.func @transform_9(%arg0: i32) -> (i32, i32, i32) {
    %c0_i32 = arith.constant 0 : i32
    %c0_i32_0 = arith.constant 0 : i32
    %c0_i32_1 = arith.constant 0 : i32
    %c0_i32_2 = arith.constant 0 : i32
    return %c0_i32, %c0_i32_0, %c0_i32_1 : i32, i32, i32
  }
  func.func @transform_10(%arg0: i32) -> (i32, i32) {
    %c0_i32 = arith.constant 0 : i32
    %c0_i32_0 = arith.constant 0 : i32
    %c0_i32_1 = arith.constant 0 : i32
    return %c0_i32, %c0_i32_0 : i32, i32
  }
  func.func @transform_11(%arg0: i32) -> (i32, i32) {
    %c0_i32 = arith.constant 0 : i32
    %c0_i32_0 = arith.constant 0 : i32
    %c0_i32_1 = arith.constant 0 : i32
    return %c0_i32, %c0_i32_0 : i32, i32
  }
  func.func @transform_12(%arg0: i32) -> (i32, i32) {
    %c0_i32 = arith.constant 0 : i32
    %c0_i32_0 = arith.constant 0 : i32
    %c0_i32_1 = arith.constant 0 : i32
    return %c0_i32, %c0_i32_0 : i32, i32
  }
  func.func @transform_13(%arg0: i32) -> (i32, i32) {
    %c0_i32 = arith.constant 0 : i32
    %c0_i32_0 = arith.constant 0 : i32
    %c0_i32_1 = arith.constant 0 : i32
    return %c0_i32, %c0_i32_0 : i32, i32
  }
  func.func @transform_14(%arg0: i32) -> (i32, i32) {
    %c0_i32 = arith.constant 0 : i32
    %c0_i32_0 = arith.constant 0 : i32
    %c0_i32_1 = arith.constant 0 : i32
    return %c0_i32, %c0_i32_0 : i32, i32
  }
  func.func @transform_15(%arg0: i32) -> (i32, i32) {
    %c0_i32 = arith.constant 0 : i32
    %c0_i32_0 = arith.constant 0 : i32
    %c0_i32_1 = arith.constant 0 : i32
    return %c0_i32, %c0_i32_0 : i32, i32
  }
}

</mosaic_0001>

<llo_original>
// kernel: sandnet_forward.1
$region0: #{sandnet_forward.1}
  #allocation0 [shape = 'u32[]', space=smem, size = 0x4, offset = 0x4, fixed_abs, tag = 'smem constant byte address 0x4 - core index']
  #allocation1 [shape = 'u32[144,128]{1,0:T(1,128)}', space=vmem, size = 0x12000, scoped, tag = 'internal scratch']
  #allocation2 [shape = 'f32[1,1]{1,0:T(1,128)S(1)}', space=vmem, size = 0x200, scoped, tag = 'scoped memory for sandnet_forward.1']
  %s0 = inlined_call_operand.vmem [shape: f32[280,10], index: 0, kind: input, shape index: {}]
  %s1 = inlined_call_operand.vmem [shape: f32[4,10,72], index: 1, kind: input, shape index: {}]
  %s2 = inlined_call_operand.vmem [shape: f32[1,72], index: 2, kind: input, shape index: {}]
  %s3 = inlined_call_operand.vmem [shape: f32[4,72,128], index: 3, kind: input, shape index: {}]
  %s4 = inlined_call_operand.vmem [shape: f32[1,128], index: 4, kind: input, shape index: {}]
  %s5 = inlined_call_operand.vmem [shape: f32[4,128,224], index: 5, kind: input, shape index: {}]
  %s6 = inlined_call_operand.vmem [shape: f32[1,224], index: 6, kind: input, shape index: {}]
  %s7 = inlined_call_operand.vmem [shape: f32[4,224,96], index: 7, kind: input, shape index: {}]
  %s8 = inlined_call_operand.vmem [shape: f32[1,96], index: 8, kind: input, shape index: {}]
  %s9 = inlined_call_operand.vmem [shape: f32[4,96,40], index: 9, kind: input, shape index: {}]
  %s10 = inlined_call_operand.vmem [shape: f32[1,40], index: 10, kind: input, shape index: {}]
  %s11 = inlined_call_operand.vmem [shape: bf16[1000,500], index: 11, kind: input, shape index: {}]
  %s12 = inlined_call_operand.vmem [shape: f32[1,500], index: 12, kind: input, shape index: {}]
  %s13 = inlined_call_operand.vmem [shape: f32[500,1], index: 13, kind: input, shape index: {}]
  %s14 = inlined_call_operand.<no memory space> [shape: f32[1,1], index: 14, kind: input, shape index: {}]
  %s15 = inlined_call_operand.vmem [shape: f32[2,1], index: 15, kind: output, shape index: {}]
  %s16 = sld [smem:[#allocation0]]
  $region70: #{sandnet_forward.1} parent=0
    _
  %s18 = ssub.s32 1, %s16
  %s19 = scalar_select 0, %s18, %s16
  %v20 = vstv %s14
  %21 = vst [vmem:[#allocation2] sm:$0x1] %v20
  // Predicated region
  $region2: #{sandnet_forward.1} parent=0 // pred_check
    _
  $region3: #{sandnet_forward.1} parent=0 // pred_check_branch
    %23 = sbr.rel (0) target = $region5
  $region4: #{sandnet_forward.1} parent=0 // pred_region
    _
  $region5: #{sandnet_forward.1} parent=0 // pred_fallthru
    _
  // Predicated region
  $region6: #{sandnet_forward.1} parent=0 // pred_check
    _
  $region7: #{sandnet_forward.1} parent=0 // pred_check_branch
    %25 = sbr.rel (0) target = $region9
  $region8: #{sandnet_forward.1} parent=0 // pred_region
    _
  $region9: #{sandnet_forward.1} parent=0 // pred_fallthru
    _
  // Predicated region
  $region10: #{sandnet_forward.1} parent=0 // pred_check
    _
  $region11: #{sandnet_forward.1} parent=0 // pred_check_branch
    %27 = sbr.rel (0) target = $region13
  $region12: #{sandnet_forward.1} parent=0 // pred_region
    _
  $region13: #{sandnet_forward.1} parent=0 // pred_fallthru
    _
  // Predicated region
  $region14: #{sandnet_forward.1} parent=0 // pred_check
    _
  $region15: #{sandnet_forward.1} parent=0 // pred_check_branch
    %29 = sbr.rel (0) target = $region17
  $region16: #{sandnet_forward.1} parent=0 // pred_region
    _
  $region17: #{sandnet_forward.1} parent=0 // pred_fallthru
    _
  // Predicated region
  $region18: #{sandnet_forward.1} parent=0 // pred_check
    _
  $region19: #{sandnet_forward.1} parent=0 // pred_check_branch
    %31 = sbr.rel (0) target = $region21
  $region20: #{sandnet_forward.1} parent=0 // pred_region
    _
  $region21: #{sandnet_forward.1} parent=0 // pred_fallthru
    _
  // Predicated region
  $region22: #{sandnet_forward.1} parent=0 // pred_check
    _
  $region23: #{sandnet_forward.1} parent=0 // pred_check_branch
    %33 = sbr.rel (0) target = $region25
  $region24: #{sandnet_forward.1} parent=0 // pred_region
    _
  $region25: #{sandnet_forward.1} parent=0 // pred_fallthru
    _
  // Predicated region
  $region26: #{sandnet_forward.1} parent=0 // pred_check
    _
  $region27: #{sandnet_forward.1} parent=0 // pred_check_branch
    %35 = sbr.rel (0) target = $region29
  $region28: #{sandnet_forward.1} parent=0 // pred_region
    _
  $region29: #{sandnet_forward.1} parent=0 // pred_fallthru
    _
  // Predicated region
  $region30: #{sandnet_forward.1} parent=0 // pred_check
    _
  $region31: #{sandnet_forward.1} parent=0 // pred_check_branch
    %37 = sbr.rel (0) target = $region33
  $region32: #{sandnet_forward.1} parent=0 // pred_region
    _
  $region33: #{sandnet_forward.1} parent=0 // pred_fallthru
    _
  // Predicated region
  $region34: #{sandnet_forward.1} parent=0 // pred_check
    _
  $region35: #{sandnet_forward.1} parent=0 // pred_check_branch
    %39 = sbr.rel (0) target = $region37
  $region36: #{sandnet_forward.1} parent=0 // pred_region
    _
  $region37: #{sandnet_forward.1} parent=0 // pred_fallthru
    _
  // Predicated region
  $region38: #{sandnet_forward.1} parent=0 // pred_check
    _
  $region39: #{sandnet_forward.1} parent=0 // pred_check_branch
    %41 = sbr.rel (0) target = $region41
  $region40: #{sandnet_forward.1} parent=0 // pred_region
    _
  $region41: #{sandnet_forward.1} parent=0 // pred_fallthru
    _
  // Predicated region
  $region42: #{sandnet_forward.1} parent=0 // pred_check
    _
  $region43: #{sandnet_forward.1} parent=0 // pred_check_branch
    %43 = sbr.rel (0) target = $region45
  $region44: #{sandnet_forward.1} parent=0 // pred_region
    _
  $region45: #{sandnet_forward.1} parent=0 // pred_fallthru
    _
  // Predicated region
  $region46: #{sandnet_forward.1} parent=0 // pred_check
    _
  $region47: #{sandnet_forward.1} parent=0 // pred_check_branch
    %45 = sbr.rel (0) target = $region49
  $region48: #{sandnet_forward.1} parent=0 // pred_region
    _
  $region49: #{sandnet_forward.1} parent=0 // pred_fallthru
    _
  // Predicated region
  $region50: #{sandnet_forward.1} parent=0 // pred_check
    _
  $region51: #{sandnet_forward.1} parent=0 // pred_check_branch
    %47 = sbr.rel (0) target = $region53
  $region52: #{sandnet_forward.1} parent=0 // pred_region
    _
  $region53: #{sandnet_forward.1} parent=0 // pred_fallthru
    _
  // Predicated region
  $region54: #{sandnet_forward.1} parent=0 // pred_check
    _
  $region55: #{sandnet_forward.1} parent=0 // pred_check_branch
    %49 = sbr.rel (0) target = $region57
  $region56: #{sandnet_forward.1} parent=0 // pred_region
    _
  $region57: #{sandnet_forward.1} parent=0 // pred_fallthru
    _
  // Predicated region
  $region58: #{sandnet_forward.1} parent=0 // pred_check
    _
  $region59: #{sandnet_forward.1} parent=0 // pred_check_branch
    %51 = sbr.rel (0) target = $region61
  $region60: #{sandnet_forward.1} parent=0 // pred_region
    _
  $region61: #{sandnet_forward.1} parent=0 // pred_fallthru
    _
  %v53 = vld [vmem:[%s0] sm:$0xff]
  %v54 = vld [vmem:[%s0 + $0x8] sm:$0xff]
  %v55 = vld [vmem:[%s0 + $0x10] sm:$0xff]
  %v56 = vld [vmem:[%s0 + $0x18] sm:$0xff]
  %v57 = vld [vmem:[%s0 + $0x20] sm:$0xff]
  %v58 = vld [vmem:[%s0 + $0x28] sm:$0xff]
  %v59 = vld [vmem:[%s0 + $0x30] sm:$0xff]
  %v60 = vld [vmem:[%s0 + $0x38] sm:$0xff]
  %v61 = vld [vmem:[%s0 + $0x40] sm:$0xff]
  %v62 = vld [vmem:[%s0 + $0x48] sm:$0xff]
  %v63 = vld [vmem:[%s0 + $0x50] sm:$0xff]
  %v64 = vld [vmem:[%s0 + $0x58] sm:$0xff]
  %v65 = vld [vmem:[%s0 + $0x60] sm:$0xff]
  %v66 = vld [vmem:[%s0 + $0x68] sm:$0xff]
  %v67 = vld [vmem:[%s0 + $0x70] sm:$0xff]
  %v68 = vld [vmem:[%s0 + $0x78] sm:$0xff]
  %v69 = vld [vmem:[%s0 + $0x80] sm:$0xff]
  %v70 = vld [vmem:[%s0 + $0x88] sm:$0xff]
  %v71 = vld [vmem:[%s0 + $0x90] sm:$0xff]
  %v72 = vld [vmem:[%s0 + $0x98] sm:$0xff]
  %v73 = vld [vmem:[%s0 + $0xa0] sm:$0xff]
  %v74 = vld [vmem:[%s0 + $0xa8] sm:$0xff]
  %v75 = vld [vmem:[%s0 + $0xb0] sm:$0xff]
  %v76 = vld [vmem:[%s0 + $0xb8] sm:$0xff]
  %v77 = vld [vmem:[%s0 + $0xc0] sm:$0xff]
  %v78 = vld [vmem:[%s0 + $0xc8] sm:$0xff]
  %v79 = vld [vmem:[%s0 + $0xd0] sm:$0xff]
  %v80 = vld [vmem:[%s0 + $0xd8] sm:$0xff]
  %v81 = vld [vmem:[%s0 + $0xe0] sm:$0xff]
  %v82 = vld [vmem:[%s0 + $0xe8] sm:$0xff]
  %v83 = vld [vmem:[%s0 + $0xf0] sm:$0xff]
  %v84 = vld [vmem:[%s0 + $0xf8] sm:$0xff]
  %v85 = vld [vmem:[%s0 + $0x100] sm:$0xff]
  %v86 = vld [vmem:[%s0 + $0x108] sm:$0xff]
  %v87 = vld [vmem:[%s0 + $0x110] sm:$0xff]
  %v88 = vld [vmem:[%s1] sm:$0xff]
  %v89 = vld [vmem:[%s1 + $0x8] sm:$0x3]
  %s90 = scalar_lea.vmem %s1, 16
  %v91 = vld [vmem:[%s90] sm:$0xff]
  %v92 = vld [vmem:[%s90 + $0x8] sm:$0x3]
  %vm127 = vcmask 1046528
  %v128 = vrot.slane %v53, 1
  %v129 = vrot.slane %v54, 1
  %v130 = vsel %vm127, %v128, %v129
  %v131 = vrot.slane %v55, 1
  %v132 = vsel %vm127, %v129, %v131
  %v133 = vrot.slane %v56, 1
  %v134 = vsel %vm127, %v131, %v133
  %v135 = vrot.slane %v57, 1
  %v136 = vsel %vm127, %v133, %v135
  %v137 = vrot.slane %v58, 1
  %v138 = vsel %vm127, %v135, %v137
  %v139 = vrot.slane %v59, 1
  %v140 = vsel %vm127, %v137, %v139
  %v141 = vrot.slane %v60, 1
  %v142 = vsel %vm127, %v139, %v141
  %v143 = vrot.slane %v61, 1
  %v144 = vsel %vm127, %v141, %v143
  %v145 = vrot.slane %v62, 1
  %v146 = vsel %vm127, %v143, %v145
  %v147 = vrot.slane %v63, 1
  %v148 = vsel %vm127, %v145, %v147
  %v149 = vrot.slane %v64, 1
  %v150 = vsel %vm127, %v147, %v149
  %v151 = vrot.slane %v65, 1
  %v152 = vsel %vm127, %v149, %v151
  %v153 = vrot.slane %v66, 1
  %v154 = vsel %vm127, %v151, %v153
  %v155 = vrot.slane %v67, 1
  %v156 = vsel %vm127, %v153, %v155
  %v157 = vrot.slane %v68, 1
  %v158 = vsel %vm127, %v155, %v157
  %v159 = vrot.slane %v69, 1
  %v160 = vsel %vm127, %v157, %v159
  %v161 = vrot.slane %v70, 1
  %v162 = vsel %vm127, %v159, %v161
  %v163 = vrot.slane %v71, 1
  %v164 = vsel %vm127, %v161, %v163
  %v165 = vrot.slane %v72, 1
  %v166 = vsel %vm127, %v163, %v165
  %v167 = vrot.slane %v73, 1
  %v168 = vsel %vm127, %v165, %v167
  %v169 = vrot.slane %v74, 1
  %v170 = vsel %vm127, %v167, %v169
  %v171 = vrot.slane %v75, 1
  %v172 = vsel %vm127, %v169, %v171
  %v173 = vrot.slane %v76, 1
  %v174 = vsel %vm127, %v171, %v173
  %v175 = vrot.slane %v77, 1
  %v176 = vsel %vm127, %v173, %v175
  %v177 = vrot.slane %v78, 1
  %v178 = vsel %vm127, %v175, %v177
  %v179 = vrot.slane %v79, 1
  %v180 = vsel %vm127, %v177, %v179
  %v181 = vrot.slane %v80, 1
  %v182 = vsel %vm127, %v179, %v181
  %v183 = vrot.slane %v81, 1
  %v184 = vsel %vm127, %v181, %v183
  %v185 = vrot.slane %v82, 1
  %v186 = vsel %vm127, %v183, %v185
  %v187 = vrot.slane %v83, 1
  %v188 = vsel %vm127, %v185, %v187
  %v189 = vrot.slane %v84, 1
  %v190 = vsel %vm127, %v187, %v189
  %v191 = vrot.slane %v85, 1
  %v192 = vsel %vm127, %v189, %v191
  %v193 = vrot.slane %v86, 1
  %v194 = vsel %vm127, %v191, %v193
  %vm195 = vcmask 80896
  %v196 = vsel %vm195, %v130, 0
  %v198 = vsel %vm195, %v132, 0
  %v200 = vsel %vm195, %v134, 0
  %v202 = vsel %vm195, %v136, 0
  %v204 = vsel %vm195, %v138, 0
  %v206 = vsel %vm195, %v140, 0
  %v208 = vsel %vm195, %v142, 0
  %v210 = vsel %vm195, %v144, 0
  %v212 = vsel %vm195, %v146, 0
  %v214 = vsel %vm195, %v148, 0
  %v216 = vsel %vm195, %v150, 0
  %v218 = vsel %vm195, %v152, 0
  %v220 = vsel %vm195, %v154, 0
  %v222 = vsel %vm195, %v156, 0
  %v224 = vsel %vm195, %v158, 0
  %v226 = vsel %vm195, %v160, 0
  %v228 = vsel %vm195, %v162, 0
  %v230 = vsel %vm195, %v164, 0
  %v232 = vsel %vm195, %v166, 0
  %v234 = vsel %vm195, %v168, 0
  %v236 = vsel %vm195, %v170, 0
  %v238 = vsel %vm195, %v172, 0
  %v240 = vsel %vm195, %v174, 0
  %v242 = vsel %vm195, %v176, 0
  %v244 = vsel %vm195, %v178, 0
  %v246 = vsel %vm195, %v180, 0
  %v248 = vsel %vm195, %v182, 0
  %v250 = vsel %vm195, %v184, 0
  %v252 = vsel %vm195, %v186, 0
  %v254 = vsel %vm195, %v188, 0
  %v256 = vsel %vm195, %v190, 0
  %v258 = vsel %vm195, %v192, 0
  %v260 = vsel %vm195, %v194, 0
  %vm262 = vcmask 1041408
  %v264 = vsel %vm262, %v92, 0
  %266 = vmatprep.subr.mxu0 0.0
  %267 = vmatpush1.msra.mxu0 %v91
  %268 = vmatprep.subr.mxu0 0.0
  %269 = vmatpush1.msra.mxu0 %v264
  %270 = vmatprep.subr.mxu0 0.0
  %271 = vmatpush1.msra.mxu0 0.0
  %272 = vmatprep.subr.mxu0 0.0
  %273 = vmatpush1.msra.mxu0 0.0
  %274 = vmatprep.subr.mxu0 0.0
  %275 = vmatpush1.msra.mxu0 0.0
  %276 = vmatprep.subr.mxu0 0.0
  %277 = vmatpush1.msra.mxu0 0.0
  %278 = vmatprep.subr.mxu0 0.0
  %279 = vmatpush1.msra.mxu0 0.0
  %280 = vmatprep.subr.mxu0 0.0
  %281 = vmatpush1.msra.mxu0 0.0
  %282 = vmatprep.subr.mxu0 0.0
  %283 = vmatpush1.msra.mxu0 0.0
  %284 = vmatprep.subr.mxu0 0.0
  %285 = vmatpush1.msra.mxu0 0.0
  %286 = vmatprep.subr.mxu0 0.0
  %287 = vmatpush1.msra.mxu0 0.0
  %288 = vmatprep.subr.mxu0 0.0
  %289 = vmatpush1.msra.mxu0 0.0
  %290 = vmatprep.subr.mxu0 0.0
  %291 = vmatpush1.msra.mxu0 0.0
  %292 = vmatprep.subr.mxu0 0.0
  %293 = vmatpush1.msra.mxu0 0.0
  %294 = vmatprep.subr.mxu0 0.0
  %295 = vmatpush1.msra.mxu0 0.0
  %296 = vmatprep.subr.mxu0 0.0
  %297 = vmatpush1.msra.mxu0 0.0
  %298 = vmatprep.subr.mxu0 0.0
  %299 = vmatpush1.msra.mxu0 0.0
  %300 = vmatprep.subr.mxu0 0.0
  %301 = vmatpush1.msra.mxu0 0.0
  %302 = vmatprep.subr.mxu0 0.0
  %303 = vmatpush1.msra.mxu0 0.0
  %304 = vmatprep.subr.mxu0 0.0
  %305 = vmatpush1.msra.mxu0 0.0
  %306 = vmatprep.subr.mxu0 0.0
  %307 = vmatpush1.msra.mxu0 0.0
  %308 = vmatprep.subr.mxu0 0.0
  %309 = vmatpush1.msra.mxu0 0.0
  %310 = vmatprep.subr.mxu0 0.0
  %311 = vmatpush1.msra.mxu0 0.0
  %312 = vmatprep.subr.mxu0 0.0
  %313 = vmatpush1.msra.mxu0 0.0
  %314 = vmatprep.subr.mxu0 0.0
  %315 = vmatpush1.msra.mxu0 0.0
  %316 = vmatprep.subr.mxu0 0.0
  %317 = vmatpush1.msra.mxu0 0.0
  %318 = vmatprep.subr.mxu0 0.0
  %319 = vmatpush1.msra.mxu0 0.0
  %320 = vmatprep.subr.mxu0 0.0
  %321 = vmatpush1.msra.mxu0 0.0
  %322 = vmatprep.subr.mxu0 0.0
  %323 = vmatpush1.msra.mxu0 0.0
  %324 = vmatprep.subr.mxu0 0.0
  %325 = vmatpush1.msra.mxu0 0.0
  %326 = vmatprep.subr.mxu0 0.0
  %327 = vmatpush1.msra.mxu0 0.0
  %328 = vmatprep.subr.mxu0 0.0
  %329 = vmatpush1.msra.mxu0 0.0
  %330 = vmatprep.mubr.f32.mxu0 0.0
  %331 = vmatmul.mubr.f32.gmra.mrb[0].mxu0 %v196
  %v332 = vpop.f32.mrb[0].mxu0
  %v333 = vadd.f32 0.0, %v332
  %v334 = vpop.f32.mrb[0].mxu0
  %335 = vmatprep.mubr.f32.mxu0 0.0
  %336 = vmatmul.mubr.f32.gmra.mrb[0].mxu0 %v198
  %v337 = vpop.f32.mrb[0].mxu0
  %v338 = vadd.f32 0.0, %v337
  %v339 = vpop.f32.mrb[0].mxu0
  %340 = vmatprep.mubr.f32.mxu0 0.0
  %341 = vmatmul.mubr.f32.gmra.mrb[0].mxu0 %v200
  %v342 = vpop.f32.mrb[0].mxu0
  %v343 = vadd.f32 0.0, %v342
  %v344 = vpop.f32.mrb[0].mxu0
  %345 = vmatprep.mubr.f32.mxu0 0.0
  %346 = vmatmul.mubr.f32.gmra.mrb[0].mxu0 %v202
  %v347 = vpop.f32.mrb[0].mxu0
  %v348 = vadd.f32 0.0, %v347
  %v349 = vpop.f32.mrb[0].mxu0
  %350 = vmatprep.mubr.f32.mxu0 0.0
  %351 = vmatmul.mubr.f32.gmra.mrb[0].mxu0 %v204
  %v352 = vpop.f32.mrb[0].mxu0
  %v353 = vadd.f32 0.0, %v352
  %v354 = vpop.f32.mrb[0].mxu0
  %355 = vmatprep.mubr.f32.mxu0 0.0
  %356 = vmatmul.mubr.f32.gmra.mrb[0].mxu0 %v206
  %v357 = vpop.f32.mrb[0].mxu0
  %v358 = vadd.f32 0.0, %v357
  %v359 = vpop.f32.mrb[0].mxu0
  %360 = vmatprep.mubr.f32.mxu0 0.0
  %361 = vmatmul.mubr.f32.gmra.mrb[0].mxu0 %v208
  %v362 = vpop.f32.mrb[0].mxu0
  %v363 = vadd.f32 0.0, %v362
  %v364 = vpop.f32.mrb[0].mxu0
  %365 = vmatprep.mubr.f32.mxu0 0.0
  %366 = vmatmul.mubr.f32.gmra.mrb[0].mxu0 %v210
  %v367 = vpop.f32.mrb[0].mxu0
  %v368 = vadd.f32 0.0, %v367
  %v369 = vpop.f32.mrb[0].mxu0
  %370 = vmatprep.mubr.f32.mxu0 0.0
  %371 = vmatmul.mubr.f32.gmra.mrb[0].mxu0 %v212
  %v372 = vpop.f32.mrb[0].mxu0
  %v373 = vadd.f32 0.0, %v372
  %v374 = vpop.f32.mrb[0].mxu0
  %375 = vmatprep.mubr.f32.mxu0 0.0
  %376 = vmatmul.mubr.f32.gmra.mrb[0].mxu0 %v214
  %v377 = vpop.f32.mrb[0].mxu0
  %v378 = vadd.f32 0.0, %v377
  %v379 = vpop.f32.mrb[0].mxu0
  %380 = vmatprep.mubr.f32.mxu0 0.0
  %381 = vmatmul.mubr.f32.gmra.mrb[0].mxu0 %v216
  %v382 = vpop.f32.mrb[0].mxu0
  %v383 = vadd.f32 0.0, %v382
  %v384 = vpop.f32.mrb[0].mxu0
  %385 = vmatprep.mubr.f32.mxu0 0.0
  %386 = vmatmul.mubr.f32.gmra.mrb[0].mxu0 %v218
  %v387 = vpop.f32.mrb[0].mxu0
  %v388 = vadd.f32 0.0, %v387
  %v389 = vpop.f32.mrb[0].mxu0
  %390 = vmatprep.mubr.f32.mxu0 0.0
  %391 = vmatmul.mubr.f32.gmra.mrb[0].mxu0 %v220
  %v392 = vpop.f32.mrb[0].mxu0
  %v393 = vadd.f32 0.0, %v392
  %v394 = vpop.f32.mrb[0].mxu0
  %395 = vmatprep.mubr.f32.mxu0 0.0
  %396 = vmatmul.mubr.f32.gmra.mrb[0].mxu0 %v222
  %v397 = vpop.f32.mrb[0].mxu0
  %v398 = vadd.f32 0.0, %v397
  %v399 = vpop.f32.mrb[0].mxu0
  %400 = vmatprep.mubr.f32.mxu0 0.0
  %401 = vmatmul.mubr.f32.gmra.mrb[0].mxu0 %v224
  %v402 = vpop.f32.mrb[0].mxu0
  %v403 = vadd.f32 0.0, %v402
  %v404 = vpop.f32.mrb[0].mxu0
  %405 = vmatprep.mubr.f32.mxu0 0.0
  %406 = vmatmul.mubr.f32.gmra.mrb[0].mxu0 %v226
  %v407 = vpop.f32.mrb[0].mxu0
  %v408 = vadd.f32 0.0, %v407
  %v409 = vpop.f32.mrb[0].mxu0
  %410 = vmatprep.mubr.f32.mxu0 0.0
  %411 = vmatmul.mubr.f32.gmra.mrb[0].mxu0 %v228
  %v412 = vpop.f32.mrb[0].mxu0
  %v413 = vadd.f32 0.0, %v412
  %v414 = vpop.f32.mrb[0].mxu0
  %415 = vmatprep.mubr.f32.mxu0 0.0
  %416 = vmatmul.mubr.f32.gmra.mrb[0].mxu0 %v230
  %v417 = vpop.f32.mrb[0].mxu0
  %v418 = vadd.f32 0.0, %v417
  %v419 = vpop.f32.mrb[0].mxu0
  %420 = vmatprep.mubr.f32.mxu0 0.0
  %421 = vmatmul.mubr.f32.gmra.mrb[0].mxu0 %v232
  %v422 = vpop.f32.mrb[0].mxu0
  %v423 = vadd.f32 0.0, %v422
  %v424 = vpop.f32.mrb[0].mxu0
  %425 = vmatprep.mubr.f32.mxu0 0.0
  %426 = vmatmul.mubr.f32.gmra.mrb[0].mxu0 %v234
  %v427 = vpop.f32.mrb[0].mxu0
  %v428 = vadd.f32 0.0, %v427
  %v429 = vpop.f32.mrb[0].mxu0
  %430 = vmatprep.mubr.f32.mxu0 0.0
  %431 = vmatmul.mubr.f32.gmra.mrb[0].mxu0 %v236
  %v432 = vpop.f32.mrb[0].mxu0
  %v433 = vadd.f32 0.0, %v432
  %v434 = vpop.f32.mrb[0].mxu0
  %435 = vmatprep.mubr.f32.mxu0 0.0
  %436 = vmatmul.mubr.f32.gmra.mrb[0].mxu0 %v238
  %v437 = vpop.f32.mrb[0].mxu0
  %v438 = vadd.f32 0.0, %v437
  %v439 = vpop.f32.mrb[0].mxu0
  %440 = vmatprep.mubr.f32.mxu0 0.0
  %441 = vmatmul.mubr.f32.gmra.mrb[0].mxu0 %v240
  %v442 = vpop.f32.mrb[0].mxu0
  %v443 = vadd.f32 0.0, %v442
  %v444 = vpop.f32.mrb[0].mxu0
  %445 = vmatprep.mubr.f32.mxu0 0.0
  %446 = vmatmul.mubr.f32.gmra.mrb[0].mxu0 %v242
  %v447 = vpop.f32.mrb[0].mxu0
  %v448 = vadd.f32 0.0, %v447
  %v449 = vpop.f32.mrb[0].mxu0
  %450 = vmatprep.mubr.f32.mxu0 0.0
  %451 = vmatmul.mubr.f32.gmra.mrb[0].mxu0 %v244
  %v452 = vpop.f32.mrb[0].mxu0
  %v453 = vadd.f32 0.0, %v452
  %v454 = vpop.f32.mrb[0].mxu0
  %455 = vmatprep.mubr.f32.mxu0 0.0
  %456 = vmatmul.mubr.f32.gmra.mrb[0].mxu0 %v246
  %v457 = vpop.f32.mrb[0].mxu0
  %v458 = vadd.f32 0.0, %v457
  %v459 = vpop.f32.mrb[0].mxu0
  %460 = vmatprep.mubr.f32.mxu0 0.0
  %461 = vmatmul.mubr.f32.gmra.mrb[0].mxu0 %v248
  %v462 = vpop.f32.mrb[0].mxu0
  %v463 = vadd.f32 0.0, %v462
  %v464 = vpop.f32.mrb[0].mxu0
  %465 = vmatprep.mubr.f32.mxu0 0.0
  %466 = vmatmul.mubr.f32.gmra.mrb[0].mxu0 %v250
  %v467 = vpop.f32.mrb[0].mxu0
  %v468 = vadd.f32 0.0, %v467
  %v469 = vpop.f32.mrb[0].mxu0
  %470 = vmatprep.mubr.f32.mxu0 0.0
  %471 = vmatmul.mubr.f32.gmra.mrb[0].mxu0 %v252
  %v472 = vpop.f32.mrb[0].mxu0
  %v473 = vadd.f32 0.0, %v472
  %v474 = vpop.f32.mrb[0].mxu0
  %475 = vmatprep.mubr.f32.mxu0 0.0
  %476 = vmatmul.mubr.f32.gmra.mrb[0].mxu0 %v254
  %v477 = vpop.f32.mrb[0].mxu0
  %v478 = vadd.f32 0.0, %v477
  %v479 = vpop.f32.mrb[0].mxu0
  %480 = vmatprep.mubr.f32.mxu0 0.0
  %481 = vmatmul.mubr.f32.gmra.mrb[0].mxu0 %v256
  %v482 = vpop.f32.mrb[0].mxu0
  %v483 = vadd.f32 0.0, %v482
  %v484 = vpop.f32.mrb[0].mxu0
  %485 = vmatprep.mubr.f32.mxu0 0.0
  %486 = vmatmul.mubr.f32.gmra.mrb[0].mxu0 %v258
  %v487 = vpop.f32.mrb[0].mxu0
  %v488 = vadd.f32 0.0, %v487
  %v489 = vpop.f32.mrb[0].mxu0
  %490 = vmatprep.mubr.f32.mxu0 0.0
  %491 = vmatmul.mubr.f32.gmra.mrb[0].mxu0 %v260
  %v492 = vpop.f32.mrb[0].mxu0
  %v493 = vadd.f32 0.0, %v492
  %v494 = vpop.f32.mrb[0].mxu0
  %495 = vdwg.mxu0
  %v496 = vsel %vm195, %v53, 0
  %v498 = vsel %vm195, %v54, 0
  %v500 = vsel %vm195, %v55, 0
  %v502 = vsel %vm195, %v56, 0
  %v504 = vsel %vm195, %v57, 0
  %v506 = vsel %vm195, %v58, 0
  %v508 = vsel %vm195, %v59, 0
  %v510 = vsel %vm195, %v60, 0
  %v512 = vsel %vm195, %v61, 0
  %v514 = vsel %vm195, %v62, 0
  %v516 = vsel %vm195, %v63, 0
  %v518 = vsel %vm195, %v64, 0
  %v520 = vsel %vm195, %v65, 0
  %v522 = vsel %vm195, %v66, 0
  %v524 = vsel %vm195, %v67, 0
  %v526 = vsel %vm195, %v68, 0
  %v528 = vsel %vm195, %v69, 0
  %v530 = vsel %vm195, %v70, 0
  %v532 = vsel %vm195, %v71, 0
  %v534 = vsel %vm195, %v72, 0
  %v536 = vsel %vm195, %v73, 0
  %v538 = vsel %vm195, %v74, 0
  %v540 = vsel %vm195, %v75, 0
  %v542 = vsel %vm195, %v76, 0
  %v544 = vsel %vm195, %v77, 0
  %v546 = vsel %vm195, %v78, 0
  %v548 = vsel %vm195, %v79, 0
  %v550 = vsel %vm195, %v80, 0
  %v552 = vsel %vm195, %v81, 0
  %v554 = vsel %vm195, %v82, 0
  %v556 = vsel %vm195, %v83, 0
  %v558 = vsel %vm195, %v84, 0
  %v560 = vsel %vm195, %v85, 0
  %v563 = vsel %vm262, %v89, 0
  %565 = vmatprep.subr.mxu0 0.0
  %566 = vmatpush1.msra.mxu0 %v88
  %567 = vmatprep.subr.mxu0 0.0
  %568 = vmatpush1.msra.mxu0 %v563
  %569 = vmatprep.subr.mxu0 0.0
  %570 = vmatpush1.msra.mxu0 0.0
  %571 = vmatprep.subr.mxu0 0.0
  %572 = vmatpush1.msra.mxu0 0.0
  %573 = vmatprep.subr.mxu0 0.0
  %574 = vmatpush1.msra.mxu0 0.0
  %575 = vmatprep.subr.mxu0 0.0
  %576 = vmatpush1.msra.mxu0 0.0
  %577 = vmatprep.subr.mxu0 0.0
  %578 = vmatpush1.msra.mxu0 0.0
  %579 = vmatprep.subr.mxu0 0.0
  %580 = vmatpush1.msra.mxu0 0.0
  %581 = vmatprep.subr.mxu0 0.0
  %582 = vmatpush1.msra.mxu0 0.0
  %583 = vmatprep.subr.mxu0 0.0
  %584 = vmatpush1.msra.mxu0 0.0
  %585 = vmatprep.subr.mxu0 0.0
  %586 = vmatpush1.msra.mxu0 0.0
  %587 = vmatprep.subr.mxu0 0.0
  %588 = vmatpush1.msra.mxu0 0.0
  %589 = vmatprep.subr.mxu0 0.0
  %590 = vmatpush1.msra.mxu0 0.0
  %591 = vmatprep.subr.mxu0 0.0
  %592 = vmatpush1.msra.mxu0 0.0
  %593 = vmatprep.subr.mxu0 0.0
  %594 = vmatpush1.msra.mxu0 0.0
  %595 = vmatprep.subr.mxu0 0.0
  %596 = vmatpush1.msra.mxu0 0.0
  %597 = vmatprep.subr.mxu0 0.0
  %598 = vmatpush1.msra.mxu0 0.0
  %599 = vmatprep.subr.mxu0 0.0
  %600 = vmatpush1.msra.mxu0 0.0
  %601 = vmatprep.subr.mxu0 0.0
  %602 = vmatpush1.msra.mxu0 0.0
  %603 = vmatprep.subr.mxu0 0.0
  %604 = vmatpush1.msra.mxu0 0.0
  %605 = vmatprep.subr.mxu0 0.0
  %606 = vmatpush1.msra.mxu0 0.0
  %607 = vmatprep.subr.mxu0 0.0
  %608 = vmatpush1.msra.mxu0 0.0
  %609 = vmatprep.subr.mxu0 0.0
  %610 = vmatpush1.msra.mxu0 0.0
  %611 = vmatprep.subr.mxu0 0.0
  %612 = vmatpush1.msra.mxu0 0.0
  %613 = vmatprep.subr.mxu0 0.0
  %614 = vmatpush1.msra.mxu0 0.0
  %615 = vmatprep.subr.mxu0 0.0
  %616 = vmatpush1.msra.mxu0 0.0
  %617 = vmatprep.subr.mxu0 0.0
  %618 = vmatpush1.msra.mxu0 0.0
  %619 = vmatprep.subr.mxu0 0.0
  %620 = vmatpush1.msra.mxu0 0.0
  %621 = vmatprep.subr.mxu0 0.0
  %622 = vmatpush1.msra.mxu0 0.0
  %623 = vmatprep.subr.mxu0 0.0
  %624 = vmatpush1.msra.mxu0 0.0
  %625 = vmatprep.subr.mxu0 0.0
  %626 = vmatpush1.msra.mxu0 0.0
  %627 = vmatprep.subr.mxu0 0.0
  %628 = vmatpush1.msra.mxu0 0.0
  %629 = vmatprep.mubr.f32.mxu0 0.0
  %630 = vmatmul.mubr.f32.gmra.mrb[0].mxu0 %v496
  %v631 = vpop.f32.mrb[0].mxu0
  %v632 = vadd.f32 %v333, %v631
  %v633 = vpop.f32.mrb[0].mxu0
  %634 = vmatprep.mubr.f32.mxu0 0.0
  %635 = vmatmul.mubr.f32.gmra.mrb[0].mxu0 %v498
  %v636 = vpop.f32.mrb[0].mxu0
  %v637 = vadd.f32 %v338, %v636
  %v638 = vpop.f32.mrb[0].mxu0
  %639 = vmatprep.mubr.f32.mxu0 0.0
  %640 = vmatmul.mubr.f32.gmra.mrb[0].mxu0 %v500
  %v641 = vpop.f32.mrb[0].mxu0
  %v642 = vadd.f32 %v343, %v641
  %v643 = vpop.f32.mrb[0].mxu0
  %644 = vmatprep.mubr.f32.mxu0 0.0
  %645 = vmatmul.mubr.f32.gmra.mrb[0].mxu0 %v502
  %v646 = vpop.f32.mrb[0].mxu0
  %v647 = vadd.f32 %v348, %v646
  %v648 = vpop.f32.mrb[0].mxu0
  %649 = vmatprep.mubr.f32.mxu0 0.0
  %650 = vmatmul.mubr.f32.gmra.mrb[0].mxu0 %v504
  %v651 = vpop.f32.mrb[0].mxu0
  %v652 = vadd.f32 %v353, %v651
  %v653 = vpop.f32.mrb[0].mxu0
  %654 = vmatprep.mubr.f32.mxu0 0.0
  %655 = vmatmul.mubr.f32.gmra.mrb[0].mxu0 %v506
  %v656 = vpop.f32.mrb[0].mxu0
  %v657 = vadd.f32 %v358, %v656
  %v658 = vpop.f32.mrb[0].mxu0
  %659 = vmatprep.mubr.f32.mxu0 0.0
  %660 = vmatmul.mubr.f32.gmra.mrb[0].mxu0 %v508
  %v661 = vpop.f32.mrb[0].mxu0
  %v662 = vadd.f32 %v363, %v661
  %v663 = vpop.f32.mrb[0].mxu0
  %664 = vmatprep.mubr.f32.mxu0 0.0
  %665 = vmatmul.mubr.f32.gmra.mrb[0].mxu0 %v510
  %v666 = vpop.f32.mrb[0].mxu0
  %v667 = vadd.f32 %v368, %v666
  %v668 = vpop.f32.mrb[0].mxu0
  %669 = vmatprep.mubr.f32.mxu0 0.0
  %670 = vmatmul.mubr.f32.gmra.mrb[0].mxu0 %v512
  %v671 = vpop.f32.mrb[0].mxu0
  %v672 = vadd.f32 %v373, %v671
  %v673 = vpop.f32.mrb[0].mxu0
  %674 = vmatprep.mubr.f32.mxu0 0.0
  %675 = vmatmul.mubr.f32.gmra.mrb[0].mxu0 %v514
  %v676 = vpop.f32.mrb[0].mxu0
  %v677 = vadd.f32 %v378, %v676
  %v678 = vpop.f32.mrb[0].mxu0
  %679 = vmatprep.mubr.f32.mxu0 0.0
  %680 = vmatmul.mubr.f32.gmra.mrb[0].mxu0 %v516
  %v681 = vpop.f32.mrb[0].mxu0
  %v682 = vadd.f32 %v383, %v681
  %v683 = vpop.f32.mrb[0].mxu0
  %684 = vmatprep.mubr.f32.mxu0 0.0
  %685 = vmatmul.mubr.f32.gmra.mrb[0].mxu0 %v518
  %v686 = vpop.f32.mrb[0].mxu0
  %v687 = vadd.f32 %v388, %v686
  %v688 = vpop.f32.mrb[0].mxu0
  %689 = vmatprep.mubr.f32.mxu0 0.0
  %690 = vmatmul.mubr.f32.gmra.mrb[0].mxu0 %v520
  %v691 = vpop.f32.mrb[0].mxu0
  %v692 = vadd.f32 %v393, %v691
  %v693 = vpop.f32.mrb[0].mxu0
  %694 = vmatprep.mubr.f32.mxu0 0.0
  %695 = vmatmul.mubr.f32.gmra.mrb[0].mxu0 %v522
  %v696 = vpop.f32.mrb[0].mxu0
  %v697 = vadd.f32 %v398, %v696
  %v698 = vpop.f32.mrb[0].mxu0
  %699 = vmatprep.mubr.f32.mxu0 0.0
  %700 = vmatmul.mubr.f32.gmra.mrb[0].mxu0 %v524
  %v701 = vpop.f32.mrb[0].mxu0
  %v702 = vadd.f32 %v403, %v701
  %v703 = vpop.f32.mrb[0].mxu0
  %704 = vmatprep.mubr.f32.mxu0 0.0
  %705 = vmatmul.mubr.f32.gmra.mrb[0].mxu0 %v526
  %v706 = vpop.f32.mrb[0].mxu0
  %v707 = vadd.f32 %v408, %v706
  %v708 = vpop.f32.mrb[0].mxu0
  %709 = vmatprep.mubr.f32.mxu0 0.0
  %710 = vmatmul.mubr.f32.gmra.mrb[0].mxu0 %v528
  %v711 = vpop.f32.mrb[0].mxu0
  %v712 = vadd.f32 %v413, %v711
  %v713 = vpop.f32.mrb[0].mxu0
  %714 = vmatprep.mubr.f32.mxu0 0.0
  %715 = vmatmul.mubr.f32.gmra.mrb[0].mxu0 %v530
  %v716 = vpop.f32.mrb[0].mxu0
  %v717 = vadd.f32 %v418, %v716
  %v718 = vpop.f32.mrb[0].mxu0
  %719 = vmatprep.mubr.f32.mxu0 0.0
  %720 = vmatmul.mubr.f32.gmra.mrb[0].mxu0 %v532
  %v721 = vpop.f32.mrb[0].mxu0
  %v722 = vadd.f32 %v423, %v721
  %v723 = vpop.f32.mrb[0].mxu0
  %724 = vmatprep.mubr.f32.mxu0 0.0
  %725 = vmatmul.mubr.f32.gmra.mrb[0].mxu0 %v534
  %v726 = vpop.f32.mrb[0].mxu0
  %v727 = vadd.f32 %v428, %v726
  %v728 = vpop.f32.mrb[0].mxu0
  %729 = vmatprep.mubr.f32.mxu0 0.0
  %730 = vmatmul.mubr.f32.gmra.mrb[0].mxu0 %v536
  %v731 = vpop.f32.mrb[0].mxu0
  %v732 = vadd.f32 %v433, %v731
  %v733 = vpop.f32.mrb[0].mxu0
  %734 = vmatprep.mubr.f32.mxu0 0.0
  %735 = vmatmul.mubr.f32.gmra.mrb[0].mxu0 %v538
  %v736 = vpop.f32.mrb[0].mxu0
  %v737 = vadd.f32 %v438, %v736
  %v738 = vpop.f32.mrb[0].mxu0
  %739 = vmatprep.mubr.f32.mxu0 0.0
  %740 = vmatmul.mubr.f32.gmra.mrb[0].mxu0 %v540
  %v741 = vpop.f32.mrb[0].mxu0
  %v742 = vadd.f32 %v443, %v741
  %v743 = vpop.f32.mrb[0].mxu0
  %744 = vmatprep.mubr.f32.mxu0 0.0
  %745 = vmatmul.mubr.f32.gmra.mrb[0].mxu0 %v542
  %v746 = vpop.f32.mrb[0].mxu0
  %v747 = vadd.f32 %v448, %v746
  %v748 = vpop.f32.mrb[0].mxu0
  %749 = vmatprep.mubr.f32.mxu0 0.0
  %750 = vmatmul.mubr.f32.gmra.mrb[0].mxu0 %v544
  %v751 = vpop.f32.mrb[0].mxu0
  %v752 = vadd.f32 %v453, %v751
  %v753 = vpop.f32.mrb[0].mxu0
  %754 = vmatprep.mubr.f32.mxu0 0.0
  %755 = vmatmul.mubr.f32.gmra.mrb[0].mxu0 %v546
  %v756 = vpop.f32.mrb[0].mxu0
  %v757 = vadd.f32 %v458, %v756
  %v758 = vpop.f32.mrb[0].mxu0
  %759 = vmatprep.mubr.f32.mxu0 0.0
  %760 = vmatmul.mubr.f32.gmra.mrb[0].mxu0 %v548
  %v761 = vpop.f32.mrb[0].mxu0
  %v762 = vadd.f32 %v463, %v761
  %v763 = vpop.f32.mrb[0].mxu0
  %764 = vmatprep.mubr.f32.mxu0 0.0
  %765 = vmatmul.mubr.f32.gmra.mrb[0].mxu0 %v550
  %v766 = vpop.f32.mrb[0].mxu0
  %v767 = vadd.f32 %v468, %v766
  %v768 = vpop.f32.mrb[0].mxu0
  %769 = vmatprep.mubr.f32.mxu0 0.0
  %770 = vmatmul.mubr.f32.gmra.mrb[0].mxu0 %v552
  %v771 = vpop.f32.mrb[0].mxu0
  %v772 = vadd.f32 %v473, %v771
  %v773 = vpop.f32.mrb[0].mxu0
  %774 = vmatprep.mubr.f32.mxu0 0.0
  %775 = vmatmul.mubr.f32.gmra.mrb[0].mxu0 %v554
  %v776 = vpop.f32.mrb[0].mxu0
  %v777 = vadd.f32 %v478, %v776
  %v778 = vpop.f32.mrb[0].mxu0
  %779 = vmatprep.mubr.f32.mxu0 0.0
  %780 = vmatmul.mubr.f32.gmra.mrb[0].mxu0 %v556
  %v781 = vpop.f32.mrb[0].mxu0
  %v782 = vadd.f32 %v483, %v781
  %v783 = vpop.f32.mrb[0].mxu0
  %784 = vmatprep.mubr.f32.mxu0 0.0
  %785 = vmatmul.mubr.f32.gmra.mrb[0].mxu0 %v558
  %v786 = vpop.f32.mrb[0].mxu0
  %v787 = vadd.f32 %v488, %v786
  %v788 = vpop.f32.mrb[0].mxu0
  %789 = vmatprep.mubr.f32.mxu0 0.0
  %790 = vmatmul.mubr.f32.gmra.mrb[0].mxu0 %v560
  %v791 = vpop.f32.mrb[0].mxu0
  %v792 = vadd.f32 %v493, %v791
  %v793 = vpop.f32.mrb[0].mxu0
  %794 = vdwg.mxu0
  %s795 = scalar_lea.vmem %s1, 32
  %v796 = vld [vmem:[%s795] sm:$0xff]
  %v797 = vld [vmem:[%s795 + $0x8] sm:$0x3]
  %vm799 = vcmask 1045504
  %v800 = vrot.slane %v54, 2
  %v801 = vrot.slane %v55, 2
  %v802 = vsel %vm799, %v800, %v801
  %v803 = vrot.slane %v56, 2
  %v804 = vsel %vm799, %v801, %v803
  %v805 = vrot.slane %v57, 2
  %v806 = vsel %vm799, %v803, %v805
  %v807 = vrot.slane %v58, 2
  %v808 = vsel %vm799, %v805, %v807
  %v809 = vrot.slane %v59, 2
  %v810 = vsel %vm799, %v807, %v809
  %v811 = vrot.slane %v60, 2
  %v812 = vsel %vm799, %v809, %v811
  %v813 = vrot.slane %v61, 2
  %v814 = vsel %vm799, %v811, %v813
  %v815 = vrot.slane %v62, 2
  %v816 = vsel %vm799, %v813, %v815
  %v817 = vrot.slane %v63, 2
  %v818 = vsel %vm799, %v815, %v817
  %v819 = vrot.slane %v64, 2
  %v820 = vsel %vm799, %v817, %v819
  %v821 = vrot.slane %v65, 2
  %v822 = vsel %vm799, %v819, %v821
  %v823 = vrot.slane %v66, 2
  %v824 = vsel %vm799, %v821, %v823
  %v825 = vrot.slane %v67, 2
  %v826 = vsel %vm799, %v823, %v825
  %v827 = vrot.slane %v68, 2
  %v828 = vsel %vm799, %v825, %v827
  %v829 = vrot.slane %v69, 2
  %v830 = vsel %vm799, %v827, %v829
  %v831 = vrot.slane %v70, 2
  %v832 = vsel %vm799, %v829, %v831
  %v833 = vrot.slane %v71, 2
  %v834 = vsel %vm799, %v831, %v833
  %v835 = vrot.slane %v72, 2
  %v836 = vsel %vm799, %v833, %v835
  %v837 = vrot.slane %v73, 2
  %v838 = vsel %vm799, %v835, %v837
  %v839 = vrot.slane %v74, 2
  %v840 = vsel %vm799, %v837, %v839
  %v841 = vrot.slane %v75, 2
  %v842 = vsel %vm799, %v839, %v841
  %v843 = vrot.slane %v76, 2
  %v844 = vsel %vm799, %v841, %v843
  %v845 = vrot.slane %v77, 2
  %v846 = vsel %vm799, %v843, %v845
  %v847 = vrot.slane %v78, 2
  %v848 = vsel %vm799, %v845, %v847
  %v849 = vrot.slane %v79, 2
  %v850 = vsel %vm799, %v847, %v849
  %v851 = vrot.slane %v80, 2
  %v852 = vsel %vm799, %v849, %v851
  %v853 = vrot.slane %v81, 2
  %v854 = vsel %vm799, %v851, %v853
  %v855 = vrot.slane %v82, 2
  %v856 = vsel %vm799, %v853, %v855
  %v857 = vrot.slane %v83, 2
  %v858 = vsel %vm799, %v855, %v857
  %v859 = vrot.slane %v84, 2
  %v860 = vsel %vm799, %v857, %v859
  %v861 = vrot.slane %v85, 2
  %v862 = vsel %vm799, %v859, %v861
  %v863 = vrot.slane %v86, 2
  %v864 = vsel %vm799, %v861, %v863
  %v865 = vrot.slane %v87, 2
  %v866 = vsel %vm799, %v863, %v865
  %v867 = vsel %vm195, %v802, 0
  %v869 = vsel %vm195, %v804, 0
  %v871 = vsel %vm195, %v806, 0
  %v873 = vsel %vm195, %v808, 0
  %v875 = vsel %vm195, %v810, 0
  %v877 = vsel %vm195, %v812, 0
  %v879 = vsel %vm195, %v814, 0
  %v881 = vsel %vm195, %v816, 0
  %v883 = vsel %vm195, %v818, 0
  %v885 = vsel %vm195, %v820, 0
  %v887 = vsel %vm195, %v822, 0
  %v889 = vsel %vm195, %v824, 0
  %v891 = vsel %vm195, %v826, 0
  %v893 = vsel %vm195, %v828, 0
  %v895 = vsel %vm195, %v830, 0
  %v897 = vsel %vm195, %v832, 0
  %v899 = vsel %vm195, %v834, 0
  %v901 = vsel %vm195, %v836, 0
  %v903 = vsel %vm195, %v838, 0
  %v905 = vsel %vm195, %v840, 0
  %v907 = vsel %vm195, %v842, 0
  %v909 = vsel %vm195, %v844, 0
  %v911 = vsel %vm195, %v846, 0
  %v913 = vsel %vm195, %v848, 0
  %v915 = vsel %vm195, %v850, 0
  %v917 = vsel %vm195, %v852, 0
  %v919 = vsel %vm195, %v854, 0
  %v921 = vsel %vm195, %v856, 0
  %v923 = vsel %vm195, %v858, 0
  %v925 = vsel %vm195, %v860, 0
  %v927 = vsel %vm195, %v862, 0
  %v929 = vsel %vm195, %v864, 0
  %v931 = vsel %vm195, %v866, 0
  %v934 = vsel %vm262, %v797, 0
  %936 = vmatprep.subr.mxu0 0.0
  %937 = vmatpush1.msra.mxu0 %v796
  %938 = vmatprep.subr.mxu0 0.0
  %939 = vmatpush1.msra.mxu0 %v934
  %940 = vmatprep.subr.mxu0 0.0
  %941 = vmatpush1.msra.mxu0 0.0
  %942 = vmatprep.subr.mxu0 0.0
  %943 = vmatpush1.msra.mxu0 0.0
  %944 = vmatprep.subr.mxu0 0.0
  %945 = vmatpush1.msra.mxu0 0.0
  %946 = vmatprep.subr.mxu0 0.0
  %947 = vmatpush1.msra.mxu0 0.0
  %948 = vmatprep.subr.mxu0 0.0
  %949 = vmatpush1.msra.mxu0 0.0
  %950 = vmatprep.subr.mxu0 0.0
  %951 = vmatpush1.msra.mxu0 0.0
  %952 = vmatprep.subr.mxu0 0.0
  %953 = vmatpush1.msra.mxu0 0.0
  %954 = vmatprep.subr.mxu0 0.0
  %955 = vmatpush1.msra.mxu0 0.0
  %956 = vmatprep.subr.mxu0 0.0
  %957 = vmatpush1.msra.mxu0 0.0
  %958 = vmatprep.subr.mxu0 0.0
  %959 = vmatpush1.msra.mxu0 0.0
  %960 = vmatprep.subr.mxu0 0.0
  %961 = vmatpush1.msra.mxu0 0.0
  %962 = vmatprep.subr.mxu0 0.0
  %963 = vmatpush1.msra.mxu0 0.0
  %964 = vmatprep.subr.mxu0 0.0
  %965 = vmatpush1.msra.mxu0 0.0
  %966 = vmatprep.subr.mxu0 0.0
  %967 = vmatpush1.msra.mxu0 0.0
  %968 = vmatprep.subr.mxu0 0.0
  %969 = vmatpush1.msra.mxu0 0.0
  %970 = vmatprep.subr.mxu0 0.0
  %971 = vmatpush1.msra.mxu0 0.0
  %972 = vmatprep.subr.mxu0 0.0
  %973 = vmatpush1.msra.mxu0 0.0
  %974 = vmatprep.subr.mxu0 0.0
  %975 = vmatpush1.msra.mxu0 0.0
  %976 = vmatprep.subr.mxu0 0.0
  %977 = vmatpush1.msra.mxu0 0.0
  %978 = vmatprep.subr.mxu0 0.0
  %979 = vmatpush1.msra.mxu0 0.0
  %980 = vmatprep.subr.mxu0 0.0
  %981 = vmatpush1.msra.mxu0 0.0
  %982 = vmatprep.subr.mxu0 0.0
  %983 = vmatpush1.msra.mxu0 0.0
  %984 = vmatprep.subr.mxu0 0.0
  %985 = vmatpush1.msra.mxu0 0.0
  %986 = vmatprep.subr.mxu0 0.0
  %987 = vmatpush1.msra.mxu0 0.0
  %988 = vmatprep.subr.mxu0 0.0
  %989 = vmatpush1.msra.mxu0 0.0
  %990 = vmatprep.subr.mxu0 0.0
  %991 = vmatpush1.msra.mxu0 0.0
  %992 = vmatprep.subr.mxu0 0.0
  %993 = vmatpush1.msra.mxu0 0.0
  %994 = vmatprep.subr.mxu0 0.0
  %995 = vmatpush1.msra.mxu0 0.0
  %996 = vmatprep.subr.mxu0 0.0
  %997 = vmatpush1.msra.mxu0 0.0
  %998 = vmatprep.subr.mxu0 0.0
  %999 = vmatpush1.msra.mxu0 0.0
  %1000 = vmatprep.mubr.f32.mxu0 0.0
  %1001 = vmatmul.mubr.f32.gmra.mrb[0].mxu0 %v867
  %v1002 = vpop.f32.mrb[0].mxu0
  %v1003 = vadd.f32 0.0, %v1002
  %v1004 = vpop.f32.mrb[0].mxu0
  %1005 = vmatprep.mubr.f32.mxu0 0.0
  %1006 = vmatmul.mubr.f32.gmra.mrb[0].mxu0 %v869
  %v1007 = vpop.f32.mrb[0].mxu0
  %v1008 = vadd.f32 0.0, %v1007
  %v1009 = vpop.f32.mrb[0].mxu0
  %1010 = vmatprep.mubr.f32.mxu0 0.0
  %1011 = vmatmul.mubr.f32.gmra.mrb[0].mxu0 %v871
  %v1012 = vpop.f32.mrb[0].mxu0
  %v1013 = vadd.f32 0.0, %v1012
  %v1014 = vpop.f32.mrb[0].mxu0
  %1015 = vmatprep.mubr.f32.mxu0 0.0
  %1016 = vmatmul.mubr.f32.gmra.mrb[0].mxu0 %v873
  %v1017 = vpop.f32.mrb[0].mxu0
  %v1018 = vadd.f32 0.0, %v1017
  %v1019 = vpop.f32.mrb[0].mxu0
  %1020 = vmatprep.mubr.f32.mxu0 0.0
  %1021 = vmatmul.mubr.f32.gmra.mrb[0].mxu0 %v875
  %v1022 = vpop.f32.mrb[0].mxu0
  %v1023 = vadd.f32 0.0, %v1022
  %v1024 = vpop.f32.mrb[0].mxu0
  %1025 = vmatprep.mubr.f32.mxu0 0.0
  %1026 = vmatmul.mubr.f32.gmra.mrb[0].mxu0 %v877
  %v1027 = vpop.f32.mrb[0].mxu0
  %v1028 = vadd.f32 0.0, %v1027
  %v1029 = vpop.f32.mrb[0].mxu0
  %1030 = vmatprep.mubr.f32.mxu0 0.0
  %1031 = vmatmul.mubr.f32.gmra.mrb[0].mxu0 %v879
  %v1032 = vpop.f32.mrb[0].mxu0
  %v1033 = vadd.f32 0.0, %v1032
  %v1034 = vpop.f32.mrb[0].mxu0
  %1035 = vmatprep.mubr.f32.mxu0 0.0
  %1036 = vmatmul.mubr.f32.gmra.mrb[0].mxu0 %v881
  %v1037 = vpop.f32.mrb[0].mxu0
  %v1038 = vadd.f32 0.0, %v1037
  %v1039 = vpop.f32.mrb[0].mxu0
  %1040 = vmatprep.mubr.f32.mxu0 0.0
  %1041 = vmatmul.mubr.f32.gmra.mrb[0].mxu0 %v883
  %v1042 = vpop.f32.mrb[0].mxu0
  %v1043 = vadd.f32 0.0, %v1042
  %v1044 = vpop.f32.mrb[0].mxu0
  %1045 = vmatprep.mubr.f32.mxu0 0.0
  %1046 = vmatmul.mubr.f32.gmra.mrb[0].mxu0 %v885
  %v1047 = vpop.f32.mrb[0].mxu0
  %v1048 = vadd.f32 0.0, %v1047
  %v1049 = vpop.f32.mrb[0].mxu0
  %1050 = vmatprep.mubr.f32.mxu0 0.0
  %1051 = vmatmul.mubr.f32.gmra.mrb[0].mxu0 %v887
  %v1052 = vpop.f32.mrb[0].mxu0
  %v1053 = vadd.f32 0.0, %v1052
  %v1054 = vpop.f32.mrb[0].mxu0
  %1055 = vmatprep.mubr.f32.mxu0 0.0
  %1056 = vmatmul.mubr.f32.gmra.mrb[0].mxu0 %v889
  %v1057 = vpop.f32.mrb[0].mxu0
  %v1058 = vadd.f32 0.0, %v1057
  %v1059 = vpop.f32.mrb[0].mxu0
  %1060 = vmatprep.mubr.f32.mxu0 0.0
  %1061 = vmatmul.mubr.f32.gmra.mrb[0].mxu0 %v891
  %v1062 = vpop.f32.mrb[0].mxu0
  %v1063 = vadd.f32 0.0, %v1062
  %v1064 = vpop.f32.mrb[0].mxu0
  %1065 = vmatprep.mubr.f32.mxu0 0.0
  %1066 = vmatmul.mubr.f32.gmra.mrb[0].mxu0 %v893
  %v1067 = vpop.f32.mrb[0].mxu0
  %v1068 = vadd.f32 0.0, %v1067
  %v1069 = vpop.f32.mrb[0].mxu0
  %1070 = vmatprep.mubr.f32.mxu0 0.0
  %1071 = vmatmul.mubr.f32.gmra.mrb[0].mxu0 %v895
  %v1072 = vpop.f32.mrb[0].mxu0
  %v1073 = vadd.f32 0.0, %v1072
  %v1074 = vpop.f32.mrb[0].mxu0
  %1075 = vmatprep.mubr.f32.mxu0 0.0
  %1076 = vmatmul.mubr.f32.gmra.mrb[0].mxu0 %v897
  %v1077 = vpop.f32.mrb[0].mxu0
  %v1078 = vadd.f32 0.0, %v1077
  %v1079 = vpop.f32.mrb[0].mxu0
  %1080 = vmatprep.mubr.f32.mxu0 0.0
  %1081 = vmatmul.mubr.f32.gmra.mrb[0].mxu0 %v899
  %v1082 = vpop.f32.mrb[0].mxu0
  %v1083 = vadd.f32 0.0, %v1082
  %v1084 = vpop.f32.mrb[0].mxu0
  %1085 = vmatprep.mubr.f32.mxu0 0.0
  %1086 = vmatmul.mubr.f32.gmra.mrb[0].mxu0 %v901
  %v1087 = vpop.f32.mrb[0].mxu0
  %v1088 = vadd.f32 0.0, %v1087
  %v1089 = vpop.f32.mrb[0].mxu0
  %1090 = vmatprep.mubr.f32.mxu0 0.0
  %1091 = vmatmul.mubr.f32.gmra.mrb[0].mxu0 %v903
  %v1092 = vpop.f32.mrb[0].mxu0
  %v1093 = vadd.f32 0.0, %v1092
  %v1094 = vpop.f32.mrb[0].mxu0
  %1095 = vmatprep.mubr.f32.mxu0 0.0
  %1096 = vmatmul.mubr.f32.gmra.mrb[0].mxu0 %v905
  %v1097 = vpop.f32.mrb[0].mxu0
  %v1098 = vadd.f32 0.0, %v1097
  %v1099 = vpop.f32.mrb[0].mxu0
  %1100 = vmatprep.mubr.f32.mxu0 0.0
  %1101 = vmatmul.mubr.f32.gmra.mrb[0].mxu0 %v907
  %v1102 = vpop.f32.mrb[0].mxu0
  %v1103 = vadd.f32 0.0, %v1102
  %v1104 = vpop.f32.mrb[0].mxu0
  %1105 = vmatprep.mubr.f32.mxu0 0.0
  %1106 = vmatmul.mubr.f32.gmra.mrb[0].mxu0 %v909
  %v1107 = vpop.f32.mrb[0].mxu0
  %v1108 = vadd.f32 0.0, %v1107
  %v1109 = vpop.f32.mrb[0].mxu0
  %1110 = vmatprep.mubr.f32.mxu0 0.0
  %1111 = vmatmul.mubr.f32.gmra.mrb[0].mxu0 %v911
  %v1112 = vpop.f32.mrb[0].mxu0
  %v1113 = vadd.f32 0.0, %v1112
  %v1114 = vpop.f32.mrb[0].mxu0
  %1115 = vmatprep.mubr.f32.mxu0 0.0
  %1116 = vmatmul.mubr.f32.gmra.mrb[0].mxu0 %v913
  %v1117 = vpop.f32.mrb[0].mxu0
  %v1118 = vadd.f32 0.0, %v1117
  %v1119 = vpop.f32.mrb[0].mxu0
  %1120 = vmatprep.mubr.f32.mxu0 0.0
  %1121 = vmatmul.mubr.f32.gmra.mrb[0].mxu0 %v915
  %v1122 = vpop.f32.mrb[0].mxu0
  %v1123 = vadd.f32 0.0, %v1122
  %v1124 = vpop.f32.mrb[0].mxu0
  %1125 = vmatprep.mubr.f32.mxu0 0.0
  %1126 = vmatmul.mubr.f32.gmra.mrb[0].mxu0 %v917
  %v1127 = vpop.f32.mrb[0].mxu0
  %v1128 = vadd.f32 0.0, %v1127
  %v1129 = vpop.f32.mrb[0].mxu0
  %1130 = vmatprep.mubr.f32.mxu0 0.0
  %1131 = vmatmul.mubr.f32.gmra.mrb[0].mxu0 %v919
  %v1132 = vpop.f32.mrb[0].mxu0
  %v1133 = vadd.f32 0.0, %v1132
  %v1134 = vpop.f32.mrb[0].mxu0
  %1135 = vmatprep.mubr.f32.mxu0 0.0
  %1136 = vmatmul.mubr.f32.gmra.mrb[0].mxu0 %v921
  %v1137 = vpop.f32.mrb[0].mxu0
  %v1138 = vadd.f32 0.0, %v1137
  %v1139 = vpop.f32.mrb[0].mxu0
  %1140 = vmatprep.mubr.f32.mxu0 0.0
  %1141 = vmatmul.mubr.f32.gmra.mrb[0].mxu0 %v923
  %v1142 = vpop.f32.mrb[0].mxu0
  %v1143 = vadd.f32 0.0, %v1142
  %v1144 = vpop.f32.mrb[0].mxu0
  %1145 = vmatprep.mubr.f32.mxu0 0.0
  %1146 = vmatmul.mubr.f32.gmra.mrb[0].mxu0 %v925
  %v1147 = vpop.f32.mrb[0].mxu0
  %v1148 = vadd.f32 0.0, %v1147
  %v1149 = vpop.f32.mrb[0].mxu0
  %1150 = vmatprep.mubr.f32.mxu0 0.0
  %1151 = vmatmul.mubr.f32.gmra.mrb[0].mxu0 %v927
  %v1152 = vpop.f32.mrb[0].mxu0
  %v1153 = vadd.f32 0.0, %v1152
  %v1154 = vpop.f32.mrb[0].mxu0
  %1155 = vmatprep.mubr.f32.mxu0 0.0
  %1156 = vmatmul.mubr.f32.gmra.mrb[0].mxu0 %v929
  %v1157 = vpop.f32.mrb[0].mxu0
  %v1158 = vadd.f32 0.0, %v1157
  %v1159 = vpop.f32.mrb[0].mxu0
  %1160 = vmatprep.mubr.f32.mxu0 0.0
  %1161 = vmatmul.mubr.f32.gmra.mrb[0].mxu0 %v931
  %v1162 = vpop.f32.mrb[0].mxu0
  %v1163 = vadd.f32 0.0, %v1162
  %v1164 = vpop.f32.mrb[0].mxu0
  %1165 = vdwg.mxu0
  %v1166 = vadd.f32 %v632, %v1003
  %v1167 = vadd.f32 %v637, %v1008
  %v1168 = vadd.f32 %v642, %v1013
  %v1169 = vadd.f32 %v647, %v1018
  %v1170 = vadd.f32 %v652, %v1023
  %v1171 = vadd.f32 %v657, %v1028
  %v1172 = vadd.f32 %v662, %v1033
  %v1173 = vadd.f32 %v667, %v1038
  %v1174 = vadd.f32 %v672, %v1043
  %v1175 = vadd.f32 %v677, %v1048
  %v1176 = vadd.f32 %v682, %v1053
  %v1177 = vadd.f32 %v687, %v1058
  %v1178 = vadd.f32 %v692, %v1063
  %v1179 = vadd.f32 %v697, %v1068
  %v1180 = vadd.f32 %v702, %v1073
  %v1181 = vadd.f32 %v707, %v1078
  %v1182 = vadd.f32 %v712, %v1083
  %v1183 = vadd.f32 %v717, %v1088
  %v1184 = vadd.f32 %v722, %v1093
  %v1185 = vadd.f32 %v727, %v1098
  %v1186 = vadd.f32 %v732, %v1103
  %v1187 = vadd.f32 %v737, %v1108
  %v1188 = vadd.f32 %v742, %v1113
  %v1189 = vadd.f32 %v747, %v1118
  %v1190 = vadd.f32 %v752, %v1123
  %v1191 = vadd.f32 %v757, %v1128
  %v1192 = vadd.f32 %v762, %v1133
  %v1193 = vadd.f32 %v767, %v1138
  %v1194 = vadd.f32 %v772, %v1143
  %v1195 = vadd.f32 %v777, %v1148
  %v1196 = vadd.f32 %v782, %v1153
  %v1197 = vadd.f32 %v787, %v1158
  %v1198 = vadd.f32 %v792, %v1163
  %s1199 = scalar_lea.vmem %s1, 48
  %v1200 = vld [vmem:[%s1199] sm:$0xff]
  %v1201 = vld [vmem:[%s1199 + $0x8] sm:$0x3]
  %vm1202 = vcmask 1044480
  %v1203 = vrot.slane %v54, 3
  %v1204 = vrot.slane %v55, 3
  %v1205 = vsel %vm1202, %v1203, %v1204
  %v1206 = vrot.slane %v56, 3
  %v1207 = vsel %vm1202, %v1204, %v1206
  %v1208 = vrot.slane %v57, 3
  %v1209 = vsel %vm1202, %v1206, %v1208
  %v1210 = vrot.slane %v58, 3
  %v1211 = vsel %vm1202, %v1208, %v1210
  %v1212 = vrot.slane %v59, 3
  %v1213 = vsel %vm1202, %v1210, %v1212
  %v1214 = vrot.slane %v60, 3
  %v1215 = vsel %vm1202, %v1212, %v1214
  %v1216 = vrot.slane %v61, 3
  %v1217 = vsel %vm1202, %v1214, %v1216
  %v1218 = vrot.slane %v62, 3
  %v1219 = vsel %vm1202, %v1216, %v1218
  %v1220 = vrot.slane %v63, 3
  %v1221 = vsel %vm1202, %v1218, %v1220
  %v1222 = vrot.slane %v64, 3
  %v1223 = vsel %vm1202, %v1220, %v1222
  %v1224 = vrot.slane %v65, 3
  %v1225 = vsel %vm1202, %v1222, %v1224
  %v1226 = vrot.slane %v66, 3
  %v1227 = vsel %vm1202, %v1224, %v1226
  %v1228 = vrot.slane %v67, 3
  %v1229 = vsel %vm1202, %v1226, %v1228
  %v1230 = vrot.slane %v68, 3
  %v1231 = vsel %vm1202, %v1228, %v1230
  %v1232 = vrot.slane %v69, 3
  %v1233 = vsel %vm1202, %v1230, %v1232
  %v1234 = vrot.slane %v70, 3
  %v1235 = vsel %vm1202, %v1232, %v1234
  %v1236 = vrot.slane %v71, 3
  %v1237 = vsel %vm1202, %v1234, %v1236
  %v1238 = vrot.slane %v72, 3
  %v1239 = vsel %vm1202, %v1236, %v1238
  %v1240 = vrot.slane %v73, 3
  %v1241 = vsel %vm1202, %v1238, %v1240
  %v1242 = vrot.slane %v74, 3
  %v1243 = vsel %vm1202, %v1240, %v1242
  %v1244 = vrot.slane %v75, 3
  %v1245 = vsel %vm1202, %v1242, %v1244
  %v1246 = vrot.slane %v76, 3
  %v1247 = vsel %vm1202, %v1244, %v1246
  %v1248 = vrot.slane %v77, 3
  %v1249 = vsel %vm1202, %v1246, %v1248
  %v1250 = vrot.slane %v78, 3
  %v1251 = vsel %vm1202, %v1248, %v1250
  %v1252 = vrot.slane %v79, 3
  %v1253 = vsel %vm1202, %v1250, %v1252
  %v1254 = vrot.slane %v80, 3
  %v1255 = vsel %vm1202, %v1252, %v1254
  %v1256 = vrot.slane %v81, 3
  %v1257 = vsel %vm1202, %v1254, %v1256
  %v1258 = vrot.slane %v82, 3
  %v1259 = vsel %vm1202, %v1256, %v1258
  %v1260 = vrot.slane %v83, 3
  %v1261 = vsel %vm1202, %v1258, %v1260
  %v1262 = vrot.slane %v84, 3
  %v1263 = vsel %vm1202, %v1260, %v1262
  %v1264 = vrot.slane %v85, 3
  %v1265 = vsel %vm1202, %v1262, %v1264
  %v1266 = vrot.slane %v86, 3
  %v1267 = vsel %vm1202, %v1264, %v1266
  %v1268 = vrot.slane %v87, 3
  %v1269 = vsel %vm1202, %v1266, %v1268
  %v1270 = vsel %vm195, %v1205, 0
  %v1272 = vsel %vm195, %v1207, 0
  %v1274 = vsel %vm195, %v1209, 0
  %v1276 = vsel %vm195, %v1211, 0
  %v1278 = vsel %vm195, %v1213, 0
  %v1280 = vsel %vm195, %v1215, 0
  %v1282 = vsel %vm195, %v1217, 0
  %v1284 = vsel %vm195, %v1219, 0
  %v1286 = vsel %vm195, %v1221, 0
  %v1288 = vsel %vm195, %v1223, 0
  %v1290 = vsel %vm195, %v1225, 0
  %v1292 = vsel %vm195, %v1227, 0
  %v1294 = vsel %vm195, %v1229, 0
  %v1296 = vsel %vm195, %v1231, 0
  %v1298 = vsel %vm195, %v1233, 0
  %v1300 = vsel %vm195, %v1235, 0
  %v1302 = vsel %vm195, %v1237, 0
  %v1304 = vsel %vm195, %v1239, 0
  %v1306 = vsel %vm195, %v1241, 0
  %v1308 = vsel %vm195, %v1243, 0
  %v1310 = vsel %vm195, %v1245, 0
  %v1312 = vsel %vm195, %v1247, 0
  %v1314 = vsel %vm195, %v1249, 0
  %v1316 = vsel %vm195, %v1251, 0
  %v1318 = vsel %vm195, %v1253, 0
  %v1320 = vsel %vm195, %v1255, 0
  %v1322 = vsel %vm195, %v1257, 0
  %v1324 = vsel %vm195, %v1259, 0
  %v1326 = vsel %vm195, %v1261, 0
  %v1328 = vsel %vm195, %v1263, 0
  %v1330 = vsel %vm195, %v1265, 0
  %v1332 = vsel %vm195, %v1267, 0
  %v1334 = vsel %vm195, %v1269, 0
  %v1337 = vsel %vm262, %v1201, 0
  %1339 = vmatprep.subr.mxu0 0.0
  %1340 = vmatpush1.msra.mxu0 %v1200
  %1341 = vmatprep.subr.mxu0 0.0
  %1342 = vmatpush1.msra.mxu0 %v1337
  %1343 = vmatprep.subr.mxu0 0.0
  %1344 = vmatpush1.msra.mxu0 0.0
  %1345 = vmatprep.subr.mxu0 0.0
  %1346 = vmatpush1.msra.mxu0 0.0
  %1347 = vmatprep.subr.mxu0 0.0
  %1348 = vmatpush1.msra.mxu0 0.0
  %1349 = vmatprep.subr.mxu0 0.0
  %1350 = vmatpush1.msra.mxu0 0.0
  %1351 = vmatprep.subr.mxu0 0.0
  %1352 = vmatpush1.msra.mxu0 0.0
  %1353 = vmatprep.subr.mxu0 0.0
  %1354 = vmatpush1.msra.mxu0 0.0
  %1355 = vmatprep.subr.mxu0 0.0
  %1356 = vmatpush1.msra.mxu0 0.0
  %1357 = vmatprep.subr.mxu0 0.0
  %1358 = vmatpush1.msra.mxu0 0.0
  %1359 = vmatprep.subr.mxu0 0.0
  %1360 = vmatpush1.msra.mxu0 0.0
  %1361 = vmatprep.subr.mxu0 0.0
  %1362 = vmatpush1.msra.mxu0 0.0
  %1363 = vmatprep.subr.mxu0 0.0
  %1364 = vmatpush1.msra.mxu0 0.0
  %1365 = vmatprep.subr.mxu0 0.0
  %1366 = vmatpush1.msra.mxu0 0.0
  %1367 = vmatprep.subr.mxu0 0.0
  %1368 = vmatpush1.msra.mxu0 0.0
  %1369 = vmatprep.subr.mxu0 0.0
  %1370 = vmatpush1.msra.mxu0 0.0
  %1371 = vmatprep.subr.mxu0 0.0
  %1372 = vmatpush1.msra.mxu0 0.0
  %1373 = vmatprep.subr.mxu0 0.0
  %1374 = vmatpush1.msra.mxu0 0.0
  %1375 = vmatprep.subr.mxu0 0.0
  %1376 = vmatpush1.msra.mxu0 0.0
  %1377 = vmatprep.subr.mxu0 0.0
  %1378 = vmatpush1.msra.mxu0 0.0
  %1379 = vmatprep.subr.mxu0 0.0
  %1380 = vmatpush1.msra.mxu0 0.0
  %1381 = vmatprep.subr.mxu0 0.0
  %1382 = vmatpush1.msra.mxu0 0.0
  %1383 = vmatprep.subr.mxu0 0.0
  %1384 = vmatpush1.msra.mxu0 0.0
  %1385 = vmatprep.subr.mxu0 0.0
  %1386 = vmatpush1.msra.mxu0 0.0
  %1387 = vmatprep.subr.mxu0 0.0
  %1388 = vmatpush1.msra.mxu0 0.0
  %1389 = vmatprep.subr.mxu0 0.0
  %1390 = vmatpush1.msra.mxu0 0.0
  %1391 = vmatprep.subr.mxu0 0.0
  %1392 = vmatpush1.msra.mxu0 0.0
  %1393 = vmatprep.subr.mxu0 0.0
  %1394 = vmatpush1.msra.mxu0 0.0
  %1395 = vmatprep.subr.mxu0 0.0
  %1396 = vmatpush1.msra.mxu0 0.0
  %1397 = vmatprep.subr.mxu0 0.0
  %1398 = vmatpush1.msra.mxu0 0.0
  %1399 = vmatprep.subr.mxu0 0.0
  %1400 = vmatpush1.msra.mxu0 0.0
  %1401 = vmatprep.subr.mxu0 0.0
  %1402 = vmatpush1.msra.mxu0 0.0
  %1403 = vmatprep.mubr.f32.mxu0 0.0
  %1404 = vmatmul.mubr.f32.gmra.mrb[0].mxu0 %v1270
  %v1405 = vpop.f32.mrb[0].mxu0
  %v1406 = vadd.f32 0.0, %v1405
  %v1407 = vpop.f32.mrb[0].mxu0
  %1408 = vmatprep.mubr.f32.mxu0 0.0
  %1409 = vmatmul.mubr.f32.gmra.mrb[0].mxu0 %v1272
  %v1410 = vpop.f32.mrb[0].mxu0
  %v1411 = vadd.f32 0.0, %v1410
  %v1412 = vpop.f32.mrb[0].mxu0
  %1413 = vmatprep.mubr.f32.mxu0 0.0
  %1414 = vmatmul.mubr.f32.gmra.mrb[0].mxu0 %v1274
  %v1415 = vpop.f32.mrb[0].mxu0
  %v1416 = vadd.f32 0.0, %v1415
  %v1417 = vpop.f32.mrb[0].mxu0
  %1418 = vmatprep.mubr.f32.mxu0 0.0
  %1419 = vmatmul.mubr.f32.gmra.mrb[0].mxu0 %v1276
  %v1420 = vpop.f32.mrb[0].mxu0
  %v1421 = vadd.f32 0.0, %v1420
  %v1422 = vpop.f32.mrb[0].mxu0
  %1423 = vmatprep.mubr.f32.mxu0 0.0
  %1424 = vmatmul.mubr.f32.gmra.mrb[0].mxu0 %v1278
  %v1425 = vpop.f32.mrb[0].mxu0
  %v1426 = vadd.f32 0.0, %v1425
  %v1427 = vpop.f32.mrb[0].mxu0
  %1428 = vmatprep.mubr.f32.mxu0 0.0
  %1429 = vmatmul.mubr.f32.gmra.mrb[0].mxu0 %v1280
  %v1430 = vpop.f32.mrb[0].mxu0
  %v1431 = vadd.f32 0.0, %v1430
  %v1432 = vpop.f32.mrb[0].mxu0
  %1433 = vmatprep.mubr.f32.mxu0 0.0
  %1434 = vmatmul.mubr.f32.gmra.mrb[0].mxu0 %v1282
  %v1435 = vpop.f32.mrb[0].mxu0
  %v1436 = vadd.f32 0.0, %v1435
  %v1437 = vpop.f32.mrb[0].mxu0
  %1438 = vmatprep.mubr.f32.mxu0 0.0
  %1439 = vmatmul.mubr.f32.gmra.mrb[0].mxu0 %v1284
  %v1440 = vpop.f32.mrb[0].mxu0
  %v1441 = vadd.f32 0.0, %v1440
  %v1442 = vpop.f32.mrb[0].mxu0
  %1443 = vmatprep.mubr.f32.mxu0 0.0
  %1444 = vmatmul.mubr.f32.gmra.mrb[0].mxu0 %v1286
  %v1445 = vpop.f32.mrb[0].mxu0
  %v1446 = vadd.f32 0.0, %v1445
  %v1447 = vpop.f32.mrb[0].mxu0
  %1448 = vmatprep.mubr.f32.mxu0 0.0
  %1449 = vmatmul.mubr.f32.gmra.mrb[0].mxu0 %v1288
  %v1450 = vpop.f32.mrb[0].mxu0
  %v1451 = vadd.f32 0.0, %v1450
  %v1452 = vpop.f32.mrb[0].mxu0
  %1453 = vmatprep.mubr.f32.mxu0 0.0
  %1454 = vmatmul.mubr.f32.gmra.mrb[0].mxu0 %v1290
  %v1455 = vpop.f32.mrb[0].mxu0
  %v1456 = vadd.f32 0.0, %v1455
  %v1457 = vpop.f32.mrb[0].mxu0
  %1458 = vmatprep.mubr.f32.mxu0 0.0
  %1459 = vmatmul.mubr.f32.gmra.mrb[0].mxu0 %v1292
  %v1460 = vpop.f32.mrb[0].mxu0
  %v1461 = vadd.f32 0.0, %v1460
  %v1462 = vpop.f32.mrb[0].mxu0
  %1463 = vmatprep.mubr.f32.mxu0 0.0
  %1464 = vmatmul.mubr.f32.gmra.mrb[0].mxu0 %v1294
  %v1465 = vpop.f32.mrb[0].mxu0
  %v1466 = vadd.f32 0.0, %v1465
  %v1467 = vpop.f32.mrb[0].mxu0
  %1468 = vmatprep.mubr.f32.mxu0 0.0
  %1469 = vmatmul.mubr.f32.gmra.mrb[0].mxu0 %v1296
  %v1470 = vpop.f32.mrb[0].mxu0
  %v1471 = vadd.f32 0.0, %v1470
  %v1472 = vpop.f32.mrb[0].mxu0
  %1473 = vmatprep.mubr.f32.mxu0 0.0
  %1474 = vmatmul.mubr.f32.gmra.mrb[0].mxu0 %v1298
  %v1475 = vpop.f32.mrb[0].mxu0
  %v1476 = vadd.f32 0.0, %v1475
  %v1477 = vpop.f32.mrb[0].mxu0
  %1478 = vmatprep.mubr.f32.mxu0 0.0
  %1479 = vmatmul.mubr.f32.gmra.mrb[0].mxu0 %v1300
  %v1480 = vpop.f32.mrb[0].mxu0
  %v1481 = vadd.f32 0.0, %v1480
  %v1482 = vpop.f32.mrb[0].mxu0
  %1483 = vmatprep.mubr.f32.mxu0 0.0
  %1484 = vmatmul.mubr.f32.gmra.mrb[0].mxu0 %v1302
  %v1485 = vpop.f32.mrb[0].mxu0
  %v1486 = vadd.f32 0.0, %v1485
  %v1487 = vpop.f32.mrb[0].mxu0
  %1488 = vmatprep.mubr.f32.mxu0 0.0
  %1489 = vmatmul.mubr.f32.gmra.mrb[0].mxu0 %v1304
  %v1490 = vpop.f32.mrb[0].mxu0
  %v1491 = vadd.f32 0.0, %v1490
  %v1492 = vpop.f32.mrb[0].mxu0
  %1493 = vmatprep.mubr.f32.mxu0 0.0
  %1494 = vmatmul.mubr.f32.gmra.mrb[0].mxu0 %v1306
  %v1495 = vpop.f32.mrb[0].mxu0
  %v1496 = vadd.f32 0.0, %v1495
  %v1497 = vpop.f32.mrb[0].mxu0
  %1498 = vmatprep.mubr.f32.mxu0 0.0
  %1499 = vmatmul.mubr.f32.gmra.mrb[0].mxu0 %v1308
  %v1500 = vpop.f32.mrb[0].mxu0
  %v1501 = vadd.f32 0.0, %v1500
  %v1502 = vpop.f32.mrb[0].mxu0
  %1503 = vmatprep.mubr.f32.mxu0 0.0
  %1504 = vmatmul.mubr.f32.gmra.mrb[0].mxu0 %v1310
  %v1505 = vpop.f32.mrb[0].mxu0
  %v1506 = vadd.f32 0.0, %v1505
  %v1507 = vpop.f32.mrb[0].mxu0
  %1508 = vmatprep.mubr.f32.mxu0 0.0
  %1509 = vmatmul.mubr.f32.gmra.mrb[0].mxu0 %v1312
  %v1510 = vpop.f32.mrb[0].mxu0
  %v1511 = vadd.f32 0.0, %v1510
  %v1512 = vpop.f32.mrb[0].mxu0
  %1513 = vmatprep.mubr.f32.mxu0 0.0
  %1514 = vmatmul.mubr.f32.gmra.mrb[0].mxu0 %v1314
  %v1515 = vpop.f32.mrb[0].mxu0
  %v1516 = vadd.f32 0.0, %v1515
  %v1517 = vpop.f32.mrb[0].mxu0
  %1518 = vmatprep.mubr.f32.mxu0 0.0
  %1519 = vmatmul.mubr.f32.gmra.mrb[0].mxu0 %v1316
  %v1520 = vpop.f32.mrb[0].mxu0
  %v1521 = vadd.f32 0.0, %v1520
  %v1522 = vpop.f32.mrb[0].mxu0
  %1523 = vmatprep.mubr.f32.mxu0 0.0
  %1524 = vmatmul.mubr.f32.gmra.mrb[0].mxu0 %v1318
  %v1525 = vpop.f32.mrb[0].mxu0
  %v1526 = vadd.f32 0.0, %v1525
  %v1527 = vpop.f32.mrb[0].mxu0
  %1528 = vmatprep.mubr.f32.mxu0 0.0
  %1529 = vmatmul.mubr.f32.gmra.mrb[0].mxu0 %v1320
  %v1530 = vpop.f32.mrb[0].mxu0
  %v1531 = vadd.f32 0.0, %v1530
  %v1532 = vpop.f32.mrb[0].mxu0
  %1533 = vmatprep.mubr.f32.mxu0 0.0
  %1534 = vmatmul.mubr.f32.gmra.mrb[0].mxu0 %v1322
  %v1535 = vpop.f32.mrb[0].mxu0
  %v1536 = vadd.f32 0.0, %v1535
  %v1537 = vpop.f32.mrb[0].mxu0
  %1538 = vmatprep.mubr.f32.mxu0 0.0
  %1539 = vmatmul.mubr.f32.gmra.mrb[0].mxu0 %v1324
  %v1540 = vpop.f32.mrb[0].mxu0
  %v1541 = vadd.f32 0.0, %v1540
  %v1542 = vpop.f32.mrb[0].mxu0
  %1543 = vmatprep.mubr.f32.mxu0 0.0
  %1544 = vmatmul.mubr.f32.gmra.mrb[0].mxu0 %v1326
  %v1545 = vpop.f32.mrb[0].mxu0
  %v1546 = vadd.f32 0.0, %v1545
  %v1547 = vpop.f32.mrb[0].mxu0
  %1548 = vmatprep.mubr.f32.mxu0 0.0
  %1549 = vmatmul.mubr.f32.gmra.mrb[0].mxu0 %v1328
  %v1550 = vpop.f32.mrb[0].mxu0
  %v1551 = vadd.f32 0.0, %v1550
  %v1552 = vpop.f32.mrb[0].mxu0
  %1553 = vmatprep.mubr.f32.mxu0 0.0
  %1554 = vmatmul.mubr.f32.gmra.mrb[0].mxu0 %v1330
  %v1555 = vpop.f32.mrb[0].mxu0
  %v1556 = vadd.f32 0.0, %v1555
  %v1557 = vpop.f32.mrb[0].mxu0
  %1558 = vmatprep.mubr.f32.mxu0 0.0
  %1559 = vmatmul.mubr.f32.gmra.mrb[0].mxu0 %v1332
  %v1560 = vpop.f32.mrb[0].mxu0
  %v1561 = vadd.f32 0.0, %v1560
  %v1562 = vpop.f32.mrb[0].mxu0
  %1563 = vmatprep.mubr.f32.mxu0 0.0
  %1564 = vmatmul.mubr.f32.gmra.mrb[0].mxu0 %v1334
  %v1565 = vpop.f32.mrb[0].mxu0
  %v1566 = vadd.f32 0.0, %v1565
  %v1567 = vpop.f32.mrb[0].mxu0
  %1568 = vdwg.mxu0
  %v1569 = vadd.f32 %v1166, %v1406
  %v1570 = vadd.f32 %v1167, %v1411
  %v1571 = vadd.f32 %v1168, %v1416
  %v1572 = vadd.f32 %v1169, %v1421
  %v1573 = vadd.f32 %v1170, %v1426
  %v1574 = vadd.f32 %v1171, %v1431
  %v1575 = vadd.f32 %v1172, %v1436
  %v1576 = vadd.f32 %v1173, %v1441
  %v1577 = vadd.f32 %v1174, %v1446
  %v1578 = vadd.f32 %v1175, %v1451
  %v1579 = vadd.f32 %v1176, %v1456
  %v1580 = vadd.f32 %v1177, %v1461
  %v1581 = vadd.f32 %v1178, %v1466
  %v1582 = vadd.f32 %v1179, %v1471
  %v1583 = vadd.f32 %v1180, %v1476
  %v1584 = vadd.f32 %v1181, %v1481
  %v1585 = vadd.f32 %v1182, %v1486
  %v1586 = vadd.f32 %v1183, %v1491
  %v1587 = vadd.f32 %v1184, %v1496
  %v1588 = vadd.f32 %v1185, %v1501
  %v1589 = vadd.f32 %v1186, %v1506
  %v1590 = vadd.f32 %v1187, %v1511
  %v1591 = vadd.f32 %v1188, %v1516
  %v1592 = vadd.f32 %v1189, %v1521
  %v1593 = vadd.f32 %v1190, %v1526
  %v1594 = vadd.f32 %v1191, %v1531
  %v1595 = vadd.f32 %v1192, %v1536
  %v1596 = vadd.f32 %v1193, %v1541
  %v1597 = vadd.f32 %v1194, %v1546
  %v1598 = vadd.f32 %v1195, %v1551
  %v1599 = vadd.f32 %v1196, %v1556
  %v1600 = vadd.f32 %v1197, %v1561
  %v1601 = vadd.f32 %v1198, %v1566
  %v1602 = vld [vmem:[%s2] sm:$0x1]
  %v1604 = vlaneseq
  %v1605 = vshrl.u32 %v1604, 7
  %v1606 = vsub.s32 0, %v1605
  %v1607 = vrot.slane %v1602, %v1606
  %v1609 = vadd.f32 %v1569, %v1607
  %v1610 = vadd.f32 %v1570, %v1607
  %v1611 = vadd.f32 %v1571, %v1607
  %v1612 = vadd.f32 %v1572, %v1607
  %v1613 = vadd.f32 %v1573, %v1607
  %v1614 = vadd.f32 %v1574, %v1607
  %v1615 = vadd.f32 %v1575, %v1607
  %v1616 = vadd.f32 %v1576, %v1607
  %v1617 = vadd.f32 %v1577, %v1607
  %v1618 = vadd.f32 %v1578, %v1607
  %v1619 = vadd.f32 %v1579, %v1607
  %v1620 = vadd.f32 %v1580, %v1607
  %v1621 = vadd.f32 %v1581, %v1607
  %v1622 = vadd.f32 %v1582, %v1607
  %v1623 = vadd.f32 %v1583, %v1607
  %v1624 = vadd.f32 %v1584, %v1607
  %v1625 = vadd.f32 %v1585, %v1607
  %v1626 = vadd.f32 %v1586, %v1607
  %v1627 = vadd.f32 %v1587, %v1607
  %v1628 = vadd.f32 %v1588, %v1607
  %v1629 = vadd.f32 %v1589, %v1607
  %v1630 = vadd.f32 %v1590, %v1607
  %v1631 = vadd.f32 %v1591, %v1607
  %v1632 = vadd.f32 %v1592, %v1607
  %v1633 = vadd.f32 %v1593, %v1607
  %v1634 = vadd.f32 %v1594, %v1607
  %v1635 = vadd.f32 %v1595, %v1607
  %v1636 = vadd.f32 %v1596, %v1607
  %v1637 = vadd.f32 %v1597, %v1607
  %v1638 = vadd.f32 %v1598, %v1607
  %v1639 = vadd.f32 %v1599, %v1607
  %v1640 = vadd.f32 %v1600, %v1607
  %v1641 = vadd.f32 %v1601, %v1607
  %v1642 = vmax.f32 %v1609, 0.0
  %v1643 = vmax.f32 %v1610, 0.0
  %v1644 = vmax.f32 %v1611, 0.0
  %v1645 = vmax.f32 %v1612, 0.0
  %v1646 = vmax.f32 %v1613, 0.0
  %v1647 = vmax.f32 %v1614, 0.0
  %v1648 = vmax.f32 %v1615, 0.0
  %v1649 = vmax.f32 %v1616, 0.0
  %v1650 = vmax.f32 %v1617, 0.0
  %v1651 = vmax.f32 %v1618, 0.0
  %v1652 = vmax.f32 %v1619, 0.0
  %v1653 = vmax.f32 %v1620, 0.0
  %v1654 = vmax.f32 %v1621, 0.0
  %v1655 = vmax.f32 %v1622, 0.0
  %v1656 = vmax.f32 %v1623, 0.0
  %v1657 = vmax.f32 %v1624, 0.0
  %v1658 = vmax.f32 %v1625, 0.0
  %v1659 = vmax.f32 %v1626, 0.0
  %v1660 = vmax.f32 %v1627, 0.0
  %v1661 = vmax.f32 %v1628, 0.0
  %v1662 = vmax.f32 %v1629, 0.0
  %v1663 = vmax.f32 %v1630, 0.0
  %v1664 = vmax.f32 %v1631, 0.0
  %v1665 = vmax.f32 %v1632, 0.0
  %v1666 = vmax.f32 %v1633, 0.0
  %v1667 = vmax.f32 %v1634, 0.0
  %v1668 = vmax.f32 %v1635, 0.0
  %v1669 = vmax.f32 %v1636, 0.0
  %v1670 = vmax.f32 %v1637, 0.0
  %v1671 = vmax.f32 %v1638, 0.0
  %v1672 = vmax.f32 %v1639, 0.0
  %v1673 = vmax.f32 %v1640, 0.0
  %v1674 = vmax.f32 %v1641, 0.0
  %v1675 = vld [vmem:[%s3] sm:$0xff]
  %v1676 = vld [vmem:[%s3 + $0x8] sm:$0xff]
  %v1677 = vld [vmem:[%s3 + $0x10] sm:$0xff]
  %v1678 = vld [vmem:[%s3 + $0x18] sm:$0xff]
  %v1679 = vld [vmem:[%s3 + $0x20] sm:$0xff]
  %v1680 = vld [vmem:[%s3 + $0x28] sm:$0xff]
  %v1681 = vld [vmem:[%s3 + $0x30] sm:$0xff]
  %v1682 = vld [vmem:[%s3 + $0x38] sm:$0xff]
  %v1683 = vld [vmem:[%s3 + $0x40] sm:$0xff]
  %s1684 = scalar_lea.vmem %s3, 72
  %v1685 = vld [vmem:[%s1684] sm:$0xff]
  %v1686 = vld [vmem:[%s1684 + $0x8] sm:$0xff]
  %v1687 = vld [vmem:[%s1684 + $0x10] sm:$0xff]
  %v1688 = vld [vmem:[%s1684 + $0x18] sm:$0xff]
  %v1689 = vld [vmem:[%s1684 + $0x20] sm:$0xff]
  %v1690 = vld [vmem:[%s1684 + $0x28] sm:$0xff]
  %v1691 = vld [vmem:[%s1684 + $0x30] sm:$0xff]
  %v1692 = vld [vmem:[%s1684 + $0x38] sm:$0xff]
  %v1693 = vld [vmem:[%s1684 + $0x40] sm:$0xff]
  %v1726 = vrot.slane %v1642, 1
  %v1727 = vrot.slane %v1643, 1
  %v1728 = vsel %vm127, %v1726, %v1727
  %v1729 = vrot.slane %v1644, 1
  %v1730 = vsel %vm127, %v1727, %v1729
  %v1731 = vrot.slane %v1645, 1
  %v1732 = vsel %vm127, %v1729, %v1731
  %v1733 = vrot.slane %v1646, 1
  %v1734 = vsel %vm127, %v1731, %v1733
  %v1735 = vrot.slane %v1647, 1
  %v1736 = vsel %vm127, %v1733, %v1735
  %v1737 = vrot.slane %v1648, 1
  %v1738 = vsel %vm127, %v1735, %v1737
  %v1739 = vrot.slane %v1649, 1
  %v1740 = vsel %vm127, %v1737, %v1739
  %v1741 = vrot.slane %v1650, 1
  %v1742 = vsel %vm127, %v1739, %v1741
  %v1743 = vrot.slane %v1651, 1
  %v1744 = vsel %vm127, %v1741, %v1743
  %v1745 = vrot.slane %v1652, 1
  %v1746 = vsel %vm127, %v1743, %v1745
  %v1747 = vrot.slane %v1653, 1
  %v1748 = vsel %vm127, %v1745, %v1747
  %v1749 = vrot.slane %v1654, 1
  %v1750 = vsel %vm127, %v1747, %v1749
  %v1751 = vrot.slane %v1655, 1
  %v1752 = vsel %vm127, %v1749, %v1751
  %v1753 = vrot.slane %v1656, 1
  %v1754 = vsel %vm127, %v1751, %v1753
  %v1755 = vrot.slane %v1657, 1
  %v1756 = vsel %vm127, %v1753, %v1755
  %v1757 = vrot.slane %v1658, 1
  %v1758 = vsel %vm127, %v1755, %v1757
  %v1759 = vrot.slane %v1659, 1
  %v1760 = vsel %vm127, %v1757, %v1759
  %v1761 = vrot.slane %v1660, 1
  %v1762 = vsel %vm127, %v1759, %v1761
  %v1763 = vrot.slane %v1661, 1
  %v1764 = vsel %vm127, %v1761, %v1763
  %v1765 = vrot.slane %v1662, 1
  %v1766 = vsel %vm127, %v1763, %v1765
  %v1767 = vrot.slane %v1663, 1
  %v1768 = vsel %vm127, %v1765, %v1767
  %v1769 = vrot.slane %v1664, 1
  %v1770 = vsel %vm127, %v1767, %v1769
  %v1771 = vrot.slane %v1665, 1
  %v1772 = vsel %vm127, %v1769, %v1771
  %v1773 = vrot.slane %v1666, 1
  %v1774 = vsel %vm127, %v1771, %v1773
  %v1775 = vrot.slane %v1667, 1
  %v1776 = vsel %vm127, %v1773, %v1775
  %v1777 = vrot.slane %v1668, 1
  %v1778 = vsel %vm127, %v1775, %v1777
  %v1779 = vrot.slane %v1669, 1
  %v1780 = vsel %vm127, %v1777, %v1779
  %v1781 = vrot.slane %v1670, 1
  %v1782 = vsel %vm127, %v1779, %v1781
  %v1783 = vrot.slane %v1671, 1
  %v1784 = vsel %vm127, %v1781, %v1783
  %v1785 = vrot.slane %v1672, 1
  %v1786 = vsel %vm127, %v1783, %v1785
  %v1787 = vrot.slane %v1673, 1
  %v1788 = vsel %vm127, %v1785, %v1787
  %vm1789 = vcmask 588800
  %v1790 = vsel %vm1789, %v1728, 0
  %v1792 = vsel %vm1789, %v1730, 0
  %v1794 = vsel %vm1789, %v1732, 0
  %v1796 = vsel %vm1789, %v1734, 0
  %v1798 = vsel %vm1789, %v1736, 0
  %v1800 = vsel %vm1789, %v1738, 0
  %v1802 = vsel %vm1789, %v1740, 0
  %v1804 = vsel %vm1789, %v1742, 0
  %v1806 = vsel %vm1789, %v1744, 0
  %v1808 = vsel %vm1789, %v1746, 0
  %v1810 = vsel %vm1789, %v1748, 0
  %v1812 = vsel %vm1789, %v1750, 0
  %v1814 = vsel %vm1789, %v1752, 0
  %v1816 = vsel %vm1789, %v1754, 0
  %v1818 = vsel %vm1789, %v1756, 0
  %v1820 = vsel %vm1789, %v1758, 0
  %v1822 = vsel %vm1789, %v1760, 0
  %v1824 = vsel %vm1789, %v1762, 0
  %v1826 = vsel %vm1789, %v1764, 0
  %v1828 = vsel %vm1789, %v1766, 0
  %v1830 = vsel %vm1789, %v1768, 0
  %v1832 = vsel %vm1789, %v1770, 0
  %v1834 = vsel %vm1789, %v1772, 0
  %v1836 = vsel %vm1789, %v1774, 0
  %v1838 = vsel %vm1789, %v1776, 0
  %v1840 = vsel %vm1789, %v1778, 0
  %v1842 = vsel %vm1789, %v1780, 0
  %v1844 = vsel %vm1789, %v1782, 0
  %v1846 = vsel %vm1789, %v1784, 0
  %v1848 = vsel %vm1789, %v1786, 0
  %v1850 = vsel %vm1789, %v1788, 0
  %1852 = vmatprep.subr.mxu0 0.0
  %1853 = vmatpush1.msra.mxu0 %v1685
  %1854 = vmatprep.subr.mxu0 0.0
  %1855 = vmatpush1.msra.mxu0 %v1686
  %1856 = vmatprep.subr.mxu0 0.0
  %1857 = vmatpush1.msra.mxu0 %v1687
  %1858 = vmatprep.subr.mxu0 0.0
  %1859 = vmatpush1.msra.mxu0 %v1688
  %1860 = vmatprep.subr.mxu0 0.0
  %1861 = vmatpush1.msra.mxu0 %v1689
  %1862 = vmatprep.subr.mxu0 0.0
  %1863 = vmatpush1.msra.mxu0 %v1690
  %1864 = vmatprep.subr.mxu0 0.0
  %1865 = vmatpush1.msra.mxu0 %v1691
  %1866 = vmatprep.subr.mxu0 0.0
  %1867 = vmatpush1.msra.mxu0 %v1692
  %1868 = vmatprep.subr.mxu0 0.0
  %1869 = vmatpush1.msra.mxu0 %v1693
  %1870 = vmatprep.subr.mxu0 0.0
  %1871 = vmatpush1.msra.mxu0 0.0
  %1872 = vmatprep.subr.mxu0 0.0
  %1873 = vmatpush1.msra.mxu0 0.0
  %1874 = vmatprep.subr.mxu0 0.0
  %1875 = vmatpush1.msra.mxu0 0.0
  %1876 = vmatprep.subr.mxu0 0.0
  %1877 = vmatpush1.msra.mxu0 0.0
  %1878 = vmatprep.subr.mxu0 0.0
  %1879 = vmatpush1.msra.mxu0 0.0
  %1880 = vmatprep.subr.mxu0 0.0
  %1881 = vmatpush1.msra.mxu0 0.0
  %1882 = vmatprep.subr.mxu0 0.0
  %1883 = vmatpush1.msra.mxu0 0.0
  %1884 = vmatprep.subr.mxu0 0.0
  %1885 = vmatpush1.msra.mxu0 0.0
  %1886 = vmatprep.subr.mxu0 0.0
  %1887 = vmatpush1.msra.mxu0 0.0
  %1888 = vmatprep.subr.mxu0 0.0
  %1889 = vmatpush1.msra.mxu0 0.0
  %1890 = vmatprep.subr.mxu0 0.0
  %1891 = vmatpush1.msra.mxu0 0.0
  %1892 = vmatprep.subr.mxu0 0.0
  %1893 = vmatpush1.msra.mxu0 0.0
  %1894 = vmatprep.subr.mxu0 0.0
  %1895 = vmatpush1.msra.mxu0 0.0
  %1896 = vmatprep.subr.mxu0 0.0
  %1897 = vmatpush1.msra.mxu0 0.0
  %1898 = vmatprep.subr.mxu0 0.0
  %1899 = vmatpush1.msra.mxu0 0.0
  %1900 = vmatprep.subr.mxu0 0.0
  %1901 = vmatpush1.msra.mxu0 0.0
  %1902 = vmatprep.subr.mxu0 0.0
  %1903 = vmatpush1.msra.mxu0 0.0
  %1904 = vmatprep.subr.mxu0 0.0
  %1905 = vmatpush1.msra.mxu0 0.0
  %1906 = vmatprep.subr.mxu0 0.0
  %1907 = vmatpush1.msra.mxu0 0.0
  %1908 = vmatprep.subr.mxu0 0.0
  %1909 = vmatpush1.msra.mxu0 0.0
  %1910 = vmatprep.subr.mxu0 0.0
  %1911 = vmatpush1.msra.mxu0 0.0
  %1912 = vmatprep.subr.mxu0 0.0
  %1913 = vmatpush1.msra.mxu0 0.0
  %1914 = vmatprep.subr.mxu0 0.0
  %1915 = vmatpush1.msra.mxu0 0.0
  %1916 = vmatprep.mubr.f32.mxu0 0.0
  %1917 = vmatmul.mubr.f32.gmra.mrb[0].mxu0 %v1790
  %v1918 = vpop.f32.mrb[0].mxu0
  %v1919 = vadd.f32 0.0, %v1918
  %v1920 = vpop.f32.mrb[0].mxu0
  %1921 = vmatprep.mubr.f32.mxu0 0.0
  %1922 = vmatmul.mubr.f32.gmra.mrb[0].mxu0 %v1792
  %v1923 = vpop.f32.mrb[0].mxu0
  %v1924 = vadd.f32 0.0, %v1923
  %v1925 = vpop.f32.mrb[0].mxu0
  %1926 = vmatprep.mubr.f32.mxu0 0.0
  %1927 = vmatmul.mubr.f32.gmra.mrb[0].mxu0 %v1794
  %v1928 = vpop.f32.mrb[0].mxu0
  %v1929 = vadd.f32 0.0, %v1928
  %v1930 = vpop.f32.mrb[0].mxu0
  %1931 = vmatprep.mubr.f32.mxu0 0.0
  %1932 = vmatmul.mubr.f32.gmra.mrb[0].mxu0 %v1796
  %v1933 = vpop.f32.mrb[0].mxu0
  %v1934 = vadd.f32 0.0, %v1933
  %v1935 = vpop.f32.mrb[0].mxu0
  %1936 = vmatprep.mubr.f32.mxu0 0.0
  %1937 = vmatmul.mubr.f32.gmra.mrb[0].mxu0 %v1798
  %v1938 = vpop.f32.mrb[0].mxu0
  %v1939 = vadd.f32 0.0, %v1938
  %v1940 = vpop.f32.mrb[0].mxu0
  %1941 = vmatprep.mubr.f32.mxu0 0.0
  %1942 = vmatmul.mubr.f32.gmra.mrb[0].mxu0 %v1800
  %v1943 = vpop.f32.mrb[0].mxu0
  %v1944 = vadd.f32 0.0, %v1943
  %v1945 = vpop.f32.mrb[0].mxu0
  %1946 = vmatprep.mubr.f32.mxu0 0.0
  %1947 = vmatmul.mubr.f32.gmra.mrb[0].mxu0 %v1802
  %v1948 = vpop.f32.mrb[0].mxu0
  %v1949 = vadd.f32 0.0, %v1948
  %v1950 = vpop.f32.mrb[0].mxu0
  %1951 = vmatprep.mubr.f32.mxu0 0.0
  %1952 = vmatmul.mubr.f32.gmra.mrb[0].mxu0 %v1804
  %v1953 = vpop.f32.mrb[0].mxu0
  %v1954 = vadd.f32 0.0, %v1953
  %v1955 = vpop.f32.mrb[0].mxu0
  %1956 = vmatprep.mubr.f32.mxu0 0.0
  %1957 = vmatmul.mubr.f32.gmra.mrb[0].mxu0 %v1806
  %v1958 = vpop.f32.mrb[0].mxu0
  %v1959 = vadd.f32 0.0, %v1958
  %v1960 = vpop.f32.mrb[0].mxu0
  %1961 = vmatprep.mubr.f32.mxu0 0.0
  %1962 = vmatmul.mubr.f32.gmra.mrb[0].mxu0 %v1808
  %v1963 = vpop.f32.mrb[0].mxu0
  %v1964 = vadd.f32 0.0, %v1963
  %v1965 = vpop.f32.mrb[0].mxu0
  %1966 = vmatprep.mubr.f32.mxu0 0.0
  %1967 = vmatmul.mubr.f32.gmra.mrb[0].mxu0 %v1810
  %v1968 = vpop.f32.mrb[0].mxu0
  %v1969 = vadd.f32 0.0, %v1968
  %v1970 = vpop.f32.mrb[0].mxu0
  %1971 = vmatprep.mubr.f32.mxu0 0.0
  %1972 = vmatmul.mubr.f32.gmra.mrb[0].mxu0 %v1812
  %v1973 = vpop.f32.mrb[0].mxu0
  %v1974 = vadd.f32 0.0, %v1973
  %v1975 = vpop.f32.mrb[0].mxu0
  %1976 = vmatprep.mubr.f32.mxu0 0.0
  %1977 = vmatmul.mubr.f32.gmra.mrb[0].mxu0 %v1814
  %v1978 = vpop.f32.mrb[0].mxu0
  %v1979 = vadd.f32 0.0, %v1978
  %v1980 = vpop.f32.mrb[0].mxu0
  %1981 = vmatprep.mubr.f32.mxu0 0.0
  %1982 = vmatmul.mubr.f32.gmra.mrb[0].mxu0 %v1816
  %v1983 = vpop.f32.mrb[0].mxu0
  %v1984 = vadd.f32 0.0, %v1983
  %v1985 = vpop.f32.mrb[0].mxu0
  %1986 = vmatprep.mubr.f32.mxu0 0.0
  %1987 = vmatmul.mubr.f32.gmra.mrb[0].mxu0 %v1818
  %v1988 = vpop.f32.mrb[0].mxu0
  %v1989 = vadd.f32 0.0, %v1988
  %v1990 = vpop.f32.mrb[0].mxu0
  %1991 = vmatprep.mubr.f32.mxu0 0.0
  %1992 = vmatmul.mubr.f32.gmra.mrb[0].mxu0 %v1820
  %v1993 = vpop.f32.mrb[0].mxu0
  %v1994 = vadd.f32 0.0, %v1993
  %v1995 = vpop.f32.mrb[0].mxu0
  %1996 = vmatprep.mubr.f32.mxu0 0.0
  %1997 = vmatmul.mubr.f32.gmra.mrb[0].mxu0 %v1822
  %v1998 = vpop.f32.mrb[0].mxu0
  %v1999 = vadd.f32 0.0, %v1998
  %v2000 = vpop.f32.mrb[0].mxu0
  %2001 = vmatprep.mubr.f32.mxu0 0.0
  %2002 = vmatmul.mubr.f32.gmra.mrb[0].mxu0 %v1824
  %v2003 = vpop.f32.mrb[0].mxu0
  %v2004 = vadd.f32 0.0, %v2003
  %v2005 = vpop.f32.mrb[0].mxu0
  %2006 = vmatprep.mubr.f32.mxu0 0.0
  %2007 = vmatmul.mubr.f32.gmra.mrb[0].mxu0 %v1826
  %v2008 = vpop.f32.mrb[0].mxu0
  %v2009 = vadd.f32 0.0, %v2008
  %v2010 = vpop.f32.mrb[0].mxu0
  %2011 = vmatprep.mubr.f32.mxu0 0.0
  %2012 = vmatmul.mubr.f32.gmra.mrb[0].mxu0 %v1828
  %v2013 = vpop.f32.mrb[0].mxu0
  %v2014 = vadd.f32 0.0, %v2013
  %v2015 = vpop.f32.mrb[0].mxu0
  %2016 = vmatprep.mubr.f32.mxu0 0.0
  %2017 = vmatmul.mubr.f32.gmra.mrb[0].mxu0 %v1830
  %v2018 = vpop.f32.mrb[0].mxu0
  %v2019 = vadd.f32 0.0, %v2018
  %v2020 = vpop.f32.mrb[0].mxu0
  %2021 = vmatprep.mubr.f32.mxu0 0.0
  %2022 = vmatmul.mubr.f32.gmra.mrb[0].mxu0 %v1832
  %v2023 = vpop.f32.mrb[0].mxu0
  %v2024 = vadd.f32 0.0, %v2023
  %v2025 = vpop.f32.mrb[0].mxu0
  %2026 = vmatprep.mubr.f32.mxu0 0.0
  %2027 = vmatmul.mubr.f32.gmra.mrb[0].mxu0 %v1834
  %v2028 = vpop.f32.mrb[0].mxu0
  %v2029 = vadd.f32 0.0, %v2028
  %v2030 = vpop.f32.mrb[0].mxu0
  %2031 = vmatprep.mubr.f32.mxu0 0.0
  %2032 = vmatmul.mubr.f32.gmra.mrb[0].mxu0 %v1836
  %v2033 = vpop.f32.mrb[0].mxu0
  %v2034 = vadd.f32 0.0, %v2033
  %v2035 = vpop.f32.mrb[0].mxu0
  %2036 = vmatprep.mubr.f32.mxu0 0.0
  %2037 = vmatmul.mubr.f32.gmra.mrb[0].mxu0 %v1838
  %v2038 = vpop.f32.mrb[0].mxu0
  %v2039 = vadd.f32 0.0, %v2038
  %v2040 = vpop.f32.mrb[0].mxu0
  %2041 = vmatprep.mubr.f32.mxu0 0.0
  %2042 = vmatmul.mubr.f32.gmra.mrb[0].mxu0 %v1840
  %v2043 = vpop.f32.mrb[0].mxu0
  %v2044 = vadd.f32 0.0, %v2043
  %v2045 = vpop.f32.mrb[0].mxu0
  %2046 = vmatprep.mubr.f32.mxu0 0.0
  %2047 = vmatmul.mubr.f32.gmra.mrb[0].mxu0 %v1842
  %v2048 = vpop.f32.mrb[0].mxu0
  %v2049 = vadd.f32 0.0, %v2048
  %v2050 = vpop.f32.mrb[0].mxu0
  %2051 = vmatprep.mubr.f32.mxu0 0.0
  %2052 = vmatmul.mubr.f32.gmra.mrb[0].mxu0 %v1844
  %v2053 = vpop.f32.mrb[0].mxu0
  %v2054 = vadd.f32 0.0, %v2053
  %v2055 = vpop.f32.mrb[0].mxu0
  %2056 = vmatprep.mubr.f32.mxu0 0.0
  %2057 = vmatmul.mubr.f32.gmra.mrb[0].mxu0 %v1846
  %v2058 = vpop.f32.mrb[0].mxu0
  %v2059 = vadd.f32 0.0, %v2058
  %v2060 = vpop.f32.mrb[0].mxu0
  %2061 = vmatprep.mubr.f32.mxu0 0.0
  %2062 = vmatmul.mubr.f32.gmra.mrb[0].mxu0 %v1848
  %v2063 = vpop.f32.mrb[0].mxu0
  %v2064 = vadd.f32 0.0, %v2063
  %v2065 = vpop.f32.mrb[0].mxu0
  %2066 = vmatprep.mubr.f32.mxu0 0.0
  %2067 = vmatmul.mubr.f32.gmra.mrb[0].mxu0 %v1850
  %v2068 = vpop.f32.mrb[0].mxu0
  %v2069 = vadd.f32 0.0, %v2068
  %v2070 = vpop.f32.mrb[0].mxu0
  %2071 = vdwg.mxu0
  %v2072 = vsel %vm1789, %v1642, 0
  %v2074 = vsel %vm1789, %v1643, 0
  %v2076 = vsel %vm1789, %v1644, 0
  %v2078 = vsel %vm1789, %v1645, 0
  %v2080 = vsel %vm1789, %v1646, 0
  %v2082 = vsel %vm1789, %v1647, 0
  %v2084 = vsel %vm1789, %v1648, 0
  %v2086 = vsel %vm1789, %v1649, 0
  %v2088 = vsel %vm1789, %v1650, 0
  %v2090 = vsel %vm1789, %v1651, 0
  %v2092 = vsel %vm1789, %v1652, 0
  %v2094 = vsel %vm1789, %v1653, 0
  %v2096 = vsel %vm1789, %v1654, 0
  %v2098 = vsel %vm1789, %v1655, 0
  %v2100 = vsel %vm1789, %v1656, 0
  %v2102 = vsel %vm1789, %v1657, 0
  %v2104 = vsel %vm1789, %v1658, 0
  %v2106 = vsel %vm1789, %v1659, 0
  %v2108 = vsel %vm1789, %v1660, 0
  %v2110 = vsel %vm1789, %v1661, 0
  %v2112 = vsel %vm1789, %v1662, 0
  %v2114 = vsel %vm1789, %v1663, 0
  %v2116 = vsel %vm1789, %v1664, 0
  %v2118 = vsel %vm1789, %v1665, 0
  %v2120 = vsel %vm1789, %v1666, 0
  %v2122 = vsel %vm1789, %v1667, 0
  %v2124 = vsel %vm1789, %v1668, 0
  %v2126 = vsel %vm1789, %v1669, 0
  %v2128 = vsel %vm1789, %v1670, 0
  %v2130 = vsel %vm1789, %v1671, 0
  %v2132 = vsel %vm1789, %v1672, 0
  %2134 = vmatprep.subr.mxu0 0.0
  %2135 = vmatpush1.msra.mxu0 %v1675
  %2136 = vmatprep.subr.mxu0 0.0
  %2137 = vmatpush1.msra.mxu0 %v1676
  %2138 = vmatprep.subr.mxu0 0.0
  %2139 = vmatpush1.msra.mxu0 %v1677
  %2140 = vmatprep.subr.mxu0 0.0
  %2141 = vmatpush1.msra.mxu0 %v1678
  %2142 = vmatprep.subr.mxu0 0.0
  %2143 = vmatpush1.msra.mxu0 %v1679
  %2144 = vmatprep.subr.mxu0 0.0
  %2145 = vmatpush1.msra.mxu0 %v1680
  %2146 = vmatprep.subr.mxu0 0.0
  %2147 = vmatpush1.msra.mxu0 %v1681
  %2148 = vmatprep.subr.mxu0 0.0
  %2149 = vmatpush1.msra.mxu0 %v1682
  %2150 = vmatprep.subr.mxu0 0.0
  %2151 = vmatpush1.msra.mxu0 %v1683
  %2152 = vmatprep.subr.mxu0 0.0
  %2153 = vmatpush1.msra.mxu0 0.0
  %2154 = vmatprep.subr.mxu0 0.0
  %2155 = vmatpush1.msra.mxu0 0.0
  %2156 = vmatprep.subr.mxu0 0.0
  %2157 = vmatpush1.msra.mxu0 0.0
  %2158 = vmatprep.subr.mxu0 0.0
  %2159 = vmatpush1.msra.mxu0 0.0
  %2160 = vmatprep.subr.mxu0 0.0
  %2161 = vmatpush1.msra.mxu0 0.0
  %2162 = vmatprep.subr.mxu0 0.0
  %2163 = vmatpush1.msra.mxu0 0.0
  %2164 = vmatprep.subr.mxu0 0.0
  %2165 = vmatpush1.msra.mxu0 0.0
  %2166 = vmatprep.subr.mxu0 0.0
  %2167 = vmatpush1.msra.mxu0 0.0
  %2168 = vmatprep.subr.mxu0 0.0
  %2169 = vmatpush1.msra.mxu0 0.0
  %2170 = vmatprep.subr.mxu0 0.0
  %2171 = vmatpush1.msra.mxu0 0.0
  %2172 = vmatprep.subr.mxu0 0.0
  %2173 = vmatpush1.msra.mxu0 0.0
  %2174 = vmatprep.subr.mxu0 0.0
  %2175 = vmatpush1.msra.mxu0 0.0
  %2176 = vmatprep.subr.mxu0 0.0
  %2177 = vmatpush1.msra.mxu0 0.0
  %2178 = vmatprep.subr.mxu0 0.0
  %2179 = vmatpush1.msra.mxu0 0.0
  %2180 = vmatprep.subr.mxu0 0.0
  %2181 = vmatpush1.msra.mxu0 0.0
  %2182 = vmatprep.subr.mxu0 0.0
  %2183 = vmatpush1.msra.mxu0 0.0
  %2184 = vmatprep.subr.mxu0 0.0
  %2185 = vmatpush1.msra.mxu0 0.0
  %2186 = vmatprep.subr.mxu0 0.0
  %2187 = vmatpush1.msra.mxu0 0.0
  %2188 = vmatprep.subr.mxu0 0.0
  %2189 = vmatpush1.msra.mxu0 0.0
  %2190 = vmatprep.subr.mxu0 0.0
  %2191 = vmatpush1.msra.mxu0 0.0
  %2192 = vmatprep.subr.mxu0 0.0
  %2193 = vmatpush1.msra.mxu0 0.0
  %2194 = vmatprep.subr.mxu0 0.0
  %2195 = vmatpush1.msra.mxu0 0.0
  %2196 = vmatprep.subr.mxu0 0.0
  %2197 = vmatpush1.msra.mxu0 0.0
  %2198 = vmatprep.mubr.f32.mxu0 0.0
  %2199 = vmatmul.mubr.f32.gmra.mrb[0].mxu0 %v2072
  %v2200 = vpop.f32.mrb[0].mxu0
  %v2201 = vadd.f32 %v1919, %v2200
  %v2202 = vpop.f32.mrb[0].mxu0
  %2203 = vmatprep.mubr.f32.mxu0 0.0
  %2204 = vmatmul.mubr.f32.gmra.mrb[0].mxu0 %v2074
  %v2205 = vpop.f32.mrb[0].mxu0
  %v2206 = vadd.f32 %v1924, %v2205
  %v2207 = vpop.f32.mrb[0].mxu0
  %2208 = vmatprep.mubr.f32.mxu0 0.0
  %2209 = vmatmul.mubr.f32.gmra.mrb[0].mxu0 %v2076
  %v2210 = vpop.f32.mrb[0].mxu0
  %v2211 = vadd.f32 %v1929, %v2210
  %v2212 = vpop.f32.mrb[0].mxu0
  %2213 = vmatprep.mubr.f32.mxu0 0.0
  %2214 = vmatmul.mubr.f32.gmra.mrb[0].mxu0 %v2078
  %v2215 = vpop.f32.mrb[0].mxu0
  %v2216 = vadd.f32 %v1934, %v2215
  %v2217 = vpop.f32.mrb[0].mxu0
  %2218 = vmatprep.mubr.f32.mxu0 0.0
  %2219 = vmatmul.mubr.f32.gmra.mrb[0].mxu0 %v2080
  %v2220 = vpop.f32.mrb[0].mxu0
  %v2221 = vadd.f32 %v1939, %v2220
  %v2222 = vpop.f32.mrb[0].mxu0
  %2223 = vmatprep.mubr.f32.mxu0 0.0
  %2224 = vmatmul.mubr.f32.gmra.mrb[0].mxu0 %v2082
  %v2225 = vpop.f32.mrb[0].mxu0
  %v2226 = vadd.f32 %v1944, %v2225
  %v2227 = vpop.f32.mrb[0].mxu0
  %2228 = vmatprep.mubr.f32.mxu0 0.0
  %2229 = vmatmul.mubr.f32.gmra.mrb[0].mxu0 %v2084
  %v2230 = vpop.f32.mrb[0].mxu0
  %v2231 = vadd.f32 %v1949, %v2230
  %v2232 = vpop.f32.mrb[0].mxu0
  %2233 = vmatprep.mubr.f32.mxu0 0.0
  %2234 = vmatmul.mubr.f32.gmra.mrb[0].mxu0 %v2086
  %v2235 = vpop.f32.mrb[0].mxu0
  %v2236 = vadd.f32 %v1954, %v2235
  %v2237 = vpop.f32.mrb[0].mxu0
  %2238 = vmatprep.mubr.f32.mxu0 0.0
  %2239 = vmatmul.mubr.f32.gmra.mrb[0].mxu0 %v2088
  %v2240 = vpop.f32.mrb[0].mxu0
  %v2241 = vadd.f32 %v1959, %v2240
  %v2242 = vpop.f32.mrb[0].mxu0
  %2243 = vmatprep.mubr.f32.mxu0 0.0
  %2244 = vmatmul.mubr.f32.gmra.mrb[0].mxu0 %v2090
  %v2245 = vpop.f32.mrb[0].mxu0
  %v2246 = vadd.f32 %v1964, %v2245
  %v2247 = vpop.f32.mrb[0].mxu0
  %2248 = vmatprep.mubr.f32.mxu0 0.0
  %2249 = vmatmul.mubr.f32.gmra.mrb[0].mxu0 %v2092
  %v2250 = vpop.f32.mrb[0].mxu0
  %v2251 = vadd.f32 %v1969, %v2250
  %v2252 = vpop.f32.mrb[0].mxu0
  %2253 = vmatprep.mubr.f32.mxu0 0.0
  %2254 = vmatmul.mubr.f32.gmra.mrb[0].mxu0 %v2094
  %v2255 = vpop.f32.mrb[0].mxu0
  %v2256 = vadd.f32 %v1974, %v2255
  %v2257 = vpop.f32.mrb[0].mxu0
  %2258 = vmatprep.mubr.f32.mxu0 0.0
  %2259 = vmatmul.mubr.f32.gmra.mrb[0].mxu0 %v2096
  %v2260 = vpop.f32.mrb[0].mxu0
  %v2261 = vadd.f32 %v1979, %v2260
  %v2262 = vpop.f32.mrb[0].mxu0
  %2263 = vmatprep.mubr.f32.mxu0 0.0
  %2264 = vmatmul.mubr.f32.gmra.mrb[0].mxu0 %v2098
  %v2265 = vpop.f32.mrb[0].mxu0
  %v2266 = vadd.f32 %v1984, %v2265
  %v2267 = vpop.f32.mrb[0].mxu0
  %2268 = vmatprep.mubr.f32.mxu0 0.0
  %2269 = vmatmul.mubr.f32.gmra.mrb[0].mxu0 %v2100
  %v2270 = vpop.f32.mrb[0].mxu0
  %v2271 = vadd.f32 %v1989, %v2270
  %v2272 = vpop.f32.mrb[0].mxu0
  %2273 = vmatprep.mubr.f32.mxu0 0.0
  %2274 = vmatmul.mubr.f32.gmra.mrb[0].mxu0 %v2102
  %v2275 = vpop.f32.mrb[0].mxu0
  %v2276 = vadd.f32 %v1994, %v2275
  %v2277 = vpop.f32.mrb[0].mxu0
  %2278 = vmatprep.mubr.f32.mxu0 0.0
  %2279 = vmatmul.mubr.f32.gmra.mrb[0].mxu0 %v2104
  %v2280 = vpop.f32.mrb[0].mxu0
  %v2281 = vadd.f32 %v1999, %v2280
  %v2282 = vpop.f32.mrb[0].mxu0
  %2283 = vmatprep.mubr.f32.mxu0 0.0
  %2284 = vmatmul.mubr.f32.gmra.mrb[0].mxu0 %v2106
  %v2285 = vpop.f32.mrb[0].mxu0
  %v2286 = vadd.f32 %v2004, %v2285
  %v2287 = vpop.f32.mrb[0].mxu0
  %2288 = vmatprep.mubr.f32.mxu0 0.0
  %2289 = vmatmul.mubr.f32.gmra.mrb[0].mxu0 %v2108
  %v2290 = vpop.f32.mrb[0].mxu0
  %v2291 = vadd.f32 %v2009, %v2290
  %v2292 = vpop.f32.mrb[0].mxu0
  %2293 = vmatprep.mubr.f32.mxu0 0.0
  %2294 = vmatmul.mubr.f32.gmra.mrb[0].mxu0 %v2110
  %v2295 = vpop.f32.mrb[0].mxu0
  %v2296 = vadd.f32 %v2014, %v2295
  %v2297 = vpop.f32.mrb[0].mxu0
  %2298 = vmatprep.mubr.f32.mxu0 0.0
  %2299 = vmatmul.mubr.f32.gmra.mrb[0].mxu0 %v2112
  %v2300 = vpop.f32.mrb[0].mxu0
  %v2301 = vadd.f32 %v2019, %v2300
  %v2302 = vpop.f32.mrb[0].mxu0
  %2303 = vmatprep.mubr.f32.mxu0 0.0
  %2304 = vmatmul.mubr.f32.gmra.mrb[0].mxu0 %v2114
  %v2305 = vpop.f32.mrb[0].mxu0
  %v2306 = vadd.f32 %v2024, %v2305
  %v2307 = vpop.f32.mrb[0].mxu0
  %2308 = vmatprep.mubr.f32.mxu0 0.0
  %2309 = vmatmul.mubr.f32.gmra.mrb[0].mxu0 %v2116
  %v2310 = vpop.f32.mrb[0].mxu0
  %v2311 = vadd.f32 %v2029, %v2310
  %v2312 = vpop.f32.mrb[0].mxu0
  %2313 = vmatprep.mubr.f32.mxu0 0.0
  %2314 = vmatmul.mubr.f32.gmra.mrb[0].mxu0 %v2118
  %v2315 = vpop.f32.mrb[0].mxu0
  %v2316 = vadd.f32 %v2034, %v2315
  %v2317 = vpop.f32.mrb[0].mxu0
  %2318 = vmatprep.mubr.f32.mxu0 0.0
  %2319 = vmatmul.mubr.f32.gmra.mrb[0].mxu0 %v2120
  %v2320 = vpop.f32.mrb[0].mxu0
  %v2321 = vadd.f32 %v2039, %v2320
  %v2322 = vpop.f32.mrb[0].mxu0
  %2323 = vmatprep.mubr.f32.mxu0 0.0
  %2324 = vmatmul.mubr.f32.gmra.mrb[0].mxu0 %v2122
  %v2325 = vpop.f32.mrb[0].mxu0
  %v2326 = vadd.f32 %v2044, %v2325
  %v2327 = vpop.f32.mrb[0].mxu0
  %2328 = vmatprep.mubr.f32.mxu0 0.0
  %2329 = vmatmul.mubr.f32.gmra.mrb[0].mxu0 %v2124
  %v2330 = vpop.f32.mrb[0].mxu0
  %v2331 = vadd.f32 %v2049, %v2330
  %v2332 = vpop.f32.mrb[0].mxu0
  %2333 = vmatprep.mubr.f32.mxu0 0.0
  %2334 = vmatmul.mubr.f32.gmra.mrb[0].mxu0 %v2126
  %v2335 = vpop.f32.mrb[0].mxu0
  %v2336 = vadd.f32 %v2054, %v2335
  %v2337 = vpop.f32.mrb[0].mxu0
  %2338 = vmatprep.mubr.f32.mxu0 0.0
  %2339 = vmatmul.mubr.f32.gmra.mrb[0].mxu0 %v2128
  %v2340 = vpop.f32.mrb[0].mxu0
  %v2341 = vadd.f32 %v2059, %v2340
  %v2342 = vpop.f32.mrb[0].mxu0
  %2343 = vmatprep.mubr.f32.mxu0 0.0
  %2344 = vmatmul.mubr.f32.gmra.mrb[0].mxu0 %v2130
  %v2345 = vpop.f32.mrb[0].mxu0
  %v2346 = vadd.f32 %v2064, %v2345
  %v2347 = vpop.f32.mrb[0].mxu0
  %2348 = vmatprep.mubr.f32.mxu0 0.0
  %2349 = vmatmul.mubr.f32.gmra.mrb[0].mxu0 %v2132
  %v2350 = vpop.f32.mrb[0].mxu0
  %v2351 = vadd.f32 %v2069, %v2350
  %v2352 = vpop.f32.mrb[0].mxu0
  %2353 = vdwg.mxu0
  %s2354 = scalar_lea.vmem %s3, 144
  %v2355 = vld [vmem:[%s2354] sm:$0xff]
  %v2356 = vld [vmem:[%s2354 + $0x8] sm:$0xff]
  %v2357 = vld [vmem:[%s2354 + $0x10] sm:$0xff]
  %v2358 = vld [vmem:[%s2354 + $0x18] sm:$0xff]
  %v2359 = vld [vmem:[%s2354 + $0x20] sm:$0xff]
  %v2360 = vld [vmem:[%s2354 + $0x28] sm:$0xff]
  %v2361 = vld [vmem:[%s2354 + $0x30] sm:$0xff]
  %v2362 = vld [vmem:[%s2354 + $0x38] sm:$0xff]
  %v2363 = vld [vmem:[%s2354 + $0x40] sm:$0xff]
  %v2365 = vrot.slane %v1643, 2
  %v2366 = vrot.slane %v1644, 2
  %v2367 = vsel %vm799, %v2365, %v2366
  %v2368 = vrot.slane %v1645, 2
  %v2369 = vsel %vm799, %v2366, %v2368
  %v2370 = vrot.slane %v1646, 2
  %v2371 = vsel %vm799, %v2368, %v2370
  %v2372 = vrot.slane %v1647, 2
  %v2373 = vsel %vm799, %v2370, %v2372
  %v2374 = vrot.slane %v1648, 2
  %v2375 = vsel %vm799, %v2372, %v2374
  %v2376 = vrot.slane %v1649, 2
  %v2377 = vsel %vm799, %v2374, %v2376
  %v2378 = vrot.slane %v1650, 2
  %v2379 = vsel %vm799, %v2376, %v2378
  %v2380 = vrot.slane %v1651, 2
  %v2381 = vsel %vm799, %v2378, %v2380
  %v2382 = vrot.slane %v1652, 2
  %v2383 = vsel %vm799, %v2380, %v2382
  %v2384 = vrot.slane %v1653, 2
  %v2385 = vsel %vm799, %v2382, %v2384
  %v2386 = vrot.slane %v1654, 2
  %v2387 = vsel %vm799, %v2384, %v2386
  %v2388 = vrot.slane %v1655, 2
  %v2389 = vsel %vm799, %v2386, %v2388
  %v2390 = vrot.slane %v1656, 2
  %v2391 = vsel %vm799, %v2388, %v2390
  %v2392 = vrot.slane %v1657, 2
  %v2393 = vsel %vm799, %v2390, %v2392
  %v2394 = vrot.slane %v1658, 2
  %v2395 = vsel %vm799, %v2392, %v2394
  %v2396 = vrot.slane %v1659, 2
  %v2397 = vsel %vm799, %v2394, %v2396
  %v2398 = vrot.slane %v1660, 2
  %v2399 = vsel %vm799, %v2396, %v2398
  %v2400 = vrot.slane %v1661, 2
  %v2401 = vsel %vm799, %v2398, %v2400
  %v2402 = vrot.slane %v1662, 2
  %v2403 = vsel %vm799, %v2400, %v2402
  %v2404 = vrot.slane %v1663, 2
  %v2405 = vsel %vm799, %v2402, %v2404
  %v2406 = vrot.slane %v1664, 2
  %v2407 = vsel %vm799, %v2404, %v2406
  %v2408 = vrot.slane %v1665, 2
  %v2409 = vsel %vm799, %v2406, %v2408
  %v2410 = vrot.slane %v1666, 2
  %v2411 = vsel %vm799, %v2408, %v2410
  %v2412 = vrot.slane %v1667, 2
  %v2413 = vsel %vm799, %v2410, %v2412
  %v2414 = vrot.slane %v1668, 2
  %v2415 = vsel %vm799, %v2412, %v2414
  %v2416 = vrot.slane %v1669, 2
  %v2417 = vsel %vm799, %v2414, %v2416
  %v2418 = vrot.slane %v1670, 2
  %v2419 = vsel %vm799, %v2416, %v2418
  %v2420 = vrot.slane %v1671, 2
  %v2421 = vsel %vm799, %v2418, %v2420
  %v2422 = vrot.slane %v1672, 2
  %v2423 = vsel %vm799, %v2420, %v2422
  %v2424 = vrot.slane %v1673, 2
  %v2425 = vsel %vm799, %v2422, %v2424
  %v2426 = vrot.slane %v1674, 2
  %v2427 = vsel %vm799, %v2424, %v2426
  %v2428 = vsel %vm1789, %v2367, 0
  %v2430 = vsel %vm1789, %v2369, 0
  %v2432 = vsel %vm1789, %v2371, 0
  %v2434 = vsel %vm1789, %v2373, 0
  %v2436 = vsel %vm1789, %v2375, 0
  %v2438 = vsel %vm1789, %v2377, 0
  %v2440 = vsel %vm1789, %v2379, 0
  %v2442 = vsel %vm1789, %v2381, 0
  %v2444 = vsel %vm1789, %v2383, 0
  %v2446 = vsel %vm1789, %v2385, 0
  %v2448 = vsel %vm1789, %v2387, 0
  %v2450 = vsel %vm1789, %v2389, 0
  %v2452 = vsel %vm1789, %v2391, 0
  %v2454 = vsel %vm1789, %v2393, 0
  %v2456 = vsel %vm1789, %v2395, 0
  %v2458 = vsel %vm1789, %v2397, 0
  %v2460 = vsel %vm1789, %v2399, 0
  %v2462 = vsel %vm1789, %v2401, 0
  %v2464 = vsel %vm1789, %v2403, 0
  %v2466 = vsel %vm1789, %v2405, 0
  %v2468 = vsel %vm1789, %v2407, 0
  %v2470 = vsel %vm1789, %v2409, 0
  %v2472 = vsel %vm1789, %v2411, 0
  %v2474 = vsel %vm1789, %v2413, 0
  %v2476 = vsel %vm1789, %v2415, 0
  %v2478 = vsel %vm1789, %v2417, 0
  %v2480 = vsel %vm1789, %v2419, 0
  %v2482 = vsel %vm1789, %v2421, 0
  %v2484 = vsel %vm1789, %v2423, 0
  %v2486 = vsel %vm1789, %v2425, 0
  %v2488 = vsel %vm1789, %v2427, 0
  %2490 = vmatprep.subr.mxu0 0.0
  %2491 = vmatpush1.msra.mxu0 %v2355
  %2492 = vmatprep.subr.mxu0 0.0
  %2493 = vmatpush1.msra.mxu0 %v2356
  %2494 = vmatprep.subr.mxu0 0.0
  %2495 = vmatpush1.msra.mxu0 %v2357
  %2496 = vmatprep.subr.mxu0 0.0
  %2497 = vmatpush1.msra.mxu0 %v2358
  %2498 = vmatprep.subr.mxu0 0.0
  %2499 = vmatpush1.msra.mxu0 %v2359
  %2500 = vmatprep.subr.mxu0 0.0
  %2501 = vmatpush1.msra.mxu0 %v2360
  %2502 = vmatprep.subr.mxu0 0.0
  %2503 = vmatpush1.msra.mxu0 %v2361
  %2504 = vmatprep.subr.mxu0 0.0
  %2505 = vmatpush1.msra.mxu0 %v2362
  %2506 = vmatprep.subr.mxu0 0.0
  %2507 = vmatpush1.msra.mxu0 %v2363
  %2508 = vmatprep.subr.mxu0 0.0
  %2509 = vmatpush1.msra.mxu0 0.0
  %2510 = vmatprep.subr.mxu0 0.0
  %2511 = vmatpush1.msra.mxu0 0.0
  %2512 = vmatprep.subr.mxu0 0.0
  %2513 = vmatpush1.msra.mxu0 0.0
  %2514 = vmatprep.subr.mxu0 0.0
  %2515 = vmatpush1.msra.mxu0 0.0
  %2516 = vmatprep.subr.mxu0 0.0
  %2517 = vmatpush1.msra.mxu0 0.0
  %2518 = vmatprep.subr.mxu0 0.0
  %2519 = vmatpush1.msra.mxu0 0.0
  %2520 = vmatprep.subr.mxu0 0.0
  %2521 = vmatpush1.msra.mxu0 0.0
  %2522 = vmatprep.subr.mxu0 0.0
  %2523 = vmatpush1.msra.mxu0 0.0
  %2524 = vmatprep.subr.mxu0 0.0
  %2525 = vmatpush1.msra.mxu0 0.0
  %2526 = vmatprep.subr.mxu0 0.0
  %2527 = vmatpush1.msra.mxu0 0.0
  %2528 = vmatprep.subr.mxu0 0.0
  %2529 = vmatpush1.msra.mxu0 0.0
  %2530 = vmatprep.subr.mxu0 0.0
  %2531 = vmatpush1.msra.mxu0 0.0
  %2532 = vmatprep.subr.mxu0 0.0
  %2533 = vmatpush1.msra.mxu0 0.0
  %2534 = vmatprep.subr.mxu0 0.0
  %2535 = vmatpush1.msra.mxu0 0.0
  %2536 = vmatprep.subr.mxu0 0.0
  %2537 = vmatpush1.msra.mxu0 0.0
  %2538 = vmatprep.subr.mxu0 0.0
  %2539 = vmatpush1.msra.mxu0 0.0
  %2540 = vmatprep.subr.mxu0 0.0
  %2541 = vmatpush1.msra.mxu0 0.0
  %2542 = vmatprep.subr.mxu0 0.0
  %2543 = vmatpush1.msra.mxu0 0.0
  %2544 = vmatprep.subr.mxu0 0.0
  %2545 = vmatpush1.msra.mxu0 0.0
  %2546 = vmatprep.subr.mxu0 0.0
  %2547 = vmatpush1.msra.mxu0 0.0
  %2548 = vmatprep.subr.mxu0 0.0
  %2549 = vmatpush1.msra.mxu0 0.0
  %2550 = vmatprep.subr.mxu0 0.0
  %2551 = vmatpush1.msra.mxu0 0.0
  %2552 = vmatprep.subr.mxu0 0.0
  %2553 = vmatpush1.msra.mxu0 0.0
  %2554 = vmatprep.mubr.f32.mxu0 0.0
  %2555 = vmatmul.mubr.f32.gmra.mrb[0].mxu0 %v2428
  %v2556 = vpop.f32.mrb[0].mxu0
  %v2557 = vadd.f32 0.0, %v2556
  %v2558 = vpop.f32.mrb[0].mxu0
  %2559 = vmatprep.mubr.f32.mxu0 0.0
  %2560 = vmatmul.mubr.f32.gmra.mrb[0].mxu0 %v2430
  %v2561 = vpop.f32.mrb[0].mxu0
  %v2562 = vadd.f32 0.0, %v2561
  %v2563 = vpop.f32.mrb[0].mxu0
  %2564 = vmatprep.mubr.f32.mxu0 0.0
  %2565 = vmatmul.mubr.f32.gmra.mrb[0].mxu0 %v2432
  %v2566 = vpop.f32.mrb[0].mxu0
  %v2567 = vadd.f32 0.0, %v2566
  %v2568 = vpop.f32.mrb[0].mxu0
  %2569 = vmatprep.mubr.f32.mxu0 0.0
  %2570 = vmatmul.mubr.f32.gmra.mrb[0].mxu0 %v2434
  %v2571 = vpop.f32.mrb[0].mxu0
  %v2572 = vadd.f32 0.0, %v2571
  %v2573 = vpop.f32.mrb[0].mxu0
  %2574 = vmatprep.mubr.f32.mxu0 0.0
  %2575 = vmatmul.mubr.f32.gmra.mrb[0].mxu0 %v2436
  %v2576 = vpop.f32.mrb[0].mxu0
  %v2577 = vadd.f32 0.0, %v2576
  %v2578 = vpop.f32.mrb[0].mxu0
  %2579 = vmatprep.mubr.f32.mxu0 0.0
  %2580 = vmatmul.mubr.f32.gmra.mrb[0].mxu0 %v2438
  %v2581 = vpop.f32.mrb[0].mxu0
  %v2582 = vadd.f32 0.0, %v2581
  %v2583 = vpop.f32.mrb[0].mxu0
  %2584 = vmatprep.mubr.f32.mxu0 0.0
  %2585 = vmatmul.mubr.f32.gmra.mrb[0].mxu0 %v2440
  %v2586 = vpop.f32.mrb[0].mxu0
  %v2587 = vadd.f32 0.0, %v2586
  %v2588 = vpop.f32.mrb[0].mxu0
  %2589 = vmatprep.mubr.f32.mxu0 0.0
  %2590 = vmatmul.mubr.f32.gmra.mrb[0].mxu0 %v2442
  %v2591 = vpop.f32.mrb[0].mxu0
  %v2592 = vadd.f32 0.0, %v2591
  %v2593 = vpop.f32.mrb[0].mxu0
  %2594 = vmatprep.mubr.f32.mxu0 0.0
  %2595 = vmatmul.mubr.f32.gmra.mrb[0].mxu0 %v2444
  %v2596 = vpop.f32.mrb[0].mxu0
  %v2597 = vadd.f32 0.0, %v2596
  %v2598 = vpop.f32.mrb[0].mxu0
  %2599 = vmatprep.mubr.f32.mxu0 0.0
  %2600 = vmatmul.mubr.f32.gmra.mrb[0].mxu0 %v2446
  %v2601 = vpop.f32.mrb[0].mxu0
  %v2602 = vadd.f32 0.0, %v2601
  %v2603 = vpop.f32.mrb[0].mxu0
  %2604 = vmatprep.mubr.f32.mxu0 0.0
  %2605 = vmatmul.mubr.f32.gmra.mrb[0].mxu0 %v2448
  %v2606 = vpop.f32.mrb[0].mxu0
  %v2607 = vadd.f32 0.0, %v2606
  %v2608 = vpop.f32.mrb[0].mxu0
  %2609 = vmatprep.mubr.f32.mxu0 0.0
  %2610 = vmatmul.mubr.f32.gmra.mrb[0].mxu0 %v2450
  %v2611 = vpop.f32.mrb[0].mxu0
  %v2612 = vadd.f32 0.0, %v2611
  %v2613 = vpop.f32.mrb[0].mxu0
  %2614 = vmatprep.mubr.f32.mxu0 0.0
  %2615 = vmatmul.mubr.f32.gmra.mrb[0].mxu0 %v2452
  %v2616 = vpop.f32.mrb[0].mxu0
  %v2617 = vadd.f32 0.0, %v2616
  %v2618 = vpop.f32.mrb[0].mxu0
  %2619 = vmatprep.mubr.f32.mxu0 0.0
  %2620 = vmatmul.mubr.f32.gmra.mrb[0].mxu0 %v2454
  %v2621 = vpop.f32.mrb[0].mxu0
  %v2622 = vadd.f32 0.0, %v2621
  %v2623 = vpop.f32.mrb[0].mxu0
  %2624 = vmatprep.mubr.f32.mxu0 0.0
  %2625 = vmatmul.mubr.f32.gmra.mrb[0].mxu0 %v2456
  %v2626 = vpop.f32.mrb[0].mxu0
  %v2627 = vadd.f32 0.0, %v2626
  %v2628 = vpop.f32.mrb[0].mxu0
  %2629 = vmatprep.mubr.f32.mxu0 0.0
  %2630 = vmatmul.mubr.f32.gmra.mrb[0].mxu0 %v2458
  %v2631 = vpop.f32.mrb[0].mxu0
  %v2632 = vadd.f32 0.0, %v2631
  %v2633 = vpop.f32.mrb[0].mxu0
  %2634 = vmatprep.mubr.f32.mxu0 0.0
  %2635 = vmatmul.mubr.f32.gmra.mrb[0].mxu0 %v2460
  %v2636 = vpop.f32.mrb[0].mxu0
  %v2637 = vadd.f32 0.0, %v2636
  %v2638 = vpop.f32.mrb[0].mxu0
  %2639 = vmatprep.mubr.f32.mxu0 0.0
  %2640 = vmatmul.mubr.f32.gmra.mrb[0].mxu0 %v2462
  %v2641 = vpop.f32.mrb[0].mxu0
  %v2642 = vadd.f32 0.0, %v2641
  %v2643 = vpop.f32.mrb[0].mxu0
  %2644 = vmatprep.mubr.f32.mxu0 0.0
  %2645 = vmatmul.mubr.f32.gmra.mrb[0].mxu0 %v2464
  %v2646 = vpop.f32.mrb[0].mxu0
  %v2647 = vadd.f32 0.0, %v2646
  %v2648 = vpop.f32.mrb[0].mxu0
  %2649 = vmatprep.mubr.f32.mxu0 0.0
  %2650 = vmatmul.mubr.f32.gmra.mrb[0].mxu0 %v2466
  %v2651 = vpop.f32.mrb[0].mxu0
  %v2652 = vadd.f32 0.0, %v2651
  %v2653 = vpop.f32.mrb[0].mxu0
  %2654 = vmatprep.mubr.f32.mxu0 0.0
  %2655 = vmatmul.mubr.f32.gmra.mrb[0].mxu0 %v2468
  %v2656 = vpop.f32.mrb[0].mxu0
  %v2657 = vadd.f32 0.0, %v2656
  %v2658 = vpop.f32.mrb[0].mxu0
  %2659 = vmatprep.mubr.f32.mxu0 0.0
  %2660 = vmatmul.mubr.f32.gmra.mrb[0].mxu0 %v2470
  %v2661 = vpop.f32.mrb[0].mxu0
  %v2662 = vadd.f32 0.0, %v2661
  %v2663 = vpop.f32.mrb[0].mxu0
  %2664 = vmatprep.mubr.f32.mxu0 0.0
  %2665 = vmatmul.mubr.f32.gmra.mrb[0].mxu0 %v2472
  %v2666 = vpop.f32.mrb[0].mxu0
  %v2667 = vadd.f32 0.0, %v2666
  %v2668 = vpop.f32.mrb[0].mxu0
  %2669 = vmatprep.mubr.f32.mxu0 0.0
  %2670 = vmatmul.mubr.f32.gmra.mrb[0].mxu0 %v2474
  %v2671 = vpop.f32.mrb[0].mxu0
  %v2672 = vadd.f32 0.0, %v2671
  %v2673 = vpop.f32.mrb[0].mxu0
  %2674 = vmatprep.mubr.f32.mxu0 0.0
  %2675 = vmatmul.mubr.f32.gmra.mrb[0].mxu0 %v2476
  %v2676 = vpop.f32.mrb[0].mxu0
  %v2677 = vadd.f32 0.0, %v2676
  %v2678 = vpop.f32.mrb[0].mxu0
  %2679 = vmatprep.mubr.f32.mxu0 0.0
  %2680 = vmatmul.mubr.f32.gmra.mrb[0].mxu0 %v2478
  %v2681 = vpop.f32.mrb[0].mxu0
  %v2682 = vadd.f32 0.0, %v2681
  %v2683 = vpop.f32.mrb[0].mxu0
  %2684 = vmatprep.mubr.f32.mxu0 0.0
  %2685 = vmatmul.mubr.f32.gmra.mrb[0].mxu0 %v2480
  %v2686 = vpop.f32.mrb[0].mxu0
  %v2687 = vadd.f32 0.0, %v2686
  %v2688 = vpop.f32.mrb[0].mxu0
  %2689 = vmatprep.mubr.f32.mxu0 0.0
  %2690 = vmatmul.mubr.f32.gmra.mrb[0].mxu0 %v2482
  %v2691 = vpop.f32.mrb[0].mxu0
  %v2692 = vadd.f32 0.0, %v2691
  %v2693 = vpop.f32.mrb[0].mxu0
  %2694 = vmatprep.mubr.f32.mxu0 0.0
  %2695 = vmatmul.mubr.f32.gmra.mrb[0].mxu0 %v2484
  %v2696 = vpop.f32.mrb[0].mxu0
  %v2697 = vadd.f32 0.0, %v2696
  %v2698 = vpop.f32.mrb[0].mxu0
  %2699 = vmatprep.mubr.f32.mxu0 0.0
  %2700 = vmatmul.mubr.f32.gmra.mrb[0].mxu0 %v2486
  %v2701 = vpop.f32.mrb[0].mxu0
  %v2702 = vadd.f32 0.0, %v2701
  %v2703 = vpop.f32.mrb[0].mxu0
  %2704 = vmatprep.mubr.f32.mxu0 0.0
  %2705 = vmatmul.mubr.f32.gmra.mrb[0].mxu0 %v2488
  %v2706 = vpop.f32.mrb[0].mxu0
  %v2707 = vadd.f32 0.0, %v2706
  %v2708 = vpop.f32.mrb[0].mxu0
  %2709 = vdwg.mxu0
  %v2710 = vadd.f32 %v2201, %v2557
  %v2711 = vadd.f32 %v2206, %v2562
  %v2712 = vadd.f32 %v2211, %v2567
  %v2713 = vadd.f32 %v2216, %v2572
  %v2714 = vadd.f32 %v2221, %v2577
  %v2715 = vadd.f32 %v2226, %v2582
  %v2716 = vadd.f32 %v2231, %v2587
  %v2717 = vadd.f32 %v2236, %v2592
  %v2718 = vadd.f32 %v2241, %v2597
  %v2719 = vadd.f32 %v2246, %v2602
  %v2720 = vadd.f32 %v2251, %v2607
  %v2721 = vadd.f32 %v2256, %v2612
  %v2722 = vadd.f32 %v2261, %v2617
  %v2723 = vadd.f32 %v2266, %v2622
  %v2724 = vadd.f32 %v2271, %v2627
  %v2725 = vadd.f32 %v2276, %v2632
  %v2726 = vadd.f32 %v2281, %v2637
  %v2727 = vadd.f32 %v2286, %v2642
  %v2728 = vadd.f32 %v2291, %v2647
  %v2729 = vadd.f32 %v2296, %v2652
  %v2730 = vadd.f32 %v2301, %v2657
  %v2731 = vadd.f32 %v2306, %v2662
  %v2732 = vadd.f32 %v2311, %v2667
  %v2733 = vadd.f32 %v2316, %v2672
  %v2734 = vadd.f32 %v2321, %v2677
  %v2735 = vadd.f32 %v2326, %v2682
  %v2736 = vadd.f32 %v2331, %v2687
  %v2737 = vadd.f32 %v2336, %v2692
  %v2738 = vadd.f32 %v2341, %v2697
  %v2739 = vadd.f32 %v2346, %v2702
  %v2740 = vadd.f32 %v2351, %v2707
  %s2741 = scalar_lea.vmem %s3, 216
  %v2742 = vld [vmem:[%s2741] sm:$0xff]
  %v2743 = vld [vmem:[%s2741 + $0x8] sm:$0xff]
  %v2744 = vld [vmem:[%s2741 + $0x10] sm:$0xff]
  %v2745 = vld [vmem:[%s2741 + $0x18] sm:$0xff]
  %v2746 = vld [vmem:[%s2741 + $0x20] sm:$0xff]
  %v2747 = vld [vmem:[%s2741 + $0x28] sm:$0xff]
  %v2748 = vld [vmem:[%s2741 + $0x30] sm:$0xff]
  %v2749 = vld [vmem:[%s2741 + $0x38] sm:$0xff]
  %v2750 = vld [vmem:[%s2741 + $0x40] sm:$0xff]
  %v2751 = vrot.slane %v1643, 3
  %v2752 = vrot.slane %v1644, 3
  %v2753 = vsel %vm1202, %v2751, %v2752
  %v2754 = vrot.slane %v1645, 3
  %v2755 = vsel %vm1202, %v2752, %v2754
  %v2756 = vrot.slane %v1646, 3
  %v2757 = vsel %vm1202, %v2754, %v2756
  %v2758 = vrot.slane %v1647, 3
  %v2759 = vsel %vm1202, %v2756, %v2758
  %v2760 = vrot.slane %v1648, 3
  %v2761 = vsel %vm1202, %v2758, %v2760
  %v2762 = vrot.slane %v1649, 3
  %v2763 = vsel %vm1202, %v2760, %v2762
  %v2764 = vrot.slane %v1650, 3
  %v2765 = vsel %vm1202, %v2762, %v2764
  %v2766 = vrot.slane %v1651, 3
  %v2767 = vsel %vm1202, %v2764, %v2766
  %v2768 = vrot.slane %v1652, 3
  %v2769 = vsel %vm1202, %v2766, %v2768
  %v2770 = vrot.slane %v1653, 3
  %v2771 = vsel %vm1202, %v2768, %v2770
  %v2772 = vrot.slane %v1654, 3
  %v2773 = vsel %vm1202, %v2770, %v2772
  %v2774 = vrot.slane %v1655, 3
  %v2775 = vsel %vm1202, %v2772, %v2774
  %v2776 = vrot.slane %v1656, 3
  %v2777 = vsel %vm1202, %v2774, %v2776
  %v2778 = vrot.slane %v1657, 3
  %v2779 = vsel %vm1202, %v2776, %v2778
  %v2780 = vrot.slane %v1658, 3
  %v2781 = vsel %vm1202, %v2778, %v2780
  %v2782 = vrot.slane %v1659, 3
  %v2783 = vsel %vm1202, %v2780, %v2782
  %v2784 = vrot.slane %v1660, 3
  %v2785 = vsel %vm1202, %v2782, %v2784
  %v2786 = vrot.slane %v1661, 3
  %v2787 = vsel %vm1202, %v2784, %v2786
  %v2788 = vrot.slane %v1662, 3
  %v2789 = vsel %vm1202, %v2786, %v2788
  %v2790 = vrot.slane %v1663, 3
  %v2791 = vsel %vm1202, %v2788, %v2790
  %v2792 = vrot.slane %v1664, 3
  %v2793 = vsel %vm1202, %v2790, %v2792
  %v2794 = vrot.slane %v1665, 3
  %v2795 = vsel %vm1202, %v2792, %v2794
  %v2796 = vrot.slane %v1666, 3
  %v2797 = vsel %vm1202, %v2794, %v2796
  %v2798 = vrot.slane %v1667, 3
  %v2799 = vsel %vm1202, %v2796, %v2798
  %v2800 = vrot.slane %v1668, 3
  %v2801 = vsel %vm1202, %v2798, %v2800
  %v2802 = vrot.slane %v1669, 3
  %v2803 = vsel %vm1202, %v2800, %v2802
  %v2804 = vrot.slane %v1670, 3
  %v2805 = vsel %vm1202, %v2802, %v2804
  %v2806 = vrot.slane %v1671, 3
  %v2807 = vsel %vm1202, %v2804, %v2806
  %v2808 = vrot.slane %v1672, 3
  %v2809 = vsel %vm1202, %v2806, %v2808
  %v2810 = vrot.slane %v1673, 3
  %v2811 = vsel %vm1202, %v2808, %v2810
  %v2812 = vrot.slane %v1674, 3
  %v2813 = vsel %vm1202, %v2810, %v2812
  %v2814 = vsel %vm1789, %v2753, 0
  %v2816 = vsel %vm1789, %v2755, 0
  %v2818 = vsel %vm1789, %v2757, 0
  %v2820 = vsel %vm1789, %v2759, 0
  %v2822 = vsel %vm1789, %v2761, 0
  %v2824 = vsel %vm1789, %v2763, 0
  %v2826 = vsel %vm1789, %v2765, 0
  %v2828 = vsel %vm1789, %v2767, 0
  %v2830 = vsel %vm1789, %v2769, 0
  %v2832 = vsel %vm1789, %v2771, 0
  %v2834 = vsel %vm1789, %v2773, 0
  %v2836 = vsel %vm1789, %v2775, 0
  %v2838 = vsel %vm1789, %v2777, 0
  %v2840 = vsel %vm1789, %v2779, 0
  %v2842 = vsel %vm1789, %v2781, 0
  %v2844 = vsel %vm1789, %v2783, 0
  %v2846 = vsel %vm1789, %v2785, 0
  %v2848 = vsel %vm1789, %v2787, 0
  %v2850 = vsel %vm1789, %v2789, 0
  %v2852 = vsel %vm1789, %v2791, 0
  %v2854 = vsel %vm1789, %v2793, 0
  %v2856 = vsel %vm1789, %v2795, 0
  %v2858 = vsel %vm1789, %v2797, 0
  %v2860 = vsel %vm1789, %v2799, 0
  %v2862 = vsel %vm1789, %v2801, 0
  %v2864 = vsel %vm1789, %v2803, 0
  %v2866 = vsel %vm1789, %v2805, 0
  %v2868 = vsel %vm1789, %v2807, 0
  %v2870 = vsel %vm1789, %v2809, 0
  %v2872 = vsel %vm1789, %v2811, 0
  %v2874 = vsel %vm1789, %v2813, 0
  %2876 = vmatprep.subr.mxu0 0.0
  %2877 = vmatpush1.msra.mxu0 %v2742
  %2878 = vmatprep.subr.mxu0 0.0
  %2879 = vmatpush1.msra.mxu0 %v2743
  %2880 = vmatprep.subr.mxu0 0.0
  %2881 = vmatpush1.msra.mxu0 %v2744
  %2882 = vmatprep.subr.mxu0 0.0
  %2883 = vmatpush1.msra.mxu0 %v2745
  %2884 = vmatprep.subr.mxu0 0.0
  %2885 = vmatpush1.msra.mxu0 %v2746
  %2886 = vmatprep.subr.mxu0 0.0
  %2887 = vmatpush1.msra.mxu0 %v2747
  %2888 = vmatprep.subr.mxu0 0.0
  %2889 = vmatpush1.msra.mxu0 %v2748
  %2890 = vmatprep.subr.mxu0 0.0
  %2891 = vmatpush1.msra.mxu0 %v2749
  %2892 = vmatprep.subr.mxu0 0.0
  %2893 = vmatpush1.msra.mxu0 %v2750
  %2894 = vmatprep.subr.mxu0 0.0
  %2895 = vmatpush1.msra.mxu0 0.0
  %2896 = vmatprep.subr.mxu0 0.0
  %2897 = vmatpush1.msra.mxu0 0.0
  %2898 = vmatprep.subr.mxu0 0.0
  %2899 = vmatpush1.msra.mxu0 0.0
  %2900 = vmatprep.subr.mxu0 0.0
  %2901 = vmatpush1.msra.mxu0 0.0
  %2902 = vmatprep.subr.mxu0 0.0
  %2903 = vmatpush1.msra.mxu0 0.0
  %2904 = vmatprep.subr.mxu0 0.0
  %2905 = vmatpush1.msra.mxu0 0.0
  %2906 = vmatprep.subr.mxu0 0.0
  %2907 = vmatpush1.msra.mxu0 0.0
  %2908 = vmatprep.subr.mxu0 0.0
  %2909 = vmatpush1.msra.mxu0 0.0
  %2910 = vmatprep.subr.mxu0 0.0
  %2911 = vmatpush1.msra.mxu0 0.0
  %2912 = vmatprep.subr.mxu0 0.0
  %2913 = vmatpush1.msra.mxu0 0.0
  %2914 = vmatprep.subr.mxu0 0.0
  %2915 = vmatpush1.msra.mxu0 0.0
  %2916 = vmatprep.subr.mxu0 0.0
  %2917 = vmatpush1.msra.mxu0 0.0
  %2918 = vmatprep.subr.mxu0 0.0
  %2919 = vmatpush1.msra.mxu0 0.0
  %2920 = vmatprep.subr.mxu0 0.0
  %2921 = vmatpush1.msra.mxu0 0.0
  %2922 = vmatprep.subr.mxu0 0.0
  %2923 = vmatpush1.msra.mxu0 0.0
  %2924 = vmatprep.subr.mxu0 0.0
  %2925 = vmatpush1.msra.mxu0 0.0
  %2926 = vmatprep.subr.mxu0 0.0
  %2927 = vmatpush1.msra.mxu0 0.0
  %2928 = vmatprep.subr.mxu0 0.0
  %2929 = vmatpush1.msra.mxu0 0.0
  %2930 = vmatprep.subr.mxu0 0.0
  %2931 = vmatpush1.msra.mxu0 0.0
  %2932 = vmatprep.subr.mxu0 0.0
  %2933 = vmatpush1.msra.mxu0 0.0
  %2934 = vmatprep.subr.mxu0 0.0
  %2935 = vmatpush1.msra.mxu0 0.0
  %2936 = vmatprep.subr.mxu0 0.0
  %2937 = vmatpush1.msra.mxu0 0.0
  %2938 = vmatprep.subr.mxu0 0.0
  %2939 = vmatpush1.msra.mxu0 0.0
  %2940 = vmatprep.mubr.f32.mxu0 0.0
  %2941 = vmatmul.mubr.f32.gmra.mrb[0].mxu0 %v2814
  %v2942 = vpop.f32.mrb[0].mxu0
  %v2943 = vadd.f32 0.0, %v2942
  %v2944 = vpop.f32.mrb[0].mxu0
  %2945 = vmatprep.mubr.f32.mxu0 0.0
  %2946 = vmatmul.mubr.f32.gmra.mrb[0].mxu0 %v2816
  %v2947 = vpop.f32.mrb[0].mxu0
  %v2948 = vadd.f32 0.0, %v2947
  %v2949 = vpop.f32.mrb[0].mxu0
  %2950 = vmatprep.mubr.f32.mxu0 0.0
  %2951 = vmatmul.mubr.f32.gmra.mrb[0].mxu0 %v2818
  %v2952 = vpop.f32.mrb[0].mxu0
  %v2953 = vadd.f32 0.0, %v2952
  %v2954 = vpop.f32.mrb[0].mxu0
  %2955 = vmatprep.mubr.f32.mxu0 0.0
  %2956 = vmatmul.mubr.f32.gmra.mrb[0].mxu0 %v2820
  %v2957 = vpop.f32.mrb[0].mxu0
  %v2958 = vadd.f32 0.0, %v2957
  %v2959 = vpop.f32.mrb[0].mxu0
  %2960 = vmatprep.mubr.f32.mxu0 0.0
  %2961 = vmatmul.mubr.f32.gmra.mrb[0].mxu0 %v2822
  %v2962 = vpop.f32.mrb[0].mxu0
  %v2963 = vadd.f32 0.0, %v2962
  %v2964 = vpop.f32.mrb[0].mxu0
  %2965 = vmatprep.mubr.f32.mxu0 0.0
  %2966 = vmatmul.mubr.f32.gmra.mrb[0].mxu0 %v2824
  %v2967 = vpop.f32.mrb[0].mxu0
  %v2968 = vadd.f32 0.0, %v2967
  %v2969 = vpop.f32.mrb[0].mxu0
  %2970 = vmatprep.mubr.f32.mxu0 0.0
  %2971 = vmatmul.mubr.f32.gmra.mrb[0].mxu0 %v2826
  %v2972 = vpop.f32.mrb[0].mxu0
  %v2973 = vadd.f32 0.0, %v2972
  %v2974 = vpop.f32.mrb[0].mxu0
  %2975 = vmatprep.mubr.f32.mxu0 0.0
  %2976 = vmatmul.mubr.f32.gmra.mrb[0].mxu0 %v2828
  %v2977 = vpop.f32.mrb[0].mxu0
  %v2978 = vadd.f32 0.0, %v2977
  %v2979 = vpop.f32.mrb[0].mxu0
  %2980 = vmatprep.mubr.f32.mxu0 0.0
  %2981 = vmatmul.mubr.f32.gmra.mrb[0].mxu0 %v2830
  %v2982 = vpop.f32.mrb[0].mxu0
  %v2983 = vadd.f32 0.0, %v2982
  %v2984 = vpop.f32.mrb[0].mxu0
  %2985 = vmatprep.mubr.f32.mxu0 0.0
  %2986 = vmatmul.mubr.f32.gmra.mrb[0].mxu0 %v2832
  %v2987 = vpop.f32.mrb[0].mxu0
  %v2988 = vadd.f32 0.0, %v2987
  %v2989 = vpop.f32.mrb[0].mxu0
  %2990 = vmatprep.mubr.f32.mxu0 0.0
  %2991 = vmatmul.mubr.f32.gmra.mrb[0].mxu0 %v2834
  %v2992 = vpop.f32.mrb[0].mxu0
  %v2993 = vadd.f32 0.0, %v2992
  %v2994 = vpop.f32.mrb[0].mxu0
  %2995 = vmatprep.mubr.f32.mxu0 0.0
  %2996 = vmatmul.mubr.f32.gmra.mrb[0].mxu0 %v2836
  %v2997 = vpop.f32.mrb[0].mxu0
  %v2998 = vadd.f32 0.0, %v2997
  %v2999 = vpop.f32.mrb[0].mxu0
  %3000 = vmatprep.mubr.f32.mxu0 0.0
  %3001 = vmatmul.mubr.f32.gmra.mrb[0].mxu0 %v2838
  %v3002 = vpop.f32.mrb[0].mxu0
  %v3003 = vadd.f32 0.0, %v3002
  %v3004 = vpop.f32.mrb[0].mxu0
  %3005 = vmatprep.mubr.f32.mxu0 0.0
  %3006 = vmatmul.mubr.f32.gmra.mrb[0].mxu0 %v2840
  %v3007 = vpop.f32.mrb[0].mxu0
  %v3008 = vadd.f32 0.0, %v3007
  %v3009 = vpop.f32.mrb[0].mxu0
  %3010 = vmatprep.mubr.f32.mxu0 0.0
  %3011 = vmatmul.mubr.f32.gmra.mrb[0].mxu0 %v2842
  %v3012 = vpop.f32.mrb[0].mxu0
  %v3013 = vadd.f32 0.0, %v3012
  %v3014 = vpop.f32.mrb[0].mxu0
  %3015 = vmatprep.mubr.f32.mxu0 0.0
  %3016 = vmatmul.mubr.f32.gmra.mrb[0].mxu0 %v2844
  %v3017 = vpop.f32.mrb[0].mxu0
  %v3018 = vadd.f32 0.0, %v3017
  %v3019 = vpop.f32.mrb[0].mxu0
  %3020 = vmatprep.mubr.f32.mxu0 0.0
  %3021 = vmatmul.mubr.f32.gmra.mrb[0].mxu0 %v2846
  %v3022 = vpop.f32.mrb[0].mxu0
  %v3023 = vadd.f32 0.0, %v3022
  %v3024 = vpop.f32.mrb[0].mxu0
  %3025 = vmatprep.mubr.f32.mxu0 0.0
  %3026 = vmatmul.mubr.f32.gmra.mrb[0].mxu0 %v2848
  %v3027 = vpop.f32.mrb[0].mxu0
  %v3028 = vadd.f32 0.0, %v3027
  %v3029 = vpop.f32.mrb[0].mxu0
  %3030 = vmatprep.mubr.f32.mxu0 0.0
  %3031 = vmatmul.mubr.f32.gmra.mrb[0].mxu0 %v2850
  %v3032 = vpop.f32.mrb[0].mxu0
  %v3033 = vadd.f32 0.0, %v3032
  %v3034 = vpop.f32.mrb[0].mxu0
  %3035 = vmatprep.mubr.f32.mxu0 0.0
  %3036 = vmatmul.mubr.f32.gmra.mrb[0].mxu0 %v2852
  %v3037 = vpop.f32.mrb[0].mxu0
  %v3038 = vadd.f32 0.0, %v3037
  %v3039 = vpop.f32.mrb[0].mxu0
  %3040 = vmatprep.mubr.f32.mxu0 0.0
  %3041 = vmatmul.mubr.f32.gmra.mrb[0].mxu0 %v2854
  %v3042 = vpop.f32.mrb[0].mxu0
  %v3043 = vadd.f32 0.0, %v3042
  %v3044 = vpop.f32.mrb[0].mxu0
  %3045 = vmatprep.mubr.f32.mxu0 0.0
  %3046 = vmatmul.mubr.f32.gmra.mrb[0].mxu0 %v2856
  %v3047 = vpop.f32.mrb[0].mxu0
  %v3048 = vadd.f32 0.0, %v3047
  %v3049 = vpop.f32.mrb[0].mxu0
  %3050 = vmatprep.mubr.f32.mxu0 0.0
  %3051 = vmatmul.mubr.f32.gmra.mrb[0].mxu0 %v2858
  %v3052 = vpop.f32.mrb[0].mxu0
  %v3053 = vadd.f32 0.0, %v3052
  %v3054 = vpop.f32.mrb[0].mxu0
  %3055 = vmatprep.mubr.f32.mxu0 0.0
  %3056 = vmatmul.mubr.f32.gmra.mrb[0].mxu0 %v2860
  %v3057 = vpop.f32.mrb[0].mxu0
  %v3058 = vadd.f32 0.0, %v3057
  %v3059 = vpop.f32.mrb[0].mxu0
  %3060 = vmatprep.mubr.f32.mxu0 0.0
  %3061 = vmatmul.mubr.f32.gmra.mrb[0].mxu0 %v2862
  %v3062 = vpop.f32.mrb[0].mxu0
  %v3063 = vadd.f32 0.0, %v3062
  %v3064 = vpop.f32.mrb[0].mxu0
  %3065 = vmatprep.mubr.f32.mxu0 0.0
  %3066 = vmatmul.mubr.f32.gmra.mrb[0].mxu0 %v2864
  %v3067 = vpop.f32.mrb[0].mxu0
  %v3068 = vadd.f32 0.0, %v3067
  %v3069 = vpop.f32.mrb[0].mxu0
  %3070 = vmatprep.mubr.f32.mxu0 0.0
  %3071 = vmatmul.mubr.f32.gmra.mrb[0].mxu0 %v2866
  %v3072 = vpop.f32.mrb[0].mxu0
  %v3073 = vadd.f32 0.0, %v3072
  %v3074 = vpop.f32.mrb[0].mxu0
  %3075 = vmatprep.mubr.f32.mxu0 0.0
  %3076 = vmatmul.mubr.f32.gmra.mrb[0].mxu0 %v2868
  %v3077 = vpop.f32.mrb[0].mxu0
  %v3078 = vadd.f32 0.0, %v3077
  %v3079 = vpop.f32.mrb[0].mxu0
  %3080 = vmatprep.mubr.f32.mxu0 0.0
  %3081 = vmatmul.mubr.f32.gmra.mrb[0].mxu0 %v2870
  %v3082 = vpop.f32.mrb[0].mxu0
  %v3083 = vadd.f32 0.0, %v3082
  %v3084 = vpop.f32.mrb[0].mxu0
  %3085 = vmatprep.mubr.f32.mxu0 0.0
  %3086 = vmatmul.mubr.f32.gmra.mrb[0].mxu0 %v2872
  %v3087 = vpop.f32.mrb[0].mxu0
  %v3088 = vadd.f32 0.0, %v3087
  %v3089 = vpop.f32.mrb[0].mxu0
  %3090 = vmatprep.mubr.f32.mxu0 0.0
  %3091 = vmatmul.mubr.f32.gmra.mrb[0].mxu0 %v2874
  %v3092 = vpop.f32.mrb[0].mxu0
  %v3093 = vadd.f32 0.0, %v3092
  %v3094 = vpop.f32.mrb[0].mxu0
  %3095 = vdwg.mxu0
  %v3096 = vadd.f32 %v2710, %v2943
  %v3097 = vadd.f32 %v2711, %v2948
  %v3098 = vadd.f32 %v2712, %v2953
  %v3099 = vadd.f32 %v2713, %v2958
  %v3100 = vadd.f32 %v2714, %v2963
  %v3101 = vadd.f32 %v2715, %v2968
  %v3102 = vadd.f32 %v2716, %v2973
  %v3103 = vadd.f32 %v2717, %v2978
  %v3104 = vadd.f32 %v2718, %v2983
  %v3105 = vadd.f32 %v2719, %v2988
  %v3106 = vadd.f32 %v2720, %v2993
  %v3107 = vadd.f32 %v2721, %v2998
  %v3108 = vadd.f32 %v2722, %v3003
  %v3109 = vadd.f32 %v2723, %v3008
  %v3110 = vadd.f32 %v2724, %v3013
  %v3111 = vadd.f32 %v2725, %v3018
  %v3112 = vadd.f32 %v2726, %v3023
  %v3113 = vadd.f32 %v2727, %v3028
  %v3114 = vadd.f32 %v2728, %v3033
  %v3115 = vadd.f32 %v2729, %v3038
  %v3116 = vadd.f32 %v2730, %v3043
  %v3117 = vadd.f32 %v2731, %v3048
  %v3118 = vadd.f32 %v2732, %v3053
  %v3119 = vadd.f32 %v2733, %v3058
  %v3120 = vadd.f32 %v2734, %v3063
  %v3121 = vadd.f32 %v2735, %v3068
  %v3122 = vadd.f32 %v2736, %v3073
  %v3123 = vadd.f32 %v2737, %v3078
  %v3124 = vadd.f32 %v2738, %v3083
  %v3125 = vadd.f32 %v2739, %v3088
  %v3126 = vadd.f32 %v2740, %v3093
  %v3127 = vld [vmem:[%s4] sm:$0x1]
  %v3129 = vlaneseq
  %v3130 = vshrl.u32 %v3129, 7
  %v3131 = vsub.s32 0, %v3130
  %v3132 = vrot.slane %v3127, %v3131
  %v3134 = vadd.f32 %v3096, %v3132
  %v3135 = vadd.f32 %v3097, %v3132
  %v3136 = vadd.f32 %v3098, %v3132
  %v3137 = vadd.f32 %v3099, %v3132
  %v3138 = vadd.f32 %v3100, %v3132
  %v3139 = vadd.f32 %v3101, %v3132
  %v3140 = vadd.f32 %v3102, %v3132
  %v3141 = vadd.f32 %v3103, %v3132
  %v3142 = vadd.f32 %v3104, %v3132
  %v3143 = vadd.f32 %v3105, %v3132
  %v3144 = vadd.f32 %v3106, %v3132
  %v3145 = vadd.f32 %v3107, %v3132
  %v3146 = vadd.f32 %v3108, %v3132
  %v3147 = vadd.f32 %v3109, %v3132
  %v3148 = vadd.f32 %v3110, %v3132
  %v3149 = vadd.f32 %v3111, %v3132
  %v3150 = vadd.f32 %v3112, %v3132
  %v3151 = vadd.f32 %v3113, %v3132
  %v3152 = vadd.f32 %v3114, %v3132
  %v3153 = vadd.f32 %v3115, %v3132
  %v3154 = vadd.f32 %v3116, %v3132
  %v3155 = vadd.f32 %v3117, %v3132
  %v3156 = vadd.f32 %v3118, %v3132
  %v3157 = vadd.f32 %v3119, %v3132
  %v3158 = vadd.f32 %v3120, %v3132
  %v3159 = vadd.f32 %v3121, %v3132
  %v3160 = vadd.f32 %v3122, %v3132
  %v3161 = vadd.f32 %v3123, %v3132
  %v3162 = vadd.f32 %v3124, %v3132
  %v3163 = vadd.f32 %v3125, %v3132
  %v3164 = vadd.f32 %v3126, %v3132
  %v3165 = vmax.f32 %v3134, 0.0
  %v3166 = vmax.f32 %v3135, 0.0
  %v3167 = vmax.f32 %v3136, 0.0
  %v3168 = vmax.f32 %v3137, 0.0
  %v3169 = vmax.f32 %v3138, 0.0
  %v3170 = vmax.f32 %v3139, 0.0
  %v3171 = vmax.f32 %v3140, 0.0
  %v3172 = vmax.f32 %v3141, 0.0
  %v3173 = vmax.f32 %v3142, 0.0
  %v3174 = vmax.f32 %v3143, 0.0
  %v3175 = vmax.f32 %v3144, 0.0
  %v3176 = vmax.f32 %v3145, 0.0
  %v3177 = vmax.f32 %v3146, 0.0
  %v3178 = vmax.f32 %v3147, 0.0
  %v3179 = vmax.f32 %v3148, 0.0
  %v3180 = vmax.f32 %v3149, 0.0
  %v3181 = vmax.f32 %v3150, 0.0
  %v3182 = vmax.f32 %v3151, 0.0
  %v3183 = vmax.f32 %v3152, 0.0
  %v3184 = vmax.f32 %v3153, 0.0
  %v3185 = vmax.f32 %v3154, 0.0
  %v3186 = vmax.f32 %v3155, 0.0
  %v3187 = vmax.f32 %v3156, 0.0
  %v3188 = vmax.f32 %v3157, 0.0
  %v3189 = vmax.f32 %v3158, 0.0
  %v3190 = vmax.f32 %v3159, 0.0
  %v3191 = vmax.f32 %v3160, 0.0
  %v3192 = vmax.f32 %v3161, 0.0
  %v3193 = vmax.f32 %v3162, 0.0
  %v3194 = vmax.f32 %v3163, 0.0
  %v3195 = vmax.f32 %v3164, 0.0
  %v3196 = vld [vmem:[%s5] sm:$0xff]
  %v3197 = vld [vmem:[%s5 + $0x8] sm:$0xff]
  %v3198 = vld [vmem:[%s5 + $0x10] sm:$0xff]
  %v3199 = vld [vmem:[%s5 + $0x18] sm:$0xff]
  %v3200 = vld [vmem:[%s5 + $0x20] sm:$0xff]
  %v3201 = vld [vmem:[%s5 + $0x28] sm:$0xff]
  %v3202 = vld [vmem:[%s5 + $0x30] sm:$0xff]
  %v3203 = vld [vmem:[%s5 + $0x38] sm:$0xff]
  %v3204 = vld [vmem:[%s5 + $0x40] sm:$0xff]
  %v3205 = vld [vmem:[%s5 + $0x48] sm:$0xff]
  %v3206 = vld [vmem:[%s5 + $0x50] sm:$0xff]
  %v3207 = vld [vmem:[%s5 + $0x58] sm:$0xff]
  %v3208 = vld [vmem:[%s5 + $0x60] sm:$0xff]
  %v3209 = vld [vmem:[%s5 + $0x68] sm:$0xff]
  %v3210 = vld [vmem:[%s5 + $0x70] sm:$0xff]
  %v3211 = vld [vmem:[%s5 + $0x78] sm:$0xff]
  %v3212 = vld [vmem:[%s5 + $0x80] sm:$0xff]
  %v3213 = vld [vmem:[%s5 + $0x88] sm:$0xff]
  %v3214 = vld [vmem:[%s5 + $0x90] sm:$0xff]
  %v3215 = vld [vmem:[%s5 + $0x98] sm:$0xff]
  %v3216 = vld [vmem:[%s5 + $0xa0] sm:$0xff]
  %v3217 = vld [vmem:[%s5 + $0xa8] sm:$0xff]
  %v3218 = vld [vmem:[%s5 + $0xb0] sm:$0xff]
  %v3219 = vld [vmem:[%s5 + $0xb8] sm:$0xff]
  %v3220 = vld [vmem:[%s5 + $0xc0] sm:$0xff]
  %v3221 = vld [vmem:[%s5 + $0xc8] sm:$0xff]
  %v3222 = vld [vmem:[%s5 + $0xd0] sm:$0xff]
  %v3223 = vld [vmem:[%s5 + $0xd8] sm:$0xff]
  %v3224 = vld [vmem:[%s5 + $0xe0] sm:$0xff]
  %v3225 = vld [vmem:[%s5 + $0xe8] sm:$0xff]
  %v3226 = vld [vmem:[%s5 + $0xf0] sm:$0xff]
  %v3227 = vld [vmem:[%s5 + $0xf8] sm:$0xff]
  %s3228 = scalar_lea.vmem %s5, 256
  %v3229 = vld [vmem:[%s3228] sm:$0xff]
  %v3230 = vld [vmem:[%s3228 + $0x8] sm:$0xff]
  %v3231 = vld [vmem:[%s3228 + $0x10] sm:$0xff]
  %v3232 = vld [vmem:[%s3228 + $0x18] sm:$0xff]
  %v3233 = vld [vmem:[%s3228 + $0x20] sm:$0xff]
  %v3234 = vld [vmem:[%s3228 + $0x28] sm:$0xff]
  %v3235 = vld [vmem:[%s3228 + $0x30] sm:$0xff]
  %v3236 = vld [vmem:[%s3228 + $0x38] sm:$0xff]
  %v3237 = vld [vmem:[%s3228 + $0x40] sm:$0xff]
  %v3238 = vld [vmem:[%s3228 + $0x48] sm:$0xff]
  %v3239 = vld [vmem:[%s3228 + $0x50] sm:$0xff]
  %v3240 = vld [vmem:[%s3228 + $0x58] sm:$0xff]
  %v3241 = vld [vmem:[%s3228 + $0x60] sm:$0xff]
  %v3242 = vld [vmem:[%s3228 + $0x68] sm:$0xff]
  %v3243 = vld [vmem:[%s3228 + $0x70] sm:$0xff]
  %v3244 = vld [vmem:[%s3228 + $0x78] sm:$0xff]
  %v3245 = vld [vmem:[%s3228 + $0x80] sm:$0xff]
  %v3246 = vld [vmem:[%s3228 + $0x88] sm:$0xff]
  %v3247 = vld [vmem:[%s3228 + $0x90] sm:$0xff]
  %v3248 = vld [vmem:[%s3228 + $0x98] sm:$0xff]
  %v3249 = vld [vmem:[%s3228 + $0xa0] sm:$0xff]
  %v3250 = vld [vmem:[%s3228 + $0xa8] sm:$0xff]
  %v3251 = vld [vmem:[%s3228 + $0xb0] sm:$0xff]
  %v3252 = vld [vmem:[%s3228 + $0xb8] sm:$0xff]
  %v3253 = vld [vmem:[%s3228 + $0xc0] sm:$0xff]
  %v3254 = vld [vmem:[%s3228 + $0xc8] sm:$0xff]
  %v3255 = vld [vmem:[%s3228 + $0xd0] sm:$0xff]
  %v3256 = vld [vmem:[%s3228 + $0xd8] sm:$0xff]
  %v3257 = vld [vmem:[%s3228 + $0xe0] sm:$0xff]
  %v3258 = vld [vmem:[%s3228 + $0xe8] sm:$0xff]
  %v3259 = vld [vmem:[%s3228 + $0xf0] sm:$0xff]
  %v3260 = vld [vmem:[%s3228 + $0xf8] sm:$0xff]
  %v3291 = vrot.slane %v3165, 1
  %v3292 = vrot.slane %v3166, 1
  %v3293 = vsel %vm127, %v3291, %v3292
  %v3294 = vrot.slane %v3167, 1
  %v3295 = vsel %vm127, %v3292, %v3294
  %v3296 = vrot.slane %v3168, 1
  %v3297 = vsel %vm127, %v3294, %v3296
  %v3298 = vrot.slane %v3169, 1
  %v3299 = vsel %vm127, %v3296, %v3298
  %v3300 = vrot.slane %v3170, 1
  %v3301 = vsel %vm127, %v3298, %v3300
  %v3302 = vrot.slane %v3171, 1
  %v3303 = vsel %vm127, %v3300, %v3302
  %v3304 = vrot.slane %v3172, 1
  %v3305 = vsel %vm127, %v3302, %v3304
  %v3306 = vrot.slane %v3173, 1
  %v3307 = vsel %vm127, %v3304, %v3306
  %v3308 = vrot.slane %v3174, 1
  %v3309 = vsel %vm127, %v3306, %v3308
  %v3310 = vrot.slane %v3175, 1
  %v3311 = vsel %vm127, %v3308, %v3310
  %v3312 = vrot.slane %v3176, 1
  %v3313 = vsel %vm127, %v3310, %v3312
  %v3314 = vrot.slane %v3177, 1
  %v3315 = vsel %vm127, %v3312, %v3314
  %v3316 = vrot.slane %v3178, 1
  %v3317 = vsel %vm127, %v3314, %v3316
  %v3318 = vrot.slane %v3179, 1
  %v3319 = vsel %vm127, %v3316, %v3318
  %v3320 = vrot.slane %v3180, 1
  %v3321 = vsel %vm127, %v3318, %v3320
  %v3322 = vrot.slane %v3181, 1
  %v3323 = vsel %vm127, %v3320, %v3322
  %v3324 = vrot.slane %v3182, 1
  %v3325 = vsel %vm127, %v3322, %v3324
  %v3326 = vrot.slane %v3183, 1
  %v3327 = vsel %vm127, %v3324, %v3326
  %v3328 = vrot.slane %v3184, 1
  %v3329 = vsel %vm127, %v3326, %v3328
  %v3330 = vrot.slane %v3185, 1
  %v3331 = vsel %vm127, %v3328, %v3330
  %v3332 = vrot.slane %v3186, 1
  %v3333 = vsel %vm127, %v3330, %v3332
  %v3334 = vrot.slane %v3187, 1
  %v3335 = vsel %vm127, %v3332, %v3334
  %v3336 = vrot.slane %v3188, 1
  %v3337 = vsel %vm127, %v3334, %v3336
  %v3338 = vrot.slane %v3189, 1
  %v3339 = vsel %vm127, %v3336, %v3338
  %v3340 = vrot.slane %v3190, 1
  %v3341 = vsel %vm127, %v3338, %v3340
  %v3342 = vrot.slane %v3191, 1
  %v3343 = vsel %vm127, %v3340, %v3342
  %v3344 = vrot.slane %v3192, 1
  %v3345 = vsel %vm127, %v3342, %v3344
  %v3346 = vrot.slane %v3193, 1
  %v3347 = vsel %vm127, %v3344, %v3346
  %v3348 = vrot.slane %v3194, 1
  %v3349 = vsel %vm127, %v3346, %v3348
  %3379 = vmatprep.subr.mxu0 %v3230
  %3380 = vmatpush1.msra.mxu0 %v3229
  %3381 = vmatprep.subr.mxu0 %v3232
  %3382 = vmatpush1.msra.mxu0 %v3231
  %3383 = vmatprep.subr.mxu0 %v3234
  %3384 = vmatpush1.msra.mxu0 %v3233
  %3385 = vmatprep.subr.mxu0 %v3236
  %3386 = vmatpush1.msra.mxu0 %v3235
  %3387 = vmatprep.subr.mxu0 %v3238
  %3388 = vmatpush1.msra.mxu0 %v3237
  %3389 = vmatprep.subr.mxu0 %v3240
  %3390 = vmatpush1.msra.mxu0 %v3239
  %3391 = vmatprep.subr.mxu0 %v3242
  %3392 = vmatpush1.msra.mxu0 %v3241
  %3393 = vmatprep.subr.mxu0 %v3244
  %3394 = vmatpush1.msra.mxu0 %v3243
  %3395 = vmatprep.subr.mxu0 %v3246
  %3396 = vmatpush1.msra.mxu0 %v3245
  %3397 = vmatprep.subr.mxu0 %v3248
  %3398 = vmatpush1.msra.mxu0 %v3247
  %3399 = vmatprep.subr.mxu0 %v3250
  %3400 = vmatpush1.msra.mxu0 %v3249
  %3401 = vmatprep.subr.mxu0 %v3252
  %3402 = vmatpush1.msra.mxu0 %v3251
  %3403 = vmatprep.subr.mxu0 %v3254
  %3404 = vmatpush1.msra.mxu0 %v3253
  %3405 = vmatprep.subr.mxu0 %v3256
  %3406 = vmatpush1.msra.mxu0 %v3255
  %3407 = vmatprep.subr.mxu0 %v3258
  %3408 = vmatpush1.msra.mxu0 %v3257
  %3409 = vmatprep.subr.mxu0 %v3260
  %3410 = vmatpush1.msra.mxu0 %v3259
  %3411 = vmatprep.subr.mxu0 0.0
  %3412 = vmatpush1.msra.mxu0 0.0
  %3413 = vmatprep.subr.mxu0 0.0
  %3414 = vmatpush1.msra.mxu0 0.0
  %3415 = vmatprep.subr.mxu0 0.0
  %3416 = vmatpush1.msra.mxu0 0.0
  %3417 = vmatprep.subr.mxu0 0.0
  %3418 = vmatpush1.msra.mxu0 0.0
  %3419 = vmatprep.subr.mxu0 0.0
  %3420 = vmatpush1.msra.mxu0 0.0
  %3421 = vmatprep.subr.mxu0 0.0
  %3422 = vmatpush1.msra.mxu0 0.0
  %3423 = vmatprep.subr.mxu0 0.0
  %3424 = vmatpush1.msra.mxu0 0.0
  %3425 = vmatprep.subr.mxu0 0.0
  %3426 = vmatpush1.msra.mxu0 0.0
  %3427 = vmatprep.subr.mxu0 0.0
  %3428 = vmatpush1.msra.mxu0 0.0
  %3429 = vmatprep.subr.mxu0 0.0
  %3430 = vmatpush1.msra.mxu0 0.0
  %3431 = vmatprep.subr.mxu0 0.0
  %3432 = vmatpush1.msra.mxu0 0.0
  %3433 = vmatprep.subr.mxu0 0.0
  %3434 = vmatpush1.msra.mxu0 0.0
  %3435 = vmatprep.subr.mxu0 0.0
  %3436 = vmatpush1.msra.mxu0 0.0
  %3437 = vmatprep.subr.mxu0 0.0
  %3438 = vmatpush1.msra.mxu0 0.0
  %3439 = vmatprep.subr.mxu0 0.0
  %3440 = vmatpush1.msra.mxu0 0.0
  %3441 = vmatprep.subr.mxu0 0.0
  %3442 = vmatpush1.msra.mxu0 0.0
  %3443 = vmatprep.mubr.f32.mxu0 0.0
  %3444 = vmatmul.mubr.f32.gmra.mrb[0].mxu0 %v3293
  %v3445 = vpop.f32.mrb[0].mxu0
  %v3446 = vadd.f32 0.0, %v3445
  %v3447 = vpop.f32.mrb[0].mxu0
  %v3448 = vadd.f32 0.0, %v3447
  %3449 = vmatprep.mubr.f32.mxu0 0.0
  %3450 = vmatmul.mubr.f32.gmra.mrb[0].mxu0 %v3295
  %v3451 = vpop.f32.mrb[0].mxu0
  %v3452 = vadd.f32 0.0, %v3451
  %v3453 = vpop.f32.mrb[0].mxu0
  %v3454 = vadd.f32 0.0, %v3453
  %3455 = vmatprep.mubr.f32.mxu0 0.0
  %3456 = vmatmul.mubr.f32.gmra.mrb[0].mxu0 %v3297
  %v3457 = vpop.f32.mrb[0].mxu0
  %v3458 = vadd.f32 0.0, %v3457
  %v3459 = vpop.f32.mrb[0].mxu0
  %v3460 = vadd.f32 0.0, %v3459
  %3461 = vmatprep.mubr.f32.mxu0 0.0
  %3462 = vmatmul.mubr.f32.gmra.mrb[0].mxu0 %v3299
  %v3463 = vpop.f32.mrb[0].mxu0
  %v3464 = vadd.f32 0.0, %v3463
  %v3465 = vpop.f32.mrb[0].mxu0
  %v3466 = vadd.f32 0.0, %v3465
  %3467 = vmatprep.mubr.f32.mxu0 0.0
  %3468 = vmatmul.mubr.f32.gmra.mrb[0].mxu0 %v3301
  %v3469 = vpop.f32.mrb[0].mxu0
  %v3470 = vadd.f32 0.0, %v3469
  %v3471 = vpop.f32.mrb[0].mxu0
  %v3472 = vadd.f32 0.0, %v3471
  %3473 = vmatprep.mubr.f32.mxu0 0.0
  %3474 = vmatmul.mubr.f32.gmra.mrb[0].mxu0 %v3303
  %v3475 = vpop.f32.mrb[0].mxu0
  %v3476 = vadd.f32 0.0, %v3475
  %v3477 = vpop.f32.mrb[0].mxu0
  %v3478 = vadd.f32 0.0, %v3477
  %3479 = vmatprep.mubr.f32.mxu0 0.0
  %3480 = vmatmul.mubr.f32.gmra.mrb[0].mxu0 %v3305
  %v3481 = vpop.f32.mrb[0].mxu0
  %v3482 = vadd.f32 0.0, %v3481
  %v3483 = vpop.f32.mrb[0].mxu0
  %v3484 = vadd.f32 0.0, %v3483
  %3485 = vmatprep.mubr.f32.mxu0 0.0
  %3486 = vmatmul.mubr.f32.gmra.mrb[0].mxu0 %v3307
  %v3487 = vpop.f32.mrb[0].mxu0
  %v3488 = vadd.f32 0.0, %v3487
  %v3489 = vpop.f32.mrb[0].mxu0
  %v3490 = vadd.f32 0.0, %v3489
  %3491 = vmatprep.mubr.f32.mxu0 0.0
  %3492 = vmatmul.mubr.f32.gmra.mrb[0].mxu0 %v3309
  %v3493 = vpop.f32.mrb[0].mxu0
  %v3494 = vadd.f32 0.0, %v3493
  %v3495 = vpop.f32.mrb[0].mxu0
  %v3496 = vadd.f32 0.0, %v3495
  %3497 = vmatprep.mubr.f32.mxu0 0.0
  %3498 = vmatmul.mubr.f32.gmra.mrb[0].mxu0 %v3311
  %v3499 = vpop.f32.mrb[0].mxu0
  %v3500 = vadd.f32 0.0, %v3499
  %v3501 = vpop.f32.mrb[0].mxu0
  %v3502 = vadd.f32 0.0, %v3501
  %3503 = vmatprep.mubr.f32.mxu0 0.0
  %3504 = vmatmul.mubr.f32.gmra.mrb[0].mxu0 %v3313
  %v3505 = vpop.f32.mrb[0].mxu0
  %v3506 = vadd.f32 0.0, %v3505
  %v3507 = vpop.f32.mrb[0].mxu0
  %v3508 = vadd.f32 0.0, %v3507
  %3509 = vmatprep.mubr.f32.mxu0 0.0
  %3510 = vmatmul.mubr.f32.gmra.mrb[0].mxu0 %v3315
  %v3511 = vpop.f32.mrb[0].mxu0
  %v3512 = vadd.f32 0.0, %v3511
  %v3513 = vpop.f32.mrb[0].mxu0
  %v3514 = vadd.f32 0.0, %v3513
  %3515 = vmatprep.mubr.f32.mxu0 0.0
  %3516 = vmatmul.mubr.f32.gmra.mrb[0].mxu0 %v3317
  %v3517 = vpop.f32.mrb[0].mxu0
  %v3518 = vadd.f32 0.0, %v3517
  %v3519 = vpop.f32.mrb[0].mxu0
  %v3520 = vadd.f32 0.0, %v3519
  %3521 = vmatprep.mubr.f32.mxu0 0.0
  %3522 = vmatmul.mubr.f32.gmra.mrb[0].mxu0 %v3319
  %v3523 = vpop.f32.mrb[0].mxu0
  %v3524 = vadd.f32 0.0, %v3523
  %v3525 = vpop.f32.mrb[0].mxu0
  %v3526 = vadd.f32 0.0, %v3525
  %3527 = vmatprep.mubr.f32.mxu0 0.0
  %3528 = vmatmul.mubr.f32.gmra.mrb[0].mxu0 %v3321
  %v3529 = vpop.f32.mrb[0].mxu0
  %v3530 = vadd.f32 0.0, %v3529
  %v3531 = vpop.f32.mrb[0].mxu0
  %v3532 = vadd.f32 0.0, %v3531
  %3533 = vmatprep.mubr.f32.mxu0 0.0
  %3534 = vmatmul.mubr.f32.gmra.mrb[0].mxu0 %v3323
  %v3535 = vpop.f32.mrb[0].mxu0
  %v3536 = vadd.f32 0.0, %v3535
  %v3537 = vpop.f32.mrb[0].mxu0
  %v3538 = vadd.f32 0.0, %v3537
  %3539 = vmatprep.mubr.f32.mxu0 0.0
  %3540 = vmatmul.mubr.f32.gmra.mrb[0].mxu0 %v3325
  %v3541 = vpop.f32.mrb[0].mxu0
  %v3542 = vadd.f32 0.0, %v3541
  %v3543 = vpop.f32.mrb[0].mxu0
  %v3544 = vadd.f32 0.0, %v3543
  %3545 = vmatprep.mubr.f32.mxu0 0.0
  %3546 = vmatmul.mubr.f32.gmra.mrb[0].mxu0 %v3327
  %v3547 = vpop.f32.mrb[0].mxu0
  %v3548 = vadd.f32 0.0, %v3547
  %v3549 = vpop.f32.mrb[0].mxu0
  %v3550 = vadd.f32 0.0, %v3549
  %3551 = vmatprep.mubr.f32.mxu0 0.0
  %3552 = vmatmul.mubr.f32.gmra.mrb[0].mxu0 %v3329
  %v3553 = vpop.f32.mrb[0].mxu0
  %v3554 = vadd.f32 0.0, %v3553
  %v3555 = vpop.f32.mrb[0].mxu0
  %v3556 = vadd.f32 0.0, %v3555
  %3557 = vmatprep.mubr.f32.mxu0 0.0
  %3558 = vmatmul.mubr.f32.gmra.mrb[0].mxu0 %v3331
  %v3559 = vpop.f32.mrb[0].mxu0
  %v3560 = vadd.f32 0.0, %v3559
  %v3561 = vpop.f32.mrb[0].mxu0
  %v3562 = vadd.f32 0.0, %v3561
  %3563 = vmatprep.mubr.f32.mxu0 0.0
  %3564 = vmatmul.mubr.f32.gmra.mrb[0].mxu0 %v3333
  %v3565 = vpop.f32.mrb[0].mxu0
  %v3566 = vadd.f32 0.0, %v3565
  %v3567 = vpop.f32.mrb[0].mxu0
  %v3568 = vadd.f32 0.0, %v3567
  %3569 = vmatprep.mubr.f32.mxu0 0.0
  %3570 = vmatmul.mubr.f32.gmra.mrb[0].mxu0 %v3335
  %v3571 = vpop.f32.mrb[0].mxu0
  %v3572 = vadd.f32 0.0, %v3571
  %v3573 = vpop.f32.mrb[0].mxu0
  %v3574 = vadd.f32 0.0, %v3573
  %3575 = vmatprep.mubr.f32.mxu0 0.0
  %3576 = vmatmul.mubr.f32.gmra.mrb[0].mxu0 %v3337
  %v3577 = vpop.f32.mrb[0].mxu0
  %v3578 = vadd.f32 0.0, %v3577
  %v3579 = vpop.f32.mrb[0].mxu0
  %v3580 = vadd.f32 0.0, %v3579
  %3581 = vmatprep.mubr.f32.mxu0 0.0
  %3582 = vmatmul.mubr.f32.gmra.mrb[0].mxu0 %v3339
  %v3583 = vpop.f32.mrb[0].mxu0
  %v3584 = vadd.f32 0.0, %v3583
  %v3585 = vpop.f32.mrb[0].mxu0
  %v3586 = vadd.f32 0.0, %v3585
  %3587 = vmatprep.mubr.f32.mxu0 0.0
  %3588 = vmatmul.mubr.f32.gmra.mrb[0].mxu0 %v3341
  %v3589 = vpop.f32.mrb[0].mxu0
  %v3590 = vadd.f32 0.0, %v3589
  %v3591 = vpop.f32.mrb[0].mxu0
  %v3592 = vadd.f32 0.0, %v3591
  %3593 = vmatprep.mubr.f32.mxu0 0.0
  %3594 = vmatmul.mubr.f32.gmra.mrb[0].mxu0 %v3343
  %v3595 = vpop.f32.mrb[0].mxu0
  %v3596 = vadd.f32 0.0, %v3595
  %v3597 = vpop.f32.mrb[0].mxu0
  %v3598 = vadd.f32 0.0, %v3597
  %3599 = vmatprep.mubr.f32.mxu0 0.0
  %3600 = vmatmul.mubr.f32.gmra.mrb[0].mxu0 %v3345
  %v3601 = vpop.f32.mrb[0].mxu0
  %v3602 = vadd.f32 0.0, %v3601
  %v3603 = vpop.f32.mrb[0].mxu0
  %v3604 = vadd.f32 0.0, %v3603
  %3605 = vmatprep.mubr.f32.mxu0 0.0
  %3606 = vmatmul.mubr.f32.gmra.mrb[0].mxu0 %v3347
  %v3607 = vpop.f32.mrb[0].mxu0
  %v3608 = vadd.f32 0.0, %v3607
  %v3609 = vpop.f32.mrb[0].mxu0
  %v3610 = vadd.f32 0.0, %v3609
  %3611 = vmatprep.mubr.f32.mxu0 0.0
  %3612 = vmatmul.mubr.f32.gmra.mrb[0].mxu0 %v3349
  %v3613 = vpop.f32.mrb[0].mxu0
  %v3614 = vadd.f32 0.0, %v3613
  %v3615 = vpop.f32.mrb[0].mxu0
  %v3616 = vadd.f32 0.0, %v3615
  %3617 = vdwg.mxu0
  %3618 = vmatprep.subr.mxu0 %v3197
  %3619 = vmatpush1.msra.mxu0 %v3196
  %3620 = vmatprep.subr.mxu0 %v3199
  %3621 = vmatpush1.msra.mxu0 %v3198
  %3622 = vmatprep.subr.mxu0 %v3201
  %3623 = vmatpush1.msra.mxu0 %v3200
  %3624 = vmatprep.subr.mxu0 %v3203
  %3625 = vmatpush1.msra.mxu0 %v3202
  %3626 = vmatprep.subr.mxu0 %v3205
  %3627 = vmatpush1.msra.mxu0 %v3204
  %3628 = vmatprep.subr.mxu0 %v3207
  %3629 = vmatpush1.msra.mxu0 %v3206
  %3630 = vmatprep.subr.mxu0 %v3209
  %3631 = vmatpush1.msra.mxu0 %v3208
  %3632 = vmatprep.subr.mxu0 %v3211
  %3633 = vmatpush1.msra.mxu0 %v3210
  %3634 = vmatprep.subr.mxu0 %v3213
  %3635 = vmatpush1.msra.mxu0 %v3212
  %3636 = vmatprep.subr.mxu0 %v3215
  %3637 = vmatpush1.msra.mxu0 %v3214
  %3638 = vmatprep.subr.mxu0 %v3217
  %3639 = vmatpush1.msra.mxu0 %v3216
  %3640 = vmatprep.subr.mxu0 %v3219
  %3641 = vmatpush1.msra.mxu0 %v3218
  %3642 = vmatprep.subr.mxu0 %v3221
  %3643 = vmatpush1.msra.mxu0 %v3220
  %3644 = vmatprep.subr.mxu0 %v3223
  %3645 = vmatpush1.msra.mxu0 %v3222
  %3646 = vmatprep.subr.mxu0 %v3225
  %3647 = vmatpush1.msra.mxu0 %v3224
  %3648 = vmatprep.subr.mxu0 %v3227
  %3649 = vmatpush1.msra.mxu0 %v3226
  %3650 = vmatprep.subr.mxu0 0.0
  %3651 = vmatpush1.msra.mxu0 0.0
  %3652 = vmatprep.subr.mxu0 0.0
  %3653 = vmatpush1.msra.mxu0 0.0
  %3654 = vmatprep.subr.mxu0 0.0
  %3655 = vmatpush1.msra.mxu0 0.0
  %3656 = vmatprep.subr.mxu0 0.0
  %3657 = vmatpush1.msra.mxu0 0.0
  %3658 = vmatprep.subr.mxu0 0.0
  %3659 = vmatpush1.msra.mxu0 0.0
  %3660 = vmatprep.subr.mxu0 0.0
  %3661 = vmatpush1.msra.mxu0 0.0
  %3662 = vmatprep.subr.mxu0 0.0
  %3663 = vmatpush1.msra.mxu0 0.0
  %3664 = vmatprep.subr.mxu0 0.0
  %3665 = vmatpush1.msra.mxu0 0.0
  %3666 = vmatprep.subr.mxu0 0.0
  %3667 = vmatpush1.msra.mxu0 0.0
  %3668 = vmatprep.subr.mxu0 0.0
  %3669 = vmatpush1.msra.mxu0 0.0
  %3670 = vmatprep.subr.mxu0 0.0
  %3671 = vmatpush1.msra.mxu0 0.0
  %3672 = vmatprep.subr.mxu0 0.0
  %3673 = vmatpush1.msra.mxu0 0.0
  %3674 = vmatprep.subr.mxu0 0.0
  %3675 = vmatpush1.msra.mxu0 0.0
  %3676 = vmatprep.subr.mxu0 0.0
  %3677 = vmatpush1.msra.mxu0 0.0
  %3678 = vmatprep.subr.mxu0 0.0
  %3679 = vmatpush1.msra.mxu0 0.0
  %3680 = vmatprep.subr.mxu0 0.0
  %3681 = vmatpush1.msra.mxu0 0.0
  %3682 = vmatprep.mubr.f32.mxu0 0.0
  %3683 = vmatmul.mubr.f32.gmra.mrb[0].mxu0 %v3165
  %v3684 = vpop.f32.mrb[0].mxu0
  %v3685 = vadd.f32 %v3446, %v3684
  %v3686 = vpop.f32.mrb[0].mxu0
  %v3687 = vadd.f32 %v3448, %v3686
  %3688 = vmatprep.mubr.f32.mxu0 0.0
  %3689 = vmatmul.mubr.f32.gmra.mrb[0].mxu0 %v3166
  %v3690 = vpop.f32.mrb[0].mxu0
  %v3691 = vadd.f32 %v3452, %v3690
  %v3692 = vpop.f32.mrb[0].mxu0
  %v3693 = vadd.f32 %v3454, %v3692
  %3694 = vmatprep.mubr.f32.mxu0 0.0
  %3695 = vmatmul.mubr.f32.gmra.mrb[0].mxu0 %v3167
  %v3696 = vpop.f32.mrb[0].mxu0
  %v3697 = vadd.f32 %v3458, %v3696
  %v3698 = vpop.f32.mrb[0].mxu0
  %v3699 = vadd.f32 %v3460, %v3698
  %3700 = vmatprep.mubr.f32.mxu0 0.0
  %3701 = vmatmul.mubr.f32.gmra.mrb[0].mxu0 %v3168
  %v3702 = vpop.f32.mrb[0].mxu0
  %v3703 = vadd.f32 %v3464, %v3702
  %v3704 = vpop.f32.mrb[0].mxu0
  %v3705 = vadd.f32 %v3466, %v3704
  %3706 = vmatprep.mubr.f32.mxu0 0.0
  %3707 = vmatmul.mubr.f32.gmra.mrb[0].mxu0 %v3169
  %v3708 = vpop.f32.mrb[0].mxu0
  %v3709 = vadd.f32 %v3470, %v3708
  %v3710 = vpop.f32.mrb[0].mxu0
  %v3711 = vadd.f32 %v3472, %v3710
  %3712 = vmatprep.mubr.f32.mxu0 0.0
  %3713 = vmatmul.mubr.f32.gmra.mrb[0].mxu0 %v3170
  %v3714 = vpop.f32.mrb[0].mxu0
  %v3715 = vadd.f32 %v3476, %v3714
  %v3716 = vpop.f32.mrb[0].mxu0
  %v3717 = vadd.f32 %v3478, %v3716
  %3718 = vmatprep.mubr.f32.mxu0 0.0
  %3719 = vmatmul.mubr.f32.gmra.mrb[0].mxu0 %v3171
  %v3720 = vpop.f32.mrb[0].mxu0
  %v3721 = vadd.f32 %v3482, %v3720
  %v3722 = vpop.f32.mrb[0].mxu0
  %v3723 = vadd.f32 %v3484, %v3722
  %3724 = vmatprep.mubr.f32.mxu0 0.0
  %3725 = vmatmul.mubr.f32.gmra.mrb[0].mxu0 %v3172
  %v3726 = vpop.f32.mrb[0].mxu0
  %v3727 = vadd.f32 %v3488, %v3726
  %v3728 = vpop.f32.mrb[0].mxu0
  %v3729 = vadd.f32 %v3490, %v3728
  %3730 = vmatprep.mubr.f32.mxu0 0.0
  %3731 = vmatmul.mubr.f32.gmra.mrb[0].mxu0 %v3173
  %v3732 = vpop.f32.mrb[0].mxu0
  %v3733 = vadd.f32 %v3494, %v3732
  %v3734 = vpop.f32.mrb[0].mxu0
  %v3735 = vadd.f32 %v3496, %v3734
  %3736 = vmatprep.mubr.f32.mxu0 0.0
  %3737 = vmatmul.mubr.f32.gmra.mrb[0].mxu0 %v3174
  %v3738 = vpop.f32.mrb[0].mxu0
  %v3739 = vadd.f32 %v3500, %v3738
  %v3740 = vpop.f32.mrb[0].mxu0
  %v3741 = vadd.f32 %v3502, %v3740
  %3742 = vmatprep.mubr.f32.mxu0 0.0
  %3743 = vmatmul.mubr.f32.gmra.mrb[0].mxu0 %v3175
  %v3744 = vpop.f32.mrb[0].mxu0
  %v3745 = vadd.f32 %v3506, %v3744
  %v3746 = vpop.f32.mrb[0].mxu0
  %v3747 = vadd.f32 %v3508, %v3746
  %3748 = vmatprep.mubr.f32.mxu0 0.0
  %3749 = vmatmul.mubr.f32.gmra.mrb[0].mxu0 %v3176
  %v3750 = vpop.f32.mrb[0].mxu0
  %v3751 = vadd.f32 %v3512, %v3750
  %v3752 = vpop.f32.mrb[0].mxu0
  %v3753 = vadd.f32 %v3514, %v3752
  %3754 = vmatprep.mubr.f32.mxu0 0.0
  %3755 = vmatmul.mubr.f32.gmra.mrb[0].mxu0 %v3177
  %v3756 = vpop.f32.mrb[0].mxu0
  %v3757 = vadd.f32 %v3518, %v3756
  %v3758 = vpop.f32.mrb[0].mxu0
  %v3759 = vadd.f32 %v3520, %v3758
  %3760 = vmatprep.mubr.f32.mxu0 0.0
  %3761 = vmatmul.mubr.f32.gmra.mrb[0].mxu0 %v3178
  %v3762 = vpop.f32.mrb[0].mxu0
  %v3763 = vadd.f32 %v3524, %v3762
  %v3764 = vpop.f32.mrb[0].mxu0
  %v3765 = vadd.f32 %v3526, %v3764
  %3766 = vmatprep.mubr.f32.mxu0 0.0
  %3767 = vmatmul.mubr.f32.gmra.mrb[0].mxu0 %v3179
  %v3768 = vpop.f32.mrb[0].mxu0
  %v3769 = vadd.f32 %v3530, %v3768
  %v3770 = vpop.f32.mrb[0].mxu0
  %v3771 = vadd.f32 %v3532, %v3770
  %3772 = vmatprep.mubr.f32.mxu0 0.0
  %3773 = vmatmul.mubr.f32.gmra.mrb[0].mxu0 %v3180
  %v3774 = vpop.f32.mrb[0].mxu0
  %v3775 = vadd.f32 %v3536, %v3774
  %v3776 = vpop.f32.mrb[0].mxu0
  %v3777 = vadd.f32 %v3538, %v3776
  %3778 = vmatprep.mubr.f32.mxu0 0.0
  %3779 = vmatmul.mubr.f32.gmra.mrb[0].mxu0 %v3181
  %v3780 = vpop.f32.mrb[0].mxu0
  %v3781 = vadd.f32 %v3542, %v3780
  %v3782 = vpop.f32.mrb[0].mxu0
  %v3783 = vadd.f32 %v3544, %v3782
  %3784 = vmatprep.mubr.f32.mxu0 0.0
  %3785 = vmatmul.mubr.f32.gmra.mrb[0].mxu0 %v3182
  %v3786 = vpop.f32.mrb[0].mxu0
  %v3787 = vadd.f32 %v3548, %v3786
  %v3788 = vpop.f32.mrb[0].mxu0
  %v3789 = vadd.f32 %v3550, %v3788
  %3790 = vmatprep.mubr.f32.mxu0 0.0
  %3791 = vmatmul.mubr.f32.gmra.mrb[0].mxu0 %v3183
  %v3792 = vpop.f32.mrb[0].mxu0
  %v3793 = vadd.f32 %v3554, %v3792
  %v3794 = vpop.f32.mrb[0].mxu0
  %v3795 = vadd.f32 %v3556, %v3794
  %3796 = vmatprep.mubr.f32.mxu0 0.0
  %3797 = vmatmul.mubr.f32.gmra.mrb[0].mxu0 %v3184
  %v3798 = vpop.f32.mrb[0].mxu0
  %v3799 = vadd.f32 %v3560, %v3798
  %v3800 = vpop.f32.mrb[0].mxu0
  %v3801 = vadd.f32 %v3562, %v3800
  %3802 = vmatprep.mubr.f32.mxu0 0.0
  %3803 = vmatmul.mubr.f32.gmra.mrb[0].mxu0 %v3185
  %v3804 = vpop.f32.mrb[0].mxu0
  %v3805 = vadd.f32 %v3566, %v3804
  %v3806 = vpop.f32.mrb[0].mxu0
  %v3807 = vadd.f32 %v3568, %v3806
  %3808 = vmatprep.mubr.f32.mxu0 0.0
  %3809 = vmatmul.mubr.f32.gmra.mrb[0].mxu0 %v3186
  %v3810 = vpop.f32.mrb[0].mxu0
  %v3811 = vadd.f32 %v3572, %v3810
  %v3812 = vpop.f32.mrb[0].mxu0
  %v3813 = vadd.f32 %v3574, %v3812
  %3814 = vmatprep.mubr.f32.mxu0 0.0
  %3815 = vmatmul.mubr.f32.gmra.mrb[0].mxu0 %v3187
  %v3816 = vpop.f32.mrb[0].mxu0
  %v3817 = vadd.f32 %v3578, %v3816
  %v3818 = vpop.f32.mrb[0].mxu0
  %v3819 = vadd.f32 %v3580, %v3818
  %3820 = vmatprep.mubr.f32.mxu0 0.0
  %3821 = vmatmul.mubr.f32.gmra.mrb[0].mxu0 %v3188
  %v3822 = vpop.f32.mrb[0].mxu0
  %v3823 = vadd.f32 %v3584, %v3822
  %v3824 = vpop.f32.mrb[0].mxu0
  %v3825 = vadd.f32 %v3586, %v3824
  %3826 = vmatprep.mubr.f32.mxu0 0.0
  %3827 = vmatmul.mubr.f32.gmra.mrb[0].mxu0 %v3189
  %v3828 = vpop.f32.mrb[0].mxu0
  %v3829 = vadd.f32 %v3590, %v3828
  %v3830 = vpop.f32.mrb[0].mxu0
  %v3831 = vadd.f32 %v3592, %v3830
  %3832 = vmatprep.mubr.f32.mxu0 0.0
  %3833 = vmatmul.mubr.f32.gmra.mrb[0].mxu0 %v3190
  %v3834 = vpop.f32.mrb[0].mxu0
  %v3835 = vadd.f32 %v3596, %v3834
  %v3836 = vpop.f32.mrb[0].mxu0
  %v3837 = vadd.f32 %v3598, %v3836
  %3838 = vmatprep.mubr.f32.mxu0 0.0
  %3839 = vmatmul.mubr.f32.gmra.mrb[0].mxu0 %v3191
  %v3840 = vpop.f32.mrb[0].mxu0
  %v3841 = vadd.f32 %v3602, %v3840
  %v3842 = vpop.f32.mrb[0].mxu0
  %v3843 = vadd.f32 %v3604, %v3842
  %3844 = vmatprep.mubr.f32.mxu0 0.0
  %3845 = vmatmul.mubr.f32.gmra.mrb[0].mxu0 %v3192
  %v3846 = vpop.f32.mrb[0].mxu0
  %v3847 = vadd.f32 %v3608, %v3846
  %v3848 = vpop.f32.mrb[0].mxu0
  %v3849 = vadd.f32 %v3610, %v3848
  %3850 = vmatprep.mubr.f32.mxu0 0.0
  %3851 = vmatmul.mubr.f32.gmra.mrb[0].mxu0 %v3193
  %v3852 = vpop.f32.mrb[0].mxu0
  %v3853 = vadd.f32 %v3614, %v3852
  %v3854 = vpop.f32.mrb[0].mxu0
  %v3855 = vadd.f32 %v3616, %v3854
  %3856 = vdwg.mxu0
  %s3857 = scalar_lea.vmem %s5, 512
  %v3858 = vld [vmem:[%s3857] sm:$0xff]
  %v3859 = vld [vmem:[%s3857 + $0x8] sm:$0xff]
  %v3860 = vld [vmem:[%s3857 + $0x10] sm:$0xff]
  %v3861 = vld [vmem:[%s3857 + $0x18] sm:$0xff]
  %v3862 = vld [vmem:[%s3857 + $0x20] sm:$0xff]
  %v3863 = vld [vmem:[%s3857 + $0x28] sm:$0xff]
  %v3864 = vld [vmem:[%s3857 + $0x30] sm:$0xff]
  %v3865 = vld [vmem:[%s3857 + $0x38] sm:$0xff]
  %v3866 = vld [vmem:[%s3857 + $0x40] sm:$0xff]
  %v3867 = vld [vmem:[%s3857 + $0x48] sm:$0xff]
  %v3868 = vld [vmem:[%s3857 + $0x50] sm:$0xff]
  %v3869 = vld [vmem:[%s3857 + $0x58] sm:$0xff]
  %v3870 = vld [vmem:[%s3857 + $0x60] sm:$0xff]
  %v3871 = vld [vmem:[%s3857 + $0x68] sm:$0xff]
  %v3872 = vld [vmem:[%s3857 + $0x70] sm:$0xff]
  %v3873 = vld [vmem:[%s3857 + $0x78] sm:$0xff]
  %v3874 = vld [vmem:[%s3857 + $0x80] sm:$0xff]
  %v3875 = vld [vmem:[%s3857 + $0x88] sm:$0xff]
  %v3876 = vld [vmem:[%s3857 + $0x90] sm:$0xff]
  %v3877 = vld [vmem:[%s3857 + $0x98] sm:$0xff]
  %v3878 = vld [vmem:[%s3857 + $0xa0] sm:$0xff]
  %v3879 = vld [vmem:[%s3857 + $0xa8] sm:$0xff]
  %v3880 = vld [vmem:[%s3857 + $0xb0] sm:$0xff]
  %v3881 = vld [vmem:[%s3857 + $0xb8] sm:$0xff]
  %v3882 = vld [vmem:[%s3857 + $0xc0] sm:$0xff]
  %v3883 = vld [vmem:[%s3857 + $0xc8] sm:$0xff]
  %v3884 = vld [vmem:[%s3857 + $0xd0] sm:$0xff]
  %v3885 = vld [vmem:[%s3857 + $0xd8] sm:$0xff]
  %v3886 = vld [vmem:[%s3857 + $0xe0] sm:$0xff]
  %v3887 = vld [vmem:[%s3857 + $0xe8] sm:$0xff]
  %v3888 = vld [vmem:[%s3857 + $0xf0] sm:$0xff]
  %v3889 = vld [vmem:[%s3857 + $0xf8] sm:$0xff]
  %v3891 = vrot.slane %v3166, 2
  %v3892 = vrot.slane %v3167, 2
  %v3893 = vsel %vm799, %v3891, %v3892
  %v3894 = vrot.slane %v3168, 2
  %v3895 = vsel %vm799, %v3892, %v3894
  %v3896 = vrot.slane %v3169, 2
  %v3897 = vsel %vm799, %v3894, %v3896
  %v3898 = vrot.slane %v3170, 2
  %v3899 = vsel %vm799, %v3896, %v3898
  %v3900 = vrot.slane %v3171, 2
  %v3901 = vsel %vm799, %v3898, %v3900
  %v3902 = vrot.slane %v3172, 2
  %v3903 = vsel %vm799, %v3900, %v3902
  %v3904 = vrot.slane %v3173, 2
  %v3905 = vsel %vm799, %v3902, %v3904
  %v3906 = vrot.slane %v3174, 2
  %v3907 = vsel %vm799, %v3904, %v3906
  %v3908 = vrot.slane %v3175, 2
  %v3909 = vsel %vm799, %v3906, %v3908
  %v3910 = vrot.slane %v3176, 2
  %v3911 = vsel %vm799, %v3908, %v3910
  %v3912 = vrot.slane %v3177, 2
  %v3913 = vsel %vm799, %v3910, %v3912
  %v3914 = vrot.slane %v3178, 2
  %v3915 = vsel %vm799, %v3912, %v3914
  %v3916 = vrot.slane %v3179, 2
  %v3917 = vsel %vm799, %v3914, %v3916
  %v3918 = vrot.slane %v3180, 2
  %v3919 = vsel %vm799, %v3916, %v3918
  %v3920 = vrot.slane %v3181, 2
  %v3921 = vsel %vm799, %v3918, %v3920
  %v3922 = vrot.slane %v3182, 2
  %v3923 = vsel %vm799, %v3920, %v3922
  %v3924 = vrot.slane %v3183, 2
  %v3925 = vsel %vm799, %v3922, %v3924
  %v3926 = vrot.slane %v3184, 2
  %v3927 = vsel %vm799, %v3924, %v3926
  %v3928 = vrot.slane %v3185, 2
  %v3929 = vsel %vm799, %v3926, %v3928
  %v3930 = vrot.slane %v3186, 2
  %v3931 = vsel %vm799, %v3928, %v3930
  %v3932 = vrot.slane %v3187, 2
  %v3933 = vsel %vm799, %v3930, %v3932
  %v3934 = vrot.slane %v3188, 2
  %v3935 = vsel %vm799, %v3932, %v3934
  %v3936 = vrot.slane %v3189, 2
  %v3937 = vsel %vm799, %v3934, %v3936
  %v3938 = vrot.slane %v3190, 2
  %v3939 = vsel %vm799, %v3936, %v3938
  %v3940 = vrot.slane %v3191, 2
  %v3941 = vsel %vm799, %v3938, %v3940
  %v3942 = vrot.slane %v3192, 2
  %v3943 = vsel %vm799, %v3940, %v3942
  %v3944 = vrot.slane %v3193, 2
  %v3945 = vsel %vm799, %v3942, %v3944
  %v3946 = vrot.slane %v3194, 2
  %v3947 = vsel %vm799, %v3944, %v3946
  %v3948 = vrot.slane %v3195, 2
  %v3949 = vsel %vm799, %v3946, %v3948
  %3979 = vmatprep.subr.mxu0 %v3859
  %3980 = vmatpush1.msra.mxu0 %v3858
  %3981 = vmatprep.subr.mxu0 %v3861
  %3982 = vmatpush1.msra.mxu0 %v3860
  %3983 = vmatprep.subr.mxu0 %v3863
  %3984 = vmatpush1.msra.mxu0 %v3862
  %3985 = vmatprep.subr.mxu0 %v3865
  %3986 = vmatpush1.msra.mxu0 %v3864
  %3987 = vmatprep.subr.mxu0 %v3867
  %3988 = vmatpush1.msra.mxu0 %v3866
  %3989 = vmatprep.subr.mxu0 %v3869
  %3990 = vmatpush1.msra.mxu0 %v3868
  %3991 = vmatprep.subr.mxu0 %v3871
  %3992 = vmatpush1.msra.mxu0 %v3870
  %3993 = vmatprep.subr.mxu0 %v3873
  %3994 = vmatpush1.msra.mxu0 %v3872
  %3995 = vmatprep.subr.mxu0 %v3875
  %3996 = vmatpush1.msra.mxu0 %v3874
  %3997 = vmatprep.subr.mxu0 %v3877
  %3998 = vmatpush1.msra.mxu0 %v3876
  %3999 = vmatprep.subr.mxu0 %v3879
  %4000 = vmatpush1.msra.mxu0 %v3878
  %4001 = vmatprep.subr.mxu0 %v3881
  %4002 = vmatpush1.msra.mxu0 %v3880
  %4003 = vmatprep.subr.mxu0 %v3883
  %4004 = vmatpush1.msra.mxu0 %v3882
  %4005 = vmatprep.subr.mxu0 %v3885
  %4006 = vmatpush1.msra.mxu0 %v3884
  %4007 = vmatprep.subr.mxu0 %v3887
  %4008 = vmatpush1.msra.mxu0 %v3886
  %4009 = vmatprep.subr.mxu0 %v3889
  %4010 = vmatpush1.msra.mxu0 %v3888
  %4011 = vmatprep.subr.mxu0 0.0
  %4012 = vmatpush1.msra.mxu0 0.0
  %4013 = vmatprep.subr.mxu0 0.0
  %4014 = vmatpush1.msra.mxu0 0.0
  %4015 = vmatprep.subr.mxu0 0.0
  %4016 = vmatpush1.msra.mxu0 0.0
  %4017 = vmatprep.subr.mxu0 0.0
  %4018 = vmatpush1.msra.mxu0 0.0
  %4019 = vmatprep.subr.mxu0 0.0
  %4020 = vmatpush1.msra.mxu0 0.0
  %4021 = vmatprep.subr.mxu0 0.0
  %4022 = vmatpush1.msra.mxu0 0.0
  %4023 = vmatprep.subr.mxu0 0.0
  %4024 = vmatpush1.msra.mxu0 0.0
  %4025 = vmatprep.subr.mxu0 0.0
  %4026 = vmatpush1.msra.mxu0 0.0
  %4027 = vmatprep.subr.mxu0 0.0
  %4028 = vmatpush1.msra.mxu0 0.0
  %4029 = vmatprep.subr.mxu0 0.0
  %4030 = vmatpush1.msra.mxu0 0.0
  %4031 = vmatprep.subr.mxu0 0.0
  %4032 = vmatpush1.msra.mxu0 0.0
  %4033 = vmatprep.subr.mxu0 0.0
  %4034 = vmatpush1.msra.mxu0 0.0
  %4035 = vmatprep.subr.mxu0 0.0
  %4036 = vmatpush1.msra.mxu0 0.0
  %4037 = vmatprep.subr.mxu0 0.0
  %4038 = vmatpush1.msra.mxu0 0.0
  %4039 = vmatprep.subr.mxu0 0.0
  %4040 = vmatpush1.msra.mxu0 0.0
  %4041 = vmatprep.subr.mxu0 0.0
  %4042 = vmatpush1.msra.mxu0 0.0
  %4043 = vmatprep.mubr.f32.mxu0 0.0
  %4044 = vmatmul.mubr.f32.gmra.mrb[0].mxu0 %v3893
  %v4045 = vpop.f32.mrb[0].mxu0
  %v4046 = vadd.f32 0.0, %v4045
  %v4047 = vpop.f32.mrb[0].mxu0
  %v4048 = vadd.f32 0.0, %v4047
  %4049 = vmatprep.mubr.f32.mxu0 0.0
  %4050 = vmatmul.mubr.f32.gmra.mrb[0].mxu0 %v3895
  %v4051 = vpop.f32.mrb[0].mxu0
  %v4052 = vadd.f32 0.0, %v4051
  %v4053 = vpop.f32.mrb[0].mxu0
  %v4054 = vadd.f32 0.0, %v4053
  %4055 = vmatprep.mubr.f32.mxu0 0.0
  %4056 = vmatmul.mubr.f32.gmra.mrb[0].mxu0 %v3897
  %v4057 = vpop.f32.mrb[0].mxu0
  %v4058 = vadd.f32 0.0, %v4057
  %v4059 = vpop.f32.mrb[0].mxu0
  %v4060 = vadd.f32 0.0, %v4059
  %4061 = vmatprep.mubr.f32.mxu0 0.0
  %4062 = vmatmul.mubr.f32.gmra.mrb[0].mxu0 %v3899
  %v4063 = vpop.f32.mrb[0].mxu0
  %v4064 = vadd.f32 0.0, %v4063
  %v4065 = vpop.f32.mrb[0].mxu0
  %v4066 = vadd.f32 0.0, %v4065
  %4067 = vmatprep.mubr.f32.mxu0 0.0
  %4068 = vmatmul.mubr.f32.gmra.mrb[0].mxu0 %v3901
  %v4069 = vpop.f32.mrb[0].mxu0
  %v4070 = vadd.f32 0.0, %v4069
  %v4071 = vpop.f32.mrb[0].mxu0
  %v4072 = vadd.f32 0.0, %v4071
  %4073 = vmatprep.mubr.f32.mxu0 0.0
  %4074 = vmatmul.mubr.f32.gmra.mrb[0].mxu0 %v3903
  %v4075 = vpop.f32.mrb[0].mxu0
  %v4076 = vadd.f32 0.0, %v4075
  %v4077 = vpop.f32.mrb[0].mxu0
  %v4078 = vadd.f32 0.0, %v4077
  %4079 = vmatprep.mubr.f32.mxu0 0.0
  %4080 = vmatmul.mubr.f32.gmra.mrb[0].mxu0 %v3905
  %v4081 = vpop.f32.mrb[0].mxu0
  %v4082 = vadd.f32 0.0, %v4081
  %v4083 = vpop.f32.mrb[0].mxu0
  %v4084 = vadd.f32 0.0, %v4083
  %4085 = vmatprep.mubr.f32.mxu0 0.0
  %4086 = vmatmul.mubr.f32.gmra.mrb[0].mxu0 %v3907
  %v4087 = vpop.f32.mrb[0].mxu0
  %v4088 = vadd.f32 0.0, %v4087
  %v4089 = vpop.f32.mrb[0].mxu0
  %v4090 = vadd.f32 0.0, %v4089
  %4091 = vmatprep.mubr.f32.mxu0 0.0
  %4092 = vmatmul.mubr.f32.gmra.mrb[0].mxu0 %v3909
  %v4093 = vpop.f32.mrb[0].mxu0
  %v4094 = vadd.f32 0.0, %v4093
  %v4095 = vpop.f32.mrb[0].mxu0
  %v4096 = vadd.f32 0.0, %v4095
  %4097 = vmatprep.mubr.f32.mxu0 0.0
  %4098 = vmatmul.mubr.f32.gmra.mrb[0].mxu0 %v3911
  %v4099 = vpop.f32.mrb[0].mxu0
  %v4100 = vadd.f32 0.0, %v4099
  %v4101 = vpop.f32.mrb[0].mxu0
  %v4102 = vadd.f32 0.0, %v4101
  %4103 = vmatprep.mubr.f32.mxu0 0.0
  %4104 = vmatmul.mubr.f32.gmra.mrb[0].mxu0 %v3913
  %v4105 = vpop.f32.mrb[0].mxu0
  %v4106 = vadd.f32 0.0, %v4105
  %v4107 = vpop.f32.mrb[0].mxu0
  %v4108 = vadd.f32 0.0, %v4107
  %4109 = vmatprep.mubr.f32.mxu0 0.0
  %4110 = vmatmul.mubr.f32.gmra.mrb[0].mxu0 %v3915
  %v4111 = vpop.f32.mrb[0].mxu0
  %v4112 = vadd.f32 0.0, %v4111
  %v4113 = vpop.f32.mrb[0].mxu0
  %v4114 = vadd.f32 0.0, %v4113
  %4115 = vmatprep.mubr.f32.mxu0 0.0
  %4116 = vmatmul.mubr.f32.gmra.mrb[0].mxu0 %v3917
  %v4117 = vpop.f32.mrb[0].mxu0
  %v4118 = vadd.f32 0.0, %v4117
  %v4119 = vpop.f32.mrb[0].mxu0
  %v4120 = vadd.f32 0.0, %v4119
  %4121 = vmatprep.mubr.f32.mxu0 0.0
  %4122 = vmatmul.mubr.f32.gmra.mrb[0].mxu0 %v3919
  %v4123 = vpop.f32.mrb[0].mxu0
  %v4124 = vadd.f32 0.0, %v4123
  %v4125 = vpop.f32.mrb[0].mxu0
  %v4126 = vadd.f32 0.0, %v4125
  %4127 = vmatprep.mubr.f32.mxu0 0.0
  %4128 = vmatmul.mubr.f32.gmra.mrb[0].mxu0 %v3921
  %v4129 = vpop.f32.mrb[0].mxu0
  %v4130 = vadd.f32 0.0, %v4129
  %v4131 = vpop.f32.mrb[0].mxu0
  %v4132 = vadd.f32 0.0, %v4131
  %4133 = vmatprep.mubr.f32.mxu0 0.0
  %4134 = vmatmul.mubr.f32.gmra.mrb[0].mxu0 %v3923
  %v4135 = vpop.f32.mrb[0].mxu0
  %v4136 = vadd.f32 0.0, %v4135
  %v4137 = vpop.f32.mrb[0].mxu0
  %v4138 = vadd.f32 0.0, %v4137
  %4139 = vmatprep.mubr.f32.mxu0 0.0
  %4140 = vmatmul.mubr.f32.gmra.mrb[0].mxu0 %v3925
  %v4141 = vpop.f32.mrb[0].mxu0
  %v4142 = vadd.f32 0.0, %v4141
  %v4143 = vpop.f32.mrb[0].mxu0
  %v4144 = vadd.f32 0.0, %v4143
  %4145 = vmatprep.mubr.f32.mxu0 0.0
  %4146 = vmatmul.mubr.f32.gmra.mrb[0].mxu0 %v3927
  %v4147 = vpop.f32.mrb[0].mxu0
  %v4148 = vadd.f32 0.0, %v4147
  %v4149 = vpop.f32.mrb[0].mxu0
  %v4150 = vadd.f32 0.0, %v4149
  %4151 = vmatprep.mubr.f32.mxu0 0.0
  %4152 = vmatmul.mubr.f32.gmra.mrb[0].mxu0 %v3929
  %v4153 = vpop.f32.mrb[0].mxu0
  %v4154 = vadd.f32 0.0, %v4153
  %v4155 = vpop.f32.mrb[0].mxu0
  %v4156 = vadd.f32 0.0, %v4155
  %4157 = vmatprep.mubr.f32.mxu0 0.0
  %4158 = vmatmul.mubr.f32.gmra.mrb[0].mxu0 %v3931
  %v4159 = vpop.f32.mrb[0].mxu0
  %v4160 = vadd.f32 0.0, %v4159
  %v4161 = vpop.f32.mrb[0].mxu0
  %v4162 = vadd.f32 0.0, %v4161
  %4163 = vmatprep.mubr.f32.mxu0 0.0
  %4164 = vmatmul.mubr.f32.gmra.mrb[0].mxu0 %v3933
  %v4165 = vpop.f32.mrb[0].mxu0
  %v4166 = vadd.f32 0.0, %v4165
  %v4167 = vpop.f32.mrb[0].mxu0
  %v4168 = vadd.f32 0.0, %v4167
  %4169 = vmatprep.mubr.f32.mxu0 0.0
  %4170 = vmatmul.mubr.f32.gmra.mrb[0].mxu0 %v3935
  %v4171 = vpop.f32.mrb[0].mxu0
  %v4172 = vadd.f32 0.0, %v4171
  %v4173 = vpop.f32.mrb[0].mxu0
  %v4174 = vadd.f32 0.0, %v4173
  %4175 = vmatprep.mubr.f32.mxu0 0.0
  %4176 = vmatmul.mubr.f32.gmra.mrb[0].mxu0 %v3937
  %v4177 = vpop.f32.mrb[0].mxu0
  %v4178 = vadd.f32 0.0, %v4177
  %v4179 = vpop.f32.mrb[0].mxu0
  %v4180 = vadd.f32 0.0, %v4179
  %4181 = vmatprep.mubr.f32.mxu0 0.0
  %4182 = vmatmul.mubr.f32.gmra.mrb[0].mxu0 %v3939
  %v4183 = vpop.f32.mrb[0].mxu0
  %v4184 = vadd.f32 0.0, %v4183
  %v4185 = vpop.f32.mrb[0].mxu0
  %v4186 = vadd.f32 0.0, %v4185
  %4187 = vmatprep.mubr.f32.mxu0 0.0
  %4188 = vmatmul.mubr.f32.gmra.mrb[0].mxu0 %v3941
  %v4189 = vpop.f32.mrb[0].mxu0
  %v4190 = vadd.f32 0.0, %v4189
  %v4191 = vpop.f32.mrb[0].mxu0
  %v4192 = vadd.f32 0.0, %v4191
  %4193 = vmatprep.mubr.f32.mxu0 0.0
  %4194 = vmatmul.mubr.f32.gmra.mrb[0].mxu0 %v3943
  %v4195 = vpop.f32.mrb[0].mxu0
  %v4196 = vadd.f32 0.0, %v4195
  %v4197 = vpop.f32.mrb[0].mxu0
  %v4198 = vadd.f32 0.0, %v4197
  %4199 = vmatprep.mubr.f32.mxu0 0.0
  %4200 = vmatmul.mubr.f32.gmra.mrb[0].mxu0 %v3945
  %v4201 = vpop.f32.mrb[0].mxu0
  %v4202 = vadd.f32 0.0, %v4201
  %v4203 = vpop.f32.mrb[0].mxu0
  %v4204 = vadd.f32 0.0, %v4203
  %4205 = vmatprep.mubr.f32.mxu0 0.0
  %4206 = vmatmul.mubr.f32.gmra.mrb[0].mxu0 %v3947
  %v4207 = vpop.f32.mrb[0].mxu0
  %v4208 = vadd.f32 0.0, %v4207
  %v4209 = vpop.f32.mrb[0].mxu0
  %v4210 = vadd.f32 0.0, %v4209
  %4211 = vmatprep.mubr.f32.mxu0 0.0
  %4212 = vmatmul.mubr.f32.gmra.mrb[0].mxu0 %v3949
  %v4213 = vpop.f32.mrb[0].mxu0
  %v4214 = vadd.f32 0.0, %v4213
  %v4215 = vpop.f32.mrb[0].mxu0
  %v4216 = vadd.f32 0.0, %v4215
  %4217 = vdwg.mxu0
  %v4218 = vadd.f32 %v3685, %v4046
  %v4219 = vadd.f32 %v3687, %v4048
  %v4220 = vadd.f32 %v3691, %v4052
  %v4221 = vadd.f32 %v3693, %v4054
  %v4222 = vadd.f32 %v3697, %v4058
  %v4223 = vadd.f32 %v3699, %v4060
  %v4224 = vadd.f32 %v3703, %v4064
  %v4225 = vadd.f32 %v3705, %v4066
  %v4226 = vadd.f32 %v3709, %v4070
  %v4227 = vadd.f32 %v3711, %v4072
  %v4228 = vadd.f32 %v3715, %v4076
  %v4229 = vadd.f32 %v3717, %v4078
  %v4230 = vadd.f32 %v3721, %v4082
  %v4231 = vadd.f32 %v3723, %v4084
  %v4232 = vadd.f32 %v3727, %v4088
  %v4233 = vadd.f32 %v3729, %v4090
  %v4234 = vadd.f32 %v3733, %v4094
  %v4235 = vadd.f32 %v3735, %v4096
  %v4236 = vadd.f32 %v3739, %v4100
  %v4237 = vadd.f32 %v3741, %v4102
  %v4238 = vadd.f32 %v3745, %v4106
  %v4239 = vadd.f32 %v3747, %v4108
  %v4240 = vadd.f32 %v3751, %v4112
  %v4241 = vadd.f32 %v3753, %v4114
  %v4242 = vadd.f32 %v3757, %v4118
  %v4243 = vadd.f32 %v3759, %v4120
  %v4244 = vadd.f32 %v3763, %v4124
  %v4245 = vadd.f32 %v3765, %v4126
  %v4246 = vadd.f32 %v3769, %v4130
  %v4247 = vadd.f32 %v3771, %v4132
  %v4248 = vadd.f32 %v3775, %v4136
  %v4249 = vadd.f32 %v3777, %v4138
  %v4250 = vadd.f32 %v3781, %v4142
  %v4251 = vadd.f32 %v3783, %v4144
  %v4252 = vadd.f32 %v3787, %v4148
  %v4253 = vadd.f32 %v3789, %v4150
  %v4254 = vadd.f32 %v3793, %v4154
  %v4255 = vadd.f32 %v3795, %v4156
  %v4256 = vadd.f32 %v3799, %v4160
  %v4257 = vadd.f32 %v3801, %v4162
  %v4258 = vadd.f32 %v3805, %v4166
  %v4259 = vadd.f32 %v3807, %v4168
  %v4260 = vadd.f32 %v3811, %v4172
  %v4261 = vadd.f32 %v3813, %v4174
  %v4262 = vadd.f32 %v3817, %v4178
  %v4263 = vadd.f32 %v3819, %v4180
  %v4264 = vadd.f32 %v3823, %v4184
  %v4265 = vadd.f32 %v3825, %v4186
  %v4266 = vadd.f32 %v3829, %v4190
  %v4267 = vadd.f32 %v3831, %v4192
  %v4268 = vadd.f32 %v3835, %v4196
  %v4269 = vadd.f32 %v3837, %v4198
  %v4270 = vadd.f32 %v3841, %v4202
  %v4271 = vadd.f32 %v3843, %v4204
  %v4272 = vadd.f32 %v3847, %v4208
  %v4273 = vadd.f32 %v3849, %v4210
  %v4274 = vadd.f32 %v3853, %v4214
  %v4275 = vadd.f32 %v3855, %v4216
  %s4276 = scalar_lea.vmem %s5, 768
  %v4277 = vld [vmem:[%s4276] sm:$0xff]
  %v4278 = vld [vmem:[%s4276 + $0x8] sm:$0xff]
  %v4279 = vld [vmem:[%s4276 + $0x10] sm:$0xff]
  %v4280 = vld [vmem:[%s4276 + $0x18] sm:$0xff]
  %v4281 = vld [vmem:[%s4276 + $0x20] sm:$0xff]
  %v4282 = vld [vmem:[%s4276 + $0x28] sm:$0xff]
  %v4283 = vld [vmem:[%s4276 + $0x30] sm:$0xff]
  %v4284 = vld [vmem:[%s4276 + $0x38] sm:$0xff]
  %v4285 = vld [vmem:[%s4276 + $0x40] sm:$0xff]
  %v4286 = vld [vmem:[%s4276 + $0x48] sm:$0xff]
  %v4287 = vld [vmem:[%s4276 + $0x50] sm:$0xff]
  %v4288 = vld [vmem:[%s4276 + $0x58] sm:$0xff]
  %v4289 = vld [vmem:[%s4276 + $0x60] sm:$0xff]
  %v4290 = vld [vmem:[%s4276 + $0x68] sm:$0xff]
  %v4291 = vld [vmem:[%s4276 + $0x70] sm:$0xff]
  %v4292 = vld [vmem:[%s4276 + $0x78] sm:$0xff]
  %v4293 = vld [vmem:[%s4276 + $0x80] sm:$0xff]
  %v4294 = vld [vmem:[%s4276 + $0x88] sm:$0xff]
  %v4295 = vld [vmem:[%s4276 + $0x90] sm:$0xff]
  %v4296 = vld [vmem:[%s4276 + $0x98] sm:$0xff]
  %v4297 = vld [vmem:[%s4276 + $0xa0] sm:$0xff]
  %v4298 = vld [vmem:[%s4276 + $0xa8] sm:$0xff]
  %v4299 = vld [vmem:[%s4276 + $0xb0] sm:$0xff]
  %v4300 = vld [vmem:[%s4276 + $0xb8] sm:$0xff]
  %v4301 = vld [vmem:[%s4276 + $0xc0] sm:$0xff]
  %v4302 = vld [vmem:[%s4276 + $0xc8] sm:$0xff]
  %v4303 = vld [vmem:[%s4276 + $0xd0] sm:$0xff]
  %v4304 = vld [vmem:[%s4276 + $0xd8] sm:$0xff]
  %v4305 = vld [vmem:[%s4276 + $0xe0] sm:$0xff]
  %v4306 = vld [vmem:[%s4276 + $0xe8] sm:$0xff]
  %v4307 = vld [vmem:[%s4276 + $0xf0] sm:$0xff]
  %v4308 = vld [vmem:[%s4276 + $0xf8] sm:$0xff]
  %v4309 = vrot.slane %v3166, 3
  %v4310 = vrot.slane %v3167, 3
  %v4311 = vsel %vm1202, %v4309, %v4310
  %v4312 = vrot.slane %v3168, 3
  %v4313 = vsel %vm1202, %v4310, %v4312
  %v4314 = vrot.slane %v3169, 3
  %v4315 = vsel %vm1202, %v4312, %v4314
  %v4316 = vrot.slane %v3170, 3
  %v4317 = vsel %vm1202, %v4314, %v4316
  %v4318 = vrot.slane %v3171, 3
  %v4319 = vsel %vm1202, %v4316, %v4318
  %v4320 = vrot.slane %v3172, 3
  %v4321 = vsel %vm1202, %v4318, %v4320
  %v4322 = vrot.slane %v3173, 3
  %v4323 = vsel %vm1202, %v4320, %v4322
  %v4324 = vrot.slane %v3174, 3
  %v4325 = vsel %vm1202, %v4322, %v4324
  %v4326 = vrot.slane %v3175, 3
  %v4327 = vsel %vm1202, %v4324, %v4326
  %v4328 = vrot.slane %v3176, 3
  %v4329 = vsel %vm1202, %v4326, %v4328
  %v4330 = vrot.slane %v3177, 3
  %v4331 = vsel %vm1202, %v4328, %v4330
  %v4332 = vrot.slane %v3178, 3
  %v4333 = vsel %vm1202, %v4330, %v4332
  %v4334 = vrot.slane %v3179, 3
  %v4335 = vsel %vm1202, %v4332, %v4334
  %v4336 = vrot.slane %v3180, 3
  %v4337 = vsel %vm1202, %v4334, %v4336
  %v4338 = vrot.slane %v3181, 3
  %v4339 = vsel %vm1202, %v4336, %v4338
  %v4340 = vrot.slane %v3182, 3
  %v4341 = vsel %vm1202, %v4338, %v4340
  %v4342 = vrot.slane %v3183, 3
  %v4343 = vsel %vm1202, %v4340, %v4342
  %v4344 = vrot.slane %v3184, 3
  %v4345 = vsel %vm1202, %v4342, %v4344
  %v4346 = vrot.slane %v3185, 3
  %v4347 = vsel %vm1202, %v4344, %v4346
  %v4348 = vrot.slane %v3186, 3
  %v4349 = vsel %vm1202, %v4346, %v4348
  %v4350 = vrot.slane %v3187, 3
  %v4351 = vsel %vm1202, %v4348, %v4350
  %v4352 = vrot.slane %v3188, 3
  %v4353 = vsel %vm1202, %v4350, %v4352
  %v4354 = vrot.slane %v3189, 3
  %v4355 = vsel %vm1202, %v4352, %v4354
  %v4356 = vrot.slane %v3190, 3
  %v4357 = vsel %vm1202, %v4354, %v4356
  %v4358 = vrot.slane %v3191, 3
  %v4359 = vsel %vm1202, %v4356, %v4358
  %v4360 = vrot.slane %v3192, 3
  %v4361 = vsel %vm1202, %v4358, %v4360
  %v4362 = vrot.slane %v3193, 3
  %v4363 = vsel %vm1202, %v4360, %v4362
  %v4364 = vrot.slane %v3194, 3
  %v4365 = vsel %vm1202, %v4362, %v4364
  %v4366 = vrot.slane %v3195, 3
  %v4367 = vsel %vm1202, %v4364, %v4366
  %4397 = vmatprep.subr.mxu0 %v4278
  %4398 = vmatpush1.msra.mxu0 %v4277
  %4399 = vmatprep.subr.mxu0 %v4280
  %4400 = vmatpush1.msra.mxu0 %v4279
  %4401 = vmatprep.subr.mxu0 %v4282
  %4402 = vmatpush1.msra.mxu0 %v4281
  %4403 = vmatprep.subr.mxu0 %v4284
  %4404 = vmatpush1.msra.mxu0 %v4283
  %4405 = vmatprep.subr.mxu0 %v4286
  %4406 = vmatpush1.msra.mxu0 %v4285
  %4407 = vmatprep.subr.mxu0 %v4288
  %4408 = vmatpush1.msra.mxu0 %v4287
  %4409 = vmatprep.subr.mxu0 %v4290
  %4410 = vmatpush1.msra.mxu0 %v4289
  %4411 = vmatprep.subr.mxu0 %v4292
  %4412 = vmatpush1.msra.mxu0 %v4291
  %4413 = vmatprep.subr.mxu0 %v4294
  %4414 = vmatpush1.msra.mxu0 %v4293
  %4415 = vmatprep.subr.mxu0 %v4296
  %4416 = vmatpush1.msra.mxu0 %v4295
  %4417 = vmatprep.subr.mxu0 %v4298
  %4418 = vmatpush1.msra.mxu0 %v4297
  %4419 = vmatprep.subr.mxu0 %v4300
  %4420 = vmatpush1.msra.mxu0 %v4299
  %4421 = vmatprep.subr.mxu0 %v4302
  %4422 = vmatpush1.msra.mxu0 %v4301
  %4423 = vmatprep.subr.mxu0 %v4304
  %4424 = vmatpush1.msra.mxu0 %v4303
  %4425 = vmatprep.subr.mxu0 %v4306
  %4426 = vmatpush1.msra.mxu0 %v4305
  %4427 = vmatprep.subr.mxu0 %v4308
  %4428 = vmatpush1.msra.mxu0 %v4307
  %4429 = vmatprep.subr.mxu0 0.0
  %4430 = vmatpush1.msra.mxu0 0.0
  %4431 = vmatprep.subr.mxu0 0.0
  %4432 = vmatpush1.msra.mxu0 0.0
  %4433 = vmatprep.subr.mxu0 0.0
  %4434 = vmatpush1.msra.mxu0 0.0
  %4435 = vmatprep.subr.mxu0 0.0
  %4436 = vmatpush1.msra.mxu0 0.0
  %4437 = vmatprep.subr.mxu0 0.0
  %4438 = vmatpush1.msra.mxu0 0.0
  %4439 = vmatprep.subr.mxu0 0.0
  %4440 = vmatpush1.msra.mxu0 0.0
  %4441 = vmatprep.subr.mxu0 0.0
  %4442 = vmatpush1.msra.mxu0 0.0
  %4443 = vmatprep.subr.mxu0 0.0
  %4444 = vmatpush1.msra.mxu0 0.0
  %4445 = vmatprep.subr.mxu0 0.0
  %4446 = vmatpush1.msra.mxu0 0.0
  %4447 = vmatprep.subr.mxu0 0.0
  %4448 = vmatpush1.msra.mxu0 0.0
  %4449 = vmatprep.subr.mxu0 0.0
  %4450 = vmatpush1.msra.mxu0 0.0
  %4451 = vmatprep.subr.mxu0 0.0
  %4452 = vmatpush1.msra.mxu0 0.0
  %4453 = vmatprep.subr.mxu0 0.0
  %4454 = vmatpush1.msra.mxu0 0.0
  %4455 = vmatprep.subr.mxu0 0.0
  %4456 = vmatpush1.msra.mxu0 0.0
  %4457 = vmatprep.subr.mxu0 0.0
  %4458 = vmatpush1.msra.mxu0 0.0
  %4459 = vmatprep.subr.mxu0 0.0
  %4460 = vmatpush1.msra.mxu0 0.0
  %4461 = vmatprep.mubr.f32.mxu0 0.0
  %4462 = vmatmul.mubr.f32.gmra.mrb[0].mxu0 %v4311
  %v4463 = vpop.f32.mrb[0].mxu0
  %v4464 = vadd.f32 0.0, %v4463
  %v4465 = vpop.f32.mrb[0].mxu0
  %v4466 = vadd.f32 0.0, %v4465
  %4467 = vmatprep.mubr.f32.mxu0 0.0
  %4468 = vmatmul.mubr.f32.gmra.mrb[0].mxu0 %v4313
  %v4469 = vpop.f32.mrb[0].mxu0
  %v4470 = vadd.f32 0.0, %v4469
  %v4471 = vpop.f32.mrb[0].mxu0
  %v4472 = vadd.f32 0.0, %v4471
  %4473 = vmatprep.mubr.f32.mxu0 0.0
  %4474 = vmatmul.mubr.f32.gmra.mrb[0].mxu0 %v4315
  %v4475 = vpop.f32.mrb[0].mxu0
  %v4476 = vadd.f32 0.0, %v4475
  %v4477 = vpop.f32.mrb[0].mxu0
  %v4478 = vadd.f32 0.0, %v4477
  %4479 = vmatprep.mubr.f32.mxu0 0.0
  %4480 = vmatmul.mubr.f32.gmra.mrb[0].mxu0 %v4317
  %v4481 = vpop.f32.mrb[0].mxu0
  %v4482 = vadd.f32 0.0, %v4481
  %v4483 = vpop.f32.mrb[0].mxu0
  %v4484 = vadd.f32 0.0, %v4483
  %4485 = vmatprep.mubr.f32.mxu0 0.0
  %4486 = vmatmul.mubr.f32.gmra.mrb[0].mxu0 %v4319
  %v4487 = vpop.f32.mrb[0].mxu0
  %v4488 = vadd.f32 0.0, %v4487
  %v4489 = vpop.f32.mrb[0].mxu0
  %v4490 = vadd.f32 0.0, %v4489
  %4491 = vmatprep.mubr.f32.mxu0 0.0
  %4492 = vmatmul.mubr.f32.gmra.mrb[0].mxu0 %v4321
  %v4493 = vpop.f32.mrb[0].mxu0
  %v4494 = vadd.f32 0.0, %v4493
  %v4495 = vpop.f32.mrb[0].mxu0
  %v4496 = vadd.f32 0.0, %v4495
  %4497 = vmatprep.mubr.f32.mxu0 0.0
  %4498 = vmatmul.mubr.f32.gmra.mrb[0].mxu0 %v4323
  %v4499 = vpop.f32.mrb[0].mxu0
  %v4500 = vadd.f32 0.0, %v4499
  %v4501 = vpop.f32.mrb[0].mxu0
  %v4502 = vadd.f32 0.0, %v4501
  %4503 = vmatprep.mubr.f32.mxu0 0.0
  %4504 = vmatmul.mubr.f32.gmra.mrb[0].mxu0 %v4325
  %v4505 = vpop.f32.mrb[0].mxu0
  %v4506 = vadd.f32 0.0, %v4505
  %v4507 = vpop.f32.mrb[0].mxu0
  %v4508 = vadd.f32 0.0, %v4507
  %4509 = vmatprep.mubr.f32.mxu0 0.0
  %4510 = vmatmul.mubr.f32.gmra.mrb[0].mxu0 %v4327
  %v4511 = vpop.f32.mrb[0].mxu0
  %v4512 = vadd.f32 0.0, %v4511
  %v4513 = vpop.f32.mrb[0].mxu0
  %v4514 = vadd.f32 0.0, %v4513
  %4515 = vmatprep.mubr.f32.mxu0 0.0
  %4516 = vmatmul.mubr.f32.gmra.mrb[0].mxu0 %v4329
  %v4517 = vpop.f32.mrb[0].mxu0
  %v4518 = vadd.f32 0.0, %v4517
  %v4519 = vpop.f32.mrb[0].mxu0
  %v4520 = vadd.f32 0.0, %v4519
  %4521 = vmatprep.mubr.f32.mxu0 0.0
  %4522 = vmatmul.mubr.f32.gmra.mrb[0].mxu0 %v4331
  %v4523 = vpop.f32.mrb[0].mxu0
  %v4524 = vadd.f32 0.0, %v4523
  %v4525 = vpop.f32.mrb[0].mxu0
  %v4526 = vadd.f32 0.0, %v4525
  %4527 = vmatprep.mubr.f32.mxu0 0.0
  %4528 = vmatmul.mubr.f32.gmra.mrb[0].mxu0 %v4333
  %v4529 = vpop.f32.mrb[0].mxu0
  %v4530 = vadd.f32 0.0, %v4529
  %v4531 = vpop.f32.mrb[0].mxu0
  %v4532 = vadd.f32 0.0, %v4531
  %4533 = vmatprep.mubr.f32.mxu0 0.0
  %4534 = vmatmul.mubr.f32.gmra.mrb[0].mxu0 %v4335
  %v4535 = vpop.f32.mrb[0].mxu0
  %v4536 = vadd.f32 0.0, %v4535
  %v4537 = vpop.f32.mrb[0].mxu0
  %v4538 = vadd.f32 0.0, %v4537
  %4539 = vmatprep.mubr.f32.mxu0 0.0
  %4540 = vmatmul.mubr.f32.gmra.mrb[0].mxu0 %v4337
  %v4541 = vpop.f32.mrb[0].mxu0
  %v4542 = vadd.f32 0.0, %v4541
  %v4543 = vpop.f32.mrb[0].mxu0
  %v4544 = vadd.f32 0.0, %v4543
  %4545 = vmatprep.mubr.f32.mxu0 0.0
  %4546 = vmatmul.mubr.f32.gmra.mrb[0].mxu0 %v4339
  %v4547 = vpop.f32.mrb[0].mxu0
  %v4548 = vadd.f32 0.0, %v4547
  %v4549 = vpop.f32.mrb[0].mxu0
  %v4550 = vadd.f32 0.0, %v4549
  %4551 = vmatprep.mubr.f32.mxu0 0.0
  %4552 = vmatmul.mubr.f32.gmra.mrb[0].mxu0 %v4341
  %v4553 = vpop.f32.mrb[0].mxu0
  %v4554 = vadd.f32 0.0, %v4553
  %v4555 = vpop.f32.mrb[0].mxu0
  %v4556 = vadd.f32 0.0, %v4555
  %4557 = vmatprep.mubr.f32.mxu0 0.0
  %4558 = vmatmul.mubr.f32.gmra.mrb[0].mxu0 %v4343
  %v4559 = vpop.f32.mrb[0].mxu0
  %v4560 = vadd.f32 0.0, %v4559
  %v4561 = vpop.f32.mrb[0].mxu0
  %v4562 = vadd.f32 0.0, %v4561
  %4563 = vmatprep.mubr.f32.mxu0 0.0
  %4564 = vmatmul.mubr.f32.gmra.mrb[0].mxu0 %v4345
  %v4565 = vpop.f32.mrb[0].mxu0
  %v4566 = vadd.f32 0.0, %v4565
  %v4567 = vpop.f32.mrb[0].mxu0
  %v4568 = vadd.f32 0.0, %v4567
  %4569 = vmatprep.mubr.f32.mxu0 0.0
  %4570 = vmatmul.mubr.f32.gmra.mrb[0].mxu0 %v4347
  %v4571 = vpop.f32.mrb[0].mxu0
  %v4572 = vadd.f32 0.0, %v4571
  %v4573 = vpop.f32.mrb[0].mxu0
  %v4574 = vadd.f32 0.0, %v4573
  %4575 = vmatprep.mubr.f32.mxu0 0.0
  %4576 = vmatmul.mubr.f32.gmra.mrb[0].mxu0 %v4349
  %v4577 = vpop.f32.mrb[0].mxu0
  %v4578 = vadd.f32 0.0, %v4577
  %v4579 = vpop.f32.mrb[0].mxu0
  %v4580 = vadd.f32 0.0, %v4579
  %4581 = vmatprep.mubr.f32.mxu0 0.0
  %4582 = vmatmul.mubr.f32.gmra.mrb[0].mxu0 %v4351
  %v4583 = vpop.f32.mrb[0].mxu0
  %v4584 = vadd.f32 0.0, %v4583
  %v4585 = vpop.f32.mrb[0].mxu0
  %v4586 = vadd.f32 0.0, %v4585
  %4587 = vmatprep.mubr.f32.mxu0 0.0
  %4588 = vmatmul.mubr.f32.gmra.mrb[0].mxu0 %v4353
  %v4589 = vpop.f32.mrb[0].mxu0
  %v4590 = vadd.f32 0.0, %v4589
  %v4591 = vpop.f32.mrb[0].mxu0
  %v4592 = vadd.f32 0.0, %v4591
  %4593 = vmatprep.mubr.f32.mxu0 0.0
  %4594 = vmatmul.mubr.f32.gmra.mrb[0].mxu0 %v4355
  %v4595 = vpop.f32.mrb[0].mxu0
  %v4596 = vadd.f32 0.0, %v4595
  %v4597 = vpop.f32.mrb[0].mxu0
  %v4598 = vadd.f32 0.0, %v4597
  %4599 = vmatprep.mubr.f32.mxu0 0.0
  %4600 = vmatmul.mubr.f32.gmra.mrb[0].mxu0 %v4357
  %v4601 = vpop.f32.mrb[0].mxu0
  %v4602 = vadd.f32 0.0, %v4601
  %v4603 = vpop.f32.mrb[0].mxu0
  %v4604 = vadd.f32 0.0, %v4603
  %4605 = vmatprep.mubr.f32.mxu0 0.0
  %4606 = vmatmul.mubr.f32.gmra.mrb[0].mxu0 %v4359
  %v4607 = vpop.f32.mrb[0].mxu0
  %v4608 = vadd.f32 0.0, %v4607
  %v4609 = vpop.f32.mrb[0].mxu0
  %v4610 = vadd.f32 0.0, %v4609
  %4611 = vmatprep.mubr.f32.mxu0 0.0
  %4612 = vmatmul.mubr.f32.gmra.mrb[0].mxu0 %v4361
  %v4613 = vpop.f32.mrb[0].mxu0
  %v4614 = vadd.f32 0.0, %v4613
  %v4615 = vpop.f32.mrb[0].mxu0
  %v4616 = vadd.f32 0.0, %v4615
  %4617 = vmatprep.mubr.f32.mxu0 0.0
  %4618 = vmatmul.mubr.f32.gmra.mrb[0].mxu0 %v4363
  %v4619 = vpop.f32.mrb[0].mxu0
  %v4620 = vadd.f32 0.0, %v4619
  %v4621 = vpop.f32.mrb[0].mxu0
  %v4622 = vadd.f32 0.0, %v4621
  %4623 = vmatprep.mubr.f32.mxu0 0.0
  %4624 = vmatmul.mubr.f32.gmra.mrb[0].mxu0 %v4365
  %v4625 = vpop.f32.mrb[0].mxu0
  %v4626 = vadd.f32 0.0, %v4625
  %v4627 = vpop.f32.mrb[0].mxu0
  %v4628 = vadd.f32 0.0, %v4627
  %4629 = vmatprep.mubr.f32.mxu0 0.0
  %4630 = vmatmul.mubr.f32.gmra.mrb[0].mxu0 %v4367
  %v4631 = vpop.f32.mrb[0].mxu0
  %v4632 = vadd.f32 0.0, %v4631
  %v4633 = vpop.f32.mrb[0].mxu0
  %v4634 = vadd.f32 0.0, %v4633
  %4635 = vdwg.mxu0
  %v4636 = vadd.f32 %v4218, %v4464
  %v4637 = vadd.f32 %v4219, %v4466
  %v4638 = vadd.f32 %v4220, %v4470
  %v4639 = vadd.f32 %v4221, %v4472
  %v4640 = vadd.f32 %v4222, %v4476
  %v4641 = vadd.f32 %v4223, %v4478
  %v4642 = vadd.f32 %v4224, %v4482
  %v4643 = vadd.f32 %v4225, %v4484
  %v4644 = vadd.f32 %v4226, %v4488
  %v4645 = vadd.f32 %v4227, %v4490
  %v4646 = vadd.f32 %v4228, %v4494
  %v4647 = vadd.f32 %v4229, %v4496
  %v4648 = vadd.f32 %v4230, %v4500
  %v4649 = vadd.f32 %v4231, %v4502
  %v4650 = vadd.f32 %v4232, %v4506
  %v4651 = vadd.f32 %v4233, %v4508
  %v4652 = vadd.f32 %v4234, %v4512
  %v4653 = vadd.f32 %v4235, %v4514
  %v4654 = vadd.f32 %v4236, %v4518
  %v4655 = vadd.f32 %v4237, %v4520
  %v4656 = vadd.f32 %v4238, %v4524
  %v4657 = vadd.f32 %v4239, %v4526
  %v4658 = vadd.f32 %v4240, %v4530
  %v4659 = vadd.f32 %v4241, %v4532
  %v4660 = vadd.f32 %v4242, %v4536
  %v4661 = vadd.f32 %v4243, %v4538
  %v4662 = vadd.f32 %v4244, %v4542
  %v4663 = vadd.f32 %v4245, %v4544
  %v4664 = vadd.f32 %v4246, %v4548
  %v4665 = vadd.f32 %v4247, %v4550
  %v4666 = vadd.f32 %v4248, %v4554
  %v4667 = vadd.f32 %v4249, %v4556
  %v4668 = vadd.f32 %v4250, %v4560
  %v4669 = vadd.f32 %v4251, %v4562
  %v4670 = vadd.f32 %v4252, %v4566
  %v4671 = vadd.f32 %v4253, %v4568
  %v4672 = vadd.f32 %v4254, %v4572
  %v4673 = vadd.f32 %v4255, %v4574
  %v4674 = vadd.f32 %v4256, %v4578
  %v4675 = vadd.f32 %v4257, %v4580
  %v4676 = vadd.f32 %v4258, %v4584
  %v4677 = vadd.f32 %v4259, %v4586
  %v4678 = vadd.f32 %v4260, %v4590
  %v4679 = vadd.f32 %v4261, %v4592
  %v4680 = vadd.f32 %v4262, %v4596
  %v4681 = vadd.f32 %v4263, %v4598
  %v4682 = vadd.f32 %v4264, %v4602
  %v4683 = vadd.f32 %v4265, %v4604
  %v4684 = vadd.f32 %v4266, %v4608
  %v4685 = vadd.f32 %v4267, %v4610
  %v4686 = vadd.f32 %v4268, %v4614
  %v4687 = vadd.f32 %v4269, %v4616
  %v4688 = vadd.f32 %v4270, %v4620
  %v4689 = vadd.f32 %v4271, %v4622
  %v4690 = vadd.f32 %v4272, %v4626
  %v4691 = vadd.f32 %v4273, %v4628
  %v4692 = vadd.f32 %v4274, %v4632
  %v4693 = vadd.f32 %v4275, %v4634
  %v4694 = vld [vmem:[%s6] sm:$0x3]
  %v4696 = vlaneseq
  %v4697 = vshrl.u32 %v4696, 7
  %v4698 = vsub.s32 0, %v4697
  %v4699 = vrot.slane %v4694, %v4698
  %v4700 = vlaneseq
  %v4701 = vshrl.u32 %v4700, 7
  %v4702 = vsub.s32 1, %v4701
  %v4703 = vrot.slane %v4694, %v4702
  %v4706 = vadd.f32 %v4636, %v4699
  %v4707 = vadd.f32 %v4637, %v4703
  %v4708 = vadd.f32 %v4638, %v4699
  %v4709 = vadd.f32 %v4639, %v4703
  %v4710 = vadd.f32 %v4640, %v4699
  %v4711 = vadd.f32 %v4641, %v4703
  %v4712 = vadd.f32 %v4642, %v4699
  %v4713 = vadd.f32 %v4643, %v4703
  %v4714 = vadd.f32 %v4644, %v4699
  %v4715 = vadd.f32 %v4645, %v4703
  %v4716 = vadd.f32 %v4646, %v4699
  %v4717 = vadd.f32 %v4647, %v4703
  %v4718 = vadd.f32 %v4648, %v4699
  %v4719 = vadd.f32 %v4649, %v4703
  %v4720 = vadd.f32 %v4650, %v4699
  %v4721 = vadd.f32 %v4651, %v4703
  %v4722 = vadd.f32 %v4652, %v4699
  %v4723 = vadd.f32 %v4653, %v4703
  %v4724 = vadd.f32 %v4654, %v4699
  %v4725 = vadd.f32 %v4655, %v4703
  %v4726 = vadd.f32 %v4656, %v4699
  %v4727 = vadd.f32 %v4657, %v4703
  %v4728 = vadd.f32 %v4658, %v4699
  %v4729 = vadd.f32 %v4659, %v4703
  %v4730 = vadd.f32 %v4660, %v4699
  %v4731 = vadd.f32 %v4661, %v4703
  %v4732 = vadd.f32 %v4662, %v4699
  %v4733 = vadd.f32 %v4663, %v4703
  %v4734 = vadd.f32 %v4664, %v4699
  %v4735 = vadd.f32 %v4665, %v4703
  %v4736 = vadd.f32 %v4666, %v4699
  %v4737 = vadd.f32 %v4667, %v4703
  %v4738 = vadd.f32 %v4668, %v4699
  %v4739 = vadd.f32 %v4669, %v4703
  %v4740 = vadd.f32 %v4670, %v4699
  %v4741 = vadd.f32 %v4671, %v4703
  %v4742 = vadd.f32 %v4672, %v4699
  %v4743 = vadd.f32 %v4673, %v4703
  %v4744 = vadd.f32 %v4674, %v4699
  %v4745 = vadd.f32 %v4675, %v4703
  %v4746 = vadd.f32 %v4676, %v4699
  %v4747 = vadd.f32 %v4677, %v4703
  %v4748 = vadd.f32 %v4678, %v4699
  %v4749 = vadd.f32 %v4679, %v4703
  %v4750 = vadd.f32 %v4680, %v4699
  %v4751 = vadd.f32 %v4681, %v4703
  %v4752 = vadd.f32 %v4682, %v4699
  %v4753 = vadd.f32 %v4683, %v4703
  %v4754 = vadd.f32 %v4684, %v4699
  %v4755 = vadd.f32 %v4685, %v4703
  %v4756 = vadd.f32 %v4686, %v4699
  %v4757 = vadd.f32 %v4687, %v4703
  %v4758 = vadd.f32 %v4688, %v4699
  %v4759 = vadd.f32 %v4689, %v4703
  %v4760 = vadd.f32 %v4690, %v4699
  %v4761 = vadd.f32 %v4691, %v4703
  %v4762 = vadd.f32 %v4692, %v4699
  %v4763 = vadd.f32 %v4693, %v4703
  %v4764 = vmax.f32 %v4706, 0.0
  %v4765 = vmax.f32 %v4707, 0.0
  %v4766 = vmax.f32 %v4708, 0.0
  %v4767 = vmax.f32 %v4709, 0.0
  %v4768 = vmax.f32 %v4710, 0.0
  %v4769 = vmax.f32 %v4711, 0.0
  %v4770 = vmax.f32 %v4712, 0.0
  %v4771 = vmax.f32 %v4713, 0.0
  %v4772 = vmax.f32 %v4714, 0.0
  %v4773 = vmax.f32 %v4715, 0.0
  %v4774 = vmax.f32 %v4716, 0.0
  %v4775 = vmax.f32 %v4717, 0.0
  %v4776 = vmax.f32 %v4718, 0.0
  %v4777 = vmax.f32 %v4719, 0.0
  %v4778 = vmax.f32 %v4720, 0.0
  %v4779 = vmax.f32 %v4721, 0.0
  %v4780 = vmax.f32 %v4722, 0.0
  %v4781 = vmax.f32 %v4723, 0.0
  %v4782 = vmax.f32 %v4724, 0.0
  %v4783 = vmax.f32 %v4725, 0.0
  %v4784 = vmax.f32 %v4726, 0.0
  %v4785 = vmax.f32 %v4727, 0.0
  %v4786 = vmax.f32 %v4728, 0.0
  %v4787 = vmax.f32 %v4729, 0.0
  %v4788 = vmax.f32 %v4730, 0.0
  %v4789 = vmax.f32 %v4731, 0.0
  %v4790 = vmax.f32 %v4732, 0.0
  %v4791 = vmax.f32 %v4733, 0.0
  %v4792 = vmax.f32 %v4734, 0.0
  %v4793 = vmax.f32 %v4735, 0.0
  %v4794 = vmax.f32 %v4736, 0.0
  %v4795 = vmax.f32 %v4737, 0.0
  %v4796 = vmax.f32 %v4738, 0.0
  %v4797 = vmax.f32 %v4739, 0.0
  %v4798 = vmax.f32 %v4740, 0.0
  %v4799 = vmax.f32 %v4741, 0.0
  %v4800 = vmax.f32 %v4742, 0.0
  %v4801 = vmax.f32 %v4743, 0.0
  %v4802 = vmax.f32 %v4744, 0.0
  %v4803 = vmax.f32 %v4745, 0.0
  %v4804 = vmax.f32 %v4746, 0.0
  %v4805 = vmax.f32 %v4747, 0.0
  %v4806 = vmax.f32 %v4748, 0.0
  %v4807 = vmax.f32 %v4749, 0.0
  %v4808 = vmax.f32 %v4750, 0.0
  %v4809 = vmax.f32 %v4751, 0.0
  %v4810 = vmax.f32 %v4752, 0.0
  %v4811 = vmax.f32 %v4753, 0.0
  %v4812 = vmax.f32 %v4754, 0.0
  %v4813 = vmax.f32 %v4755, 0.0
  %v4814 = vmax.f32 %v4756, 0.0
  %v4815 = vmax.f32 %v4757, 0.0
  %v4816 = vmax.f32 %v4758, 0.0
  %v4817 = vmax.f32 %v4759, 0.0
  %v4818 = vmax.f32 %v4760, 0.0
  %v4819 = vmax.f32 %v4761, 0.0
  %v4820 = vmax.f32 %v4762, 0.0
  %v4821 = vmax.f32 %v4763, 0.0
  %v4822 = vld [vmem:[%s7] sm:$0xff]
  %v4823 = vld [vmem:[%s7 + $0x8] sm:$0xff]
  %v4824 = vld [vmem:[%s7 + $0x10] sm:$0xff]
  %v4825 = vld [vmem:[%s7 + $0x18] sm:$0xff]
  %v4826 = vld [vmem:[%s7 + $0x20] sm:$0xff]
  %v4827 = vld [vmem:[%s7 + $0x28] sm:$0xff]
  %v4828 = vld [vmem:[%s7 + $0x30] sm:$0xff]
  %v4829 = vld [vmem:[%s7 + $0x38] sm:$0xff]
  %v4830 = vld [vmem:[%s7 + $0x40] sm:$0xff]
  %v4831 = vld [vmem:[%s7 + $0x48] sm:$0xff]
  %v4832 = vld [vmem:[%s7 + $0x50] sm:$0xff]
  %v4833 = vld [vmem:[%s7 + $0x58] sm:$0xff]
  %v4834 = vld [vmem:[%s7 + $0x60] sm:$0xff]
  %v4835 = vld [vmem:[%s7 + $0x68] sm:$0xff]
  %v4836 = vld [vmem:[%s7 + $0x70] sm:$0xff]
  %v4837 = vld [vmem:[%s7 + $0x78] sm:$0xff]
  %v4838 = vld [vmem:[%s7 + $0x80] sm:$0xff]
  %v4839 = vld [vmem:[%s7 + $0x88] sm:$0xff]
  %v4840 = vld [vmem:[%s7 + $0x90] sm:$0xff]
  %v4841 = vld [vmem:[%s7 + $0x98] sm:$0xff]
  %v4842 = vld [vmem:[%s7 + $0xa0] sm:$0xff]
  %v4843 = vld [vmem:[%s7 + $0xa8] sm:$0xff]
  %v4844 = vld [vmem:[%s7 + $0xb0] sm:$0xff]
  %v4845 = vld [vmem:[%s7 + $0xb8] sm:$0xff]
  %v4846 = vld [vmem:[%s7 + $0xc0] sm:$0xff]
  %v4847 = vld [vmem:[%s7 + $0xc8] sm:$0xff]
  %v4848 = vld [vmem:[%s7 + $0xd0] sm:$0xff]
  %v4849 = vld [vmem:[%s7 + $0xd8] sm:$0xff]
  %s4850 = scalar_lea.vmem %s7, 224
  %v4851 = vld [vmem:[%s4850] sm:$0xff]
  %v4852 = vld [vmem:[%s4850 + $0x8] sm:$0xff]
  %v4853 = vld [vmem:[%s4850 + $0x10] sm:$0xff]
  %v4854 = vld [vmem:[%s4850 + $0x18] sm:$0xff]
  %v4855 = vld [vmem:[%s4850 + $0x20] sm:$0xff]
  %v4856 = vld [vmem:[%s4850 + $0x28] sm:$0xff]
  %v4857 = vld [vmem:[%s4850 + $0x30] sm:$0xff]
  %v4858 = vld [vmem:[%s4850 + $0x38] sm:$0xff]
  %v4859 = vld [vmem:[%s4850 + $0x40] sm:$0xff]
  %v4860 = vld [vmem:[%s4850 + $0x48] sm:$0xff]
  %v4861 = vld [vmem:[%s4850 + $0x50] sm:$0xff]
  %v4862 = vld [vmem:[%s4850 + $0x58] sm:$0xff]
  %v4863 = vld [vmem:[%s4850 + $0x60] sm:$0xff]
  %v4864 = vld [vmem:[%s4850 + $0x68] sm:$0xff]
  %v4865 = vld [vmem:[%s4850 + $0x70] sm:$0xff]
  %v4866 = vld [vmem:[%s4850 + $0x78] sm:$0xff]
  %v4867 = vld [vmem:[%s4850 + $0x80] sm:$0xff]
  %v4868 = vld [vmem:[%s4850 + $0x88] sm:$0xff]
  %v4869 = vld [vmem:[%s4850 + $0x90] sm:$0xff]
  %v4870 = vld [vmem:[%s4850 + $0x98] sm:$0xff]
  %v4871 = vld [vmem:[%s4850 + $0xa0] sm:$0xff]
  %v4872 = vld [vmem:[%s4850 + $0xa8] sm:$0xff]
  %v4873 = vld [vmem:[%s4850 + $0xb0] sm:$0xff]
  %v4874 = vld [vmem:[%s4850 + $0xb8] sm:$0xff]
  %v4875 = vld [vmem:[%s4850 + $0xc0] sm:$0xff]
  %v4876 = vld [vmem:[%s4850 + $0xc8] sm:$0xff]
  %v4877 = vld [vmem:[%s4850 + $0xd0] sm:$0xff]
  %v4878 = vld [vmem:[%s4850 + $0xd8] sm:$0xff]
  %v4935 = vrot.slane %v4764, 1
  %v4936 = vrot.slane %v4766, 1
  %v4937 = vsel %vm127, %v4935, %v4936
  %v4938 = vrot.slane %v4765, 1
  %v4939 = vrot.slane %v4767, 1
  %v4940 = vsel %vm127, %v4938, %v4939
  %v4941 = vrot.slane %v4768, 1
  %v4942 = vsel %vm127, %v4936, %v4941
  %v4943 = vrot.slane %v4769, 1
  %v4944 = vsel %vm127, %v4939, %v4943
  %v4945 = vrot.slane %v4770, 1
  %v4946 = vsel %vm127, %v4941, %v4945
  %v4947 = vrot.slane %v4771, 1
  %v4948 = vsel %vm127, %v4943, %v4947
  %v4949 = vrot.slane %v4772, 1
  %v4950 = vsel %vm127, %v4945, %v4949
  %v4951 = vrot.slane %v4773, 1
  %v4952 = vsel %vm127, %v4947, %v4951
  %v4953 = vrot.slane %v4774, 1
  %v4954 = vsel %vm127, %v4949, %v4953
  %v4955 = vrot.slane %v4775, 1
  %v4956 = vsel %vm127, %v4951, %v4955
  %v4957 = vrot.slane %v4776, 1
  %v4958 = vsel %vm127, %v4953, %v4957
  %v4959 = vrot.slane %v4777, 1
  %v4960 = vsel %vm127, %v4955, %v4959
  %v4961 = vrot.slane %v4778, 1
  %v4962 = vsel %vm127, %v4957, %v4961
  %v4963 = vrot.slane %v4779, 1
  %v4964 = vsel %vm127, %v4959, %v4963
  %v4965 = vrot.slane %v4780, 1
  %v4966 = vsel %vm127, %v4961, %v4965
  %v4967 = vrot.slane %v4781, 1
  %v4968 = vsel %vm127, %v4963, %v4967
  %v4969 = vrot.slane %v4782, 1
  %v4970 = vsel %vm127, %v4965, %v4969
  %v4971 = vrot.slane %v4783, 1
  %v4972 = vsel %vm127, %v4967, %v4971
  %v4973 = vrot.slane %v4784, 1
  %v4974 = vsel %vm127, %v4969, %v4973
  %v4975 = vrot.slane %v4785, 1
  %v4976 = vsel %vm127, %v4971, %v4975
  %v4977 = vrot.slane %v4786, 1
  %v4978 = vsel %vm127, %v4973, %v4977
  %v4979 = vrot.slane %v4787, 1
  %v4980 = vsel %vm127, %v4975, %v4979
  %v4981 = vrot.slane %v4788, 1
  %v4982 = vsel %vm127, %v4977, %v4981
  %v4983 = vrot.slane %v4789, 1
  %v4984 = vsel %vm127, %v4979, %v4983
  %v4985 = vrot.slane %v4790, 1
  %v4986 = vsel %vm127, %v4981, %v4985
  %v4987 = vrot.slane %v4791, 1
  %v4988 = vsel %vm127, %v4983, %v4987
  %v4989 = vrot.slane %v4792, 1
  %v4990 = vsel %vm127, %v4985, %v4989
  %v4991 = vrot.slane %v4793, 1
  %v4992 = vsel %vm127, %v4987, %v4991
  %v4993 = vrot.slane %v4794, 1
  %v4994 = vsel %vm127, %v4989, %v4993
  %v4995 = vrot.slane %v4795, 1
  %v4996 = vsel %vm127, %v4991, %v4995
  %v4997 = vrot.slane %v4796, 1
  %v4998 = vsel %vm127, %v4993, %v4997
  %v4999 = vrot.slane %v4797, 1
  %v5000 = vsel %vm127, %v4995, %v4999
  %v5001 = vrot.slane %v4798, 1
  %v5002 = vsel %vm127, %v4997, %v5001
  %v5003 = vrot.slane %v4799, 1
  %v5004 = vsel %vm127, %v4999, %v5003
  %v5005 = vrot.slane %v4800, 1
  %v5006 = vsel %vm127, %v5001, %v5005
  %v5007 = vrot.slane %v4801, 1
  %v5008 = vsel %vm127, %v5003, %v5007
  %v5009 = vrot.slane %v4802, 1
  %v5010 = vsel %vm127, %v5005, %v5009
  %v5011 = vrot.slane %v4803, 1
  %v5012 = vsel %vm127, %v5007, %v5011
  %v5013 = vrot.slane %v4804, 1
  %v5014 = vsel %vm127, %v5009, %v5013
  %v5015 = vrot.slane %v4805, 1
  %v5016 = vsel %vm127, %v5011, %v5015
  %v5017 = vrot.slane %v4806, 1
  %v5018 = vsel %vm127, %v5013, %v5017
  %v5019 = vrot.slane %v4807, 1
  %v5020 = vsel %vm127, %v5015, %v5019
  %v5021 = vrot.slane %v4808, 1
  %v5022 = vsel %vm127, %v5017, %v5021
  %v5023 = vrot.slane %v4809, 1
  %v5024 = vsel %vm127, %v5019, %v5023
  %v5025 = vrot.slane %v4810, 1
  %v5026 = vsel %vm127, %v5021, %v5025
  %v5027 = vrot.slane %v4811, 1
  %v5028 = vsel %vm127, %v5023, %v5027
  %v5029 = vrot.slane %v4812, 1
  %v5030 = vsel %vm127, %v5025, %v5029
  %v5031 = vrot.slane %v4813, 1
  %v5032 = vsel %vm127, %v5027, %v5031
  %v5033 = vrot.slane %v4814, 1
  %v5034 = vsel %vm127, %v5029, %v5033
  %v5035 = vrot.slane %v4815, 1
  %v5036 = vsel %vm127, %v5031, %v5035
  %v5037 = vrot.slane %v4816, 1
  %v5038 = vsel %vm127, %v5033, %v5037
  %v5039 = vrot.slane %v4817, 1
  %v5040 = vsel %vm127, %v5035, %v5039
  %v5041 = vrot.slane %v4818, 1
  %v5042 = vsel %vm127, %v5037, %v5041
  %v5043 = vrot.slane %v4819, 1
  %v5044 = vsel %vm127, %v5039, %v5043
  %vm5072 = vcmask 785408
  %v5073 = vsel %vm5072, %v4940, 0
  %v5075 = vsel %vm5072, %v4944, 0
  %v5077 = vsel %vm5072, %v4948, 0
  %v5079 = vsel %vm5072, %v4952, 0
  %v5081 = vsel %vm5072, %v4956, 0
  %v5083 = vsel %vm5072, %v4960, 0
  %v5085 = vsel %vm5072, %v4964, 0
  %v5087 = vsel %vm5072, %v4968, 0
  %v5089 = vsel %vm5072, %v4972, 0
  %v5091 = vsel %vm5072, %v4976, 0
  %v5093 = vsel %vm5072, %v4980, 0
  %v5095 = vsel %vm5072, %v4984, 0
  %v5097 = vsel %vm5072, %v4988, 0
  %v5099 = vsel %vm5072, %v4992, 0
  %v5101 = vsel %vm5072, %v4996, 0
  %v5103 = vsel %vm5072, %v5000, 0
  %v5105 = vsel %vm5072, %v5004, 0
  %v5107 = vsel %vm5072, %v5008, 0
  %v5109 = vsel %vm5072, %v5012, 0
  %v5111 = vsel %vm5072, %v5016, 0
  %v5113 = vsel %vm5072, %v5020, 0
  %v5115 = vsel %vm5072, %v5024, 0
  %v5117 = vsel %vm5072, %v5028, 0
  %v5119 = vsel %vm5072, %v5032, 0
  %v5121 = vsel %vm5072, %v5036, 0
  %v5123 = vsel %vm5072, %v5040, 0
  %v5125 = vsel %vm5072, %v5044, 0
  %5127 = vmatprep.subr.mxu0 0.0
  %5128 = vmatpush1.msra.mxu0 %v4851
  %5129 = vmatprep.subr.mxu0 0.0
  %5130 = vmatpush1.msra.mxu0 %v4852
  %5131 = vmatprep.subr.mxu0 0.0
  %5132 = vmatpush1.msra.mxu0 %v4853
  %5133 = vmatprep.subr.mxu0 0.0
  %5134 = vmatpush1.msra.mxu0 %v4854
  %5135 = vmatprep.subr.mxu0 0.0
  %5136 = vmatpush1.msra.mxu0 %v4855
  %5137 = vmatprep.subr.mxu0 0.0
  %5138 = vmatpush1.msra.mxu0 %v4856
  %5139 = vmatprep.subr.mxu0 0.0
  %5140 = vmatpush1.msra.mxu0 %v4857
  %5141 = vmatprep.subr.mxu0 0.0
  %5142 = vmatpush1.msra.mxu0 %v4858
  %5143 = vmatprep.subr.mxu0 0.0
  %5144 = vmatpush1.msra.mxu0 %v4859
  %5145 = vmatprep.subr.mxu0 0.0
  %5146 = vmatpush1.msra.mxu0 %v4860
  %5147 = vmatprep.subr.mxu0 0.0
  %5148 = vmatpush1.msra.mxu0 %v4861
  %5149 = vmatprep.subr.mxu0 0.0
  %5150 = vmatpush1.msra.mxu0 %v4862
  %5151 = vmatprep.subr.mxu0 0.0
  %5152 = vmatpush1.msra.mxu0 %v4863
  %5153 = vmatprep.subr.mxu0 0.0
  %5154 = vmatpush1.msra.mxu0 %v4864
  %5155 = vmatprep.subr.mxu0 0.0
  %5156 = vmatpush1.msra.mxu0 %v4865
  %5157 = vmatprep.subr.mxu0 0.0
  %5158 = vmatpush1.msra.mxu0 %v4866
  %5159 = vmatprep.subr.mxu0 0.0
  %5160 = vmatpush1.msra.mxu0 %v4867
  %5161 = vmatprep.subr.mxu0 0.0
  %5162 = vmatpush1.msra.mxu0 %v4868
  %5163 = vmatprep.subr.mxu0 0.0
  %5164 = vmatpush1.msra.mxu0 %v4869
  %5165 = vmatprep.subr.mxu0 0.0
  %5166 = vmatpush1.msra.mxu0 %v4870
  %5167 = vmatprep.subr.mxu0 0.0
  %5168 = vmatpush1.msra.mxu0 %v4871
  %5169 = vmatprep.subr.mxu0 0.0
  %5170 = vmatpush1.msra.mxu0 %v4872
  %5171 = vmatprep.subr.mxu0 0.0
  %5172 = vmatpush1.msra.mxu0 %v4873
  %5173 = vmatprep.subr.mxu0 0.0
  %5174 = vmatpush1.msra.mxu0 %v4874
  %5175 = vmatprep.subr.mxu0 0.0
  %5176 = vmatpush1.msra.mxu0 %v4875
  %5177 = vmatprep.subr.mxu0 0.0
  %5178 = vmatpush1.msra.mxu0 %v4876
  %5179 = vmatprep.subr.mxu0 0.0
  %5180 = vmatpush1.msra.mxu0 %v4877
  %5181 = vmatprep.subr.mxu0 0.0
  %5182 = vmatpush1.msra.mxu0 %v4878
  %5183 = vmatprep.subr.mxu0 0.0
  %5184 = vmatpush1.msra.mxu0 0.0
  %5185 = vmatprep.subr.mxu0 0.0
  %5186 = vmatpush1.msra.mxu0 0.0
  %5187 = vmatprep.subr.mxu0 0.0
  %5188 = vmatpush1.msra.mxu0 0.0
  %5189 = vmatprep.subr.mxu0 0.0
  %5190 = vmatpush1.msra.mxu0 0.0
  %5191 = vmatprep.mubr.f32.mxu0 %v5073
  %5192 = vmatmul.mubr.f32.gmra.mrb[0].mxu0 %v4937
  %v5193 = vpop.f32.mrb[0].mxu0
  %v5194 = vadd.f32 0.0, %v5193
  %v5195 = vpop.f32.mrb[0].mxu0
  %5196 = vmatprep.mubr.f32.mxu0 %v5075
  %5197 = vmatmul.mubr.f32.gmra.mrb[0].mxu0 %v4942
  %v5198 = vpop.f32.mrb[0].mxu0
  %v5199 = vadd.f32 0.0, %v5198
  %v5200 = vpop.f32.mrb[0].mxu0
  %5201 = vmatprep.mubr.f32.mxu0 %v5077
  %5202 = vmatmul.mubr.f32.gmra.mrb[0].mxu0 %v4946
  %v5203 = vpop.f32.mrb[0].mxu0
  %v5204 = vadd.f32 0.0, %v5203
  %v5205 = vpop.f32.mrb[0].mxu0
  %5206 = vmatprep.mubr.f32.mxu0 %v5079
  %5207 = vmatmul.mubr.f32.gmra.mrb[0].mxu0 %v4950
  %v5208 = vpop.f32.mrb[0].mxu0
  %v5209 = vadd.f32 0.0, %v5208
  %v5210 = vpop.f32.mrb[0].mxu0
  %5211 = vmatprep.mubr.f32.mxu0 %v5081
  %5212 = vmatmul.mubr.f32.gmra.mrb[0].mxu0 %v4954
  %v5213 = vpop.f32.mrb[0].mxu0
  %v5214 = vadd.f32 0.0, %v5213
  %v5215 = vpop.f32.mrb[0].mxu0
  %5216 = vmatprep.mubr.f32.mxu0 %v5083
  %5217 = vmatmul.mubr.f32.gmra.mrb[0].mxu0 %v4958
  %v5218 = vpop.f32.mrb[0].mxu0
  %v5219 = vadd.f32 0.0, %v5218
  %v5220 = vpop.f32.mrb[0].mxu0
  %5221 = vmatprep.mubr.f32.mxu0 %v5085
  %5222 = vmatmul.mubr.f32.gmra.mrb[0].mxu0 %v4962
  %v5223 = vpop.f32.mrb[0].mxu0
  %v5224 = vadd.f32 0.0, %v5223
  %v5225 = vpop.f32.mrb[0].mxu0
  %5226 = vmatprep.mubr.f32.mxu0 %v5087
  %5227 = vmatmul.mubr.f32.gmra.mrb[0].mxu0 %v4966
  %v5228 = vpop.f32.mrb[0].mxu0
  %v5229 = vadd.f32 0.0, %v5228
  %v5230 = vpop.f32.mrb[0].mxu0
  %5231 = vmatprep.mubr.f32.mxu0 %v5089
  %5232 = vmatmul.mubr.f32.gmra.mrb[0].mxu0 %v4970
  %v5233 = vpop.f32.mrb[0].mxu0
  %v5234 = vadd.f32 0.0, %v5233
  %v5235 = vpop.f32.mrb[0].mxu0
  %5236 = vmatprep.mubr.f32.mxu0 %v5091
  %5237 = vmatmul.mubr.f32.gmra.mrb[0].mxu0 %v4974
  %v5238 = vpop.f32.mrb[0].mxu0
  %v5239 = vadd.f32 0.0, %v5238
  %v5240 = vpop.f32.mrb[0].mxu0
  %5241 = vmatprep.mubr.f32.mxu0 %v5093
  %5242 = vmatmul.mubr.f32.gmra.mrb[0].mxu0 %v4978
  %v5243 = vpop.f32.mrb[0].mxu0
  %v5244 = vadd.f32 0.0, %v5243
  %v5245 = vpop.f32.mrb[0].mxu0
  %5246 = vmatprep.mubr.f32.mxu0 %v5095
  %5247 = vmatmul.mubr.f32.gmra.mrb[0].mxu0 %v4982
  %v5248 = vpop.f32.mrb[0].mxu0
  %v5249 = vadd.f32 0.0, %v5248
  %v5250 = vpop.f32.mrb[0].mxu0
  %5251 = vmatprep.mubr.f32.mxu0 %v5097
  %5252 = vmatmul.mubr.f32.gmra.mrb[0].mxu0 %v4986
  %v5253 = vpop.f32.mrb[0].mxu0
  %v5254 = vadd.f32 0.0, %v5253
  %v5255 = vpop.f32.mrb[0].mxu0
  %5256 = vmatprep.mubr.f32.mxu0 %v5099
  %5257 = vmatmul.mubr.f32.gmra.mrb[0].mxu0 %v4990
  %v5258 = vpop.f32.mrb[0].mxu0
  %v5259 = vadd.f32 0.0, %v5258
  %v5260 = vpop.f32.mrb[0].mxu0
  %5261 = vmatprep.mubr.f32.mxu0 %v5101
  %5262 = vmatmul.mubr.f32.gmra.mrb[0].mxu0 %v4994
  %v5263 = vpop.f32.mrb[0].mxu0
  %v5264 = vadd.f32 0.0, %v5263
  %v5265 = vpop.f32.mrb[0].mxu0
  %5266 = vmatprep.mubr.f32.mxu0 %v5103
  %5267 = vmatmul.mubr.f32.gmra.mrb[0].mxu0 %v4998
  %v5268 = vpop.f32.mrb[0].mxu0
  %v5269 = vadd.f32 0.0, %v5268
  %v5270 = vpop.f32.mrb[0].mxu0
  %5271 = vmatprep.mubr.f32.mxu0 %v5105
  %5272 = vmatmul.mubr.f32.gmra.mrb[0].mxu0 %v5002
  %v5273 = vpop.f32.mrb[0].mxu0
  %v5274 = vadd.f32 0.0, %v5273
  %v5275 = vpop.f32.mrb[0].mxu0
  %5276 = vmatprep.mubr.f32.mxu0 %v5107
  %5277 = vmatmul.mubr.f32.gmra.mrb[0].mxu0 %v5006
  %v5278 = vpop.f32.mrb[0].mxu0
  %v5279 = vadd.f32 0.0, %v5278
  %v5280 = vpop.f32.mrb[0].mxu0
  %5281 = vmatprep.mubr.f32.mxu0 %v5109
  %5282 = vmatmul.mubr.f32.gmra.mrb[0].mxu0 %v5010
  %v5283 = vpop.f32.mrb[0].mxu0
  %v5284 = vadd.f32 0.0, %v5283
  %v5285 = vpop.f32.mrb[0].mxu0
  %5286 = vmatprep.mubr.f32.mxu0 %v5111
  %5287 = vmatmul.mubr.f32.gmra.mrb[0].mxu0 %v5014
  %v5288 = vpop.f32.mrb[0].mxu0
  %v5289 = vadd.f32 0.0, %v5288
  %v5290 = vpop.f32.mrb[0].mxu0
  %5291 = vmatprep.mubr.f32.mxu0 %v5113
  %5292 = vmatmul.mubr.f32.gmra.mrb[0].mxu0 %v5018
  %v5293 = vpop.f32.mrb[0].mxu0
  %v5294 = vadd.f32 0.0, %v5293
  %v5295 = vpop.f32.mrb[0].mxu0
  %5296 = vmatprep.mubr.f32.mxu0 %v5115
  %5297 = vmatmul.mubr.f32.gmra.mrb[0].mxu0 %v5022
  %v5298 = vpop.f32.mrb[0].mxu0
  %v5299 = vadd.f32 0.0, %v5298
  %v5300 = vpop.f32.mrb[0].mxu0
  %5301 = vmatprep.mubr.f32.mxu0 %v5117
  %5302 = vmatmul.mubr.f32.gmra.mrb[0].mxu0 %v5026
  %v5303 = vpop.f32.mrb[0].mxu0
  %v5304 = vadd.f32 0.0, %v5303
  %v5305 = vpop.f32.mrb[0].mxu0
  %5306 = vmatprep.mubr.f32.mxu0 %v5119
  %5307 = vmatmul.mubr.f32.gmra.mrb[0].mxu0 %v5030
  %v5308 = vpop.f32.mrb[0].mxu0
  %v5309 = vadd.f32 0.0, %v5308
  %v5310 = vpop.f32.mrb[0].mxu0
  %5311 = vmatprep.mubr.f32.mxu0 %v5121
  %5312 = vmatmul.mubr.f32.gmra.mrb[0].mxu0 %v5034
  %v5313 = vpop.f32.mrb[0].mxu0
  %v5314 = vadd.f32 0.0, %v5313
  %v5315 = vpop.f32.mrb[0].mxu0
  %5316 = vmatprep.mubr.f32.mxu0 %v5123
  %5317 = vmatmul.mubr.f32.gmra.mrb[0].mxu0 %v5038
  %v5318 = vpop.f32.mrb[0].mxu0
  %v5319 = vadd.f32 0.0, %v5318
  %v5320 = vpop.f32.mrb[0].mxu0
  %5321 = vmatprep.mubr.f32.mxu0 %v5125
  %5322 = vmatmul.mubr.f32.gmra.mrb[0].mxu0 %v5042
  %v5323 = vpop.f32.mrb[0].mxu0
  %v5324 = vadd.f32 0.0, %v5323
  %v5325 = vpop.f32.mrb[0].mxu0
  %5326 = vdwg.mxu0
  %v5327 = vsel %vm5072, %v4765, 0
  %v5329 = vsel %vm5072, %v4767, 0
  %v5331 = vsel %vm5072, %v4769, 0
  %v5333 = vsel %vm5072, %v4771, 0
  %v5335 = vsel %vm5072, %v4773, 0
  %v5337 = vsel %vm5072, %v4775, 0
  %v5339 = vsel %vm5072, %v4777, 0
  %v5341 = vsel %vm5072, %v4779, 0
  %v5343 = vsel %vm5072, %v4781, 0
  %v5345 = vsel %vm5072, %v4783, 0
  %v5347 = vsel %vm5072, %v4785, 0
  %v5349 = vsel %vm5072, %v4787, 0
  %v5351 = vsel %vm5072, %v4789, 0
  %v5353 = vsel %vm5072, %v4791, 0
  %v5355 = vsel %vm5072, %v4793, 0
  %v5357 = vsel %vm5072, %v4795, 0
  %v5359 = vsel %vm5072, %v4797, 0
  %v5361 = vsel %vm5072, %v4799, 0
  %v5363 = vsel %vm5072, %v4801, 0
  %v5365 = vsel %vm5072, %v4803, 0
  %v5367 = vsel %vm5072, %v4805, 0
  %v5369 = vsel %vm5072, %v4807, 0
  %v5371 = vsel %vm5072, %v4809, 0
  %v5373 = vsel %vm5072, %v4811, 0
  %v5375 = vsel %vm5072, %v4813, 0
  %v5377 = vsel %vm5072, %v4815, 0
  %v5379 = vsel %vm5072, %v4817, 0
  %5381 = vmatprep.subr.mxu0 0.0
  %5382 = vmatpush1.msra.mxu0 %v4822
  %5383 = vmatprep.subr.mxu0 0.0
  %5384 = vmatpush1.msra.mxu0 %v4823
  %5385 = vmatprep.subr.mxu0 0.0
  %5386 = vmatpush1.msra.mxu0 %v4824
  %5387 = vmatprep.subr.mxu0 0.0
  %5388 = vmatpush1.msra.mxu0 %v4825
  %5389 = vmatprep.subr.mxu0 0.0
  %5390 = vmatpush1.msra.mxu0 %v4826
  %5391 = vmatprep.subr.mxu0 0.0
  %5392 = vmatpush1.msra.mxu0 %v4827
  %5393 = vmatprep.subr.mxu0 0.0
  %5394 = vmatpush1.msra.mxu0 %v4828
  %5395 = vmatprep.subr.mxu0 0.0
  %5396 = vmatpush1.msra.mxu0 %v4829
  %5397 = vmatprep.subr.mxu0 0.0
  %5398 = vmatpush1.msra.mxu0 %v4830
  %5399 = vmatprep.subr.mxu0 0.0
  %5400 = vmatpush1.msra.mxu0 %v4831
  %5401 = vmatprep.subr.mxu0 0.0
  %5402 = vmatpush1.msra.mxu0 %v4832
  %5403 = vmatprep.subr.mxu0 0.0
  %5404 = vmatpush1.msra.mxu0 %v4833
  %5405 = vmatprep.subr.mxu0 0.0
  %5406 = vmatpush1.msra.mxu0 %v4834
  %5407 = vmatprep.subr.mxu0 0.0
  %5408 = vmatpush1.msra.mxu0 %v4835
  %5409 = vmatprep.subr.mxu0 0.0
  %5410 = vmatpush1.msra.mxu0 %v4836
  %5411 = vmatprep.subr.mxu0 0.0
  %5412 = vmatpush1.msra.mxu0 %v4837
  %5413 = vmatprep.subr.mxu0 0.0
  %5414 = vmatpush1.msra.mxu0 %v4838
  %5415 = vmatprep.subr.mxu0 0.0
  %5416 = vmatpush1.msra.mxu0 %v4839
  %5417 = vmatprep.subr.mxu0 0.0
  %5418 = vmatpush1.msra.mxu0 %v4840
  %5419 = vmatprep.subr.mxu0 0.0
  %5420 = vmatpush1.msra.mxu0 %v4841
  %5421 = vmatprep.subr.mxu0 0.0
  %5422 = vmatpush1.msra.mxu0 %v4842
  %5423 = vmatprep.subr.mxu0 0.0
  %5424 = vmatpush1.msra.mxu0 %v4843
  %5425 = vmatprep.subr.mxu0 0.0
  %5426 = vmatpush1.msra.mxu0 %v4844
  %5427 = vmatprep.subr.mxu0 0.0
  %5428 = vmatpush1.msra.mxu0 %v4845
  %5429 = vmatprep.subr.mxu0 0.0
  %5430 = vmatpush1.msra.mxu0 %v4846
  %5431 = vmatprep.subr.mxu0 0.0
  %5432 = vmatpush1.msra.mxu0 %v4847
  %5433 = vmatprep.subr.mxu0 0.0
  %5434 = vmatpush1.msra.mxu0 %v4848
  %5435 = vmatprep.subr.mxu0 0.0
  %5436 = vmatpush1.msra.mxu0 %v4849
  %5437 = vmatprep.subr.mxu0 0.0
  %5438 = vmatpush1.msra.mxu0 0.0
  %5439 = vmatprep.subr.mxu0 0.0
  %5440 = vmatpush1.msra.mxu0 0.0
  %5441 = vmatprep.subr.mxu0 0.0
  %5442 = vmatpush1.msra.mxu0 0.0
  %5443 = vmatprep.subr.mxu0 0.0
  %5444 = vmatpush1.msra.mxu0 0.0
  %5445 = vmatprep.mubr.f32.mxu0 %v5327
  %5446 = vmatmul.mubr.f32.gmra.mrb[0].mxu0 %v4764
  %v5447 = vpop.f32.mrb[0].mxu0
  %v5448 = vadd.f32 %v5194, %v5447
  %v5449 = vpop.f32.mrb[0].mxu0
  %5450 = vmatprep.mubr.f32.mxu0 %v5329
  %5451 = vmatmul.mubr.f32.gmra.mrb[0].mxu0 %v4766
  %v5452 = vpop.f32.mrb[0].mxu0
  %v5453 = vadd.f32 %v5199, %v5452
  %v5454 = vpop.f32.mrb[0].mxu0
  %5455 = vmatprep.mubr.f32.mxu0 %v5331
  %5456 = vmatmul.mubr.f32.gmra.mrb[0].mxu0 %v4768
  %v5457 = vpop.f32.mrb[0].mxu0
  %v5458 = vadd.f32 %v5204, %v5457
  %v5459 = vpop.f32.mrb[0].mxu0
  %5460 = vmatprep.mubr.f32.mxu0 %v5333
  %5461 = vmatmul.mubr.f32.gmra.mrb[0].mxu0 %v4770
  %v5462 = vpop.f32.mrb[0].mxu0
  %v5463 = vadd.f32 %v5209, %v5462
  %v5464 = vpop.f32.mrb[0].mxu0
  %5465 = vmatprep.mubr.f32.mxu0 %v5335
  %5466 = vmatmul.mubr.f32.gmra.mrb[0].mxu0 %v4772
  %v5467 = vpop.f32.mrb[0].mxu0
  %v5468 = vadd.f32 %v5214, %v5467
  %v5469 = vpop.f32.mrb[0].mxu0
  %5470 = vmatprep.mubr.f32.mxu0 %v5337
  %5471 = vmatmul.mubr.f32.gmra.mrb[0].mxu0 %v4774
  %v5472 = vpop.f32.mrb[0].mxu0
  %v5473 = vadd.f32 %v5219, %v5472
  %v5474 = vpop.f32.mrb[0].mxu0
  %5475 = vmatprep.mubr.f32.mxu0 %v5339
  %5476 = vmatmul.mubr.f32.gmra.mrb[0].mxu0 %v4776
  %v5477 = vpop.f32.mrb[0].mxu0
  %v5478 = vadd.f32 %v5224, %v5477
  %v5479 = vpop.f32.mrb[0].mxu0
  %5480 = vmatprep.mubr.f32.mxu0 %v5341
  %5481 = vmatmul.mubr.f32.gmra.mrb[0].mxu0 %v4778
  %v5482 = vpop.f32.mrb[0].mxu0
  %v5483 = vadd.f32 %v5229, %v5482
  %v5484 = vpop.f32.mrb[0].mxu0
  %5485 = vmatprep.mubr.f32.mxu0 %v5343
  %5486 = vmatmul.mubr.f32.gmra.mrb[0].mxu0 %v4780
  %v5487 = vpop.f32.mrb[0].mxu0
  %v5488 = vadd.f32 %v5234, %v5487
  %v5489 = vpop.f32.mrb[0].mxu0
  %5490 = vmatprep.mubr.f32.mxu0 %v5345
  %5491 = vmatmul.mubr.f32.gmra.mrb[0].mxu0 %v4782
  %v5492 = vpop.f32.mrb[0].mxu0
  %v5493 = vadd.f32 %v5239, %v5492
  %v5494 = vpop.f32.mrb[0].mxu0
  %5495 = vmatprep.mubr.f32.mxu0 %v5347
  %5496 = vmatmul.mubr.f32.gmra.mrb[0].mxu0 %v4784
  %v5497 = vpop.f32.mrb[0].mxu0
  %v5498 = vadd.f32 %v5244, %v5497
  %v5499 = vpop.f32.mrb[0].mxu0
  %5500 = vmatprep.mubr.f32.mxu0 %v5349
  %5501 = vmatmul.mubr.f32.gmra.mrb[0].mxu0 %v4786
  %v5502 = vpop.f32.mrb[0].mxu0
  %v5503 = vadd.f32 %v5249, %v5502
  %v5504 = vpop.f32.mrb[0].mxu0
  %5505 = vmatprep.mubr.f32.mxu0 %v5351
  %5506 = vmatmul.mubr.f32.gmra.mrb[0].mxu0 %v4788
  %v5507 = vpop.f32.mrb[0].mxu0
  %v5508 = vadd.f32 %v5254, %v5507
  %v5509 = vpop.f32.mrb[0].mxu0
  %5510 = vmatprep.mubr.f32.mxu0 %v5353
  %5511 = vmatmul.mubr.f32.gmra.mrb[0].mxu0 %v4790
  %v5512 = vpop.f32.mrb[0].mxu0
  %v5513 = vadd.f32 %v5259, %v5512
  %v5514 = vpop.f32.mrb[0].mxu0
  %5515 = vmatprep.mubr.f32.mxu0 %v5355
  %5516 = vmatmul.mubr.f32.gmra.mrb[0].mxu0 %v4792
  %v5517 = vpop.f32.mrb[0].mxu0
  %v5518 = vadd.f32 %v5264, %v5517
  %v5519 = vpop.f32.mrb[0].mxu0
  %5520 = vmatprep.mubr.f32.mxu0 %v5357
  %5521 = vmatmul.mubr.f32.gmra.mrb[0].mxu0 %v4794
  %v5522 = vpop.f32.mrb[0].mxu0
  %v5523 = vadd.f32 %v5269, %v5522
  %v5524 = vpop.f32.mrb[0].mxu0
  %5525 = vmatprep.mubr.f32.mxu0 %v5359
  %5526 = vmatmul.mubr.f32.gmra.mrb[0].mxu0 %v4796
  %v5527 = vpop.f32.mrb[0].mxu0
  %v5528 = vadd.f32 %v5274, %v5527
  %v5529 = vpop.f32.mrb[0].mxu0
  %5530 = vmatprep.mubr.f32.mxu0 %v5361
  %5531 = vmatmul.mubr.f32.gmra.mrb[0].mxu0 %v4798
  %v5532 = vpop.f32.mrb[0].mxu0
  %v5533 = vadd.f32 %v5279, %v5532
  %v5534 = vpop.f32.mrb[0].mxu0
  %5535 = vmatprep.mubr.f32.mxu0 %v5363
  %5536 = vmatmul.mubr.f32.gmra.mrb[0].mxu0 %v4800
  %v5537 = vpop.f32.mrb[0].mxu0
  %v5538 = vadd.f32 %v5284, %v5537
  %v5539 = vpop.f32.mrb[0].mxu0
  %5540 = vmatprep.mubr.f32.mxu0 %v5365
  %5541 = vmatmul.mubr.f32.gmra.mrb[0].mxu0 %v4802
  %v5542 = vpop.f32.mrb[0].mxu0
  %v5543 = vadd.f32 %v5289, %v5542
  %v5544 = vpop.f32.mrb[0].mxu0
  %5545 = vmatprep.mubr.f32.mxu0 %v5367
  %5546 = vmatmul.mubr.f32.gmra.mrb[0].mxu0 %v4804
  %v5547 = vpop.f32.mrb[0].mxu0
  %v5548 = vadd.f32 %v5294, %v5547
  %v5549 = vpop.f32.mrb[0].mxu0
  %5550 = vmatprep.mubr.f32.mxu0 %v5369
  %5551 = vmatmul.mubr.f32.gmra.mrb[0].mxu0 %v4806
  %v5552 = vpop.f32.mrb[0].mxu0
  %v5553 = vadd.f32 %v5299, %v5552
  %v5554 = vpop.f32.mrb[0].mxu0
  %5555 = vmatprep.mubr.f32.mxu0 %v5371
  %5556 = vmatmul.mubr.f32.gmra.mrb[0].mxu0 %v4808
  %v5557 = vpop.f32.mrb[0].mxu0
  %v5558 = vadd.f32 %v5304, %v5557
  %v5559 = vpop.f32.mrb[0].mxu0
  %5560 = vmatprep.mubr.f32.mxu0 %v5373
  %5561 = vmatmul.mubr.f32.gmra.mrb[0].mxu0 %v4810
  %v5562 = vpop.f32.mrb[0].mxu0
  %v5563 = vadd.f32 %v5309, %v5562
  %v5564 = vpop.f32.mrb[0].mxu0
  %5565 = vmatprep.mubr.f32.mxu0 %v5375
  %5566 = vmatmul.mubr.f32.gmra.mrb[0].mxu0 %v4812
  %v5567 = vpop.f32.mrb[0].mxu0
  %v5568 = vadd.f32 %v5314, %v5567
  %v5569 = vpop.f32.mrb[0].mxu0
  %5570 = vmatprep.mubr.f32.mxu0 %v5377
  %5571 = vmatmul.mubr.f32.gmra.mrb[0].mxu0 %v4814
  %v5572 = vpop.f32.mrb[0].mxu0
  %v5573 = vadd.f32 %v5319, %v5572
  %v5574 = vpop.f32.mrb[0].mxu0
  %5575 = vmatprep.mubr.f32.mxu0 %v5379
  %5576 = vmatmul.mubr.f32.gmra.mrb[0].mxu0 %v4816
  %v5577 = vpop.f32.mrb[0].mxu0
  %v5578 = vadd.f32 %v5324, %v5577
  %v5579 = vpop.f32.mrb[0].mxu0
  %5580 = vdwg.mxu0
  %s5581 = scalar_lea.vmem %s7, 448
  %v5582 = vld [vmem:[%s5581] sm:$0xff]
  %v5583 = vld [vmem:[%s5581 + $0x8] sm:$0xff]
  %v5584 = vld [vmem:[%s5581 + $0x10] sm:$0xff]
  %v5585 = vld [vmem:[%s5581 + $0x18] sm:$0xff]
  %v5586 = vld [vmem:[%s5581 + $0x20] sm:$0xff]
  %v5587 = vld [vmem:[%s5581 + $0x28] sm:$0xff]
  %v5588 = vld [vmem:[%s5581 + $0x30] sm:$0xff]
  %v5589 = vld [vmem:[%s5581 + $0x38] sm:$0xff]
  %v5590 = vld [vmem:[%s5581 + $0x40] sm:$0xff]
  %v5591 = vld [vmem:[%s5581 + $0x48] sm:$0xff]
  %v5592 = vld [vmem:[%s5581 + $0x50] sm:$0xff]
  %v5593 = vld [vmem:[%s5581 + $0x58] sm:$0xff]
  %v5594 = vld [vmem:[%s5581 + $0x60] sm:$0xff]
  %v5595 = vld [vmem:[%s5581 + $0x68] sm:$0xff]
  %v5596 = vld [vmem:[%s5581 + $0x70] sm:$0xff]
  %v5597 = vld [vmem:[%s5581 + $0x78] sm:$0xff]
  %v5598 = vld [vmem:[%s5581 + $0x80] sm:$0xff]
  %v5599 = vld [vmem:[%s5581 + $0x88] sm:$0xff]
  %v5600 = vld [vmem:[%s5581 + $0x90] sm:$0xff]
  %v5601 = vld [vmem:[%s5581 + $0x98] sm:$0xff]
  %v5602 = vld [vmem:[%s5581 + $0xa0] sm:$0xff]
  %v5603 = vld [vmem:[%s5581 + $0xa8] sm:$0xff]
  %v5604 = vld [vmem:[%s5581 + $0xb0] sm:$0xff]
  %v5605 = vld [vmem:[%s5581 + $0xb8] sm:$0xff]
  %v5606 = vld [vmem:[%s5581 + $0xc0] sm:$0xff]
  %v5607 = vld [vmem:[%s5581 + $0xc8] sm:$0xff]
  %v5608 = vld [vmem:[%s5581 + $0xd0] sm:$0xff]
  %v5609 = vld [vmem:[%s5581 + $0xd8] sm:$0xff]
  %v5612 = vrot.slane %v4766, 2
  %v5613 = vrot.slane %v4768, 2
  %v5614 = vsel %vm799, %v5612, %v5613
  %v5615 = vrot.slane %v4767, 2
  %v5616 = vrot.slane %v4769, 2
  %v5617 = vsel %vm799, %v5615, %v5616
  %v5618 = vrot.slane %v4770, 2
  %v5619 = vsel %vm799, %v5613, %v5618
  %v5620 = vrot.slane %v4771, 2
  %v5621 = vsel %vm799, %v5616, %v5620
  %v5622 = vrot.slane %v4772, 2
  %v5623 = vsel %vm799, %v5618, %v5622
  %v5624 = vrot.slane %v4773, 2
  %v5625 = vsel %vm799, %v5620, %v5624
  %v5626 = vrot.slane %v4774, 2
  %v5627 = vsel %vm799, %v5622, %v5626
  %v5628 = vrot.slane %v4775, 2
  %v5629 = vsel %vm799, %v5624, %v5628
  %v5630 = vrot.slane %v4776, 2
  %v5631 = vsel %vm799, %v5626, %v5630
  %v5632 = vrot.slane %v4777, 2
  %v5633 = vsel %vm799, %v5628, %v5632
  %v5634 = vrot.slane %v4778, 2
  %v5635 = vsel %vm799, %v5630, %v5634
  %v5636 = vrot.slane %v4779, 2
  %v5637 = vsel %vm799, %v5632, %v5636
  %v5638 = vrot.slane %v4780, 2
  %v5639 = vsel %vm799, %v5634, %v5638
  %v5640 = vrot.slane %v4781, 2
  %v5641 = vsel %vm799, %v5636, %v5640
  %v5642 = vrot.slane %v4782, 2
  %v5643 = vsel %vm799, %v5638, %v5642
  %v5644 = vrot.slane %v4783, 2
  %v5645 = vsel %vm799, %v5640, %v5644
  %v5646 = vrot.slane %v4784, 2
  %v5647 = vsel %vm799, %v5642, %v5646
  %v5648 = vrot.slane %v4785, 2
  %v5649 = vsel %vm799, %v5644, %v5648
  %v5650 = vrot.slane %v4786, 2
  %v5651 = vsel %vm799, %v5646, %v5650
  %v5652 = vrot.slane %v4787, 2
  %v5653 = vsel %vm799, %v5648, %v5652
  %v5654 = vrot.slane %v4788, 2
  %v5655 = vsel %vm799, %v5650, %v5654
  %v5656 = vrot.slane %v4789, 2
  %v5657 = vsel %vm799, %v5652, %v5656
  %v5658 = vrot.slane %v4790, 2
  %v5659 = vsel %vm799, %v5654, %v5658
  %v5660 = vrot.slane %v4791, 2
  %v5661 = vsel %vm799, %v5656, %v5660
  %v5662 = vrot.slane %v4792, 2
  %v5663 = vsel %vm799, %v5658, %v5662
  %v5664 = vrot.slane %v4793, 2
  %v5665 = vsel %vm799, %v5660, %v5664
  %v5666 = vrot.slane %v4794, 2
  %v5667 = vsel %vm799, %v5662, %v5666
  %v5668 = vrot.slane %v4795, 2
  %v5669 = vsel %vm799, %v5664, %v5668
  %v5670 = vrot.slane %v4796, 2
  %v5671 = vsel %vm799, %v5666, %v5670
  %v5672 = vrot.slane %v4797, 2
  %v5673 = vsel %vm799, %v5668, %v5672
  %v5674 = vrot.slane %v4798, 2
  %v5675 = vsel %vm799, %v5670, %v5674
  %v5676 = vrot.slane %v4799, 2
  %v5677 = vsel %vm799, %v5672, %v5676
  %v5678 = vrot.slane %v4800, 2
  %v5679 = vsel %vm799, %v5674, %v5678
  %v5680 = vrot.slane %v4801, 2
  %v5681 = vsel %vm799, %v5676, %v5680
  %v5682 = vrot.slane %v4802, 2
  %v5683 = vsel %vm799, %v5678, %v5682
  %v5684 = vrot.slane %v4803, 2
  %v5685 = vsel %vm799, %v5680, %v5684
  %v5686 = vrot.slane %v4804, 2
  %v5687 = vsel %vm799, %v5682, %v5686
  %v5688 = vrot.slane %v4805, 2
  %v5689 = vsel %vm799, %v5684, %v5688
  %v5690 = vrot.slane %v4806, 2
  %v5691 = vsel %vm799, %v5686, %v5690
  %v5692 = vrot.slane %v4807, 2
  %v5693 = vsel %vm799, %v5688, %v5692
  %v5694 = vrot.slane %v4808, 2
  %v5695 = vsel %vm799, %v5690, %v5694
  %v5696 = vrot.slane %v4809, 2
  %v5697 = vsel %vm799, %v5692, %v5696
  %v5698 = vrot.slane %v4810, 2
  %v5699 = vsel %vm799, %v5694, %v5698
  %v5700 = vrot.slane %v4811, 2
  %v5701 = vsel %vm799, %v5696, %v5700
  %v5702 = vrot.slane %v4812, 2
  %v5703 = vsel %vm799, %v5698, %v5702
  %v5704 = vrot.slane %v4813, 2
  %v5705 = vsel %vm799, %v5700, %v5704
  %v5706 = vrot.slane %v4814, 2
  %v5707 = vsel %vm799, %v5702, %v5706
  %v5708 = vrot.slane %v4815, 2
  %v5709 = vsel %vm799, %v5704, %v5708
  %v5710 = vrot.slane %v4816, 2
  %v5711 = vsel %vm799, %v5706, %v5710
  %v5712 = vrot.slane %v4817, 2
  %v5713 = vsel %vm799, %v5708, %v5712
  %v5714 = vrot.slane %v4818, 2
  %v5715 = vsel %vm799, %v5710, %v5714
  %v5716 = vrot.slane %v4819, 2
  %v5717 = vsel %vm799, %v5712, %v5716
  %v5718 = vrot.slane %v4820, 2
  %v5719 = vsel %vm799, %v5714, %v5718
  %v5720 = vrot.slane %v4821, 2
  %v5721 = vsel %vm799, %v5716, %v5720
  %v5749 = vsel %vm5072, %v5617, 0
  %v5751 = vsel %vm5072, %v5621, 0
  %v5753 = vsel %vm5072, %v5625, 0
  %v5755 = vsel %vm5072, %v5629, 0
  %v5757 = vsel %vm5072, %v5633, 0
  %v5759 = vsel %vm5072, %v5637, 0
  %v5761 = vsel %vm5072, %v5641, 0
  %v5763 = vsel %vm5072, %v5645, 0
  %v5765 = vsel %vm5072, %v5649, 0
  %v5767 = vsel %vm5072, %v5653, 0
  %v5769 = vsel %vm5072, %v5657, 0
  %v5771 = vsel %vm5072, %v5661, 0
  %v5773 = vsel %vm5072, %v5665, 0
  %v5775 = vsel %vm5072, %v5669, 0
  %v5777 = vsel %vm5072, %v5673, 0
  %v5779 = vsel %vm5072, %v5677, 0
  %v5781 = vsel %vm5072, %v5681, 0
  %v5783 = vsel %vm5072, %v5685, 0
  %v5785 = vsel %vm5072, %v5689, 0
  %v5787 = vsel %vm5072, %v5693, 0
  %v5789 = vsel %vm5072, %v5697, 0
  %v5791 = vsel %vm5072, %v5701, 0
  %v5793 = vsel %vm5072, %v5705, 0
  %v5795 = vsel %vm5072, %v5709, 0
  %v5797 = vsel %vm5072, %v5713, 0
  %v5799 = vsel %vm5072, %v5717, 0
  %v5801 = vsel %vm5072, %v5721, 0
  %5803 = vmatprep.subr.mxu0 0.0
  %5804 = vmatpush1.msra.mxu0 %v5582
  %5805 = vmatprep.subr.mxu0 0.0
  %5806 = vmatpush1.msra.mxu0 %v5583
  %5807 = vmatprep.subr.mxu0 0.0
  %5808 = vmatpush1.msra.mxu0 %v5584
  %5809 = vmatprep.subr.mxu0 0.0
  %5810 = vmatpush1.msra.mxu0 %v5585
  %5811 = vmatprep.subr.mxu0 0.0
  %5812 = vmatpush1.msra.mxu0 %v5586
  %5813 = vmatprep.subr.mxu0 0.0
  %5814 = vmatpush1.msra.mxu0 %v5587
  %5815 = vmatprep.subr.mxu0 0.0
  %5816 = vmatpush1.msra.mxu0 %v5588
  %5817 = vmatprep.subr.mxu0 0.0
  %5818 = vmatpush1.msra.mxu0 %v5589
  %5819 = vmatprep.subr.mxu0 0.0
  %5820 = vmatpush1.msra.mxu0 %v5590
  %5821 = vmatprep.subr.mxu0 0.0
  %5822 = vmatpush1.msra.mxu0 %v5591
  %5823 = vmatprep.subr.mxu0 0.0
  %5824 = vmatpush1.msra.mxu0 %v5592
  %5825 = vmatprep.subr.mxu0 0.0
  %5826 = vmatpush1.msra.mxu0 %v5593
  %5827 = vmatprep.subr.mxu0 0.0
  %5828 = vmatpush1.msra.mxu0 %v5594
  %5829 = vmatprep.subr.mxu0 0.0
  %5830 = vmatpush1.msra.mxu0 %v5595
  %5831 = vmatprep.subr.mxu0 0.0
  %5832 = vmatpush1.msra.mxu0 %v5596
  %5833 = vmatprep.subr.mxu0 0.0
  %5834 = vmatpush1.msra.mxu0 %v5597
  %5835 = vmatprep.subr.mxu0 0.0
  %5836 = vmatpush1.msra.mxu0 %v5598
  %5837 = vmatprep.subr.mxu0 0.0
  %5838 = vmatpush1.msra.mxu0 %v5599
  %5839 = vmatprep.subr.mxu0 0.0
  %5840 = vmatpush1.msra.mxu0 %v5600
  %5841 = vmatprep.subr.mxu0 0.0
  %5842 = vmatpush1.msra.mxu0 %v5601
  %5843 = vmatprep.subr.mxu0 0.0
  %5844 = vmatpush1.msra.mxu0 %v5602
  %5845 = vmatprep.subr.mxu0 0.0
  %5846 = vmatpush1.msra.mxu0 %v5603
  %5847 = vmatprep.subr.mxu0 0.0
  %5848 = vmatpush1.msra.mxu0 %v5604
  %5849 = vmatprep.subr.mxu0 0.0
  %5850 = vmatpush1.msra.mxu0 %v5605
  %5851 = vmatprep.subr.mxu0 0.0
  %5852 = vmatpush1.msra.mxu0 %v5606
  %5853 = vmatprep.subr.mxu0 0.0
  %5854 = vmatpush1.msra.mxu0 %v5607
  %5855 = vmatprep.subr.mxu0 0.0
  %5856 = vmatpush1.msra.mxu0 %v5608
  %5857 = vmatprep.subr.mxu0 0.0
  %5858 = vmatpush1.msra.mxu0 %v5609
  %5859 = vmatprep.subr.mxu0 0.0
  %5860 = vmatpush1.msra.mxu0 0.0
  %5861 = vmatprep.subr.mxu0 0.0
  %5862 = vmatpush1.msra.mxu0 0.0
  %5863 = vmatprep.subr.mxu0 0.0
  %5864 = vmatpush1.msra.mxu0 0.0
  %5865 = vmatprep.subr.mxu0 0.0
  %5866 = vmatpush1.msra.mxu0 0.0
  %5867 = vmatprep.mubr.f32.mxu0 %v5749
  %5868 = vmatmul.mubr.f32.gmra.mrb[0].mxu0 %v5614
  %v5869 = vpop.f32.mrb[0].mxu0
  %v5870 = vadd.f32 0.0, %v5869
  %v5871 = vpop.f32.mrb[0].mxu0
  %5872 = vmatprep.mubr.f32.mxu0 %v5751
  %5873 = vmatmul.mubr.f32.gmra.mrb[0].mxu0 %v5619
  %v5874 = vpop.f32.mrb[0].mxu0
  %v5875 = vadd.f32 0.0, %v5874
  %v5876 = vpop.f32.mrb[0].mxu0
  %5877 = vmatprep.mubr.f32.mxu0 %v5753
  %5878 = vmatmul.mubr.f32.gmra.mrb[0].mxu0 %v5623
  %v5879 = vpop.f32.mrb[0].mxu0
  %v5880 = vadd.f32 0.0, %v5879
  %v5881 = vpop.f32.mrb[0].mxu0
  %5882 = vmatprep.mubr.f32.mxu0 %v5755
  %5883 = vmatmul.mubr.f32.gmra.mrb[0].mxu0 %v5627
  %v5884 = vpop.f32.mrb[0].mxu0
  %v5885 = vadd.f32 0.0, %v5884
  %v5886 = vpop.f32.mrb[0].mxu0
  %5887 = vmatprep.mubr.f32.mxu0 %v5757
  %5888 = vmatmul.mubr.f32.gmra.mrb[0].mxu0 %v5631
  %v5889 = vpop.f32.mrb[0].mxu0
  %v5890 = vadd.f32 0.0, %v5889
  %v5891 = vpop.f32.mrb[0].mxu0
  %5892 = vmatprep.mubr.f32.mxu0 %v5759
  %5893 = vmatmul.mubr.f32.gmra.mrb[0].mxu0 %v5635
  %v5894 = vpop.f32.mrb[0].mxu0
  %v5895 = vadd.f32 0.0, %v5894
  %v5896 = vpop.f32.mrb[0].mxu0
  %5897 = vmatprep.mubr.f32.mxu0 %v5761
  %5898 = vmatmul.mubr.f32.gmra.mrb[0].mxu0 %v5639
  %v5899 = vpop.f32.mrb[0].mxu0
  %v5900 = vadd.f32 0.0, %v5899
  %v5901 = vpop.f32.mrb[0].mxu0
  %5902 = vmatprep.mubr.f32.mxu0 %v5763
  %5903 = vmatmul.mubr.f32.gmra.mrb[0].mxu0 %v5643
  %v5904 = vpop.f32.mrb[0].mxu0
  %v5905 = vadd.f32 0.0, %v5904
  %v5906 = vpop.f32.mrb[0].mxu0
  %5907 = vmatprep.mubr.f32.mxu0 %v5765
  %5908 = vmatmul.mubr.f32.gmra.mrb[0].mxu0 %v5647
  %v5909 = vpop.f32.mrb[0].mxu0
  %v5910 = vadd.f32 0.0, %v5909
  %v5911 = vpop.f32.mrb[0].mxu0
  %5912 = vmatprep.mubr.f32.mxu0 %v5767
  %5913 = vmatmul.mubr.f32.gmra.mrb[0].mxu0 %v5651
  %v5914 = vpop.f32.mrb[0].mxu0
  %v5915 = vadd.f32 0.0, %v5914
  %v5916 = vpop.f32.mrb[0].mxu0
  %5917 = vmatprep.mubr.f32.mxu0 %v5769
  %5918 = vmatmul.mubr.f32.gmra.mrb[0].mxu0 %v5655
  %v5919 = vpop.f32.mrb[0].mxu0
  %v5920 = vadd.f32 0.0, %v5919
  %v5921 = vpop.f32.mrb[0].mxu0
  %5922 = vmatprep.mubr.f32.mxu0 %v5771
  %5923 = vmatmul.mubr.f32.gmra.mrb[0].mxu0 %v5659
  %v5924 = vpop.f32.mrb[0].mxu0
  %v5925 = vadd.f32 0.0, %v5924
  %v5926 = vpop.f32.mrb[0].mxu0
  %5927 = vmatprep.mubr.f32.mxu0 %v5773
  %5928 = vmatmul.mubr.f32.gmra.mrb[0].mxu0 %v5663
  %v5929 = vpop.f32.mrb[0].mxu0
  %v5930 = vadd.f32 0.0, %v5929
  %v5931 = vpop.f32.mrb[0].mxu0
  %5932 = vmatprep.mubr.f32.mxu0 %v5775
  %5933 = vmatmul.mubr.f32.gmra.mrb[0].mxu0 %v5667
  %v5934 = vpop.f32.mrb[0].mxu0
  %v5935 = vadd.f32 0.0, %v5934
  %v5936 = vpop.f32.mrb[0].mxu0
  %5937 = vmatprep.mubr.f32.mxu0 %v5777
  %5938 = vmatmul.mubr.f32.gmra.mrb[0].mxu0 %v5671
  %v5939 = vpop.f32.mrb[0].mxu0
  %v5940 = vadd.f32 0.0, %v5939
  %v5941 = vpop.f32.mrb[0].mxu0
  %5942 = vmatprep.mubr.f32.mxu0 %v5779
  %5943 = vmatmul.mubr.f32.gmra.mrb[0].mxu0 %v5675
  %v5944 = vpop.f32.mrb[0].mxu0
  %v5945 = vadd.f32 0.0, %v5944
  %v5946 = vpop.f32.mrb[0].mxu0
  %5947 = vmatprep.mubr.f32.mxu0 %v5781
  %5948 = vmatmul.mubr.f32.gmra.mrb[0].mxu0 %v5679
  %v5949 = vpop.f32.mrb[0].mxu0
  %v5950 = vadd.f32 0.0, %v5949
  %v5951 = vpop.f32.mrb[0].mxu0
  %5952 = vmatprep.mubr.f32.mxu0 %v5783
  %5953 = vmatmul.mubr.f32.gmra.mrb[0].mxu0 %v5683
  %v5954 = vpop.f32.mrb[0].mxu0
  %v5955 = vadd.f32 0.0, %v5954
  %v5956 = vpop.f32.mrb[0].mxu0
  %5957 = vmatprep.mubr.f32.mxu0 %v5785
  %5958 = vmatmul.mubr.f32.gmra.mrb[0].mxu0 %v5687
  %v5959 = vpop.f32.mrb[0].mxu0
  %v5960 = vadd.f32 0.0, %v5959
  %v5961 = vpop.f32.mrb[0].mxu0
  %5962 = vmatprep.mubr.f32.mxu0 %v5787
  %5963 = vmatmul.mubr.f32.gmra.mrb[0].mxu0 %v5691
  %v5964 = vpop.f32.mrb[0].mxu0
  %v5965 = vadd.f32 0.0, %v5964
  %v5966 = vpop.f32.mrb[0].mxu0
  %5967 = vmatprep.mubr.f32.mxu0 %v5789
  %5968 = vmatmul.mubr.f32.gmra.mrb[0].mxu0 %v5695
  %v5969 = vpop.f32.mrb[0].mxu0
  %v5970 = vadd.f32 0.0, %v5969
  %v5971 = vpop.f32.mrb[0].mxu0
  %5972 = vmatprep.mubr.f32.mxu0 %v5791
  %5973 = vmatmul.mubr.f32.gmra.mrb[0].mxu0 %v5699
  %v5974 = vpop.f32.mrb[0].mxu0
  %v5975 = vadd.f32 0.0, %v5974
  %v5976 = vpop.f32.mrb[0].mxu0
  %5977 = vmatprep.mubr.f32.mxu0 %v5793
  %5978 = vmatmul.mubr.f32.gmra.mrb[0].mxu0 %v5703
  %v5979 = vpop.f32.mrb[0].mxu0
  %v5980 = vadd.f32 0.0, %v5979
  %v5981 = vpop.f32.mrb[0].mxu0
  %5982 = vmatprep.mubr.f32.mxu0 %v5795
  %5983 = vmatmul.mubr.f32.gmra.mrb[0].mxu0 %v5707
  %v5984 = vpop.f32.mrb[0].mxu0
  %v5985 = vadd.f32 0.0, %v5984
  %v5986 = vpop.f32.mrb[0].mxu0
  %5987 = vmatprep.mubr.f32.mxu0 %v5797
  %5988 = vmatmul.mubr.f32.gmra.mrb[0].mxu0 %v5711
  %v5989 = vpop.f32.mrb[0].mxu0
  %v5990 = vadd.f32 0.0, %v5989
  %v5991 = vpop.f32.mrb[0].mxu0
  %5992 = vmatprep.mubr.f32.mxu0 %v5799
  %5993 = vmatmul.mubr.f32.gmra.mrb[0].mxu0 %v5715
  %v5994 = vpop.f32.mrb[0].mxu0
  %v5995 = vadd.f32 0.0, %v5994
  %v5996 = vpop.f32.mrb[0].mxu0
  %5997 = vmatprep.mubr.f32.mxu0 %v5801
  %5998 = vmatmul.mubr.f32.gmra.mrb[0].mxu0 %v5719
  %v5999 = vpop.f32.mrb[0].mxu0
  %v6000 = vadd.f32 0.0, %v5999
  %v6001 = vpop.f32.mrb[0].mxu0
  %6002 = vdwg.mxu0
  %v6003 = vadd.f32 %v5448, %v5870
  %v6004 = vadd.f32 %v5453, %v5875
  %v6005 = vadd.f32 %v5458, %v5880
  %v6006 = vadd.f32 %v5463, %v5885
  %v6007 = vadd.f32 %v5468, %v5890
  %v6008 = vadd.f32 %v5473, %v5895
  %v6009 = vadd.f32 %v5478, %v5900
  %v6010 = vadd.f32 %v5483, %v5905
  %v6011 = vadd.f32 %v5488, %v5910
  %v6012 = vadd.f32 %v5493, %v5915
  %v6013 = vadd.f32 %v5498, %v5920
  %v6014 = vadd.f32 %v5503, %v5925
  %v6015 = vadd.f32 %v5508, %v5930
  %v6016 = vadd.f32 %v5513, %v5935
  %v6017 = vadd.f32 %v5518, %v5940
  %v6018 = vadd.f32 %v5523, %v5945
  %v6019 = vadd.f32 %v5528, %v5950
  %v6020 = vadd.f32 %v5533, %v5955
  %v6021 = vadd.f32 %v5538, %v5960
  %v6022 = vadd.f32 %v5543, %v5965
  %v6023 = vadd.f32 %v5548, %v5970
  %v6024 = vadd.f32 %v5553, %v5975
  %v6025 = vadd.f32 %v5558, %v5980
  %v6026 = vadd.f32 %v5563, %v5985
  %v6027 = vadd.f32 %v5568, %v5990
  %v6028 = vadd.f32 %v5573, %v5995
  %v6029 = vadd.f32 %v5578, %v6000
  %s6030 = scalar_lea.vmem %s7, 672
  %v6031 = vld [vmem:[%s6030] sm:$0xff]
  %v6032 = vld [vmem:[%s6030 + $0x8] sm:$0xff]
  %v6033 = vld [vmem:[%s6030 + $0x10] sm:$0xff]
  %v6034 = vld [vmem:[%s6030 + $0x18] sm:$0xff]
  %v6035 = vld [vmem:[%s6030 + $0x20] sm:$0xff]
  %v6036 = vld [vmem:[%s6030 + $0x28] sm:$0xff]
  %v6037 = vld [vmem:[%s6030 + $0x30] sm:$0xff]
  %v6038 = vld [vmem:[%s6030 + $0x38] sm:$0xff]
  %v6039 = vld [vmem:[%s6030 + $0x40] sm:$0xff]
  %v6040 = vld [vmem:[%s6030 + $0x48] sm:$0xff]
  %v6041 = vld [vmem:[%s6030 + $0x50] sm:$0xff]
  %v6042 = vld [vmem:[%s6030 + $0x58] sm:$0xff]
  %v6043 = vld [vmem:[%s6030 + $0x60] sm:$0xff]
  %v6044 = vld [vmem:[%s6030 + $0x68] sm:$0xff]
  %v6045 = vld [vmem:[%s6030 + $0x70] sm:$0xff]
  %v6046 = vld [vmem:[%s6030 + $0x78] sm:$0xff]
  %v6047 = vld [vmem:[%s6030 + $0x80] sm:$0xff]
  %v6048 = vld [vmem:[%s6030 + $0x88] sm:$0xff]
  %v6049 = vld [vmem:[%s6030 + $0x90] sm:$0xff]
  %v6050 = vld [vmem:[%s6030 + $0x98] sm:$0xff]
  %v6051 = vld [vmem:[%s6030 + $0xa0] sm:$0xff]
  %v6052 = vld [vmem:[%s6030 + $0xa8] sm:$0xff]
  %v6053 = vld [vmem:[%s6030 + $0xb0] sm:$0xff]
  %v6054 = vld [vmem:[%s6030 + $0xb8] sm:$0xff]
  %v6055 = vld [vmem:[%s6030 + $0xc0] sm:$0xff]
  %v6056 = vld [vmem:[%s6030 + $0xc8] sm:$0xff]
  %v6057 = vld [vmem:[%s6030 + $0xd0] sm:$0xff]
  %v6058 = vld [vmem:[%s6030 + $0xd8] sm:$0xff]
  %v6059 = vrot.slane %v4766, 3
  %v6060 = vrot.slane %v4768, 3
  %v6061 = vsel %vm1202, %v6059, %v6060
  %v6062 = vrot.slane %v4767, 3
  %v6063 = vrot.slane %v4769, 3
  %v6064 = vsel %vm1202, %v6062, %v6063
  %v6065 = vrot.slane %v4770, 3
  %v6066 = vsel %vm1202, %v6060, %v6065
  %v6067 = vrot.slane %v4771, 3
  %v6068 = vsel %vm1202, %v6063, %v6067
  %v6069 = vrot.slane %v4772, 3
  %v6070 = vsel %vm1202, %v6065, %v6069
  %v6071 = vrot.slane %v4773, 3
  %v6072 = vsel %vm1202, %v6067, %v6071
  %v6073 = vrot.slane %v4774, 3
  %v6074 = vsel %vm1202, %v6069, %v6073
  %v6075 = vrot.slane %v4775, 3
  %v6076 = vsel %vm1202, %v6071, %v6075
  %v6077 = vrot.slane %v4776, 3
  %v6078 = vsel %vm1202, %v6073, %v6077
  %v6079 = vrot.slane %v4777, 3
  %v6080 = vsel %vm1202, %v6075, %v6079
  %v6081 = vrot.slane %v4778, 3
  %v6082 = vsel %vm1202, %v6077, %v6081
  %v6083 = vrot.slane %v4779, 3
  %v6084 = vsel %vm1202, %v6079, %v6083
  %v6085 = vrot.slane %v4780, 3
  %v6086 = vsel %vm1202, %v6081, %v6085
  %v6087 = vrot.slane %v4781, 3
  %v6088 = vsel %vm1202, %v6083, %v6087
  %v6089 = vrot.slane %v4782, 3
  %v6090 = vsel %vm1202, %v6085, %v6089
  %v6091 = vrot.slane %v4783, 3
  %v6092 = vsel %vm1202, %v6087, %v6091
  %v6093 = vrot.slane %v4784, 3
  %v6094 = vsel %vm1202, %v6089, %v6093
  %v6095 = vrot.slane %v4785, 3
  %v6096 = vsel %vm1202, %v6091, %v6095
  %v6097 = vrot.slane %v4786, 3
  %v6098 = vsel %vm1202, %v6093, %v6097
  %v6099 = vrot.slane %v4787, 3
  %v6100 = vsel %vm1202, %v6095, %v6099
  %v6101 = vrot.slane %v4788, 3
  %v6102 = vsel %vm1202, %v6097, %v6101
  %v6103 = vrot.slane %v4789, 3
  %v6104 = vsel %vm1202, %v6099, %v6103
  %v6105 = vrot.slane %v4790, 3
  %v6106 = vsel %vm1202, %v6101, %v6105
  %v6107 = vrot.slane %v4791, 3
  %v6108 = vsel %vm1202, %v6103, %v6107
  %v6109 = vrot.slane %v4792, 3
  %v6110 = vsel %vm1202, %v6105, %v6109
  %v6111 = vrot.slane %v4793, 3
  %v6112 = vsel %vm1202, %v6107, %v6111
  %v6113 = vrot.slane %v4794, 3
  %v6114 = vsel %vm1202, %v6109, %v6113
  %v6115 = vrot.slane %v4795, 3
  %v6116 = vsel %vm1202, %v6111, %v6115
  %v6117 = vrot.slane %v4796, 3
  %v6118 = vsel %vm1202, %v6113, %v6117
  %v6119 = vrot.slane %v4797, 3
  %v6120 = vsel %vm1202, %v6115, %v6119
  %v6121 = vrot.slane %v4798, 3
  %v6122 = vsel %vm1202, %v6117, %v6121
  %v6123 = vrot.slane %v4799, 3
  %v6124 = vsel %vm1202, %v6119, %v6123
  %v6125 = vrot.slane %v4800, 3
  %v6126 = vsel %vm1202, %v6121, %v6125
  %v6127 = vrot.slane %v4801, 3
  %v6128 = vsel %vm1202, %v6123, %v6127
  %v6129 = vrot.slane %v4802, 3
  %v6130 = vsel %vm1202, %v6125, %v6129
  %v6131 = vrot.slane %v4803, 3
  %v6132 = vsel %vm1202, %v6127, %v6131
  %v6133 = vrot.slane %v4804, 3
  %v6134 = vsel %vm1202, %v6129, %v6133
  %v6135 = vrot.slane %v4805, 3
  %v6136 = vsel %vm1202, %v6131, %v6135
  %v6137 = vrot.slane %v4806, 3
  %v6138 = vsel %vm1202, %v6133, %v6137
  %v6139 = vrot.slane %v4807, 3
  %v6140 = vsel %vm1202, %v6135, %v6139
  %v6141 = vrot.slane %v4808, 3
  %v6142 = vsel %vm1202, %v6137, %v6141
  %v6143 = vrot.slane %v4809, 3
  %v6144 = vsel %vm1202, %v6139, %v6143
  %v6145 = vrot.slane %v4810, 3
  %v6146 = vsel %vm1202, %v6141, %v6145
  %v6147 = vrot.slane %v4811, 3
  %v6148 = vsel %vm1202, %v6143, %v6147
  %v6149 = vrot.slane %v4812, 3
  %v6150 = vsel %vm1202, %v6145, %v6149
  %v6151 = vrot.slane %v4813, 3
  %v6152 = vsel %vm1202, %v6147, %v6151
  %v6153 = vrot.slane %v4814, 3
  %v6154 = vsel %vm1202, %v6149, %v6153
  %v6155 = vrot.slane %v4815, 3
  %v6156 = vsel %vm1202, %v6151, %v6155
  %v6157 = vrot.slane %v4816, 3
  %v6158 = vsel %vm1202, %v6153, %v6157
  %v6159 = vrot.slane %v4817, 3
  %v6160 = vsel %vm1202, %v6155, %v6159
  %v6161 = vrot.slane %v4818, 3
  %v6162 = vsel %vm1202, %v6157, %v6161
  %v6163 = vrot.slane %v4819, 3
  %v6164 = vsel %vm1202, %v6159, %v6163
  %v6165 = vrot.slane %v4820, 3
  %v6166 = vsel %vm1202, %v6161, %v6165
  %v6167 = vrot.slane %v4821, 3
  %v6168 = vsel %vm1202, %v6163, %v6167
  %v6196 = vsel %vm5072, %v6064, 0
  %v6198 = vsel %vm5072, %v6068, 0
  %v6200 = vsel %vm5072, %v6072, 0
  %v6202 = vsel %vm5072, %v6076, 0
  %v6204 = vsel %vm5072, %v6080, 0
  %v6206 = vsel %vm5072, %v6084, 0
  %v6208 = vsel %vm5072, %v6088, 0
  %v6210 = vsel %vm5072, %v6092, 0
  %v6212 = vsel %vm5072, %v6096, 0
  %v6214 = vsel %vm5072, %v6100, 0
  %v6216 = vsel %vm5072, %v6104, 0
  %v6218 = vsel %vm5072, %v6108, 0
  %v6220 = vsel %vm5072, %v6112, 0
  %v6222 = vsel %vm5072, %v6116, 0
  %v6224 = vsel %vm5072, %v6120, 0
  %v6226 = vsel %vm5072, %v6124, 0
  %v6228 = vsel %vm5072, %v6128, 0
  %v6230 = vsel %vm5072, %v6132, 0
  %v6232 = vsel %vm5072, %v6136, 0
  %v6234 = vsel %vm5072, %v6140, 0
  %v6236 = vsel %vm5072, %v6144, 0
  %v6238 = vsel %vm5072, %v6148, 0
  %v6240 = vsel %vm5072, %v6152, 0
  %v6242 = vsel %vm5072, %v6156, 0
  %v6244 = vsel %vm5072, %v6160, 0
  %v6246 = vsel %vm5072, %v6164, 0
  %v6248 = vsel %vm5072, %v6168, 0
  %6250 = vmatprep.subr.mxu0 0.0
  %6251 = vmatpush1.msra.mxu0 %v6031
  %6252 = vmatprep.subr.mxu0 0.0
  %6253 = vmatpush1.msra.mxu0 %v6032
  %6254 = vmatprep.subr.mxu0 0.0
  %6255 = vmatpush1.msra.mxu0 %v6033
  %6256 = vmatprep.subr.mxu0 0.0
  %6257 = vmatpush1.msra.mxu0 %v6034
  %6258 = vmatprep.subr.mxu0 0.0
  %6259 = vmatpush1.msra.mxu0 %v6035
  %6260 = vmatprep.subr.mxu0 0.0
  %6261 = vmatpush1.msra.mxu0 %v6036
  %6262 = vmatprep.subr.mxu0 0.0
  %6263 = vmatpush1.msra.mxu0 %v6037
  %6264 = vmatprep.subr.mxu0 0.0
  %6265 = vmatpush1.msra.mxu0 %v6038
  %6266 = vmatprep.subr.mxu0 0.0
  %6267 = vmatpush1.msra.mxu0 %v6039
  %6268 = vmatprep.subr.mxu0 0.0
  %6269 = vmatpush1.msra.mxu0 %v6040
  %6270 = vmatprep.subr.mxu0 0.0
  %6271 = vmatpush1.msra.mxu0 %v6041
  %6272 = vmatprep.subr.mxu0 0.0
  %6273 = vmatpush1.msra.mxu0 %v6042
  %6274 = vmatprep.subr.mxu0 0.0
  %6275 = vmatpush1.msra.mxu0 %v6043
  %6276 = vmatprep.subr.mxu0 0.0
  %6277 = vmatpush1.msra.mxu0 %v6044
  %6278 = vmatprep.subr.mxu0 0.0
  %6279 = vmatpush1.msra.mxu0 %v6045
  %6280 = vmatprep.subr.mxu0 0.0
  %6281 = vmatpush1.msra.mxu0 %v6046
  %6282 = vmatprep.subr.mxu0 0.0
  %6283 = vmatpush1.msra.mxu0 %v6047
  %6284 = vmatprep.subr.mxu0 0.0
  %6285 = vmatpush1.msra.mxu0 %v6048
  %6286 = vmatprep.subr.mxu0 0.0
  %6287 = vmatpush1.msra.mxu0 %v6049
  %6288 = vmatprep.subr.mxu0 0.0
  %6289 = vmatpush1.msra.mxu0 %v6050
  %6290 = vmatprep.subr.mxu0 0.0
  %6291 = vmatpush1.msra.mxu0 %v6051
  %6292 = vmatprep.subr.mxu0 0.0
  %6293 = vmatpush1.msra.mxu0 %v6052
  %6294 = vmatprep.subr.mxu0 0.0
  %6295 = vmatpush1.msra.mxu0 %v6053
  %6296 = vmatprep.subr.mxu0 0.0
  %6297 = vmatpush1.msra.mxu0 %v6054
  %6298 = vmatprep.subr.mxu0 0.0
  %6299 = vmatpush1.msra.mxu0 %v6055
  %6300 = vmatprep.subr.mxu0 0.0
  %6301 = vmatpush1.msra.mxu0 %v6056
  %6302 = vmatprep.subr.mxu0 0.0
  %6303 = vmatpush1.msra.mxu0 %v6057
  %6304 = vmatprep.subr.mxu0 0.0
  %6305 = vmatpush1.msra.mxu0 %v6058
  %6306 = vmatprep.subr.mxu0 0.0
  %6307 = vmatpush1.msra.mxu0 0.0
  %6308 = vmatprep.subr.mxu0 0.0
  %6309 = vmatpush1.msra.mxu0 0.0
  %6310 = vmatprep.subr.mxu0 0.0
  %6311 = vmatpush1.msra.mxu0 0.0
  %6312 = vmatprep.subr.mxu0 0.0
  %6313 = vmatpush1.msra.mxu0 0.0
  %6314 = vmatprep.mubr.f32.mxu0 %v6196
  %6315 = vmatmul.mubr.f32.gmra.mrb[0].mxu0 %v6061
  %v6316 = vpop.f32.mrb[0].mxu0
  %v6317 = vadd.f32 0.0, %v6316
  %v6318 = vpop.f32.mrb[0].mxu0
  %6319 = vmatprep.mubr.f32.mxu0 %v6198
  %6320 = vmatmul.mubr.f32.gmra.mrb[0].mxu0 %v6066
  %v6321 = vpop.f32.mrb[0].mxu0
  %v6322 = vadd.f32 0.0, %v6321
  %v6323 = vpop.f32.mrb[0].mxu0
  %6324 = vmatprep.mubr.f32.mxu0 %v6200
  %6325 = vmatmul.mubr.f32.gmra.mrb[0].mxu0 %v6070
  %v6326 = vpop.f32.mrb[0].mxu0
  %v6327 = vadd.f32 0.0, %v6326
  %v6328 = vpop.f32.mrb[0].mxu0
  %6329 = vmatprep.mubr.f32.mxu0 %v6202
  %6330 = vmatmul.mubr.f32.gmra.mrb[0].mxu0 %v6074
  %v6331 = vpop.f32.mrb[0].mxu0
  %v6332 = vadd.f32 0.0, %v6331
  %v6333 = vpop.f32.mrb[0].mxu0
  %6334 = vmatprep.mubr.f32.mxu0 %v6204
  %6335 = vmatmul.mubr.f32.gmra.mrb[0].mxu0 %v6078
  %v6336 = vpop.f32.mrb[0].mxu0
  %v6337 = vadd.f32 0.0, %v6336
  %v6338 = vpop.f32.mrb[0].mxu0
  %6339 = vmatprep.mubr.f32.mxu0 %v6206
  %6340 = vmatmul.mubr.f32.gmra.mrb[0].mxu0 %v6082
  %v6341 = vpop.f32.mrb[0].mxu0
  %v6342 = vadd.f32 0.0, %v6341
  %v6343 = vpop.f32.mrb[0].mxu0
  %6344 = vmatprep.mubr.f32.mxu0 %v6208
  %6345 = vmatmul.mubr.f32.gmra.mrb[0].mxu0 %v6086
  %v6346 = vpop.f32.mrb[0].mxu0
  %v6347 = vadd.f32 0.0, %v6346
  %v6348 = vpop.f32.mrb[0].mxu0
  %6349 = vmatprep.mubr.f32.mxu0 %v6210
  %6350 = vmatmul.mubr.f32.gmra.mrb[0].mxu0 %v6090
  %v6351 = vpop.f32.mrb[0].mxu0
  %v6352 = vadd.f32 0.0, %v6351
  %v6353 = vpop.f32.mrb[0].mxu0
  %6354 = vmatprep.mubr.f32.mxu0 %v6212
  %6355 = vmatmul.mubr.f32.gmra.mrb[0].mxu0 %v6094
  %v6356 = vpop.f32.mrb[0].mxu0
  %v6357 = vadd.f32 0.0, %v6356
  %v6358 = vpop.f32.mrb[0].mxu0
  %6359 = vmatprep.mubr.f32.mxu0 %v6214
  %6360 = vmatmul.mubr.f32.gmra.mrb[0].mxu0 %v6098
  %v6361 = vpop.f32.mrb[0].mxu0
  %v6362 = vadd.f32 0.0, %v6361
  %v6363 = vpop.f32.mrb[0].mxu0
  %6364 = vmatprep.mubr.f32.mxu0 %v6216
  %6365 = vmatmul.mubr.f32.gmra.mrb[0].mxu0 %v6102
  %v6366 = vpop.f32.mrb[0].mxu0
  %v6367 = vadd.f32 0.0, %v6366
  %v6368 = vpop.f32.mrb[0].mxu0
  %6369 = vmatprep.mubr.f32.mxu0 %v6218
  %6370 = vmatmul.mubr.f32.gmra.mrb[0].mxu0 %v6106
  %v6371 = vpop.f32.mrb[0].mxu0
  %v6372 = vadd.f32 0.0, %v6371
  %v6373 = vpop.f32.mrb[0].mxu0
  %6374 = vmatprep.mubr.f32.mxu0 %v6220
  %6375 = vmatmul.mubr.f32.gmra.mrb[0].mxu0 %v6110
  %v6376 = vpop.f32.mrb[0].mxu0
  %v6377 = vadd.f32 0.0, %v6376
  %v6378 = vpop.f32.mrb[0].mxu0
  %6379 = vmatprep.mubr.f32.mxu0 %v6222
  %6380 = vmatmul.mubr.f32.gmra.mrb[0].mxu0 %v6114
  %v6381 = vpop.f32.mrb[0].mxu0
  %v6382 = vadd.f32 0.0, %v6381
  %v6383 = vpop.f32.mrb[0].mxu0
  %6384 = vmatprep.mubr.f32.mxu0 %v6224
  %6385 = vmatmul.mubr.f32.gmra.mrb[0].mxu0 %v6118
  %v6386 = vpop.f32.mrb[0].mxu0
  %v6387 = vadd.f32 0.0, %v6386
  %v6388 = vpop.f32.mrb[0].mxu0
  %6389 = vmatprep.mubr.f32.mxu0 %v6226
  %6390 = vmatmul.mubr.f32.gmra.mrb[0].mxu0 %v6122
  %v6391 = vpop.f32.mrb[0].mxu0
  %v6392 = vadd.f32 0.0, %v6391
  %v6393 = vpop.f32.mrb[0].mxu0
  %6394 = vmatprep.mubr.f32.mxu0 %v6228
  %6395 = vmatmul.mubr.f32.gmra.mrb[0].mxu0 %v6126
  %v6396 = vpop.f32.mrb[0].mxu0
  %v6397 = vadd.f32 0.0, %v6396
  %v6398 = vpop.f32.mrb[0].mxu0
  %6399 = vmatprep.mubr.f32.mxu0 %v6230
  %6400 = vmatmul.mubr.f32.gmra.mrb[0].mxu0 %v6130
  %v6401 = vpop.f32.mrb[0].mxu0
  %v6402 = vadd.f32 0.0, %v6401
  %v6403 = vpop.f32.mrb[0].mxu0
  %6404 = vmatprep.mubr.f32.mxu0 %v6232
  %6405 = vmatmul.mubr.f32.gmra.mrb[0].mxu0 %v6134
  %v6406 = vpop.f32.mrb[0].mxu0
  %v6407 = vadd.f32 0.0, %v6406
  %v6408 = vpop.f32.mrb[0].mxu0
  %6409 = vmatprep.mubr.f32.mxu0 %v6234
  %6410 = vmatmul.mubr.f32.gmra.mrb[0].mxu0 %v6138
  %v6411 = vpop.f32.mrb[0].mxu0
  %v6412 = vadd.f32 0.0, %v6411
  %v6413 = vpop.f32.mrb[0].mxu0
  %6414 = vmatprep.mubr.f32.mxu0 %v6236
  %6415 = vmatmul.mubr.f32.gmra.mrb[0].mxu0 %v6142
  %v6416 = vpop.f32.mrb[0].mxu0
  %v6417 = vadd.f32 0.0, %v6416
  %v6418 = vpop.f32.mrb[0].mxu0
  %6419 = vmatprep.mubr.f32.mxu0 %v6238
  %6420 = vmatmul.mubr.f32.gmra.mrb[0].mxu0 %v6146
  %v6421 = vpop.f32.mrb[0].mxu0
  %v6422 = vadd.f32 0.0, %v6421
  %v6423 = vpop.f32.mrb[0].mxu0
  %6424 = vmatprep.mubr.f32.mxu0 %v6240
  %6425 = vmatmul.mubr.f32.gmra.mrb[0].mxu0 %v6150
  %v6426 = vpop.f32.mrb[0].mxu0
  %v6427 = vadd.f32 0.0, %v6426
  %v6428 = vpop.f32.mrb[0].mxu0
  %6429 = vmatprep.mubr.f32.mxu0 %v6242
  %6430 = vmatmul.mubr.f32.gmra.mrb[0].mxu0 %v6154
  %v6431 = vpop.f32.mrb[0].mxu0
  %v6432 = vadd.f32 0.0, %v6431
  %v6433 = vpop.f32.mrb[0].mxu0
  %6434 = vmatprep.mubr.f32.mxu0 %v6244
  %6435 = vmatmul.mubr.f32.gmra.mrb[0].mxu0 %v6158
  %v6436 = vpop.f32.mrb[0].mxu0
  %v6437 = vadd.f32 0.0, %v6436
  %v6438 = vpop.f32.mrb[0].mxu0
  %6439 = vmatprep.mubr.f32.mxu0 %v6246
  %6440 = vmatmul.mubr.f32.gmra.mrb[0].mxu0 %v6162
  %v6441 = vpop.f32.mrb[0].mxu0
  %v6442 = vadd.f32 0.0, %v6441
  %v6443 = vpop.f32.mrb[0].mxu0
  %6444 = vmatprep.mubr.f32.mxu0 %v6248
  %6445 = vmatmul.mubr.f32.gmra.mrb[0].mxu0 %v6166
  %v6446 = vpop.f32.mrb[0].mxu0
  %v6447 = vadd.f32 0.0, %v6446
  %v6448 = vpop.f32.mrb[0].mxu0
  %6449 = vdwg.mxu0
  %v6450 = vadd.f32 %v6003, %v6317
  %v6451 = vadd.f32 %v6004, %v6322
  %v6452 = vadd.f32 %v6005, %v6327
  %v6453 = vadd.f32 %v6006, %v6332
  %v6454 = vadd.f32 %v6007, %v6337
  %v6455 = vadd.f32 %v6008, %v6342
  %v6456 = vadd.f32 %v6009, %v6347
  %v6457 = vadd.f32 %v6010, %v6352
  %v6458 = vadd.f32 %v6011, %v6357
  %v6459 = vadd.f32 %v6012, %v6362
  %v6460 = vadd.f32 %v6013, %v6367
  %v6461 = vadd.f32 %v6014, %v6372
  %v6462 = vadd.f32 %v6015, %v6377
  %v6463 = vadd.f32 %v6016, %v6382
  %v6464 = vadd.f32 %v6017, %v6387
  %v6465 = vadd.f32 %v6018, %v6392
  %v6466 = vadd.f32 %v6019, %v6397
  %v6467 = vadd.f32 %v6020, %v6402
  %v6468 = vadd.f32 %v6021, %v6407
  %v6469 = vadd.f32 %v6022, %v6412
  %v6470 = vadd.f32 %v6023, %v6417
  %v6471 = vadd.f32 %v6024, %v6422
  %v6472 = vadd.f32 %v6025, %v6427
  %v6473 = vadd.f32 %v6026, %v6432
  %v6474 = vadd.f32 %v6027, %v6437
  %v6475 = vadd.f32 %v6028, %v6442
  %v6476 = vadd.f32 %v6029, %v6447
  %v6477 = vld [vmem:[%s8] sm:$0x1]
  %v6479 = vlaneseq
  %v6480 = vshrl.u32 %v6479, 7
  %v6481 = vsub.s32 0, %v6480
  %v6482 = vrot.slane %v6477, %v6481
  %v6484 = vadd.f32 %v6450, %v6482
  %v6485 = vadd.f32 %v6451, %v6482
  %v6486 = vadd.f32 %v6452, %v6482
  %v6487 = vadd.f32 %v6453, %v6482
  %v6488 = vadd.f32 %v6454, %v6482
  %v6489 = vadd.f32 %v6455, %v6482
  %v6490 = vadd.f32 %v6456, %v6482
  %v6491 = vadd.f32 %v6457, %v6482
  %v6492 = vadd.f32 %v6458, %v6482
  %v6493 = vadd.f32 %v6459, %v6482
  %v6494 = vadd.f32 %v6460, %v6482
  %v6495 = vadd.f32 %v6461, %v6482
  %v6496 = vadd.f32 %v6462, %v6482
  %v6497 = vadd.f32 %v6463, %v6482
  %v6498 = vadd.f32 %v6464, %v6482
  %v6499 = vadd.f32 %v6465, %v6482
  %v6500 = vadd.f32 %v6466, %v6482
  %v6501 = vadd.f32 %v6467, %v6482
  %v6502 = vadd.f32 %v6468, %v6482
  %v6503 = vadd.f32 %v6469, %v6482
  %v6504 = vadd.f32 %v6470, %v6482
  %v6505 = vadd.f32 %v6471, %v6482
  %v6506 = vadd.f32 %v6472, %v6482
  %v6507 = vadd.f32 %v6473, %v6482
  %v6508 = vadd.f32 %v6474, %v6482
  %v6509 = vadd.f32 %v6475, %v6482
  %v6510 = vadd.f32 %v6476, %v6482
  %v6511 = vmax.f32 %v6484, 0.0
  %v6512 = vmax.f32 %v6485, 0.0
  %v6513 = vmax.f32 %v6486, 0.0
  %v6514 = vmax.f32 %v6487, 0.0
  %v6515 = vmax.f32 %v6488, 0.0
  %v6516 = vmax.f32 %v6489, 0.0
  %v6517 = vmax.f32 %v6490, 0.0
  %v6518 = vmax.f32 %v6491, 0.0
  %v6519 = vmax.f32 %v6492, 0.0
  %v6520 = vmax.f32 %v6493, 0.0
  %v6521 = vmax.f32 %v6494, 0.0
  %v6522 = vmax.f32 %v6495, 0.0
  %v6523 = vmax.f32 %v6496, 0.0
  %v6524 = vmax.f32 %v6497, 0.0
  %v6525 = vmax.f32 %v6498, 0.0
  %v6526 = vmax.f32 %v6499, 0.0
  %v6527 = vmax.f32 %v6500, 0.0
  %v6528 = vmax.f32 %v6501, 0.0
  %v6529 = vmax.f32 %v6502, 0.0
  %v6530 = vmax.f32 %v6503, 0.0
  %v6531 = vmax.f32 %v6504, 0.0
  %v6532 = vmax.f32 %v6505, 0.0
  %v6533 = vmax.f32 %v6506, 0.0
  %v6534 = vmax.f32 %v6507, 0.0
  %v6535 = vmax.f32 %v6508, 0.0
  %v6536 = vmax.f32 %v6509, 0.0
  %v6537 = vmax.f32 %v6510, 0.0
  %v6538 = vld [vmem:[%s9] sm:$0xff]
  %v6539 = vld [vmem:[%s9 + $0x8] sm:$0xff]
  %v6540 = vld [vmem:[%s9 + $0x10] sm:$0xff]
  %v6541 = vld [vmem:[%s9 + $0x18] sm:$0xff]
  %v6542 = vld [vmem:[%s9 + $0x20] sm:$0xff]
  %v6543 = vld [vmem:[%s9 + $0x28] sm:$0xff]
  %v6544 = vld [vmem:[%s9 + $0x30] sm:$0xff]
  %v6545 = vld [vmem:[%s9 + $0x38] sm:$0xff]
  %v6546 = vld [vmem:[%s9 + $0x40] sm:$0xff]
  %v6547 = vld [vmem:[%s9 + $0x48] sm:$0xff]
  %v6548 = vld [vmem:[%s9 + $0x50] sm:$0xff]
  %v6549 = vld [vmem:[%s9 + $0x58] sm:$0xff]
  %s6550 = scalar_lea.vmem %s9, 96
  %v6551 = vld [vmem:[%s6550] sm:$0xff]
  %v6552 = vld [vmem:[%s6550 + $0x8] sm:$0xff]
  %v6553 = vld [vmem:[%s6550 + $0x10] sm:$0xff]
  %v6554 = vld [vmem:[%s6550 + $0x18] sm:$0xff]
  %v6555 = vld [vmem:[%s6550 + $0x20] sm:$0xff]
  %v6556 = vld [vmem:[%s6550 + $0x28] sm:$0xff]
  %v6557 = vld [vmem:[%s6550 + $0x30] sm:$0xff]
  %v6558 = vld [vmem:[%s6550 + $0x38] sm:$0xff]
  %v6559 = vld [vmem:[%s6550 + $0x40] sm:$0xff]
  %v6560 = vld [vmem:[%s6550 + $0x48] sm:$0xff]
  %v6561 = vld [vmem:[%s6550 + $0x50] sm:$0xff]
  %v6562 = vld [vmem:[%s6550 + $0x58] sm:$0xff]
  %v6589 = vrot.slane %v6511, 1
  %v6590 = vrot.slane %v6512, 1
  %v6591 = vsel %vm127, %v6589, %v6590
  %v6592 = vrot.slane %v6513, 1
  %v6593 = vsel %vm127, %v6590, %v6592
  %v6594 = vrot.slane %v6514, 1
  %v6595 = vsel %vm127, %v6592, %v6594
  %v6596 = vrot.slane %v6515, 1
  %v6597 = vsel %vm127, %v6594, %v6596
  %v6598 = vrot.slane %v6516, 1
  %v6599 = vsel %vm127, %v6596, %v6598
  %v6600 = vrot.slane %v6517, 1
  %v6601 = vsel %vm127, %v6598, %v6600
  %v6602 = vrot.slane %v6518, 1
  %v6603 = vsel %vm127, %v6600, %v6602
  %v6604 = vrot.slane %v6519, 1
  %v6605 = vsel %vm127, %v6602, %v6604
  %v6606 = vrot.slane %v6520, 1
  %v6607 = vsel %vm127, %v6604, %v6606
  %v6608 = vrot.slane %v6521, 1
  %v6609 = vsel %vm127, %v6606, %v6608
  %v6610 = vrot.slane %v6522, 1
  %v6611 = vsel %vm127, %v6608, %v6610
  %v6612 = vrot.slane %v6523, 1
  %v6613 = vsel %vm127, %v6610, %v6612
  %v6614 = vrot.slane %v6524, 1
  %v6615 = vsel %vm127, %v6612, %v6614
  %v6616 = vrot.slane %v6525, 1
  %v6617 = vsel %vm127, %v6614, %v6616
  %v6618 = vrot.slane %v6526, 1
  %v6619 = vsel %vm127, %v6616, %v6618
  %v6620 = vrot.slane %v6527, 1
  %v6621 = vsel %vm127, %v6618, %v6620
  %v6622 = vrot.slane %v6528, 1
  %v6623 = vsel %vm127, %v6620, %v6622
  %v6624 = vrot.slane %v6529, 1
  %v6625 = vsel %vm127, %v6622, %v6624
  %v6626 = vrot.slane %v6530, 1
  %v6627 = vsel %vm127, %v6624, %v6626
  %v6628 = vrot.slane %v6531, 1
  %v6629 = vsel %vm127, %v6626, %v6628
  %v6630 = vrot.slane %v6532, 1
  %v6631 = vsel %vm127, %v6628, %v6630
  %v6632 = vrot.slane %v6533, 1
  %v6633 = vsel %vm127, %v6630, %v6632
  %v6634 = vrot.slane %v6534, 1
  %v6635 = vsel %vm127, %v6632, %v6634
  %v6636 = vrot.slane %v6535, 1
  %v6637 = vsel %vm127, %v6634, %v6636
  %v6638 = vrot.slane %v6536, 1
  %v6639 = vsel %vm127, %v6636, %v6638
  %v6640 = vsel %vm5072, %v6591, 0
  %v6642 = vsel %vm5072, %v6593, 0
  %v6644 = vsel %vm5072, %v6595, 0
  %v6646 = vsel %vm5072, %v6597, 0
  %v6648 = vsel %vm5072, %v6599, 0
  %v6650 = vsel %vm5072, %v6601, 0
  %v6652 = vsel %vm5072, %v6603, 0
  %v6654 = vsel %vm5072, %v6605, 0
  %v6656 = vsel %vm5072, %v6607, 0
  %v6658 = vsel %vm5072, %v6609, 0
  %v6660 = vsel %vm5072, %v6611, 0
  %v6662 = vsel %vm5072, %v6613, 0
  %v6664 = vsel %vm5072, %v6615, 0
  %v6666 = vsel %vm5072, %v6617, 0
  %v6668 = vsel %vm5072, %v6619, 0
  %v6670 = vsel %vm5072, %v6621, 0
  %v6672 = vsel %vm5072, %v6623, 0
  %v6674 = vsel %vm5072, %v6625, 0
  %v6676 = vsel %vm5072, %v6627, 0
  %v6678 = vsel %vm5072, %v6629, 0
  %v6680 = vsel %vm5072, %v6631, 0
  %v6682 = vsel %vm5072, %v6633, 0
  %v6684 = vsel %vm5072, %v6635, 0
  %v6686 = vsel %vm5072, %v6637, 0
  %v6688 = vsel %vm5072, %v6639, 0
  %6690 = vmatprep.subr.mxu0 0.0
  %6691 = vmatpush1.msra.mxu0 %v6551
  %6692 = vmatprep.subr.mxu0 0.0
  %6693 = vmatpush1.msra.mxu0 %v6552
  %6694 = vmatprep.subr.mxu0 0.0
  %6695 = vmatpush1.msra.mxu0 %v6553
  %6696 = vmatprep.subr.mxu0 0.0
  %6697 = vmatpush1.msra.mxu0 %v6554
  %6698 = vmatprep.subr.mxu0 0.0
  %6699 = vmatpush1.msra.mxu0 %v6555
  %6700 = vmatprep.subr.mxu0 0.0
  %6701 = vmatpush1.msra.mxu0 %v6556
  %6702 = vmatprep.subr.mxu0 0.0
  %6703 = vmatpush1.msra.mxu0 %v6557
  %6704 = vmatprep.subr.mxu0 0.0
  %6705 = vmatpush1.msra.mxu0 %v6558
  %6706 = vmatprep.subr.mxu0 0.0
  %6707 = vmatpush1.msra.mxu0 %v6559
  %6708 = vmatprep.subr.mxu0 0.0
  %6709 = vmatpush1.msra.mxu0 %v6560
  %6710 = vmatprep.subr.mxu0 0.0
  %6711 = vmatpush1.msra.mxu0 %v6561
  %6712 = vmatprep.subr.mxu0 0.0
  %6713 = vmatpush1.msra.mxu0 %v6562
  %6714 = vmatprep.subr.mxu0 0.0
  %6715 = vmatpush1.msra.mxu0 0.0
  %6716 = vmatprep.subr.mxu0 0.0
  %6717 = vmatpush1.msra.mxu0 0.0
  %6718 = vmatprep.subr.mxu0 0.0
  %6719 = vmatpush1.msra.mxu0 0.0
  %6720 = vmatprep.subr.mxu0 0.0
  %6721 = vmatpush1.msra.mxu0 0.0
  %6722 = vmatprep.subr.mxu0 0.0
  %6723 = vmatpush1.msra.mxu0 0.0
  %6724 = vmatprep.subr.mxu0 0.0
  %6725 = vmatpush1.msra.mxu0 0.0
  %6726 = vmatprep.subr.mxu0 0.0
  %6727 = vmatpush1.msra.mxu0 0.0
  %6728 = vmatprep.subr.mxu0 0.0
  %6729 = vmatpush1.msra.mxu0 0.0
  %6730 = vmatprep.subr.mxu0 0.0
  %6731 = vmatpush1.msra.mxu0 0.0
  %6732 = vmatprep.subr.mxu0 0.0
  %6733 = vmatpush1.msra.mxu0 0.0
  %6734 = vmatprep.subr.mxu0 0.0
  %6735 = vmatpush1.msra.mxu0 0.0
  %6736 = vmatprep.subr.mxu0 0.0
  %6737 = vmatpush1.msra.mxu0 0.0
  %6738 = vmatprep.subr.mxu0 0.0
  %6739 = vmatpush1.msra.mxu0 0.0
  %6740 = vmatprep.subr.mxu0 0.0
  %6741 = vmatpush1.msra.mxu0 0.0
  %6742 = vmatprep.subr.mxu0 0.0
  %6743 = vmatpush1.msra.mxu0 0.0
  %6744 = vmatprep.subr.mxu0 0.0
  %6745 = vmatpush1.msra.mxu0 0.0
  %6746 = vmatprep.subr.mxu0 0.0
  %6747 = vmatpush1.msra.mxu0 0.0
  %6748 = vmatprep.subr.mxu0 0.0
  %6749 = vmatpush1.msra.mxu0 0.0
  %6750 = vmatprep.subr.mxu0 0.0
  %6751 = vmatpush1.msra.mxu0 0.0
  %6752 = vmatprep.subr.mxu0 0.0
  %6753 = vmatpush1.msra.mxu0 0.0
  %6754 = vmatprep.mubr.f32.mxu0 0.0
  %6755 = vmatmul.mubr.f32.gmra.mrb[0].mxu0 %v6640
  %v6756 = vpop.f32.mrb[0].mxu0
  %v6757 = vadd.f32 0.0, %v6756
  %v6758 = vpop.f32.mrb[0].mxu0
  %6759 = vmatprep.mubr.f32.mxu0 0.0
  %6760 = vmatmul.mubr.f32.gmra.mrb[0].mxu0 %v6642
  %v6761 = vpop.f32.mrb[0].mxu0
  %v6762 = vadd.f32 0.0, %v6761
  %v6763 = vpop.f32.mrb[0].mxu0
  %6764 = vmatprep.mubr.f32.mxu0 0.0
  %6765 = vmatmul.mubr.f32.gmra.mrb[0].mxu0 %v6644
  %v6766 = vpop.f32.mrb[0].mxu0
  %v6767 = vadd.f32 0.0, %v6766
  %v6768 = vpop.f32.mrb[0].mxu0
  %6769 = vmatprep.mubr.f32.mxu0 0.0
  %6770 = vmatmul.mubr.f32.gmra.mrb[0].mxu0 %v6646
  %v6771 = vpop.f32.mrb[0].mxu0
  %v6772 = vadd.f32 0.0, %v6771
  %v6773 = vpop.f32.mrb[0].mxu0
  %6774 = vmatprep.mubr.f32.mxu0 0.0
  %6775 = vmatmul.mubr.f32.gmra.mrb[0].mxu0 %v6648
  %v6776 = vpop.f32.mrb[0].mxu0
  %v6777 = vadd.f32 0.0, %v6776
  %v6778 = vpop.f32.mrb[0].mxu0
  %6779 = vmatprep.mubr.f32.mxu0 0.0
  %6780 = vmatmul.mubr.f32.gmra.mrb[0].mxu0 %v6650
  %v6781 = vpop.f32.mrb[0].mxu0
  %v6782 = vadd.f32 0.0, %v6781
  %v6783 = vpop.f32.mrb[0].mxu0
  %6784 = vmatprep.mubr.f32.mxu0 0.0
  %6785 = vmatmul.mubr.f32.gmra.mrb[0].mxu0 %v6652
  %v6786 = vpop.f32.mrb[0].mxu0
  %v6787 = vpop.f32.mrb[0].mxu0
  %6788 = vmatprep.mubr.f32.mxu0 0.0
  %6789 = vmatmul.mubr.f32.gmra.mrb[0].mxu0 %v6654
  %v6790 = vpop.f32.mrb[0].mxu0
  %v6791 = vpop.f32.mrb[0].mxu0
  %6792 = vmatprep.mubr.f32.mxu0 0.0
  %6793 = vmatmul.mubr.f32.gmra.mrb[0].mxu0 %v6656
  %v6794 = vpop.f32.mrb[0].mxu0
  %v6795 = vpop.f32.mrb[0].mxu0
  %6796 = vmatprep.mubr.f32.mxu0 0.0
  %6797 = vmatmul.mubr.f32.gmra.mrb[0].mxu0 %v6658
  %v6798 = vpop.f32.mrb[0].mxu0
  %v6799 = vpop.f32.mrb[0].mxu0
  %6800 = vmatprep.mubr.f32.mxu0 0.0
  %6801 = vmatmul.mubr.f32.gmra.mrb[0].mxu0 %v6660
  %v6802 = vpop.f32.mrb[0].mxu0
  %v6803 = vpop.f32.mrb[0].mxu0
  %6804 = vmatprep.mubr.f32.mxu0 0.0
  %6805 = vmatmul.mubr.f32.gmra.mrb[0].mxu0 %v6662
  %v6806 = vpop.f32.mrb[0].mxu0
  %v6807 = vpop.f32.mrb[0].mxu0
  %6808 = vmatprep.mubr.f32.mxu0 0.0
  %6809 = vmatmul.mubr.f32.gmra.mrb[0].mxu0 %v6664
  %v6810 = vpop.f32.mrb[0].mxu0
  %v6811 = vadd.f32 0.0, %v6810
  %v6812 = vpop.f32.mrb[0].mxu0
  %6813 = vmatprep.mubr.f32.mxu0 0.0
  %6814 = vmatmul.mubr.f32.gmra.mrb[0].mxu0 %v6666
  %v6815 = vpop.f32.mrb[0].mxu0
  %v6816 = vadd.f32 0.0, %v6815
  %v6817 = vpop.f32.mrb[0].mxu0
  %6818 = vmatprep.mubr.f32.mxu0 0.0
  %6819 = vmatmul.mubr.f32.gmra.mrb[0].mxu0 %v6668
  %v6820 = vpop.f32.mrb[0].mxu0
  %v6821 = vadd.f32 0.0, %v6820
  %v6822 = vpop.f32.mrb[0].mxu0
  %6823 = vmatprep.mubr.f32.mxu0 0.0
  %6824 = vmatmul.mubr.f32.gmra.mrb[0].mxu0 %v6670
  %v6825 = vpop.f32.mrb[0].mxu0
  %v6826 = vadd.f32 0.0, %v6825
  %v6827 = vpop.f32.mrb[0].mxu0
  %6828 = vmatprep.mubr.f32.mxu0 0.0
  %6829 = vmatmul.mubr.f32.gmra.mrb[0].mxu0 %v6672
  %v6830 = vpop.f32.mrb[0].mxu0
  %v6831 = vadd.f32 0.0, %v6830
  %v6832 = vpop.f32.mrb[0].mxu0
  %6833 = vmatprep.mubr.f32.mxu0 0.0
  %6834 = vmatmul.mubr.f32.gmra.mrb[0].mxu0 %v6674
  %v6835 = vpop.f32.mrb[0].mxu0
  %v6836 = vadd.f32 0.0, %v6835
  %v6837 = vpop.f32.mrb[0].mxu0
  %6838 = vmatprep.mubr.f32.mxu0 0.0
  %6839 = vmatmul.mubr.f32.gmra.mrb[0].mxu0 %v6676
  %v6840 = vpop.f32.mrb[0].mxu0
  %v6841 = vadd.f32 0.0, %v6840
  %v6842 = vpop.f32.mrb[0].mxu0
  %6843 = vmatprep.mubr.f32.mxu0 0.0
  %6844 = vmatmul.mubr.f32.gmra.mrb[0].mxu0 %v6678
  %v6845 = vpop.f32.mrb[0].mxu0
  %v6846 = vpop.f32.mrb[0].mxu0
  %6847 = vmatprep.mubr.f32.mxu0 0.0
  %6848 = vmatmul.mubr.f32.gmra.mrb[0].mxu0 %v6680
  %v6849 = vpop.f32.mrb[0].mxu0
  %v6850 = vpop.f32.mrb[0].mxu0
  %6851 = vmatprep.mubr.f32.mxu0 0.0
  %6852 = vmatmul.mubr.f32.gmra.mrb[0].mxu0 %v6682
  %v6853 = vpop.f32.mrb[0].mxu0
  %v6854 = vpop.f32.mrb[0].mxu0
  %6855 = vmatprep.mubr.f32.mxu0 0.0
  %6856 = vmatmul.mubr.f32.gmra.mrb[0].mxu0 %v6684
  %v6857 = vpop.f32.mrb[0].mxu0
  %v6858 = vpop.f32.mrb[0].mxu0
  %6859 = vmatprep.mubr.f32.mxu0 0.0
  %6860 = vmatmul.mubr.f32.gmra.mrb[0].mxu0 %v6686
  %v6861 = vpop.f32.mrb[0].mxu0
  %v6862 = vpop.f32.mrb[0].mxu0
  %6863 = vmatprep.mubr.f32.mxu0 0.0
  %6864 = vmatmul.mubr.f32.gmra.mrb[0].mxu0 %v6688
  %v6865 = vpop.f32.mrb[0].mxu0
  %v6866 = vpop.f32.mrb[0].mxu0
  %6867 = vdwg.mxu0
  %v6868 = vsel %vm5072, %v6511, 0
  %v6870 = vsel %vm5072, %v6512, 0
  %v6872 = vsel %vm5072, %v6513, 0
  %v6874 = vsel %vm5072, %v6514, 0
  %v6876 = vsel %vm5072, %v6515, 0
  %v6878 = vsel %vm5072, %v6516, 0
  %v6880 = vsel %vm5072, %v6517, 0
  %v6882 = vsel %vm5072, %v6518, 0
  %v6884 = vsel %vm5072, %v6519, 0
  %v6886 = vsel %vm5072, %v6520, 0
  %v6888 = vsel %vm5072, %v6521, 0
  %v6890 = vsel %vm5072, %v6522, 0
  %v6892 = vsel %vm5072, %v6523, 0
  %v6894 = vsel %vm5072, %v6524, 0
  %v6896 = vsel %vm5072, %v6525, 0
  %v6898 = vsel %vm5072, %v6526, 0
  %v6900 = vsel %vm5072, %v6527, 0
  %v6902 = vsel %vm5072, %v6528, 0
  %v6904 = vsel %vm5072, %v6529, 0
  %v6906 = vsel %vm5072, %v6530, 0
  %v6908 = vsel %vm5072, %v6531, 0
  %v6910 = vsel %vm5072, %v6532, 0
  %v6912 = vsel %vm5072, %v6533, 0
  %v6914 = vsel %vm5072, %v6534, 0
  %v6916 = vsel %vm5072, %v6535, 0
  %6918 = vmatprep.subr.mxu0 0.0
  %6919 = vmatpush1.msra.mxu0 %v6538
  %6920 = vmatprep.subr.mxu0 0.0
  %6921 = vmatpush1.msra.mxu0 %v6539
  %6922 = vmatprep.subr.mxu0 0.0
  %6923 = vmatpush1.msra.mxu0 %v6540
  %6924 = vmatprep.subr.mxu0 0.0
  %6925 = vmatpush1.msra.mxu0 %v6541
  %6926 = vmatprep.subr.mxu0 0.0
  %6927 = vmatpush1.msra.mxu0 %v6542
  %6928 = vmatprep.subr.mxu0 0.0
  %6929 = vmatpush1.msra.mxu0 %v6543
  %6930 = vmatprep.subr.mxu0 0.0
  %6931 = vmatpush1.msra.mxu0 %v6544
  %6932 = vmatprep.subr.mxu0 0.0
  %6933 = vmatpush1.msra.mxu0 %v6545
  %6934 = vmatprep.subr.mxu0 0.0
  %6935 = vmatpush1.msra.mxu0 %v6546
  %6936 = vmatprep.subr.mxu0 0.0
  %6937 = vmatpush1.msra.mxu0 %v6547
  %6938 = vmatprep.subr.mxu0 0.0
  %6939 = vmatpush1.msra.mxu0 %v6548
  %6940 = vmatprep.subr.mxu0 0.0
  %6941 = vmatpush1.msra.mxu0 %v6549
  %6942 = vmatprep.subr.mxu0 0.0
  %6943 = vmatpush1.msra.mxu0 0.0
  %6944 = vmatprep.subr.mxu0 0.0
  %6945 = vmatpush1.msra.mxu0 0.0
  %6946 = vmatprep.subr.mxu0 0.0
  %6947 = vmatpush1.msra.mxu0 0.0
  %6948 = vmatprep.subr.mxu0 0.0
  %6949 = vmatpush1.msra.mxu0 0.0
  %6950 = vmatprep.subr.mxu0 0.0
  %6951 = vmatpush1.msra.mxu0 0.0
  %6952 = vmatprep.subr.mxu0 0.0
  %6953 = vmatpush1.msra.mxu0 0.0
  %6954 = vmatprep.subr.mxu0 0.0
  %6955 = vmatpush1.msra.mxu0 0.0
  %6956 = vmatprep.subr.mxu0 0.0
  %6957 = vmatpush1.msra.mxu0 0.0
  %6958 = vmatprep.subr.mxu0 0.0
  %6959 = vmatpush1.msra.mxu0 0.0
  %6960 = vmatprep.subr.mxu0 0.0
  %6961 = vmatpush1.msra.mxu0 0.0
  %6962 = vmatprep.subr.mxu0 0.0
  %6963 = vmatpush1.msra.mxu0 0.0
  %6964 = vmatprep.subr.mxu0 0.0
  %6965 = vmatpush1.msra.mxu0 0.0
  %6966 = vmatprep.subr.mxu0 0.0
  %6967 = vmatpush1.msra.mxu0 0.0
  %6968 = vmatprep.subr.mxu0 0.0
  %6969 = vmatpush1.msra.mxu0 0.0
  %6970 = vmatprep.subr.mxu0 0.0
  %6971 = vmatpush1.msra.mxu0 0.0
  %6972 = vmatprep.subr.mxu0 0.0
  %6973 = vmatpush1.msra.mxu0 0.0
  %6974 = vmatprep.subr.mxu0 0.0
  %6975 = vmatpush1.msra.mxu0 0.0
  %6976 = vmatprep.subr.mxu0 0.0
  %6977 = vmatpush1.msra.mxu0 0.0
  %6978 = vmatprep.subr.mxu0 0.0
  %6979 = vmatpush1.msra.mxu0 0.0
  %6980 = vmatprep.subr.mxu0 0.0
  %6981 = vmatpush1.msra.mxu0 0.0
  %6982 = vmatprep.mubr.f32.mxu0 0.0
  %6983 = vmatmul.mubr.f32.gmra.mrb[0].mxu0 %v6868
  %v6984 = vpop.f32.mrb[0].mxu0
  %v6985 = vadd.f32 %v6757, %v6984
  %v6986 = vpop.f32.mrb[0].mxu0
  %6987 = vmatprep.mubr.f32.mxu0 0.0
  %6988 = vmatmul.mubr.f32.gmra.mrb[0].mxu0 %v6870
  %v6989 = vpop.f32.mrb[0].mxu0
  %v6990 = vadd.f32 %v6762, %v6989
  %v6991 = vpop.f32.mrb[0].mxu0
  %6992 = vmatprep.mubr.f32.mxu0 0.0
  %6993 = vmatmul.mubr.f32.gmra.mrb[0].mxu0 %v6872
  %v6994 = vpop.f32.mrb[0].mxu0
  %v6995 = vadd.f32 %v6767, %v6994
  %v6996 = vpop.f32.mrb[0].mxu0
  %6997 = vmatprep.mubr.f32.mxu0 0.0
  %6998 = vmatmul.mubr.f32.gmra.mrb[0].mxu0 %v6874
  %v6999 = vpop.f32.mrb[0].mxu0
  %v7000 = vadd.f32 %v6772, %v6999
  %v7001 = vpop.f32.mrb[0].mxu0
  %7002 = vmatprep.mubr.f32.mxu0 0.0
  %7003 = vmatmul.mubr.f32.gmra.mrb[0].mxu0 %v6876
  %v7004 = vpop.f32.mrb[0].mxu0
  %v7005 = vadd.f32 %v6777, %v7004
  %v7006 = vpop.f32.mrb[0].mxu0
  %7007 = vmatprep.mubr.f32.mxu0 0.0
  %7008 = vmatmul.mubr.f32.gmra.mrb[0].mxu0 %v6878
  %v7009 = vpop.f32.mrb[0].mxu0
  %v7010 = vadd.f32 %v6782, %v7009
  %v7011 = vpop.f32.mrb[0].mxu0
  %7012 = vmatprep.mubr.f32.mxu0 0.0
  %7013 = vmatmul.mubr.f32.gmra.mrb[0].mxu0 %v6880
  %v7014 = vpop.f32.mrb[0].mxu0
  %v7015 = vpop.f32.mrb[0].mxu0
  %7016 = vmatprep.mubr.f32.mxu0 0.0
  %7017 = vmatmul.mubr.f32.gmra.mrb[0].mxu0 %v6882
  %v7018 = vpop.f32.mrb[0].mxu0
  %v7019 = vpop.f32.mrb[0].mxu0
  %7020 = vmatprep.mubr.f32.mxu0 0.0
  %7021 = vmatmul.mubr.f32.gmra.mrb[0].mxu0 %v6884
  %v7022 = vpop.f32.mrb[0].mxu0
  %v7023 = vpop.f32.mrb[0].mxu0
  %7024 = vmatprep.mubr.f32.mxu0 0.0
  %7025 = vmatmul.mubr.f32.gmra.mrb[0].mxu0 %v6886
  %v7026 = vpop.f32.mrb[0].mxu0
  %v7027 = vpop.f32.mrb[0].mxu0
  %7028 = vmatprep.mubr.f32.mxu0 0.0
  %7029 = vmatmul.mubr.f32.gmra.mrb[0].mxu0 %v6888
  %v7030 = vpop.f32.mrb[0].mxu0
  %v7031 = vpop.f32.mrb[0].mxu0
  %7032 = vmatprep.mubr.f32.mxu0 0.0
  %7033 = vmatmul.mubr.f32.gmra.mrb[0].mxu0 %v6890
  %v7034 = vpop.f32.mrb[0].mxu0
  %v7035 = vpop.f32.mrb[0].mxu0
  %7036 = vmatprep.mubr.f32.mxu0 0.0
  %7037 = vmatmul.mubr.f32.gmra.mrb[0].mxu0 %v6892
  %v7038 = vpop.f32.mrb[0].mxu0
  %v7039 = vadd.f32 %v6811, %v7038
  %v7040 = vpop.f32.mrb[0].mxu0
  %7041 = vmatprep.mubr.f32.mxu0 0.0
  %7042 = vmatmul.mubr.f32.gmra.mrb[0].mxu0 %v6894
  %v7043 = vpop.f32.mrb[0].mxu0
  %v7044 = vadd.f32 %v6816, %v7043
  %v7045 = vpop.f32.mrb[0].mxu0
  %7046 = vmatprep.mubr.f32.mxu0 0.0
  %7047 = vmatmul.mubr.f32.gmra.mrb[0].mxu0 %v6896
  %v7048 = vpop.f32.mrb[0].mxu0
  %v7049 = vadd.f32 %v6821, %v7048
  %v7050 = vpop.f32.mrb[0].mxu0
  %7051 = vmatprep.mubr.f32.mxu0 0.0
  %7052 = vmatmul.mubr.f32.gmra.mrb[0].mxu0 %v6898
  %v7053 = vpop.f32.mrb[0].mxu0
  %v7054 = vadd.f32 %v6826, %v7053
  %v7055 = vpop.f32.mrb[0].mxu0
  %7056 = vmatprep.mubr.f32.mxu0 0.0
  %7057 = vmatmul.mubr.f32.gmra.mrb[0].mxu0 %v6900
  %v7058 = vpop.f32.mrb[0].mxu0
  %v7059 = vadd.f32 %v6831, %v7058
  %v7060 = vpop.f32.mrb[0].mxu0
  %7061 = vmatprep.mubr.f32.mxu0 0.0
  %7062 = vmatmul.mubr.f32.gmra.mrb[0].mxu0 %v6902
  %v7063 = vpop.f32.mrb[0].mxu0
  %v7064 = vadd.f32 %v6836, %v7063
  %v7065 = vpop.f32.mrb[0].mxu0
  %7066 = vmatprep.mubr.f32.mxu0 0.0
  %7067 = vmatmul.mubr.f32.gmra.mrb[0].mxu0 %v6904
  %v7068 = vpop.f32.mrb[0].mxu0
  %v7069 = vadd.f32 %v6841, %v7068
  %v7070 = vpop.f32.mrb[0].mxu0
  %7071 = vmatprep.mubr.f32.mxu0 0.0
  %7072 = vmatmul.mubr.f32.gmra.mrb[0].mxu0 %v6906
  %v7073 = vpop.f32.mrb[0].mxu0
  %v7074 = vpop.f32.mrb[0].mxu0
  %7075 = vmatprep.mubr.f32.mxu0 0.0
  %7076 = vmatmul.mubr.f32.gmra.mrb[0].mxu0 %v6908
  %v7077 = vpop.f32.mrb[0].mxu0
  %v7078 = vpop.f32.mrb[0].mxu0
  %7079 = vmatprep.mubr.f32.mxu0 0.0
  %7080 = vmatmul.mubr.f32.gmra.mrb[0].mxu0 %v6910
  %v7081 = vpop.f32.mrb[0].mxu0
  %v7082 = vpop.f32.mrb[0].mxu0
  %7083 = vmatprep.mubr.f32.mxu0 0.0
  %7084 = vmatmul.mubr.f32.gmra.mrb[0].mxu0 %v6912
  %v7085 = vpop.f32.mrb[0].mxu0
  %v7086 = vpop.f32.mrb[0].mxu0
  %7087 = vmatprep.mubr.f32.mxu0 0.0
  %7088 = vmatmul.mubr.f32.gmra.mrb[0].mxu0 %v6914
  %v7089 = vpop.f32.mrb[0].mxu0
  %v7090 = vpop.f32.mrb[0].mxu0
  %7091 = vmatprep.mubr.f32.mxu0 0.0
  %7092 = vmatmul.mubr.f32.gmra.mrb[0].mxu0 %v6916
  %v7093 = vpop.f32.mrb[0].mxu0
  %v7094 = vpop.f32.mrb[0].mxu0
  %7095 = vdwg.mxu0
  %s7096 = scalar_lea.vmem %s9, 192
  %v7097 = vld [vmem:[%s7096] sm:$0xff]
  %v7098 = vld [vmem:[%s7096 + $0x8] sm:$0xff]
  %v7099 = vld [vmem:[%s7096 + $0x10] sm:$0xff]
  %v7100 = vld [vmem:[%s7096 + $0x18] sm:$0xff]
  %v7101 = vld [vmem:[%s7096 + $0x20] sm:$0xff]
  %v7102 = vld [vmem:[%s7096 + $0x28] sm:$0xff]
  %v7103 = vld [vmem:[%s7096 + $0x30] sm:$0xff]
  %v7104 = vld [vmem:[%s7096 + $0x38] sm:$0xff]
  %v7105 = vld [vmem:[%s7096 + $0x40] sm:$0xff]
  %v7106 = vld [vmem:[%s7096 + $0x48] sm:$0xff]
  %v7107 = vld [vmem:[%s7096 + $0x50] sm:$0xff]
  %v7108 = vld [vmem:[%s7096 + $0x58] sm:$0xff]
  %v7110 = vrot.slane %v6512, 2
  %v7111 = vrot.slane %v6513, 2
  %v7112 = vsel %vm799, %v7110, %v7111
  %v7113 = vrot.slane %v6514, 2
  %v7114 = vsel %vm799, %v7111, %v7113
  %v7115 = vrot.slane %v6515, 2
  %v7116 = vsel %vm799, %v7113, %v7115
  %v7117 = vrot.slane %v6516, 2
  %v7118 = vsel %vm799, %v7115, %v7117
  %v7119 = vrot.slane %v6517, 2
  %v7120 = vsel %vm799, %v7117, %v7119
  %v7121 = vrot.slane %v6518, 2
  %v7122 = vsel %vm799, %v7119, %v7121
  %v7123 = vrot.slane %v6519, 2
  %v7124 = vsel %vm799, %v7121, %v7123
  %v7125 = vrot.slane %v6520, 2
  %v7126 = vsel %vm799, %v7123, %v7125
  %v7127 = vrot.slane %v6521, 2
  %v7128 = vsel %vm799, %v7125, %v7127
  %v7129 = vrot.slane %v6522, 2
  %v7130 = vsel %vm799, %v7127, %v7129
  %v7131 = vrot.slane %v6523, 2
  %v7132 = vsel %vm799, %v7129, %v7131
  %v7133 = vrot.slane %v6524, 2
  %v7134 = vsel %vm799, %v7131, %v7133
  %v7135 = vrot.slane %v6525, 2
  %v7136 = vsel %vm799, %v7133, %v7135
  %v7137 = vrot.slane %v6526, 2
  %v7138 = vsel %vm799, %v7135, %v7137
  %v7139 = vrot.slane %v6527, 2
  %v7140 = vsel %vm799, %v7137, %v7139
  %v7141 = vrot.slane %v6528, 2
  %v7142 = vsel %vm799, %v7139, %v7141
  %v7143 = vrot.slane %v6529, 2
  %v7144 = vsel %vm799, %v7141, %v7143
  %v7145 = vrot.slane %v6530, 2
  %v7146 = vsel %vm799, %v7143, %v7145
  %v7147 = vrot.slane %v6531, 2
  %v7148 = vsel %vm799, %v7145, %v7147
  %v7149 = vrot.slane %v6532, 2
  %v7150 = vsel %vm799, %v7147, %v7149
  %v7151 = vrot.slane %v6533, 2
  %v7152 = vsel %vm799, %v7149, %v7151
  %v7153 = vrot.slane %v6534, 2
  %v7154 = vsel %vm799, %v7151, %v7153
  %v7155 = vrot.slane %v6535, 2
  %v7156 = vsel %vm799, %v7153, %v7155
  %v7157 = vrot.slane %v6536, 2
  %v7158 = vsel %vm799, %v7155, %v7157
  %v7159 = vrot.slane %v6537, 2
  %v7160 = vsel %vm799, %v7157, %v7159
  %v7161 = vsel %vm5072, %v7112, 0
  %v7163 = vsel %vm5072, %v7114, 0
  %v7165 = vsel %vm5072, %v7116, 0
  %v7167 = vsel %vm5072, %v7118, 0
  %v7169 = vsel %vm5072, %v7120, 0
  %v7171 = vsel %vm5072, %v7122, 0
  %v7173 = vsel %vm5072, %v7124, 0
  %v7175 = vsel %vm5072, %v7126, 0
  %v7177 = vsel %vm5072, %v7128, 0
  %v7179 = vsel %vm5072, %v7130, 0
  %v7181 = vsel %vm5072, %v7132, 0
  %v7183 = vsel %vm5072, %v7134, 0
  %v7185 = vsel %vm5072, %v7136, 0
  %v7187 = vsel %vm5072, %v7138, 0
  %v7189 = vsel %vm5072, %v7140, 0
  %v7191 = vsel %vm5072, %v7142, 0
  %v7193 = vsel %vm5072, %v7144, 0
  %v7195 = vsel %vm5072, %v7146, 0
  %v7197 = vsel %vm5072, %v7148, 0
  %v7199 = vsel %vm5072, %v7150, 0
  %v7201 = vsel %vm5072, %v7152, 0
  %v7203 = vsel %vm5072, %v7154, 0
  %v7205 = vsel %vm5072, %v7156, 0
  %v7207 = vsel %vm5072, %v7158, 0
  %v7209 = vsel %vm5072, %v7160, 0
  %7211 = vmatprep.subr.mxu0 0.0
  %7212 = vmatpush1.msra.mxu0 %v7097
  %7213 = vmatprep.subr.mxu0 0.0
  %7214 = vmatpush1.msra.mxu0 %v7098
  %7215 = vmatprep.subr.mxu0 0.0
  %7216 = vmatpush1.msra.mxu0 %v7099
  %7217 = vmatprep.subr.mxu0 0.0
  %7218 = vmatpush1.msra.mxu0 %v7100
  %7219 = vmatprep.subr.mxu0 0.0
  %7220 = vmatpush1.msra.mxu0 %v7101
  %7221 = vmatprep.subr.mxu0 0.0
  %7222 = vmatpush1.msra.mxu0 %v7102
  %7223 = vmatprep.subr.mxu0 0.0
  %7224 = vmatpush1.msra.mxu0 %v7103
  %7225 = vmatprep.subr.mxu0 0.0
  %7226 = vmatpush1.msra.mxu0 %v7104
  %7227 = vmatprep.subr.mxu0 0.0
  %7228 = vmatpush1.msra.mxu0 %v7105
  %7229 = vmatprep.subr.mxu0 0.0
  %7230 = vmatpush1.msra.mxu0 %v7106
  %7231 = vmatprep.subr.mxu0 0.0
  %7232 = vmatpush1.msra.mxu0 %v7107
  %7233 = vmatprep.subr.mxu0 0.0
  %7234 = vmatpush1.msra.mxu0 %v7108
  %7235 = vmatprep.subr.mxu0 0.0
  %7236 = vmatpush1.msra.mxu0 0.0
  %7237 = vmatprep.subr.mxu0 0.0
  %7238 = vmatpush1.msra.mxu0 0.0
  %7239 = vmatprep.subr.mxu0 0.0
  %7240 = vmatpush1.msra.mxu0 0.0
  %7241 = vmatprep.subr.mxu0 0.0
  %7242 = vmatpush1.msra.mxu0 0.0
  %7243 = vmatprep.subr.mxu0 0.0
  %7244 = vmatpush1.msra.mxu0 0.0
  %7245 = vmatprep.subr.mxu0 0.0
  %7246 = vmatpush1.msra.mxu0 0.0
  %7247 = vmatprep.subr.mxu0 0.0
  %7248 = vmatpush1.msra.mxu0 0.0
  %7249 = vmatprep.subr.mxu0 0.0
  %7250 = vmatpush1.msra.mxu0 0.0
  %7251 = vmatprep.subr.mxu0 0.0
  %7252 = vmatpush1.msra.mxu0 0.0
  %7253 = vmatprep.subr.mxu0 0.0
  %7254 = vmatpush1.msra.mxu0 0.0
  %7255 = vmatprep.subr.mxu0 0.0
  %7256 = vmatpush1.msra.mxu0 0.0
  %7257 = vmatprep.subr.mxu0 0.0
  %7258 = vmatpush1.msra.mxu0 0.0
  %7259 = vmatprep.subr.mxu0 0.0
  %7260 = vmatpush1.msra.mxu0 0.0
  %7261 = vmatprep.subr.mxu0 0.0
  %7262 = vmatpush1.msra.mxu0 0.0
  %7263 = vmatprep.subr.mxu0 0.0
  %7264 = vmatpush1.msra.mxu0 0.0
  %7265 = vmatprep.subr.mxu0 0.0
  %7266 = vmatpush1.msra.mxu0 0.0
  %7267 = vmatprep.subr.mxu0 0.0
  %7268 = vmatpush1.msra.mxu0 0.0
  %7269 = vmatprep.subr.mxu0 0.0
  %7270 = vmatpush1.msra.mxu0 0.0
  %7271 = vmatprep.subr.mxu0 0.0
  %7272 = vmatpush1.msra.mxu0 0.0
  %7273 = vmatprep.subr.mxu0 0.0
  %7274 = vmatpush1.msra.mxu0 0.0
  %7275 = vmatprep.mubr.f32.mxu0 0.0
  %7276 = vmatmul.mubr.f32.gmra.mrb[0].mxu0 %v7161
  %v7277 = vpop.f32.mrb[0].mxu0
  %v7278 = vadd.f32 0.0, %v7277
  %v7279 = vpop.f32.mrb[0].mxu0
  %7280 = vmatprep.mubr.f32.mxu0 0.0
  %7281 = vmatmul.mubr.f32.gmra.mrb[0].mxu0 %v7163
  %v7282 = vpop.f32.mrb[0].mxu0
  %v7283 = vadd.f32 0.0, %v7282
  %v7284 = vpop.f32.mrb[0].mxu0
  %7285 = vmatprep.mubr.f32.mxu0 0.0
  %7286 = vmatmul.mubr.f32.gmra.mrb[0].mxu0 %v7165
  %v7287 = vpop.f32.mrb[0].mxu0
  %v7288 = vadd.f32 0.0, %v7287
  %v7289 = vpop.f32.mrb[0].mxu0
  %7290 = vmatprep.mubr.f32.mxu0 0.0
  %7291 = vmatmul.mubr.f32.gmra.mrb[0].mxu0 %v7167
  %v7292 = vpop.f32.mrb[0].mxu0
  %v7293 = vadd.f32 0.0, %v7292
  %v7294 = vpop.f32.mrb[0].mxu0
  %7295 = vmatprep.mubr.f32.mxu0 0.0
  %7296 = vmatmul.mubr.f32.gmra.mrb[0].mxu0 %v7169
  %v7297 = vpop.f32.mrb[0].mxu0
  %v7298 = vadd.f32 0.0, %v7297
  %v7299 = vpop.f32.mrb[0].mxu0
  %7300 = vmatprep.mubr.f32.mxu0 0.0
  %7301 = vmatmul.mubr.f32.gmra.mrb[0].mxu0 %v7171
  %v7302 = vpop.f32.mrb[0].mxu0
  %v7303 = vadd.f32 0.0, %v7302
  %v7304 = vpop.f32.mrb[0].mxu0
  %7305 = vmatprep.mubr.f32.mxu0 0.0
  %7306 = vmatmul.mubr.f32.gmra.mrb[0].mxu0 %v7173
  %v7307 = vpop.f32.mrb[0].mxu0
  %v7308 = vpop.f32.mrb[0].mxu0
  %7309 = vmatprep.mubr.f32.mxu0 0.0
  %7310 = vmatmul.mubr.f32.gmra.mrb[0].mxu0 %v7175
  %v7311 = vpop.f32.mrb[0].mxu0
  %v7312 = vpop.f32.mrb[0].mxu0
  %7313 = vmatprep.mubr.f32.mxu0 0.0
  %7314 = vmatmul.mubr.f32.gmra.mrb[0].mxu0 %v7177
  %v7315 = vpop.f32.mrb[0].mxu0
  %v7316 = vpop.f32.mrb[0].mxu0
  %7317 = vmatprep.mubr.f32.mxu0 0.0
  %7318 = vmatmul.mubr.f32.gmra.mrb[0].mxu0 %v7179
  %v7319 = vpop.f32.mrb[0].mxu0
  %v7320 = vpop.f32.mrb[0].mxu0
  %7321 = vmatprep.mubr.f32.mxu0 0.0
  %7322 = vmatmul.mubr.f32.gmra.mrb[0].mxu0 %v7181
  %v7323 = vpop.f32.mrb[0].mxu0
  %v7324 = vpop.f32.mrb[0].mxu0
  %7325 = vmatprep.mubr.f32.mxu0 0.0
  %7326 = vmatmul.mubr.f32.gmra.mrb[0].mxu0 %v7183
  %v7327 = vpop.f32.mrb[0].mxu0
  %v7328 = vpop.f32.mrb[0].mxu0
  %7329 = vmatprep.mubr.f32.mxu0 0.0
  %7330 = vmatmul.mubr.f32.gmra.mrb[0].mxu0 %v7185
  %v7331 = vpop.f32.mrb[0].mxu0
  %v7332 = vadd.f32 0.0, %v7331
  %v7333 = vpop.f32.mrb[0].mxu0
  %7334 = vmatprep.mubr.f32.mxu0 0.0
  %7335 = vmatmul.mubr.f32.gmra.mrb[0].mxu0 %v7187
  %v7336 = vpop.f32.mrb[0].mxu0
  %v7337 = vadd.f32 0.0, %v7336
  %v7338 = vpop.f32.mrb[0].mxu0
  %7339 = vmatprep.mubr.f32.mxu0 0.0
  %7340 = vmatmul.mubr.f32.gmra.mrb[0].mxu0 %v7189
  %v7341 = vpop.f32.mrb[0].mxu0
  %v7342 = vadd.f32 0.0, %v7341
  %v7343 = vpop.f32.mrb[0].mxu0
  %7344 = vmatprep.mubr.f32.mxu0 0.0
  %7345 = vmatmul.mubr.f32.gmra.mrb[0].mxu0 %v7191
  %v7346 = vpop.f32.mrb[0].mxu0
  %v7347 = vadd.f32 0.0, %v7346
  %v7348 = vpop.f32.mrb[0].mxu0
  %7349 = vmatprep.mubr.f32.mxu0 0.0
  %7350 = vmatmul.mubr.f32.gmra.mrb[0].mxu0 %v7193
  %v7351 = vpop.f32.mrb[0].mxu0
  %v7352 = vadd.f32 0.0, %v7351
  %v7353 = vpop.f32.mrb[0].mxu0
  %7354 = vmatprep.mubr.f32.mxu0 0.0
  %7355 = vmatmul.mubr.f32.gmra.mrb[0].mxu0 %v7195
  %v7356 = vpop.f32.mrb[0].mxu0
  %v7357 = vadd.f32 0.0, %v7356
  %v7358 = vpop.f32.mrb[0].mxu0
  %7359 = vmatprep.mubr.f32.mxu0 0.0
  %7360 = vmatmul.mubr.f32.gmra.mrb[0].mxu0 %v7197
  %v7361 = vpop.f32.mrb[0].mxu0
  %v7362 = vadd.f32 0.0, %v7361
  %v7363 = vpop.f32.mrb[0].mxu0
  %7364 = vmatprep.mubr.f32.mxu0 0.0
  %7365 = vmatmul.mubr.f32.gmra.mrb[0].mxu0 %v7199
  %v7366 = vpop.f32.mrb[0].mxu0
  %v7367 = vpop.f32.mrb[0].mxu0
  %7368 = vmatprep.mubr.f32.mxu0 0.0
  %7369 = vmatmul.mubr.f32.gmra.mrb[0].mxu0 %v7201
  %v7370 = vpop.f32.mrb[0].mxu0
  %v7371 = vpop.f32.mrb[0].mxu0
  %7372 = vmatprep.mubr.f32.mxu0 0.0
  %7373 = vmatmul.mubr.f32.gmra.mrb[0].mxu0 %v7203
  %v7374 = vpop.f32.mrb[0].mxu0
  %v7375 = vpop.f32.mrb[0].mxu0
  %7376 = vmatprep.mubr.f32.mxu0 0.0
  %7377 = vmatmul.mubr.f32.gmra.mrb[0].mxu0 %v7205
  %v7378 = vpop.f32.mrb[0].mxu0
  %v7379 = vpop.f32.mrb[0].mxu0
  %7380 = vmatprep.mubr.f32.mxu0 0.0
  %7381 = vmatmul.mubr.f32.gmra.mrb[0].mxu0 %v7207
  %v7382 = vpop.f32.mrb[0].mxu0
  %v7383 = vpop.f32.mrb[0].mxu0
  %7384 = vmatprep.mubr.f32.mxu0 0.0
  %7385 = vmatmul.mubr.f32.gmra.mrb[0].mxu0 %v7209
  %v7386 = vpop.f32.mrb[0].mxu0
  %v7387 = vpop.f32.mrb[0].mxu0
  %7388 = vdwg.mxu0
  %v7389 = vadd.f32 %v6985, %v7278
  %v7390 = vadd.f32 %v6990, %v7283
  %v7391 = vadd.f32 %v6995, %v7288
  %v7392 = vadd.f32 %v7000, %v7293
  %v7393 = vadd.f32 %v7005, %v7298
  %v7394 = vadd.f32 %v7010, %v7303
  %v7395 = vadd.f32 %v7039, %v7332
  %v7396 = vadd.f32 %v7044, %v7337
  %v7397 = vadd.f32 %v7049, %v7342
  %v7398 = vadd.f32 %v7054, %v7347
  %v7399 = vadd.f32 %v7059, %v7352
  %v7400 = vadd.f32 %v7064, %v7357
  %v7401 = vadd.f32 %v7069, %v7362
  %s7402 = scalar_lea.vmem %s9, 288
  %v7403 = vld [vmem:[%s7402] sm:$0xff]
  %v7404 = vld [vmem:[%s7402 + $0x8] sm:$0xff]
  %v7405 = vld [vmem:[%s7402 + $0x10] sm:$0xff]
  %v7406 = vld [vmem:[%s7402 + $0x18] sm:$0xff]
  %v7407 = vld [vmem:[%s7402 + $0x20] sm:$0xff]
  %v7408 = vld [vmem:[%s7402 + $0x28] sm:$0xff]
  %v7409 = vld [vmem:[%s7402 + $0x30] sm:$0xff]
  %v7410 = vld [vmem:[%s7402 + $0x38] sm:$0xff]
  %v7411 = vld [vmem:[%s7402 + $0x40] sm:$0xff]
  %v7412 = vld [vmem:[%s7402 + $0x48] sm:$0xff]
  %v7413 = vld [vmem:[%s7402 + $0x50] sm:$0xff]
  %v7414 = vld [vmem:[%s7402 + $0x58] sm:$0xff]
  %v7415 = vrot.slane %v6512, 3
  %v7416 = vrot.slane %v6513, 3
  %v7417 = vsel %vm1202, %v7415, %v7416
  %v7418 = vrot.slane %v6514, 3
  %v7419 = vsel %vm1202, %v7416, %v7418
  %v7420 = vrot.slane %v6515, 3
  %v7421 = vsel %vm1202, %v7418, %v7420
  %v7422 = vrot.slane %v6516, 3
  %v7423 = vsel %vm1202, %v7420, %v7422
  %v7424 = vrot.slane %v6517, 3
  %v7425 = vsel %vm1202, %v7422, %v7424
  %v7426 = vrot.slane %v6518, 3
  %v7427 = vsel %vm1202, %v7424, %v7426
  %v7428 = vrot.slane %v6519, 3
  %v7429 = vsel %vm1202, %v7426, %v7428
  %v7430 = vrot.slane %v6520, 3
  %v7431 = vsel %vm1202, %v7428, %v7430
  %v7432 = vrot.slane %v6521, 3
  %v7433 = vsel %vm1202, %v7430, %v7432
  %v7434 = vrot.slane %v6522, 3
  %v7435 = vsel %vm1202, %v7432, %v7434
  %v7436 = vrot.slane %v6523, 3
  %v7437 = vsel %vm1202, %v7434, %v7436
  %v7438 = vrot.slane %v6524, 3
  %v7439 = vsel %vm1202, %v7436, %v7438
  %v7440 = vrot.slane %v6525, 3
  %v7441 = vsel %vm1202, %v7438, %v7440
  %v7442 = vrot.slane %v6526, 3
  %v7443 = vsel %vm1202, %v7440, %v7442
  %v7444 = vrot.slane %v6527, 3
  %v7445 = vsel %vm1202, %v7442, %v7444
  %v7446 = vrot.slane %v6528, 3
  %v7447 = vsel %vm1202, %v7444, %v7446
  %v7448 = vrot.slane %v6529, 3
  %v7449 = vsel %vm1202, %v7446, %v7448
  %v7450 = vrot.slane %v6530, 3
  %v7451 = vsel %vm1202, %v7448, %v7450
  %v7452 = vrot.slane %v6531, 3
  %v7453 = vsel %vm1202, %v7450, %v7452
  %v7454 = vrot.slane %v6532, 3
  %v7455 = vsel %vm1202, %v7452, %v7454
  %v7456 = vrot.slane %v6533, 3
  %v7457 = vsel %vm1202, %v7454, %v7456
  %v7458 = vrot.slane %v6534, 3
  %v7459 = vsel %vm1202, %v7456, %v7458
  %v7460 = vrot.slane %v6535, 3
  %v7461 = vsel %vm1202, %v7458, %v7460
  %v7462 = vrot.slane %v6536, 3
  %v7463 = vsel %vm1202, %v7460, %v7462
  %v7464 = vrot.slane %v6537, 3
  %v7465 = vsel %vm1202, %v7462, %v7464
  %v7466 = vsel %vm5072, %v7417, 0
  %v7468 = vsel %vm5072, %v7419, 0
  %v7470 = vsel %vm5072, %v7421, 0
  %v7472 = vsel %vm5072, %v7423, 0
  %v7474 = vsel %vm5072, %v7425, 0
  %v7476 = vsel %vm5072, %v7427, 0
  %v7478 = vsel %vm5072, %v7429, 0
  %v7480 = vsel %vm5072, %v7431, 0
  %v7482 = vsel %vm5072, %v7433, 0
  %v7484 = vsel %vm5072, %v7435, 0
  %v7486 = vsel %vm5072, %v7437, 0
  %v7488 = vsel %vm5072, %v7439, 0
  %v7490 = vsel %vm5072, %v7441, 0
  %v7492 = vsel %vm5072, %v7443, 0
  %v7494 = vsel %vm5072, %v7445, 0
  %v7496 = vsel %vm5072, %v7447, 0
  %v7498 = vsel %vm5072, %v7449, 0
  %v7500 = vsel %vm5072, %v7451, 0
  %v7502 = vsel %vm5072, %v7453, 0
  %v7504 = vsel %vm5072, %v7455, 0
  %v7506 = vsel %vm5072, %v7457, 0
  %v7508 = vsel %vm5072, %v7459, 0
  %v7510 = vsel %vm5072, %v7461, 0
  %v7512 = vsel %vm5072, %v7463, 0
  %v7514 = vsel %vm5072, %v7465, 0
  %7516 = vmatprep.subr.mxu0 0.0
  %7517 = vmatpush1.msra.mxu0 %v7403
  %7518 = vmatprep.subr.mxu0 0.0
  %7519 = vmatpush1.msra.mxu0 %v7404
  %7520 = vmatprep.subr.mxu0 0.0
  %7521 = vmatpush1.msra.mxu0 %v7405
  %7522 = vmatprep.subr.mxu0 0.0
  %7523 = vmatpush1.msra.mxu0 %v7406
  %7524 = vmatprep.subr.mxu0 0.0
  %7525 = vmatpush1.msra.mxu0 %v7407
  %7526 = vmatprep.subr.mxu0 0.0
  %7527 = vmatpush1.msra.mxu0 %v7408
  %7528 = vmatprep.subr.mxu0 0.0
  %7529 = vmatpush1.msra.mxu0 %v7409
  %7530 = vmatprep.subr.mxu0 0.0
  %7531 = vmatpush1.msra.mxu0 %v7410
  %7532 = vmatprep.subr.mxu0 0.0
  %7533 = vmatpush1.msra.mxu0 %v7411
  %7534 = vmatprep.subr.mxu0 0.0
  %7535 = vmatpush1.msra.mxu0 %v7412
  %7536 = vmatprep.subr.mxu0 0.0
  %7537 = vmatpush1.msra.mxu0 %v7413
  %7538 = vmatprep.subr.mxu0 0.0
  %7539 = vmatpush1.msra.mxu0 %v7414
  %7540 = vmatprep.subr.mxu0 0.0
  %7541 = vmatpush1.msra.mxu0 0.0
  %7542 = vmatprep.subr.mxu0 0.0
  %7543 = vmatpush1.msra.mxu0 0.0
  %7544 = vmatprep.subr.mxu0 0.0
  %7545 = vmatpush1.msra.mxu0 0.0
  %7546 = vmatprep.subr.mxu0 0.0
  %7547 = vmatpush1.msra.mxu0 0.0
  %7548 = vmatprep.subr.mxu0 0.0
  %7549 = vmatpush1.msra.mxu0 0.0
  %7550 = vmatprep.subr.mxu0 0.0
  %7551 = vmatpush1.msra.mxu0 0.0
  %7552 = vmatprep.subr.mxu0 0.0
  %7553 = vmatpush1.msra.mxu0 0.0
  %7554 = vmatprep.subr.mxu0 0.0
  %7555 = vmatpush1.msra.mxu0 0.0
  %7556 = vmatprep.subr.mxu0 0.0
  %7557 = vmatpush1.msra.mxu0 0.0
  %7558 = vmatprep.subr.mxu0 0.0
  %7559 = vmatpush1.msra.mxu0 0.0
  %7560 = vmatprep.subr.mxu0 0.0
  %7561 = vmatpush1.msra.mxu0 0.0
  %7562 = vmatprep.subr.mxu0 0.0
  %7563 = vmatpush1.msra.mxu0 0.0
  %7564 = vmatprep.subr.mxu0 0.0
  %7565 = vmatpush1.msra.mxu0 0.0
  %7566 = vmatprep.subr.mxu0 0.0
  %7567 = vmatpush1.msra.mxu0 0.0
  %7568 = vmatprep.subr.mxu0 0.0
  %7569 = vmatpush1.msra.mxu0 0.0
  %7570 = vmatprep.subr.mxu0 0.0
  %7571 = vmatpush1.msra.mxu0 0.0
  %7572 = vmatprep.subr.mxu0 0.0
  %7573 = vmatpush1.msra.mxu0 0.0
  %7574 = vmatprep.subr.mxu0 0.0
  %7575 = vmatpush1.msra.mxu0 0.0
  %7576 = vmatprep.subr.mxu0 0.0
  %7577 = vmatpush1.msra.mxu0 0.0
  %7578 = vmatprep.subr.mxu0 0.0
  %7579 = vmatpush1.msra.mxu0 0.0
  %7580 = vmatprep.mubr.f32.mxu0 0.0
  %7581 = vmatmul.mubr.f32.gmra.mrb[0].mxu0 %v7466
  %v7582 = vpop.f32.mrb[0].mxu0
  %v7583 = vadd.f32 0.0, %v7582
  %v7584 = vpop.f32.mrb[0].mxu0
  %7585 = vmatprep.mubr.f32.mxu0 0.0
  %7586 = vmatmul.mubr.f32.gmra.mrb[0].mxu0 %v7468
  %v7587 = vpop.f32.mrb[0].mxu0
  %v7588 = vadd.f32 0.0, %v7587
  %v7589 = vpop.f32.mrb[0].mxu0
  %7590 = vmatprep.mubr.f32.mxu0 0.0
  %7591 = vmatmul.mubr.f32.gmra.mrb[0].mxu0 %v7470
  %v7592 = vpop.f32.mrb[0].mxu0
  %v7593 = vadd.f32 0.0, %v7592
  %v7594 = vpop.f32.mrb[0].mxu0
  %7595 = vmatprep.mubr.f32.mxu0 0.0
  %7596 = vmatmul.mubr.f32.gmra.mrb[0].mxu0 %v7472
  %v7597 = vpop.f32.mrb[0].mxu0
  %v7598 = vadd.f32 0.0, %v7597
  %v7599 = vpop.f32.mrb[0].mxu0
  %7600 = vmatprep.mubr.f32.mxu0 0.0
  %7601 = vmatmul.mubr.f32.gmra.mrb[0].mxu0 %v7474
  %v7602 = vpop.f32.mrb[0].mxu0
  %v7603 = vadd.f32 0.0, %v7602
  %v7604 = vpop.f32.mrb[0].mxu0
  %7605 = vmatprep.mubr.f32.mxu0 0.0
  %7606 = vmatmul.mubr.f32.gmra.mrb[0].mxu0 %v7476
  %v7607 = vpop.f32.mrb[0].mxu0
  %v7608 = vadd.f32 0.0, %v7607
  %v7609 = vpop.f32.mrb[0].mxu0
  %7610 = vmatprep.mubr.f32.mxu0 0.0
  %7611 = vmatmul.mubr.f32.gmra.mrb[0].mxu0 %v7478
  %v7612 = vpop.f32.mrb[0].mxu0
  %v7613 = vpop.f32.mrb[0].mxu0
  %7614 = vmatprep.mubr.f32.mxu0 0.0
  %7615 = vmatmul.mubr.f32.gmra.mrb[0].mxu0 %v7480
  %v7616 = vpop.f32.mrb[0].mxu0
  %v7617 = vpop.f32.mrb[0].mxu0
  %7618 = vmatprep.mubr.f32.mxu0 0.0
  %7619 = vmatmul.mubr.f32.gmra.mrb[0].mxu0 %v7482
  %v7620 = vpop.f32.mrb[0].mxu0
  %v7621 = vpop.f32.mrb[0].mxu0
  %7622 = vmatprep.mubr.f32.mxu0 0.0
  %7623 = vmatmul.mubr.f32.gmra.mrb[0].mxu0 %v7484
  %v7624 = vpop.f32.mrb[0].mxu0
  %v7625 = vpop.f32.mrb[0].mxu0
  %7626 = vmatprep.mubr.f32.mxu0 0.0
  %7627 = vmatmul.mubr.f32.gmra.mrb[0].mxu0 %v7486
  %v7628 = vpop.f32.mrb[0].mxu0
  %v7629 = vpop.f32.mrb[0].mxu0
  %7630 = vmatprep.mubr.f32.mxu0 0.0
  %7631 = vmatmul.mubr.f32.gmra.mrb[0].mxu0 %v7488
  %v7632 = vpop.f32.mrb[0].mxu0
  %v7633 = vpop.f32.mrb[0].mxu0
  %7634 = vmatprep.mubr.f32.mxu0 0.0
  %7635 = vmatmul.mubr.f32.gmra.mrb[0].mxu0 %v7490
  %v7636 = vpop.f32.mrb[0].mxu0
  %v7637 = vadd.f32 0.0, %v7636
  %v7638 = vpop.f32.mrb[0].mxu0
  %7639 = vmatprep.mubr.f32.mxu0 0.0
  %7640 = vmatmul.mubr.f32.gmra.mrb[0].mxu0 %v7492
  %v7641 = vpop.f32.mrb[0].mxu0
  %v7642 = vadd.f32 0.0, %v7641
  %v7643 = vpop.f32.mrb[0].mxu0
  %7644 = vmatprep.mubr.f32.mxu0 0.0
  %7645 = vmatmul.mubr.f32.gmra.mrb[0].mxu0 %v7494
  %v7646 = vpop.f32.mrb[0].mxu0
  %v7647 = vadd.f32 0.0, %v7646
  %v7648 = vpop.f32.mrb[0].mxu0
  %7649 = vmatprep.mubr.f32.mxu0 0.0
  %7650 = vmatmul.mubr.f32.gmra.mrb[0].mxu0 %v7496
  %v7651 = vpop.f32.mrb[0].mxu0
  %v7652 = vadd.f32 0.0, %v7651
  %v7653 = vpop.f32.mrb[0].mxu0
  %7654 = vmatprep.mubr.f32.mxu0 0.0
  %7655 = vmatmul.mubr.f32.gmra.mrb[0].mxu0 %v7498
  %v7656 = vpop.f32.mrb[0].mxu0
  %v7657 = vadd.f32 0.0, %v7656
  %v7658 = vpop.f32.mrb[0].mxu0
  %7659 = vmatprep.mubr.f32.mxu0 0.0
  %7660 = vmatmul.mubr.f32.gmra.mrb[0].mxu0 %v7500
  %v7661 = vpop.f32.mrb[0].mxu0
  %v7662 = vadd.f32 0.0, %v7661
  %v7663 = vpop.f32.mrb[0].mxu0
  %7664 = vmatprep.mubr.f32.mxu0 0.0
  %7665 = vmatmul.mubr.f32.gmra.mrb[0].mxu0 %v7502
  %v7666 = vpop.f32.mrb[0].mxu0
  %v7667 = vadd.f32 0.0, %v7666
  %v7668 = vpop.f32.mrb[0].mxu0
  %7669 = vmatprep.mubr.f32.mxu0 0.0
  %7670 = vmatmul.mubr.f32.gmra.mrb[0].mxu0 %v7504
  %v7671 = vpop.f32.mrb[0].mxu0
  %v7672 = vpop.f32.mrb[0].mxu0
  %7673 = vmatprep.mubr.f32.mxu0 0.0
  %7674 = vmatmul.mubr.f32.gmra.mrb[0].mxu0 %v7506
  %v7675 = vpop.f32.mrb[0].mxu0
  %v7676 = vpop.f32.mrb[0].mxu0
  %7677 = vmatprep.mubr.f32.mxu0 0.0
  %7678 = vmatmul.mubr.f32.gmra.mrb[0].mxu0 %v7508
  %v7679 = vpop.f32.mrb[0].mxu0
  %v7680 = vpop.f32.mrb[0].mxu0
  %7681 = vmatprep.mubr.f32.mxu0 0.0
  %7682 = vmatmul.mubr.f32.gmra.mrb[0].mxu0 %v7510
  %v7683 = vpop.f32.mrb[0].mxu0
  %v7684 = vpop.f32.mrb[0].mxu0
  %7685 = vmatprep.mubr.f32.mxu0 0.0
  %7686 = vmatmul.mubr.f32.gmra.mrb[0].mxu0 %v7512
  %v7687 = vpop.f32.mrb[0].mxu0
  %v7688 = vpop.f32.mrb[0].mxu0
  %7689 = vmatprep.mubr.f32.mxu0 0.0
  %7690 = vmatmul.mubr.f32.gmra.mrb[0].mxu0 %v7514
  %v7691 = vpop.f32.mrb[0].mxu0
  %v7692 = vpop.f32.mrb[0].mxu0
  %7693 = vdwg.mxu0
  %v7694 = vadd.f32 %v7389, %v7583
  %v7695 = vadd.f32 %v7390, %v7588
  %v7696 = vadd.f32 %v7391, %v7593
  %v7697 = vadd.f32 %v7392, %v7598
  %v7698 = vadd.f32 %v7393, %v7603
  %v7699 = vadd.f32 %v7394, %v7608
  %v7700 = vadd.f32 %v7395, %v7637
  %v7701 = vadd.f32 %v7396, %v7642
  %v7702 = vadd.f32 %v7397, %v7647
  %v7703 = vadd.f32 %v7398, %v7652
  %v7704 = vadd.f32 %v7399, %v7657
  %v7705 = vadd.f32 %v7400, %v7662
  %v7706 = vadd.f32 %v7401, %v7667
  %v7707 = vld [vmem:[%s10] sm:$0x1]
  %v7709 = vlaneseq
  %v7710 = vshrl.u32 %v7709, 7
  %v7711 = vsub.s32 0, %v7710
  %v7712 = vrot.slane %v7707, %v7711
  %v7714 = vadd.f32 %v7694, %v7712
  %v7715 = vadd.f32 %v7695, %v7712
  %v7716 = vadd.f32 %v7696, %v7712
  %v7717 = vadd.f32 %v7697, %v7712
  %v7718 = vadd.f32 %v7698, %v7712
  %v7719 = vadd.f32 %v7699, %v7712
  %v7720 = vadd.f32 %v7700, %v7712
  %v7721 = vadd.f32 %v7701, %v7712
  %v7722 = vadd.f32 %v7702, %v7712
  %v7723 = vadd.f32 %v7703, %v7712
  %v7724 = vadd.f32 %v7704, %v7712
  %v7725 = vadd.f32 %v7705, %v7712
  %v7726 = vadd.f32 %v7706, %v7712
  %v7727 = vmax.f32 %v7714, 0.0
  %v7728 = vmax.f32 %v7715, 0.0
  %v7729 = vmax.f32 %v7716, 0.0
  %v7730 = vmax.f32 %v7717, 0.0
  %v7731 = vmax.f32 %v7718, 0.0
  %v7732 = vmax.f32 %v7719, 0.0
  %v7733 = vmax.f32 %v7720, 0.0
  %v7734 = vmax.f32 %v7721, 0.0
  %v7735 = vmax.f32 %v7722, 0.0
  %v7736 = vmax.f32 %v7723, 0.0
  %v7737 = vmax.f32 %v7724, 0.0
  %v7738 = vmax.f32 %v7725, 0.0
  %v7739 = vmax.f32 %v7726, 0.0
  %v7741 = vrot.slane %v7728, 5
  %v7745 = vrot.slane %v7729, 2
  %v7746 = vrot.slane %v7730, 2
  %v7747 = vsel %vm799, %v7745, %v7746
  %vm7750 = vcmask 1040384
  %v7751 = vrot.slane %v7730, 7
  %v7752 = vrot.slane %v7731, 7
  %v7753 = vsel %vm7750, %v7751, %v7752
  %v7757 = vrot.slane %v7732, 4
  %v7761 = vrot.slane %v7733, 3
  %v7762 = vrot.slane %v7734, 3
  %v7763 = vsel %vm1202, %v7761, %v7762
  %v7766 = vrot.slane %v7736, 5
  %v7769 = vrot.slane %v7737, 2
  %v7773 = vrot.slane %v7738, 7
  %v7774 = vrot.slane %v7739, 7
  %v7775 = vsel %vm7750, %v7773, %v7774
  %v7777 = vsel %vm1202, %v7727, %v7741
  %v7778 = vsel %vm262, %v7741, %v7747
  %v7779 = vsel %vm127, %v7778, %v7751
  %vm7780 = vcmask 1043456
  %v7781 = vsel %vm7780, %v7753, %v7757
  %v7782 = vsel %vm7750, %v7757, %v7763
  %v7783 = vsel %vm799, %v7782, %v7734
  %vm7784 = vcmask 1042432
  %v7785 = vsel %vm7784, %v7735, %v7766
  %v7786 = vsel %vm1202, %v7769, %v7773
  %v7788 = vrot.slane %v7777, 1
  %7789 = vrot.lane.b32.xlu0 %v7788, 40
  %v7790 = vpop.permute.xlu0 %7789
  %v7792 = vrot.slane %v7777, 2
  %7793 = vrot.lane.b32.xlu0 %v7792, 80
  %v7794 = vpop.permute.xlu0 %7793
  %v7796 = vrot.slane %v7777, 3
  %7797 = vrot.lane.b32.xlu0 %v7796, 120
  %v7798 = vpop.permute.xlu0 %7797
  %v7800 = vrot.slane %v7777, 4
  %7801 = vrot.lane.b32.xlu0 %v7800, 32
  %v7802 = vpop.permute.xlu0 %7801
  %v7804 = vrot.slane %v7777, 5
  %7805 = vrot.lane.b32.xlu0 %v7804, 72
  %v7806 = vpop.permute.xlu0 %7805
  %v7808 = vrot.slane %v7777, 6
  %7809 = vrot.lane.b32.xlu0 %v7808, 112
  %v7810 = vpop.permute.xlu0 %7809
  %v7812 = vrot.slane %v7777, 7
  %7813 = vrot.lane.b32.xlu0 %v7812, 24
  %v7814 = vpop.permute.xlu0 %7813
  %7817 = vrot.lane.b32.xlu0 %v7779, 64
  %v7818 = vpop.permute.xlu0 %7817
  %v7820 = vrot.slane %v7779, 1
  %7821 = vrot.lane.b32.xlu0 %v7820, 104
  %v7822 = vpop.permute.xlu0 %7821
  %v7824 = vrot.slane %v7779, 2
  %7825 = vrot.lane.b32.xlu0 %v7824, 16
  %v7826 = vpop.permute.xlu0 %7825
  %v7828 = vrot.slane %v7779, 3
  %7829 = vrot.lane.b32.xlu0 %v7828, 56
  %v7830 = vpop.permute.xlu0 %7829
  %v7832 = vrot.slane %v7779, 4
  %7833 = vrot.lane.b32.xlu0 %v7832, 96
  %v7834 = vpop.permute.xlu0 %7833
  %v7836 = vrot.slane %v7779, 5
  %7837 = vrot.lane.b32.xlu0 %v7836, 8
  %v7838 = vpop.permute.xlu0 %7837
  %v7840 = vrot.slane %v7779, 6
  %7841 = vrot.lane.b32.xlu0 %v7840, 48
  %v7842 = vpop.permute.xlu0 %7841
  %v7844 = vrot.slane %v7779, 7
  %7845 = vrot.lane.b32.xlu0 %v7844, 88
  %v7846 = vpop.permute.xlu0 %7845
  %vm7848 = vcmask 326656
  %v7849 = vsel %vm7848, %v7777, %v7790
  %vm7850 = vcmask 654336
  %v7851 = vsel %vm7850, %v7849, %v7794
  %vm7852 = vcmask 982016
  %v7853 = vsel %vm7852, %v7851, %v7798
  %vm7854 = vcmask 261120
  %v7855 = vsel %vm7854, %v7798, %v7802
  %v7856 = vsel %vm1789, %v7855, %v7806
  %vm7857 = vcmask 916480
  %v7858 = vsel %vm7857, %v7856, %v7810
  %vm7859 = vcmask 195584
  %v7860 = vsel %vm7859, %v7810, %v7814
  %vm7861 = vcmask 523264
  %v7862 = vsel %vm7861, %v7860, %v7818
  %vm7863 = vcmask 850944
  %v7864 = vsel %vm7863, %v7862, %v7822
  %vm7865 = vcmask 130048
  %v7866 = vsel %vm7865, %v7822, %v7826
  %vm7867 = vcmask 457728
  %v7868 = vsel %vm7867, %v7866, %v7830
  %v7869 = vsel %vm5072, %v7868, %v7834
  %vm7870 = vcmask 64512
  %v7871 = vsel %vm7870, %v7834, %v7838
  %vm7872 = vcmask 392192
  %v7873 = vsel %vm7872, %v7871, %v7842
  %vm7874 = vcmask 719872
  %v7875 = vsel %vm7874, %v7873, %v7846
  %v7877 = vrot.slane %v7781, 1
  %7878 = vrot.lane.b32.xlu0 %v7877, 40
  %v7879 = vpop.permute.xlu0 %7878
  %v7881 = vrot.slane %v7781, 2
  %7882 = vrot.lane.b32.xlu0 %v7881, 80
  %v7883 = vpop.permute.xlu0 %7882
  %v7885 = vrot.slane %v7781, 3
  %7886 = vrot.lane.b32.xlu0 %v7885, 120
  %v7887 = vpop.permute.xlu0 %7886
  %v7889 = vrot.slane %v7781, 4
  %7890 = vrot.lane.b32.xlu0 %v7889, 32
  %v7891 = vpop.permute.xlu0 %7890
  %v7893 = vrot.slane %v7781, 5
  %7894 = vrot.lane.b32.xlu0 %v7893, 72
  %v7895 = vpop.permute.xlu0 %7894
  %v7897 = vrot.slane %v7781, 6
  %7898 = vrot.lane.b32.xlu0 %v7897, 112
  %v7899 = vpop.permute.xlu0 %7898
  %v7901 = vrot.slane %v7781, 7
  %7902 = vrot.lane.b32.xlu0 %v7901, 24
  %v7903 = vpop.permute.xlu0 %7902
  %7906 = vrot.lane.b32.xlu0 %v7783, 64
  %v7907 = vpop.permute.xlu0 %7906
  %v7909 = vsel %vm7848, %v7781, %v7879
  %v7910 = vsel %vm7850, %v7909, %v7883
  %v7911 = vsel %vm7852, %v7910, %v7887
  %v7912 = vsel %vm7854, %v7887, %v7891
  %v7913 = vsel %vm1789, %v7912, %v7895
  %v7914 = vsel %vm7857, %v7913, %v7899
  %v7915 = vsel %vm7859, %v7899, %v7903
  %v7916 = vsel %vm7861, %v7915, %v7907
  %v7917 = vrot.slane %v7783, 1
  %7918 = vrot.lane.b32.xlu0 %v7917, 40
  %v7919 = vpop.permute.xlu0 %7918
  %v7921 = vrot.slane %v7783, 2
  %7922 = vrot.lane.b32.xlu0 %v7921, 80
  %v7923 = vpop.permute.xlu0 %7922
  %v7925 = vrot.slane %v7783, 3
  %7926 = vrot.lane.b32.xlu0 %v7925, 120
  %v7927 = vpop.permute.xlu0 %7926
  %v7929 = vrot.slane %v7783, 4
  %7930 = vrot.lane.b32.xlu0 %v7929, 32
  %v7931 = vpop.permute.xlu0 %7930
  %v7933 = vrot.slane %v7783, 5
  %7934 = vrot.lane.b32.xlu0 %v7933, 72
  %v7935 = vpop.permute.xlu0 %7934
  %v7937 = vrot.slane %v7783, 6
  %7938 = vrot.lane.b32.xlu0 %v7937, 112
  %v7939 = vpop.permute.xlu0 %7938
  %v7942 = vrot.slane %v7785, 7
  %7943 = vrot.lane.b32.xlu0 %v7942, 24
  %v7944 = vpop.permute.xlu0 %7943
  %7946 = vrot.lane.b32.xlu0 %v7785, 64
  %v7947 = vpop.permute.xlu0 %7946
  %v7949 = vrot.slane %v7785, 1
  %7950 = vrot.lane.b32.xlu0 %v7949, 104
  %v7951 = vpop.permute.xlu0 %7950
  %v7953 = vrot.slane %v7785, 2
  %7954 = vrot.lane.b32.xlu0 %v7953, 16
  %v7955 = vpop.permute.xlu0 %7954
  %v7957 = vrot.slane %v7785, 3
  %7958 = vrot.lane.b32.xlu0 %v7957, 56
  %v7959 = vpop.permute.xlu0 %7958
  %v7961 = vrot.slane %v7785, 4
  %7962 = vrot.lane.b32.xlu0 %v7961, 96
  %v7963 = vpop.permute.xlu0 %7962
  %v7965 = vrot.slane %v7785, 5
  %7966 = vrot.lane.b32.xlu0 %v7965, 8
  %v7967 = vpop.permute.xlu0 %7966
  %v7969 = vrot.slane %v7785, 6
  %7970 = vrot.lane.b32.xlu0 %v7969, 48
  %v7971 = vpop.permute.xlu0 %7970
  %v7974 = vrot.slane %v7786, 7
  %7975 = vrot.lane.b32.xlu0 %v7974, 88
  %v7976 = vpop.permute.xlu0 %7975
  %v7978 = vsel %vm7848, %v7783, %v7919
  %v7979 = vsel %vm7850, %v7978, %v7923
  %v7980 = vsel %vm7852, %v7979, %v7927
  %v7981 = vsel %vm7854, %v7927, %v7931
  %v7982 = vsel %vm1789, %v7981, %v7935
  %v7983 = vsel %vm7857, %v7982, %v7939
  %v7984 = vsel %vm7859, %v7939, %v7944
  %v7985 = vsel %vm7861, %v7984, %v7947
  %v7986 = vsel %vm7863, %v7985, %v7951
  %v7987 = vsel %vm7865, %v7951, %v7955
  %v7988 = vsel %vm7867, %v7987, %v7959
  %v7989 = vsel %vm5072, %v7988, %v7963
  %v7990 = vsel %vm7870, %v7963, %v7967
  %v7991 = vsel %vm7872, %v7990, %v7971
  %v7992 = vsel %vm7874, %v7991, %v7976
  %v7993 = vrot.slane %v7786, 1
  %7994 = vrot.lane.b32.xlu0 %v7993, 40
  %v7995 = vpop.permute.xlu0 %7994
  %v7997 = vrot.slane %v7786, 2
  %7998 = vrot.lane.b32.xlu0 %v7997, 80
  %v7999 = vpop.permute.xlu0 %7998
  %v8001 = vrot.slane %v7786, 3
  %8002 = vrot.lane.b32.xlu0 %v8001, 120
  %v8003 = vpop.permute.xlu0 %8002
  %v8005 = vrot.slane %v7786, 4
  %8006 = vrot.lane.b32.xlu0 %v8005, 32
  %v8007 = vpop.permute.xlu0 %8006
  %v8009 = vrot.slane %v7786, 5
  %8010 = vrot.lane.b32.xlu0 %v8009, 72
  %v8011 = vpop.permute.xlu0 %8010
  %v8013 = vrot.slane %v7786, 6
  %8014 = vrot.lane.b32.xlu0 %v8013, 112
  %v8015 = vpop.permute.xlu0 %8014
  %v8017 = vrot.slane %v7775, 7
  %8018 = vrot.lane.b32.xlu0 %v8017, 24
  %v8019 = vpop.permute.xlu0 %8018
  %8021 = vrot.lane.b32.xlu0 %v7775, 64
  %v8022 = vpop.permute.xlu0 %8021
  %v8024 = vsel %vm7848, %v7786, %v7995
  %v8025 = vsel %vm7850, %v8024, %v7999
  %v8026 = vsel %vm7852, %v8025, %v8003
  %v8027 = vsel %vm7854, %v8003, %v8007
  %v8028 = vsel %vm1789, %v8027, %v8011
  %v8029 = vsel %vm7857, %v8028, %v8015
  %v8030 = vsel %vm7859, %v8015, %v8019
  %v8031 = vsel %vm7861, %v8030, %v8022
  %v8032 = vsel %vm7750, %v7853, %v7980
  %v8033 = vsel %vm7750, %v7858, %v7983
  %v8034 = vsel %vm7750, %v7864, %v7986
  %v8035 = vsel %vm7750, %v7869, %v7989
  %v8036 = vsel %vm7750, %v7875, %v7992
  %v8037 = vsel %vm7750, %v7911, %v8026
  %v8038 = vsel %vm7750, %v7914, %v8029
  %v8039 = vsel %vm7750, %v7916, %v8031
  %v8040 = vpack.c.bf16 %v8032, %v8032
  %v8041 = vpack.c.bf16 %v8033, %v8033
  %v8042 = vpack.c.bf16 %v8034, %v8034
  %v8043 = vpack.c.bf16 %v8035, %v8035
  %v8044 = vpack.c.bf16 %v8036, %v8036
  %v8045 = vpack.c.bf16 %v8037, %v8037
  %v8046 = vpack.c.bf16 %v8038, %v8038
  %v8047 = vpack.c.bf16 %v8039, %v8039
  %v8048 = vld [vmem:[%s11] sm:$0xff]
  %v8049 = vld [vmem:[%s11 + $0x8] sm:$0xff]
  %v8050 = vld [vmem:[%s11 + $0x10] sm:$0xff]
  %v8051 = vld [vmem:[%s11 + $0x18] sm:$0xff]
  %v8052 = vld [vmem:[%s11 + $0x20] sm:$0xff]
  %v8053 = vld [vmem:[%s11 + $0x28] sm:$0xff]
  %v8054 = vld [vmem:[%s11 + $0x30] sm:$0xff]
  %v8055 = vld [vmem:[%s11 + $0x38] sm:$0xff]
  %v8056 = vld [vmem:[%s11 + $0x40] sm:$0xff]
  %v8057 = vld [vmem:[%s11 + $0x48] sm:$0xff]
  %v8058 = vld [vmem:[%s11 + $0x50] sm:$0xff]
  %v8059 = vld [vmem:[%s11 + $0x58] sm:$0xff]
  %v8060 = vld [vmem:[%s11 + $0x60] sm:$0xff]
  %v8061 = vld [vmem:[%s11 + $0x68] sm:$0xff]
  %v8062 = vld [vmem:[%s11 + $0x70] sm:$0xff]
  %v8063 = vld [vmem:[%s11 + $0x78] sm:$0xff]
  %v8064 = vld [vmem:[%s11 + $0x80] sm:$0xff]
  %v8065 = vld [vmem:[%s11 + $0x88] sm:$0xff]
  %v8066 = vld [vmem:[%s11 + $0x90] sm:$0xff]
  %v8067 = vld [vmem:[%s11 + $0x98] sm:$0xff]
  %v8068 = vld [vmem:[%s11 + $0xa0] sm:$0xff]
  %v8069 = vld [vmem:[%s11 + $0xa8] sm:$0xff]
  %v8070 = vld [vmem:[%s11 + $0xb0] sm:$0xff]
  %v8071 = vld [vmem:[%s11 + $0xb8] sm:$0xff]
  %v8072 = vld [vmem:[%s11 + $0xc0] sm:$0xff]
  %v8073 = vld [vmem:[%s11 + $0xc8] sm:$0xff]
  %v8074 = vld [vmem:[%s11 + $0xd0] sm:$0xff]
  %v8075 = vld [vmem:[%s11 + $0xd8] sm:$0xff]
  %v8076 = vld [vmem:[%s11 + $0xe0] sm:$0xff]
  %v8077 = vld [vmem:[%s11 + $0xe8] sm:$0xff]
  %v8078 = vld [vmem:[%s11 + $0xf0] sm:$0xff]
  %v8079 = vld [vmem:[%s11 + $0xf8] sm:$0xff]
  %v8080 = vld [vmem:[%s11 + $0x100] sm:$0xff]
  %v8081 = vld [vmem:[%s11 + $0x108] sm:$0xff]
  %v8082 = vld [vmem:[%s11 + $0x110] sm:$0xff]
  %v8083 = vld [vmem:[%s11 + $0x118] sm:$0xff]
  %v8084 = vld [vmem:[%s11 + $0x120] sm:$0xff]
  %v8085 = vld [vmem:[%s11 + $0x128] sm:$0xff]
  %v8086 = vld [vmem:[%s11 + $0x130] sm:$0xff]
  %v8087 = vld [vmem:[%s11 + $0x138] sm:$0xff]
  %v8088 = vld [vmem:[%s11 + $0x140] sm:$0xff]
  %v8089 = vld [vmem:[%s11 + $0x148] sm:$0xff]
  %v8090 = vld [vmem:[%s11 + $0x150] sm:$0xff]
  %v8091 = vld [vmem:[%s11 + $0x158] sm:$0xff]
  %v8092 = vld [vmem:[%s11 + $0x160] sm:$0xff]
  %v8093 = vld [vmem:[%s11 + $0x168] sm:$0xff]
  %v8094 = vld [vmem:[%s11 + $0x170] sm:$0xff]
  %v8095 = vld [vmem:[%s11 + $0x178] sm:$0xff]
  %v8096 = vld [vmem:[%s11 + $0x180] sm:$0xff]
  %v8097 = vld [vmem:[%s11 + $0x188] sm:$0xff]
  %v8098 = vld [vmem:[%s11 + $0x190] sm:$0xff]
  %v8099 = vld [vmem:[%s11 + $0x198] sm:$0xff]
  %v8100 = vld [vmem:[%s11 + $0x1a0] sm:$0xff]
  %v8101 = vld [vmem:[%s11 + $0x1a8] sm:$0xff]
  %v8102 = vld [vmem:[%s11 + $0x1b0] sm:$0xff]
  %v8103 = vld [vmem:[%s11 + $0x1b8] sm:$0xff]
  %v8104 = vld [vmem:[%s11 + $0x1c0] sm:$0xff]
  %v8105 = vld [vmem:[%s11 + $0x1c8] sm:$0xff]
  %v8106 = vld [vmem:[%s11 + $0x1d0] sm:$0xff]
  %v8107 = vld [vmem:[%s11 + $0x1d8] sm:$0xff]
  %v8108 = vld [vmem:[%s11 + $0x1e0] sm:$0xff]
  %v8109 = vld [vmem:[%s11 + $0x1e8] sm:$0xff]
  %v8110 = vld [vmem:[%s11 + $0x1f0] sm:$0xff]
  %v8111 = vld [vmem:[%s11 + $0x1f8] sm:$0xff]
  %v8112 = vld [vmem:[%s11 + $0x200] sm:$0xff]
  %v8113 = vld [vmem:[%s11 + $0x208] sm:$0xff]
  %v8114 = vld [vmem:[%s11 + $0x210] sm:$0xff]
  %v8115 = vld [vmem:[%s11 + $0x218] sm:$0xff]
  %v8116 = vld [vmem:[%s11 + $0x220] sm:$0xff]
  %v8117 = vld [vmem:[%s11 + $0x228] sm:$0xff]
  %v8118 = vld [vmem:[%s11 + $0x230] sm:$0xff]
  %v8119 = vld [vmem:[%s11 + $0x238] sm:$0xff]
  %v8120 = vld [vmem:[%s11 + $0x240] sm:$0xff]
  %v8121 = vld [vmem:[%s11 + $0x248] sm:$0xff]
  %v8122 = vld [vmem:[%s11 + $0x250] sm:$0xff]
  %v8123 = vld [vmem:[%s11 + $0x258] sm:$0xff]
  %v8124 = vld [vmem:[%s11 + $0x260] sm:$0xff]
  %v8125 = vld [vmem:[%s11 + $0x268] sm:$0xff]
  %v8126 = vld [vmem:[%s11 + $0x270] sm:$0xff]
  %v8127 = vld [vmem:[%s11 + $0x278] sm:$0xff]
  %v8128 = vld [vmem:[%s11 + $0x280] sm:$0xff]
  %v8129 = vld [vmem:[%s11 + $0x288] sm:$0xff]
  %v8130 = vld [vmem:[%s11 + $0x290] sm:$0xff]
  %v8131 = vld [vmem:[%s11 + $0x298] sm:$0xff]
  %v8132 = vld [vmem:[%s11 + $0x2a0] sm:$0xff]
  %v8133 = vld [vmem:[%s11 + $0x2a8] sm:$0xff]
  %v8134 = vld [vmem:[%s11 + $0x2b0] sm:$0xff]
  %v8135 = vld [vmem:[%s11 + $0x2b8] sm:$0xff]
  %v8136 = vld [vmem:[%s11 + $0x2c0] sm:$0xff]
  %v8137 = vld [vmem:[%s11 + $0x2c8] sm:$0xff]
  %v8138 = vld [vmem:[%s11 + $0x2d0] sm:$0xff]
  %v8139 = vld [vmem:[%s11 + $0x2d8] sm:$0xff]
  %v8140 = vld [vmem:[%s11 + $0x2e0] sm:$0xff]
  %v8141 = vld [vmem:[%s11 + $0x2e8] sm:$0xff]
  %v8142 = vld [vmem:[%s11 + $0x2f0] sm:$0xff]
  %v8143 = vld [vmem:[%s11 + $0x2f8] sm:$0xff]
  %v8144 = vld [vmem:[%s11 + $0x300] sm:$0xff]
  %v8145 = vld [vmem:[%s11 + $0x308] sm:$0xff]
  %v8146 = vld [vmem:[%s11 + $0x310] sm:$0xff]
  %v8147 = vld [vmem:[%s11 + $0x318] sm:$0xff]
  %v8148 = vld [vmem:[%s11 + $0x320] sm:$0xff]
  %v8149 = vld [vmem:[%s11 + $0x328] sm:$0xff]
  %v8150 = vld [vmem:[%s11 + $0x330] sm:$0xff]
  %v8151 = vld [vmem:[%s11 + $0x338] sm:$0xff]
  %v8152 = vld [vmem:[%s11 + $0x340] sm:$0xff]
  %v8153 = vld [vmem:[%s11 + $0x348] sm:$0xff]
  %v8154 = vld [vmem:[%s11 + $0x350] sm:$0xff]
  %v8155 = vld [vmem:[%s11 + $0x358] sm:$0xff]
  %v8156 = vld [vmem:[%s11 + $0x360] sm:$0xff]
  %v8157 = vld [vmem:[%s11 + $0x368] sm:$0xff]
  %v8158 = vld [vmem:[%s11 + $0x370] sm:$0xff]
  %v8159 = vld [vmem:[%s11 + $0x378] sm:$0xff]
  %v8160 = vld [vmem:[%s11 + $0x380] sm:$0xff]
  %v8161 = vld [vmem:[%s11 + $0x388] sm:$0xff]
  %v8162 = vld [vmem:[%s11 + $0x390] sm:$0xff]
  %v8163 = vld [vmem:[%s11 + $0x398] sm:$0xff]
  %v8164 = vld [vmem:[%s11 + $0x3a0] sm:$0xff]
  %v8165 = vld [vmem:[%s11 + $0x3a8] sm:$0xff]
  %v8166 = vld [vmem:[%s11 + $0x3b0] sm:$0xff]
  %v8167 = vld [vmem:[%s11 + $0x3b8] sm:$0xff]
  %v8168 = vld [vmem:[%s11 + $0x3c0] sm:$0xff]
  %v8169 = vld [vmem:[%s11 + $0x3c8] sm:$0xff]
  %v8170 = vld [vmem:[%s11 + $0x3d0] sm:$0xff]
  %v8171 = vld [vmem:[%s11 + $0x3d8] sm:$0xff]
  %v8172 = vld [vmem:[%s11 + $0x3e0] sm:$0xff]
  %v8173 = vld [vmem:[%s11 + $0x3e8] sm:$0xff]
  %v8174 = vld [vmem:[%s11 + $0x3f0] sm:$0xff]
  %v8175 = vld [vmem:[%s11 + $0x3f8] sm:$0xff]
  %v8176 = vld [vmem:[%s11 + $0x400] sm:$0xff]
  %v8177 = vld [vmem:[%s11 + $0x408] sm:$0xff]
  %v8178 = vld [vmem:[%s11 + $0x410] sm:$0xff]
  %v8179 = vld [vmem:[%s11 + $0x418] sm:$0xff]
  %v8180 = vld [vmem:[%s11 + $0x420] sm:$0xff]
  %v8181 = vld [vmem:[%s11 + $0x428] sm:$0xff]
  %v8182 = vld [vmem:[%s11 + $0x430] sm:$0xff]
  %v8183 = vld [vmem:[%s11 + $0x438] sm:$0xff]
  %v8184 = vld [vmem:[%s11 + $0x440] sm:$0xff]
  %v8185 = vld [vmem:[%s11 + $0x448] sm:$0xff]
  %v8186 = vld [vmem:[%s11 + $0x450] sm:$0xff]
  %v8187 = vld [vmem:[%s11 + $0x458] sm:$0xff]
  %v8188 = vld [vmem:[%s11 + $0x460] sm:$0xff]
  %v8189 = vld [vmem:[%s11 + $0x468] sm:$0xff]
  %v8190 = vld [vmem:[%s11 + $0x470] sm:$0xff]
  %v8191 = vld [vmem:[%s11 + $0x478] sm:$0xff]
  %v8192 = vld [vmem:[%s11 + $0x480] sm:$0xff]
  %v8193 = vld [vmem:[%s11 + $0x488] sm:$0xff]
  %v8194 = vld [vmem:[%s11 + $0x490] sm:$0xff]
  %v8195 = vld [vmem:[%s11 + $0x498] sm:$0xff]
  %v8196 = vld [vmem:[%s11 + $0x4a0] sm:$0xff]
  %v8197 = vld [vmem:[%s11 + $0x4a8] sm:$0xff]
  %v8198 = vld [vmem:[%s11 + $0x4b0] sm:$0xff]
  %v8199 = vld [vmem:[%s11 + $0x4b8] sm:$0xff]
  %v8200 = vld [vmem:[%s11 + $0x4c0] sm:$0xff]
  %v8201 = vld [vmem:[%s11 + $0x4c8] sm:$0xff]
  %v8202 = vld [vmem:[%s11 + $0x4d0] sm:$0xff]
  %v8203 = vld [vmem:[%s11 + $0x4d8] sm:$0xff]
  %v8204 = vld [vmem:[%s11 + $0x4e0] sm:$0xff]
  %v8205 = vld [vmem:[%s11 + $0x4e8] sm:$0xff]
  %v8206 = vld [vmem:[%s11 + $0x4f0] sm:$0xff]
  %v8207 = vld [vmem:[%s11 + $0x4f8] sm:$0xff]
  %v8208 = vld [vmem:[%s11 + $0x500] sm:$0xff]
  %v8209 = vld [vmem:[%s11 + $0x508] sm:$0xff]
  %v8210 = vld [vmem:[%s11 + $0x510] sm:$0xff]
  %v8211 = vld [vmem:[%s11 + $0x518] sm:$0xff]
  %v8212 = vld [vmem:[%s11 + $0x520] sm:$0xff]
  %v8213 = vld [vmem:[%s11 + $0x528] sm:$0xff]
  %v8214 = vld [vmem:[%s11 + $0x530] sm:$0xff]
  %v8215 = vld [vmem:[%s11 + $0x538] sm:$0xff]
  %v8216 = vld [vmem:[%s11 + $0x540] sm:$0xff]
  %v8217 = vld [vmem:[%s11 + $0x548] sm:$0xff]
  %v8218 = vld [vmem:[%s11 + $0x550] sm:$0xff]
  %v8219 = vld [vmem:[%s11 + $0x558] sm:$0xff]
  %v8220 = vld [vmem:[%s11 + $0x560] sm:$0xff]
  %v8221 = vld [vmem:[%s11 + $0x568] sm:$0xff]
  %v8222 = vld [vmem:[%s11 + $0x570] sm:$0xff]
  %v8223 = vld [vmem:[%s11 + $0x578] sm:$0xff]
  %v8224 = vld [vmem:[%s11 + $0x580] sm:$0xff]
  %v8225 = vld [vmem:[%s11 + $0x588] sm:$0xff]
  %v8226 = vld [vmem:[%s11 + $0x590] sm:$0xff]
  %v8227 = vld [vmem:[%s11 + $0x598] sm:$0xff]
  %v8228 = vld [vmem:[%s11 + $0x5a0] sm:$0xff]
  %v8229 = vld [vmem:[%s11 + $0x5a8] sm:$0xff]
  %v8230 = vld [vmem:[%s11 + $0x5b0] sm:$0xff]
  %v8231 = vld [vmem:[%s11 + $0x5b8] sm:$0xff]
  %v8232 = vld [vmem:[%s11 + $0x5c0] sm:$0xff]
  %v8233 = vld [vmem:[%s11 + $0x5c8] sm:$0xff]
  %v8234 = vld [vmem:[%s11 + $0x5d0] sm:$0xff]
  %v8235 = vld [vmem:[%s11 + $0x5d8] sm:$0xff]
  %v8236 = vld [vmem:[%s11 + $0x5e0] sm:$0xff]
  %v8237 = vld [vmem:[%s11 + $0x5e8] sm:$0xff]
  %v8238 = vld [vmem:[%s11 + $0x5f0] sm:$0xff]
  %v8239 = vld [vmem:[%s11 + $0x5f8] sm:$0xff]
  %v8240 = vld [vmem:[%s11 + $0x600] sm:$0xff]
  %v8241 = vld [vmem:[%s11 + $0x608] sm:$0xff]
  %v8242 = vld [vmem:[%s11 + $0x610] sm:$0xff]
  %v8243 = vld [vmem:[%s11 + $0x618] sm:$0xff]
  %v8244 = vld [vmem:[%s11 + $0x620] sm:$0xff]
  %v8245 = vld [vmem:[%s11 + $0x628] sm:$0xff]
  %v8246 = vld [vmem:[%s11 + $0x630] sm:$0xff]
  %v8247 = vld [vmem:[%s11 + $0x638] sm:$0xff]
  %v8248 = vld [vmem:[%s11 + $0x640] sm:$0xff]
  %v8249 = vld [vmem:[%s11 + $0x648] sm:$0xff]
  %v8250 = vld [vmem:[%s11 + $0x650] sm:$0xff]
  %v8251 = vld [vmem:[%s11 + $0x658] sm:$0xff]
  %v8252 = vld [vmem:[%s11 + $0x660] sm:$0xff]
  %v8253 = vld [vmem:[%s11 + $0x668] sm:$0xff]
  %v8254 = vld [vmem:[%s11 + $0x670] sm:$0xff]
  %v8255 = vld [vmem:[%s11 + $0x678] sm:$0xff]
  %v8256 = vld [vmem:[%s11 + $0x680] sm:$0xff]
  %v8257 = vld [vmem:[%s11 + $0x688] sm:$0xff]
  %v8258 = vld [vmem:[%s11 + $0x690] sm:$0xff]
  %v8259 = vld [vmem:[%s11 + $0x698] sm:$0xff]
  %v8260 = vld [vmem:[%s11 + $0x6a0] sm:$0xff]
  %v8261 = vld [vmem:[%s11 + $0x6a8] sm:$0xff]
  %v8262 = vld [vmem:[%s11 + $0x6b0] sm:$0xff]
  %v8263 = vld [vmem:[%s11 + $0x6b8] sm:$0xff]
  %v8264 = vld [vmem:[%s11 + $0x6c0] sm:$0xff]
  %v8265 = vld [vmem:[%s11 + $0x6c8] sm:$0xff]
  %v8266 = vld [vmem:[%s11 + $0x6d0] sm:$0xff]
  %v8267 = vld [vmem:[%s11 + $0x6d8] sm:$0xff]
  %v8268 = vld [vmem:[%s11 + $0x6e0] sm:$0xff]
  %v8269 = vld [vmem:[%s11 + $0x6e8] sm:$0xff]
  %v8270 = vld [vmem:[%s11 + $0x6f0] sm:$0xff]
  %v8271 = vld [vmem:[%s11 + $0x6f8] sm:$0xff]
  %v8272 = vld [vmem:[%s11 + $0x700] sm:$0xff]
  %v8273 = vld [vmem:[%s11 + $0x708] sm:$0xff]
  %v8274 = vld [vmem:[%s11 + $0x710] sm:$0xff]
  %v8275 = vld [vmem:[%s11 + $0x718] sm:$0xff]
  %v8276 = vld [vmem:[%s11 + $0x720] sm:$0xff]
  %v8277 = vld [vmem:[%s11 + $0x728] sm:$0xff]
  %v8278 = vld [vmem:[%s11 + $0x730] sm:$0xff]
  %v8279 = vld [vmem:[%s11 + $0x738] sm:$0xff]
  %v8280 = vld [vmem:[%s11 + $0x740] sm:$0xff]
  %v8281 = vld [vmem:[%s11 + $0x748] sm:$0xff]
  %v8282 = vld [vmem:[%s11 + $0x750] sm:$0xff]
  %v8283 = vld [vmem:[%s11 + $0x758] sm:$0xff]
  %v8284 = vld [vmem:[%s11 + $0x760] sm:$0xff]
  %v8285 = vld [vmem:[%s11 + $0x768] sm:$0xff]
  %v8286 = vld [vmem:[%s11 + $0x770] sm:$0xff]
  %v8287 = vld [vmem:[%s11 + $0x778] sm:$0xff]
  %v8288 = vld [vmem:[%s11 + $0x780] sm:$0xff]
  %v8289 = vld [vmem:[%s11 + $0x788] sm:$0xff]
  %v8290 = vld [vmem:[%s11 + $0x790] sm:$0xff]
  %v8291 = vld [vmem:[%s11 + $0x798] sm:$0xff]
  %v8292 = vld [vmem:[%s11 + $0x7a0] sm:$0xff]
  %v8293 = vld [vmem:[%s11 + $0x7a8] sm:$0xff]
  %v8294 = vld [vmem:[%s11 + $0x7b0] sm:$0xff]
  %v8295 = vld [vmem:[%s11 + $0x7b8] sm:$0xff]
  %v8296 = vld [vmem:[%s11 + $0x7c0] sm:$0xff]
  %v8297 = vld [vmem:[%s11 + $0x7c8] sm:$0xff]
  %v8298 = vld [vmem:[%s12] sm:$0xf]
  %v8300 = vlaneseq
  %v8301 = vshrl.u32 %v8300, 7
  %v8302 = vsub.s32 0, %v8301
  %v8303 = vrot.slane %v8298, %v8302
  %v8304 = vlaneseq
  %v8305 = vshrl.u32 %v8304, 7
  %v8306 = vsub.s32 1, %v8305
  %v8307 = vrot.slane %v8298, %v8306
  %v8308 = vlaneseq
  %v8309 = vshrl.u32 %v8308, 7
  %v8310 = vsub.s32 2, %v8309
  %v8311 = vrot.slane %v8298, %v8310
  %v8312 = vlaneseq
  %v8313 = vshrl.u32 %v8312, 7
  %v8314 = vsub.s32 3, %v8313
  %v8315 = vrot.slane %v8298, %v8314
  %v8570 = vunpack.c.l.b16 %v8048
  %v8571 = vunpack.c.h.b16 %v8048
  %v8572 = vunpack.c.l.b16 %v8049
  %v8573 = vunpack.c.h.b16 %v8049
  %v8574 = vunpack.c.l.b16 %v8050
  %v8575 = vunpack.c.h.b16 %v8050
  %v8576 = vunpack.c.l.b16 %v8051
  %v8577 = vunpack.c.h.b16 %v8051
  %v8578 = vunpack.c.l.b16 %v8052
  %v8579 = vunpack.c.h.b16 %v8052
  %v8580 = vunpack.c.l.b16 %v8053
  %v8581 = vunpack.c.h.b16 %v8053
  %v8582 = vunpack.c.l.b16 %v8054
  %v8583 = vunpack.c.h.b16 %v8054
  %v8584 = vunpack.c.l.b16 %v8055
  %v8585 = vunpack.c.h.b16 %v8055
  %v8586 = vunpack.c.l.b16 %v8056
  %v8587 = vunpack.c.h.b16 %v8056
  %v8588 = vunpack.c.l.b16 %v8057
  %v8589 = vunpack.c.h.b16 %v8057
  %v8590 = vunpack.c.l.b16 %v8058
  %v8591 = vunpack.c.h.b16 %v8058
  %v8592 = vunpack.c.l.b16 %v8059
  %v8593 = vunpack.c.h.b16 %v8059
  %v8594 = vunpack.c.l.b16 %v8060
  %v8595 = vunpack.c.h.b16 %v8060
  %v8596 = vunpack.c.l.b16 %v8061
  %v8597 = vunpack.c.h.b16 %v8061
  %v8598 = vunpack.c.l.b16 %v8062
  %v8599 = vunpack.c.h.b16 %v8062
  %v8600 = vunpack.c.l.b16 %v8063
  %v8601 = vunpack.c.h.b16 %v8063
  %v8602 = vunpack.c.l.b16 %v8064
  %v8603 = vunpack.c.h.b16 %v8064
  %v8604 = vunpack.c.l.b16 %v8065
  %v8605 = vunpack.c.h.b16 %v8065
  %v8606 = vunpack.c.l.b16 %v8066
  %v8607 = vunpack.c.h.b16 %v8066
  %v8608 = vunpack.c.l.b16 %v8067
  %v8609 = vunpack.c.h.b16 %v8067
  %v8610 = vunpack.c.l.b16 %v8068
  %v8611 = vunpack.c.h.b16 %v8068
  %v8612 = vunpack.c.l.b16 %v8069
  %v8613 = vunpack.c.h.b16 %v8069
  %v8614 = vunpack.c.l.b16 %v8070
  %v8615 = vunpack.c.h.b16 %v8070
  %v8616 = vunpack.c.l.b16 %v8071
  %v8617 = vunpack.c.h.b16 %v8071
  %v8618 = vunpack.c.l.b16 %v8072
  %v8619 = vunpack.c.h.b16 %v8072
  %v8620 = vunpack.c.l.b16 %v8073
  %v8621 = vunpack.c.h.b16 %v8073
  %v8622 = vunpack.c.l.b16 %v8074
  %v8623 = vunpack.c.h.b16 %v8074
  %v8624 = vunpack.c.l.b16 %v8075
  %v8625 = vunpack.c.h.b16 %v8075
  %v8626 = vunpack.c.l.b16 %v8076
  %v8627 = vunpack.c.h.b16 %v8076
  %v8628 = vunpack.c.l.b16 %v8077
  %v8629 = vunpack.c.h.b16 %v8077
  %v8630 = vunpack.c.l.b16 %v8078
  %v8631 = vunpack.c.h.b16 %v8078
  %v8632 = vunpack.c.l.b16 %v8079
  %v8633 = vunpack.c.h.b16 %v8079
  %v8634 = vunpack.c.l.b16 %v8080
  %v8635 = vunpack.c.h.b16 %v8080
  %v8636 = vunpack.c.l.b16 %v8081
  %v8637 = vunpack.c.h.b16 %v8081
  %v8638 = vunpack.c.l.b16 %v8082
  %v8639 = vunpack.c.h.b16 %v8082
  %v8640 = vunpack.c.l.b16 %v8083
  %v8641 = vunpack.c.h.b16 %v8083
  %v8642 = vunpack.c.l.b16 %v8084
  %v8643 = vunpack.c.h.b16 %v8084
  %v8644 = vunpack.c.l.b16 %v8085
  %v8645 = vunpack.c.h.b16 %v8085
  %v8646 = vunpack.c.l.b16 %v8086
  %v8647 = vunpack.c.h.b16 %v8086
  %v8648 = vunpack.c.l.b16 %v8087
  %v8649 = vunpack.c.h.b16 %v8087
  %v8650 = vunpack.c.l.b16 %v8088
  %v8651 = vunpack.c.h.b16 %v8088
  %v8652 = vunpack.c.l.b16 %v8089
  %v8653 = vunpack.c.h.b16 %v8089
  %v8654 = vunpack.c.l.b16 %v8090
  %v8655 = vunpack.c.h.b16 %v8090
  %v8656 = vunpack.c.l.b16 %v8091
  %v8657 = vunpack.c.h.b16 %v8091
  %v8658 = vunpack.c.l.b16 %v8092
  %v8659 = vunpack.c.h.b16 %v8092
  %v8660 = vunpack.c.l.b16 %v8093
  %v8661 = vunpack.c.h.b16 %v8093
  %v8662 = vunpack.c.l.b16 %v8094
  %v8663 = vunpack.c.h.b16 %v8094
  %v8664 = vunpack.c.l.b16 %v8095
  %v8665 = vunpack.c.h.b16 %v8095
  %v8666 = vunpack.c.l.b16 %v8096
  %v8667 = vunpack.c.h.b16 %v8096
  %v8668 = vunpack.c.l.b16 %v8097
  %v8669 = vunpack.c.h.b16 %v8097
  %v8670 = vunpack.c.l.b16 %v8098
  %v8671 = vunpack.c.h.b16 %v8098
  %v8672 = vunpack.c.l.b16 %v8099
  %v8673 = vunpack.c.h.b16 %v8099
  %v8674 = vunpack.c.l.b16 %v8100
  %v8675 = vunpack.c.h.b16 %v8100
  %v8676 = vunpack.c.l.b16 %v8101
  %v8677 = vunpack.c.h.b16 %v8101
  %v8678 = vunpack.c.l.b16 %v8102
  %v8679 = vunpack.c.h.b16 %v8102
  %v8680 = vunpack.c.l.b16 %v8103
  %v8681 = vunpack.c.h.b16 %v8103
  %v8682 = vunpack.c.l.b16 %v8104
  %v8683 = vunpack.c.h.b16 %v8104
  %v8684 = vunpack.c.l.b16 %v8105
  %v8685 = vunpack.c.h.b16 %v8105
  %v8686 = vunpack.c.l.b16 %v8106
  %v8687 = vunpack.c.h.b16 %v8106
  %v8688 = vunpack.c.l.b16 %v8107
  %v8689 = vunpack.c.h.b16 %v8107
  %v8690 = vunpack.c.l.b16 %v8108
  %v8691 = vunpack.c.h.b16 %v8108
  %v8692 = vunpack.c.l.b16 %v8109
  %v8693 = vunpack.c.h.b16 %v8109
  %v8694 = vunpack.c.l.b16 %v8110
  %v8695 = vunpack.c.h.b16 %v8110
  %v8696 = vunpack.c.l.b16 %v8111
  %v8697 = vunpack.c.h.b16 %v8111
  %v8698 = vunpack.c.l.b16 %v8112
  %v8699 = vunpack.c.h.b16 %v8112
  %v8700 = vunpack.c.l.b16 %v8113
  %v8701 = vunpack.c.h.b16 %v8113
  %v8702 = vunpack.c.l.b16 %v8114
  %v8703 = vunpack.c.h.b16 %v8114
  %v8704 = vunpack.c.l.b16 %v8115
  %v8705 = vunpack.c.h.b16 %v8115
  %v8706 = vunpack.c.l.b16 %v8116
  %v8707 = vunpack.c.h.b16 %v8116
  %v8708 = vunpack.c.l.b16 %v8117
  %v8709 = vunpack.c.h.b16 %v8117
  %v8710 = vunpack.c.l.b16 %v8118
  %v8711 = vunpack.c.h.b16 %v8118
  %v8712 = vunpack.c.l.b16 %v8119
  %v8713 = vunpack.c.h.b16 %v8119
  %v8714 = vunpack.c.l.b16 %v8120
  %v8715 = vunpack.c.h.b16 %v8120
  %v8716 = vunpack.c.l.b16 %v8121
  %v8717 = vunpack.c.h.b16 %v8121
  %v8718 = vunpack.c.l.b16 %v8122
  %v8719 = vunpack.c.h.b16 %v8122
  %v8720 = vunpack.c.l.b16 %v8123
  %v8721 = vunpack.c.h.b16 %v8123
  %v8722 = vunpack.c.l.b16 %v8124
  %v8723 = vunpack.c.h.b16 %v8124
  %v8724 = vunpack.c.l.b16 %v8125
  %v8725 = vunpack.c.h.b16 %v8125
  %v8726 = vunpack.c.l.b16 %v8126
  %v8727 = vunpack.c.h.b16 %v8126
  %v8728 = vunpack.c.l.b16 %v8127
  %v8729 = vunpack.c.h.b16 %v8127
  %v8730 = vunpack.c.l.b16 %v8128
  %v8731 = vunpack.c.h.b16 %v8128
  %v8732 = vunpack.c.l.b16 %v8129
  %v8733 = vunpack.c.h.b16 %v8129
  %v8734 = vunpack.c.l.b16 %v8130
  %v8735 = vunpack.c.h.b16 %v8130
  %v8736 = vunpack.c.l.b16 %v8131
  %v8737 = vunpack.c.h.b16 %v8131
  %v8738 = vunpack.c.l.b16 %v8132
  %v8739 = vunpack.c.h.b16 %v8132
  %v8740 = vunpack.c.l.b16 %v8133
  %v8741 = vunpack.c.h.b16 %v8133
  %v8742 = vunpack.c.l.b16 %v8134
  %v8743 = vunpack.c.h.b16 %v8134
  %v8744 = vunpack.c.l.b16 %v8135
  %v8745 = vunpack.c.h.b16 %v8135
  %v8746 = vunpack.c.l.b16 %v8136
  %v8747 = vunpack.c.h.b16 %v8136
  %v8748 = vunpack.c.l.b16 %v8137
  %v8749 = vunpack.c.h.b16 %v8137
  %v8750 = vunpack.c.l.b16 %v8138
  %v8751 = vunpack.c.h.b16 %v8138
  %v8752 = vunpack.c.l.b16 %v8139
  %v8753 = vunpack.c.h.b16 %v8139
  %v8754 = vunpack.c.l.b16 %v8140
  %v8755 = vunpack.c.h.b16 %v8140
  %v8756 = vunpack.c.l.b16 %v8141
  %v8757 = vunpack.c.h.b16 %v8141
  %v8758 = vunpack.c.l.b16 %v8142
  %v8759 = vunpack.c.h.b16 %v8142
  %v8760 = vunpack.c.l.b16 %v8143
  %v8761 = vunpack.c.h.b16 %v8143
  %v8762 = vunpack.c.l.b16 %v8144
  %v8763 = vunpack.c.h.b16 %v8144
  %v8764 = vunpack.c.l.b16 %v8145
  %v8765 = vunpack.c.h.b16 %v8145
  %v8766 = vunpack.c.l.b16 %v8146
  %v8767 = vunpack.c.h.b16 %v8146
  %v8768 = vunpack.c.l.b16 %v8147
  %v8769 = vunpack.c.h.b16 %v8147
  %v8770 = vunpack.c.l.b16 %v8148
  %v8771 = vunpack.c.h.b16 %v8148
  %v8772 = vunpack.c.l.b16 %v8149
  %v8773 = vunpack.c.h.b16 %v8149
  %v8774 = vunpack.c.l.b16 %v8150
  %v8775 = vunpack.c.h.b16 %v8150
  %v8776 = vunpack.c.l.b16 %v8151
  %v8777 = vunpack.c.h.b16 %v8151
  %v8778 = vunpack.c.l.b16 %v8152
  %v8779 = vunpack.c.h.b16 %v8152
  %v8780 = vunpack.c.l.b16 %v8153
  %v8781 = vunpack.c.h.b16 %v8153
  %v8782 = vunpack.c.l.b16 %v8154
  %v8783 = vunpack.c.h.b16 %v8154
  %v8784 = vunpack.c.l.b16 %v8155
  %v8785 = vunpack.c.h.b16 %v8155
  %v8786 = vunpack.c.l.b16 %v8156
  %v8787 = vunpack.c.h.b16 %v8156
  %v8788 = vunpack.c.l.b16 %v8157
  %v8789 = vunpack.c.h.b16 %v8157
  %v8790 = vunpack.c.l.b16 %v8158
  %v8791 = vunpack.c.h.b16 %v8158
  %v8792 = vunpack.c.l.b16 %v8159
  %v8793 = vunpack.c.h.b16 %v8159
  %v8794 = vunpack.c.l.b16 %v8160
  %v8795 = vunpack.c.h.b16 %v8160
  %v8796 = vunpack.c.l.b16 %v8161
  %v8797 = vunpack.c.h.b16 %v8161
  %v8798 = vunpack.c.l.b16 %v8162
  %v8799 = vunpack.c.h.b16 %v8162
  %v8800 = vunpack.c.l.b16 %v8163
  %v8801 = vunpack.c.h.b16 %v8163
  %v8802 = vunpack.c.l.b16 %v8164
  %v8803 = vunpack.c.h.b16 %v8164
  %v8804 = vunpack.c.l.b16 %v8165
  %v8805 = vunpack.c.h.b16 %v8165
  %v8806 = vunpack.c.l.b16 %v8166
  %v8807 = vunpack.c.h.b16 %v8166
  %v8808 = vunpack.c.l.b16 %v8167
  %v8809 = vunpack.c.h.b16 %v8167
  %v8810 = vunpack.c.l.b16 %v8168
  %v8811 = vunpack.c.h.b16 %v8168
  %v8812 = vunpack.c.l.b16 %v8169
  %v8813 = vunpack.c.h.b16 %v8169
  %v8814 = vunpack.c.l.b16 %v8170
  %v8815 = vunpack.c.h.b16 %v8170
  %v8816 = vunpack.c.l.b16 %v8171
  %v8817 = vunpack.c.h.b16 %v8171
  %v8818 = vunpack.c.l.b16 %v8172
  %v8819 = vunpack.c.h.b16 %v8172
  %v8820 = vunpack.c.l.b16 %v8173
  %v8821 = vunpack.c.h.b16 %v8173
  %v8822 = vunpack.c.l.b16 %v8174
  %v8823 = vunpack.c.h.b16 %v8174
  %v8824 = vunpack.c.l.b16 %v8175
  %v8825 = vunpack.c.h.b16 %v8175
  %v8826 = vunpack.c.l.b16 %v8176
  %v8827 = vunpack.c.h.b16 %v8176
  %v8828 = vunpack.c.l.b16 %v8177
  %v8829 = vunpack.c.h.b16 %v8177
  %v8830 = vunpack.c.l.b16 %v8178
  %v8831 = vunpack.c.h.b16 %v8178
  %v8832 = vunpack.c.l.b16 %v8179
  %v8833 = vunpack.c.h.b16 %v8179
  %v8834 = vunpack.c.l.b16 %v8180
  %v8835 = vunpack.c.h.b16 %v8180
  %v8836 = vunpack.c.l.b16 %v8181
  %v8837 = vunpack.c.h.b16 %v8181
  %v8838 = vunpack.c.l.b16 %v8182
  %v8839 = vunpack.c.h.b16 %v8182
  %v8840 = vunpack.c.l.b16 %v8183
  %v8841 = vunpack.c.h.b16 %v8183
  %v8842 = vunpack.c.l.b16 %v8184
  %v8843 = vunpack.c.h.b16 %v8184
  %v8844 = vunpack.c.l.b16 %v8185
  %v8845 = vunpack.c.h.b16 %v8185
  %v8846 = vunpack.c.l.b16 %v8186
  %v8847 = vunpack.c.h.b16 %v8186
  %v8848 = vunpack.c.l.b16 %v8187
  %v8849 = vunpack.c.h.b16 %v8187
  %v8850 = vunpack.c.l.b16 %v8188
  %v8851 = vunpack.c.h.b16 %v8188
  %v8852 = vunpack.c.l.b16 %v8189
  %v8853 = vunpack.c.h.b16 %v8189
  %v8854 = vunpack.c.l.b16 %v8190
  %v8855 = vunpack.c.h.b16 %v8190
  %v8856 = vunpack.c.l.b16 %v8191
  %v8857 = vunpack.c.h.b16 %v8191
  %v8858 = vunpack.c.l.b16 %v8192
  %v8859 = vunpack.c.h.b16 %v8192
  %v8860 = vunpack.c.l.b16 %v8193
  %v8861 = vunpack.c.h.b16 %v8193
  %v8862 = vunpack.c.l.b16 %v8194
  %v8863 = vunpack.c.h.b16 %v8194
  %v8864 = vunpack.c.l.b16 %v8195
  %v8865 = vunpack.c.h.b16 %v8195
  %v8866 = vunpack.c.l.b16 %v8196
  %v8867 = vunpack.c.h.b16 %v8196
  %v8868 = vunpack.c.l.b16 %v8197
  %v8869 = vunpack.c.h.b16 %v8197
  %v8870 = vunpack.c.l.b16 %v8198
  %v8871 = vunpack.c.h.b16 %v8198
  %v8872 = vunpack.c.l.b16 %v8199
  %v8873 = vunpack.c.h.b16 %v8199
  %v8874 = vunpack.c.l.b16 %v8200
  %v8875 = vunpack.c.h.b16 %v8200
  %v8876 = vunpack.c.l.b16 %v8201
  %v8877 = vunpack.c.h.b16 %v8201
  %v8878 = vunpack.c.l.b16 %v8202
  %v8879 = vunpack.c.h.b16 %v8202
  %v8880 = vunpack.c.l.b16 %v8203
  %v8881 = vunpack.c.h.b16 %v8203
  %v8882 = vunpack.c.l.b16 %v8204
  %v8883 = vunpack.c.h.b16 %v8204
  %v8884 = vunpack.c.l.b16 %v8205
  %v8885 = vunpack.c.h.b16 %v8205
  %v8886 = vunpack.c.l.b16 %v8206
  %v8887 = vunpack.c.h.b16 %v8206
  %v8888 = vunpack.c.l.b16 %v8207
  %v8889 = vunpack.c.h.b16 %v8207
  %v8890 = vunpack.c.l.b16 %v8208
  %v8891 = vunpack.c.h.b16 %v8208
  %v8892 = vunpack.c.l.b16 %v8209
  %v8893 = vunpack.c.h.b16 %v8209
  %v8894 = vunpack.c.l.b16 %v8210
  %v8895 = vunpack.c.h.b16 %v8210
  %v8896 = vunpack.c.l.b16 %v8211
  %v8897 = vunpack.c.h.b16 %v8211
  %v8898 = vunpack.c.l.b16 %v8212
  %v8899 = vunpack.c.h.b16 %v8212
  %v8900 = vunpack.c.l.b16 %v8213
  %v8901 = vunpack.c.h.b16 %v8213
  %v8902 = vunpack.c.l.b16 %v8214
  %v8903 = vunpack.c.h.b16 %v8214
  %v8904 = vunpack.c.l.b16 %v8215
  %v8905 = vunpack.c.h.b16 %v8215
  %v8906 = vunpack.c.l.b16 %v8216
  %v8907 = vunpack.c.h.b16 %v8216
  %v8908 = vunpack.c.l.b16 %v8217
  %v8909 = vunpack.c.h.b16 %v8217
  %v8910 = vunpack.c.l.b16 %v8218
  %v8911 = vunpack.c.h.b16 %v8218
  %v8912 = vunpack.c.l.b16 %v8219
  %v8913 = vunpack.c.h.b16 %v8219
  %v8914 = vunpack.c.l.b16 %v8220
  %v8915 = vunpack.c.h.b16 %v8220
  %v8916 = vunpack.c.l.b16 %v8221
  %v8917 = vunpack.c.h.b16 %v8221
  %v8918 = vunpack.c.l.b16 %v8222
  %v8919 = vunpack.c.h.b16 %v8222
  %v8920 = vunpack.c.l.b16 %v8223
  %v8921 = vunpack.c.h.b16 %v8223
  %v8922 = vunpack.c.l.b16 %v8224
  %v8923 = vunpack.c.h.b16 %v8224
  %v8924 = vunpack.c.l.b16 %v8225
  %v8925 = vunpack.c.h.b16 %v8225
  %v8926 = vunpack.c.l.b16 %v8226
  %v8927 = vunpack.c.h.b16 %v8226
  %v8928 = vunpack.c.l.b16 %v8227
  %v8929 = vunpack.c.h.b16 %v8227
  %v8930 = vunpack.c.l.b16 %v8228
  %v8931 = vunpack.c.h.b16 %v8228
  %v8932 = vunpack.c.l.b16 %v8229
  %v8933 = vunpack.c.h.b16 %v8229
  %v8934 = vunpack.c.l.b16 %v8230
  %v8935 = vunpack.c.h.b16 %v8230
  %v8936 = vunpack.c.l.b16 %v8231
  %v8937 = vunpack.c.h.b16 %v8231
  %v8938 = vunpack.c.l.b16 %v8232
  %v8939 = vunpack.c.h.b16 %v8232
  %v8940 = vunpack.c.l.b16 %v8233
  %v8941 = vunpack.c.h.b16 %v8233
  %v8942 = vunpack.c.l.b16 %v8234
  %v8943 = vunpack.c.h.b16 %v8234
  %v8944 = vunpack.c.l.b16 %v8235
  %v8945 = vunpack.c.h.b16 %v8235
  %v8946 = vunpack.c.l.b16 %v8236
  %v8947 = vunpack.c.h.b16 %v8236
  %v8948 = vunpack.c.l.b16 %v8237
  %v8949 = vunpack.c.h.b16 %v8237
  %v8950 = vunpack.c.l.b16 %v8238
  %v8951 = vunpack.c.h.b16 %v8238
  %v8952 = vunpack.c.l.b16 %v8239
  %v8953 = vunpack.c.h.b16 %v8239
  %v8954 = vunpack.c.l.b16 %v8240
  %v8955 = vunpack.c.h.b16 %v8240
  %v8956 = vunpack.c.l.b16 %v8241
  %v8957 = vunpack.c.h.b16 %v8241
  %v8958 = vunpack.c.l.b16 %v8242
  %v8959 = vunpack.c.h.b16 %v8242
  %v8960 = vunpack.c.l.b16 %v8243
  %v8961 = vunpack.c.h.b16 %v8243
  %v8962 = vunpack.c.l.b16 %v8244
  %v8963 = vunpack.c.h.b16 %v8244
  %v8964 = vunpack.c.l.b16 %v8245
  %v8965 = vunpack.c.h.b16 %v8245
  %v8966 = vunpack.c.l.b16 %v8246
  %v8967 = vunpack.c.h.b16 %v8246
  %v8968 = vunpack.c.l.b16 %v8247
  %v8969 = vunpack.c.h.b16 %v8247
  %v8970 = vunpack.c.l.b16 %v8248
  %v8971 = vunpack.c.h.b16 %v8248
  %v8972 = vunpack.c.l.b16 %v8249
  %v8973 = vunpack.c.h.b16 %v8249
  %v8974 = vunpack.c.l.b16 %v8250
  %v8975 = vunpack.c.h.b16 %v8250
  %v8976 = vunpack.c.l.b16 %v8251
  %v8977 = vunpack.c.h.b16 %v8251
  %v8978 = vunpack.c.l.b16 %v8252
  %v8979 = vunpack.c.h.b16 %v8252
  %v8980 = vunpack.c.l.b16 %v8253
  %v8981 = vunpack.c.h.b16 %v8253
  %v8982 = vunpack.c.l.b16 %v8254
  %v8983 = vunpack.c.h.b16 %v8254
  %v8984 = vunpack.c.l.b16 %v8255
  %v8985 = vunpack.c.h.b16 %v8255
  %v8986 = vunpack.c.l.b16 %v8256
  %v8987 = vunpack.c.h.b16 %v8256
  %v8988 = vunpack.c.l.b16 %v8257
  %v8989 = vunpack.c.h.b16 %v8257
  %v8990 = vunpack.c.l.b16 %v8258
  %v8991 = vunpack.c.h.b16 %v8258
  %v8992 = vunpack.c.l.b16 %v8259
  %v8993 = vunpack.c.h.b16 %v8259
  %v8994 = vunpack.c.l.b16 %v8260
  %v8995 = vunpack.c.h.b16 %v8260
  %v8996 = vunpack.c.l.b16 %v8261
  %v8997 = vunpack.c.h.b16 %v8261
  %v8998 = vunpack.c.l.b16 %v8262
  %v8999 = vunpack.c.h.b16 %v8262
  %v9000 = vunpack.c.l.b16 %v8263
  %v9001 = vunpack.c.h.b16 %v8263
  %v9002 = vunpack.c.l.b16 %v8264
  %v9003 = vunpack.c.h.b16 %v8264
  %v9004 = vunpack.c.l.b16 %v8265
  %v9005 = vunpack.c.h.b16 %v8265
  %v9006 = vunpack.c.l.b16 %v8266
  %v9007 = vunpack.c.h.b16 %v8266
  %v9008 = vunpack.c.l.b16 %v8267
  %v9009 = vunpack.c.h.b16 %v8267
  %v9010 = vunpack.c.l.b16 %v8268
  %v9011 = vunpack.c.h.b16 %v8268
  %v9012 = vunpack.c.l.b16 %v8269
  %v9013 = vunpack.c.h.b16 %v8269
  %v9014 = vunpack.c.l.b16 %v8270
  %v9015 = vunpack.c.h.b16 %v8270
  %v9016 = vunpack.c.l.b16 %v8271
  %v9017 = vunpack.c.h.b16 %v8271
  %v9018 = vunpack.c.l.b16 %v8272
  %v9019 = vunpack.c.h.b16 %v8272
  %v9020 = vunpack.c.l.b16 %v8273
  %v9021 = vunpack.c.h.b16 %v8273
  %v9022 = vunpack.c.l.b16 %v8274
  %v9023 = vunpack.c.h.b16 %v8274
  %v9024 = vunpack.c.l.b16 %v8275
  %v9025 = vunpack.c.h.b16 %v8275
  %v9026 = vunpack.c.l.b16 %v8276
  %v9027 = vunpack.c.h.b16 %v8276
  %v9028 = vunpack.c.l.b16 %v8277
  %v9029 = vunpack.c.h.b16 %v8277
  %v9030 = vunpack.c.l.b16 %v8278
  %v9031 = vunpack.c.h.b16 %v8278
  %v9032 = vunpack.c.l.b16 %v8279
  %v9033 = vunpack.c.h.b16 %v8279
  %v9034 = vunpack.c.l.b16 %v8280
  %v9035 = vunpack.c.h.b16 %v8280
  %v9036 = vunpack.c.l.b16 %v8281
  %v9037 = vunpack.c.h.b16 %v8281
  %v9038 = vunpack.c.l.b16 %v8282
  %v9039 = vunpack.c.h.b16 %v8282
  %v9040 = vunpack.c.l.b16 %v8283
  %v9041 = vunpack.c.h.b16 %v8283
  %v9042 = vunpack.c.l.b16 %v8284
  %v9043 = vunpack.c.h.b16 %v8284
  %v9044 = vunpack.c.l.b16 %v8285
  %v9045 = vunpack.c.h.b16 %v8285
  %v9046 = vunpack.c.l.b16 %v8286
  %v9047 = vunpack.c.h.b16 %v8286
  %v9048 = vunpack.c.l.b16 %v8287
  %v9049 = vunpack.c.h.b16 %v8287
  %v9050 = vunpack.c.l.b16 %v8288
  %v9051 = vunpack.c.h.b16 %v8288
  %v9052 = vunpack.c.l.b16 %v8289
  %v9053 = vunpack.c.h.b16 %v8289
  %v9054 = vunpack.c.l.b16 %v8290
  %v9055 = vunpack.c.h.b16 %v8290
  %v9056 = vunpack.c.l.b16 %v8291
  %v9057 = vunpack.c.h.b16 %v8291
  %v9058 = vunpack.c.l.b16 %v8292
  %v9059 = vunpack.c.h.b16 %v8292
  %v9060 = vunpack.c.l.b16 %v8293
  %v9061 = vunpack.c.h.b16 %v8293
  %v9062 = vunpack.c.l.b16 %v8294
  %v9063 = vunpack.c.h.b16 %v8294
  %v9064 = vunpack.c.l.b16 %v8295
  %v9065 = vunpack.c.h.b16 %v8295
  %v9066 = vunpack.c.l.b16 %v8296
  %v9067 = vunpack.c.h.b16 %v8296
  %v9068 = vunpack.c.l.b16 %v8297
  %v9069 = vunpack.c.h.b16 %v8297
  %v9070 = vpack.c.b16 %v8574, %v8570
  %v9071 = vpack.c.b16 %v8575, %v8571
  %v9072 = vpack.c.b16 %v8576, %v8572
  %v9073 = vpack.c.b16 %v8577, %v8573
  %v9074 = vpack.c.b16 %v8582, %v8578
  %v9075 = vpack.c.b16 %v8583, %v8579
  %v9076 = vpack.c.b16 %v8584, %v8580
  %v9077 = vpack.c.b16 %v8585, %v8581
  %v9078 = vpack.c.b16 %v8590, %v8586
  %v9079 = vpack.c.b16 %v8591, %v8587
  %v9080 = vpack.c.b16 %v8592, %v8588
  %v9081 = vpack.c.b16 %v8593, %v8589
  %v9082 = vpack.c.b16 %v8598, %v8594
  %v9083 = vpack.c.b16 %v8599, %v8595
  %v9084 = vpack.c.b16 %v8600, %v8596
  %v9085 = vpack.c.b16 %v8601, %v8597
  %v9086 = vpack.c.b16 %v8606, %v8602
  %v9087 = vpack.c.b16 %v8607, %v8603
  %v9088 = vpack.c.b16 %v8608, %v8604
  %v9089 = vpack.c.b16 %v8609, %v8605
  %v9090 = vpack.c.b16 %v8614, %v8610
  %v9091 = vpack.c.b16 %v8615, %v8611
  %v9092 = vpack.c.b16 %v8616, %v8612
  %v9093 = vpack.c.b16 %v8617, %v8613
  %v9094 = vpack.c.b16 %v8622, %v8618
  %v9095 = vpack.c.b16 %v8623, %v8619
  %v9096 = vpack.c.b16 %v8624, %v8620
  %v9097 = vpack.c.b16 %v8625, %v8621
  %v9098 = vpack.c.b16 %v8630, %v8626
  %v9099 = vpack.c.b16 %v8631, %v8627
  %v9100 = vpack.c.b16 %v8632, %v8628
  %v9101 = vpack.c.b16 %v8633, %v8629
  %v9102 = vpack.c.b16 %v8638, %v8634
  %v9103 = vpack.c.b16 %v8639, %v8635
  %v9104 = vpack.c.b16 %v8640, %v8636
  %v9105 = vpack.c.b16 %v8641, %v8637
  %v9106 = vpack.c.b16 %v8646, %v8642
  %v9107 = vpack.c.b16 %v8647, %v8643
  %v9108 = vpack.c.b16 %v8648, %v8644
  %v9109 = vpack.c.b16 %v8649, %v8645
  %v9110 = vpack.c.b16 %v8654, %v8650
  %v9111 = vpack.c.b16 %v8655, %v8651
  %v9112 = vpack.c.b16 %v8656, %v8652
  %v9113 = vpack.c.b16 %v8657, %v8653
  %v9114 = vpack.c.b16 %v8662, %v8658
  %v9115 = vpack.c.b16 %v8663, %v8659
  %v9116 = vpack.c.b16 %v8664, %v8660
  %v9117 = vpack.c.b16 %v8665, %v8661
  %v9118 = vpack.c.b16 %v8670, %v8666
  %v9119 = vpack.c.b16 %v8671, %v8667
  %v9120 = vpack.c.b16 %v8672, %v8668
  %v9121 = vpack.c.b16 %v8673, %v8669
  %v9122 = vpack.c.b16 %v8678, %v8674
  %v9123 = vpack.c.b16 %v8679, %v8675
  %v9124 = vpack.c.b16 %v8680, %v8676
  %v9125 = vpack.c.b16 %v8681, %v8677
  %v9126 = vpack.c.b16 %v8686, %v8682
  %v9127 = vpack.c.b16 %v8687, %v8683
  %v9128 = vpack.c.b16 %v8688, %v8684
  %v9129 = vpack.c.b16 %v8689, %v8685
  %v9130 = vpack.c.b16 %v8694, %v8690
  %v9131 = vpack.c.b16 %v8695, %v8691
  %v9132 = vpack.c.b16 %v8696, %v8692
  %v9133 = vpack.c.b16 %v8697, %v8693
  %v9134 = vpack.c.b16 %v8702, %v8698
  %v9135 = vpack.c.b16 %v8703, %v8699
  %v9136 = vpack.c.b16 %v8704, %v8700
  %v9137 = vpack.c.b16 %v8705, %v8701
  %v9138 = vpack.c.b16 %v8710, %v8706
  %v9139 = vpack.c.b16 %v8711, %v8707
  %v9140 = vpack.c.b16 %v8712, %v8708
  %v9141 = vpack.c.b16 %v8713, %v8709
  %v9142 = vpack.c.b16 %v8718, %v8714
  %v9143 = vpack.c.b16 %v8719, %v8715
  %v9144 = vpack.c.b16 %v8720, %v8716
  %v9145 = vpack.c.b16 %v8721, %v8717
  %v9146 = vpack.c.b16 %v8726, %v8722
  %v9147 = vpack.c.b16 %v8727, %v8723
  %v9148 = vpack.c.b16 %v8728, %v8724
  %v9149 = vpack.c.b16 %v8729, %v8725
  %v9150 = vpack.c.b16 %v8734, %v8730
  %v9151 = vpack.c.b16 %v8735, %v8731
  %v9152 = vpack.c.b16 %v8736, %v8732
  %v9153 = vpack.c.b16 %v8737, %v8733
  %v9154 = vpack.c.b16 %v8742, %v8738
  %v9155 = vpack.c.b16 %v8743, %v8739
  %v9156 = vpack.c.b16 %v8744, %v8740
  %v9157 = vpack.c.b16 %v8745, %v8741
  %v9158 = vpack.c.b16 %v8750, %v8746
  %v9159 = vpack.c.b16 %v8751, %v8747
  %v9160 = vpack.c.b16 %v8752, %v8748
  %v9161 = vpack.c.b16 %v8753, %v8749
  %v9162 = vpack.c.b16 %v8758, %v8754
  %v9163 = vpack.c.b16 %v8759, %v8755
  %v9164 = vpack.c.b16 %v8760, %v8756
  %v9165 = vpack.c.b16 %v8761, %v8757
  %v9166 = vpack.c.b16 %v8766, %v8762
  %v9167 = vpack.c.b16 %v8767, %v8763
  %v9168 = vpack.c.b16 %v8768, %v8764
  %v9169 = vpack.c.b16 %v8769, %v8765
  %v9170 = vpack.c.b16 %v8774, %v8770
  %v9171 = vpack.c.b16 %v8775, %v8771
  %v9172 = vpack.c.b16 %v8776, %v8772
  %v9173 = vpack.c.b16 %v8777, %v8773
  %v9174 = vpack.c.b16 %v8782, %v8778
  %v9175 = vpack.c.b16 %v8783, %v8779
  %v9176 = vpack.c.b16 %v8784, %v8780
  %v9177 = vpack.c.b16 %v8785, %v8781
  %v9178 = vpack.c.b16 %v8790, %v8786
  %v9179 = vpack.c.b16 %v8791, %v8787
  %v9180 = vpack.c.b16 %v8792, %v8788
  %v9181 = vpack.c.b16 %v8793, %v8789
  %v9182 = vpack.c.b16 %v8798, %v8794
  %v9183 = vpack.c.b16 %v8799, %v8795
  %v9184 = vpack.c.b16 %v8800, %v8796
  %v9185 = vpack.c.b16 %v8801, %v8797
  %v9186 = vpack.c.b16 %v8806, %v8802
  %v9187 = vpack.c.b16 %v8807, %v8803
  %v9188 = vpack.c.b16 %v8808, %v8804
  %v9189 = vpack.c.b16 %v8809, %v8805
  %v9190 = vpack.c.b16 %v8814, %v8810
  %v9191 = vpack.c.b16 %v8815, %v8811
  %v9192 = vpack.c.b16 %v8816, %v8812
  %v9193 = vpack.c.b16 %v8817, %v8813
  %v9194 = vpack.c.b16 %v8822, %v8818
  %v9195 = vpack.c.b16 %v8823, %v8819
  %v9196 = vpack.c.b16 %v8824, %v8820
  %v9197 = vpack.c.b16 %v8825, %v8821
  %v9198 = vpack.c.b16 %v8830, %v8826
  %v9199 = vpack.c.b16 %v8831, %v8827
  %v9200 = vpack.c.b16 %v8832, %v8828
  %v9201 = vpack.c.b16 %v8833, %v8829
  %v9202 = vpack.c.b16 %v8838, %v8834
  %v9203 = vpack.c.b16 %v8839, %v8835
  %v9204 = vpack.c.b16 %v8840, %v8836
  %v9205 = vpack.c.b16 %v8841, %v8837
  %v9206 = vpack.c.b16 %v8846, %v8842
  %v9207 = vpack.c.b16 %v8847, %v8843
  %v9208 = vpack.c.b16 %v8848, %v8844
  %v9209 = vpack.c.b16 %v8849, %v8845
  %v9210 = vpack.c.b16 %v8854, %v8850
  %v9211 = vpack.c.b16 %v8855, %v8851
  %v9212 = vpack.c.b16 %v8856, %v8852
  %v9213 = vpack.c.b16 %v8857, %v8853
  %v9214 = vpack.c.b16 %v8862, %v8858
  %v9215 = vpack.c.b16 %v8863, %v8859
  %v9216 = vpack.c.b16 %v8864, %v8860
  %v9217 = vpack.c.b16 %v8865, %v8861
  %v9218 = vpack.c.b16 %v8870, %v8866
  %v9219 = vpack.c.b16 %v8871, %v8867
  %v9220 = vpack.c.b16 %v8872, %v8868
  %v9221 = vpack.c.b16 %v8873, %v8869
  %v9222 = vpack.c.b16 %v8878, %v8874
  %v9223 = vpack.c.b16 %v8879, %v8875
  %v9224 = vpack.c.b16 %v8880, %v8876
  %v9225 = vpack.c.b16 %v8881, %v8877
  %v9226 = vpack.c.b16 %v8886, %v8882
  %v9227 = vpack.c.b16 %v8887, %v8883
  %v9228 = vpack.c.b16 %v8888, %v8884
  %v9229 = vpack.c.b16 %v8889, %v8885
  %v9230 = vpack.c.b16 %v8894, %v8890
  %v9231 = vpack.c.b16 %v8895, %v8891
  %v9232 = vpack.c.b16 %v8896, %v8892
  %v9233 = vpack.c.b16 %v8897, %v8893
  %v9234 = vpack.c.b16 %v8902, %v8898
  %v9235 = vpack.c.b16 %v8903, %v8899
  %v9236 = vpack.c.b16 %v8904, %v8900
  %v9237 = vpack.c.b16 %v8905, %v8901
  %v9238 = vpack.c.b16 %v8910, %v8906
  %v9239 = vpack.c.b16 %v8911, %v8907
  %v9240 = vpack.c.b16 %v8912, %v8908
  %v9241 = vpack.c.b16 %v8913, %v8909
  %v9242 = vpack.c.b16 %v8918, %v8914
  %v9243 = vpack.c.b16 %v8919, %v8915
  %v9244 = vpack.c.b16 %v8920, %v8916
  %v9245 = vpack.c.b16 %v8921, %v8917
  %v9246 = vpack.c.b16 %v8926, %v8922
  %v9247 = vpack.c.b16 %v8927, %v8923
  %v9248 = vpack.c.b16 %v8928, %v8924
  %v9249 = vpack.c.b16 %v8929, %v8925
  %v9250 = vpack.c.b16 %v8934, %v8930
  %v9251 = vpack.c.b16 %v8935, %v8931
  %v9252 = vpack.c.b16 %v8936, %v8932
  %v9253 = vpack.c.b16 %v8937, %v8933
  %v9254 = vpack.c.b16 %v8942, %v8938
  %v9255 = vpack.c.b16 %v8943, %v8939
  %v9256 = vpack.c.b16 %v8944, %v8940
  %v9257 = vpack.c.b16 %v8945, %v8941
  %v9258 = vpack.c.b16 %v8950, %v8946
  %v9259 = vpack.c.b16 %v8951, %v8947
  %v9260 = vpack.c.b16 %v8952, %v8948
  %v9261 = vpack.c.b16 %v8953, %v8949
  %v9262 = vpack.c.b16 %v8958, %v8954
  %v9263 = vpack.c.b16 %v8959, %v8955
  %v9264 = vpack.c.b16 %v8960, %v8956
  %v9265 = vpack.c.b16 %v8961, %v8957
  %v9266 = vpack.c.b16 %v8966, %v8962
  %v9267 = vpack.c.b16 %v8967, %v8963
  %v9268 = vpack.c.b16 %v8968, %v8964
  %v9269 = vpack.c.b16 %v8969, %v8965
  %v9270 = vpack.c.b16 %v8974, %v8970
  %v9271 = vpack.c.b16 %v8975, %v8971
  %v9272 = vpack.c.b16 %v8976, %v8972
  %v9273 = vpack.c.b16 %v8977, %v8973
  %v9274 = vpack.c.b16 %v8982, %v8978
  %v9275 = vpack.c.b16 %v8983, %v8979
  %v9276 = vpack.c.b16 %v8984, %v8980
  %v9277 = vpack.c.b16 %v8985, %v8981
  %v9278 = vpack.c.b16 %v8990, %v8986
  %v9279 = vpack.c.b16 %v8991, %v8987
  %v9280 = vpack.c.b16 %v8992, %v8988
  %v9281 = vpack.c.b16 %v8993, %v8989
  %v9282 = vpack.c.b16 %v8998, %v8994
  %v9283 = vpack.c.b16 %v8999, %v8995
  %v9284 = vpack.c.b16 %v9000, %v8996
  %v9285 = vpack.c.b16 %v9001, %v8997
  %v9286 = vpack.c.b16 %v9006, %v9002
  %v9287 = vpack.c.b16 %v9007, %v9003
  %v9288 = vpack.c.b16 %v9008, %v9004
  %v9289 = vpack.c.b16 %v9009, %v9005
  %v9290 = vpack.c.b16 %v9014, %v9010
  %v9291 = vpack.c.b16 %v9015, %v9011
  %v9292 = vpack.c.b16 %v9016, %v9012
  %v9293 = vpack.c.b16 %v9017, %v9013
  %v9294 = vpack.c.b16 %v9022, %v9018
  %v9295 = vpack.c.b16 %v9023, %v9019
  %v9296 = vpack.c.b16 %v9024, %v9020
  %v9297 = vpack.c.b16 %v9025, %v9021
  %v9298 = vpack.c.b16 %v9030, %v9026
  %v9299 = vpack.c.b16 %v9031, %v9027
  %v9300 = vpack.c.b16 %v9032, %v9028
  %v9301 = vpack.c.b16 %v9033, %v9029
  %v9302 = vpack.c.b16 %v9038, %v9034
  %v9303 = vpack.c.b16 %v9039, %v9035
  %v9304 = vpack.c.b16 %v9040, %v9036
  %v9305 = vpack.c.b16 %v9041, %v9037
  %v9306 = vpack.c.b16 %v9046, %v9042
  %v9307 = vpack.c.b16 %v9047, %v9043
  %v9308 = vpack.c.b16 %v9048, %v9044
  %v9309 = vpack.c.b16 %v9049, %v9045
  %v9310 = vpack.c.b16 %v9054, %v9050
  %v9311 = vpack.c.b16 %v9055, %v9051
  %v9312 = vpack.c.b16 %v9056, %v9052
  %v9313 = vpack.c.b16 %v9057, %v9053
  %v9314 = vpack.c.b16 %v9062, %v9058
  %v9315 = vpack.c.b16 %v9063, %v9059
  %v9316 = vpack.c.b16 %v9064, %v9060
  %v9317 = vpack.c.b16 %v9065, %v9061
  %v9318 = vpack.c.b16 %v9066, %v9066
  %v9319 = vpack.c.b16 %v9067, %v9067
  %v9320 = vpack.c.b16 %v9068, %v9068
  %v9321 = vpack.c.b16 %v9069, %v9069
  %v9571 = vsel %vm7863, %v8047, 0
  %v9574 = vsel %vm7780, %v9318, 0
  %v9577 = vsel %vm7780, %v9319, 0
  %v9580 = vsel %vm7780, %v9320, 0
  %v9583 = vsel %vm7780, %v9321, 0
  %9585 = vmatprep.subr.bf16.mxu0 %v9071
  %9586 = vmatpush1.bf16.msra.mxu0 %v9070
  %9587 = vmatprep.subr.bf16.mxu0 %v9075
  %9588 = vmatpush1.bf16.msra.mxu0 %v9074
  %9589 = vmatprep.subr.bf16.mxu0 %v9079
  %9590 = vmatpush1.bf16.msra.mxu0 %v9078
  %9591 = vmatprep.subr.bf16.mxu0 %v9083
  %9592 = vmatpush1.bf16.msra.mxu0 %v9082
  %9593 = vmatprep.subr.bf16.mxu0 %v9087
  %9594 = vmatpush1.bf16.msra.mxu0 %v9086
  %9595 = vmatprep.subr.bf16.mxu0 %v9091
  %9596 = vmatpush1.bf16.msra.mxu0 %v9090
  %9597 = vmatprep.subr.bf16.mxu0 %v9095
  %9598 = vmatpush1.bf16.msra.mxu0 %v9094
  %9599 = vmatprep.subr.bf16.mxu0 %v9099
  %9600 = vmatpush1.bf16.msra.mxu0 %v9098
  %9601 = vmatprep.subr.bf16.mxu0 %v9103
  %9602 = vmatpush1.bf16.msra.mxu0 %v9102
  %9603 = vmatprep.subr.bf16.mxu0 %v9107
  %9604 = vmatpush1.bf16.msra.mxu0 %v9106
  %9605 = vmatprep.subr.bf16.mxu0 %v9111
  %9606 = vmatpush1.bf16.msra.mxu0 %v9110
  %9607 = vmatprep.subr.bf16.mxu0 %v9115
  %9608 = vmatpush1.bf16.msra.mxu0 %v9114
  %9609 = vmatprep.subr.bf16.mxu0 %v9119
  %9610 = vmatpush1.bf16.msra.mxu0 %v9118
  %9611 = vmatprep.subr.bf16.mxu0 %v9123
  %9612 = vmatpush1.bf16.msra.mxu0 %v9122
  %9613 = vmatprep.subr.bf16.mxu0 %v9127
  %9614 = vmatpush1.bf16.msra.mxu0 %v9126
  %9615 = vmatprep.subr.bf16.mxu0 %v9131
  %9616 = vmatpush1.bf16.msra.mxu0 %v9130
  %9617 = vmatprep.mubr.bf16.mxu0 %v8041
  %9618 = vmatmul.mubr.bf16.gmra.mrb[0].mxu0 %v8040
  %v9619 = vpop.f32.mrb[0].mxu0
  %v9620 = vadd.f32 %v8303, %v9619
  %v9621 = vpop.f32.mrb[0].mxu0
  %v9622 = vadd.f32 %v8307, %v9621
  %v9623 = vpop.f32.mrb[0].mxu0
  %v9624 = vpop.f32.mrb[0].mxu0
  %9625 = vdwg.mxu0
  %9626 = vmatprep.subr.bf16.mxu0 %v9135
  %9627 = vmatpush1.bf16.msra.mxu0 %v9134
  %9628 = vmatprep.subr.bf16.mxu0 %v9139
  %9629 = vmatpush1.bf16.msra.mxu0 %v9138
  %9630 = vmatprep.subr.bf16.mxu0 %v9143
  %9631 = vmatpush1.bf16.msra.mxu0 %v9142
  %9632 = vmatprep.subr.bf16.mxu0 %v9147
  %9633 = vmatpush1.bf16.msra.mxu0 %v9146
  %9634 = vmatprep.subr.bf16.mxu0 %v9151
  %9635 = vmatpush1.bf16.msra.mxu0 %v9150
  %9636 = vmatprep.subr.bf16.mxu0 %v9155
  %9637 = vmatpush1.bf16.msra.mxu0 %v9154
  %9638 = vmatprep.subr.bf16.mxu0 %v9159
  %9639 = vmatpush1.bf16.msra.mxu0 %v9158
  %9640 = vmatprep.subr.bf16.mxu0 %v9163
  %9641 = vmatpush1.bf16.msra.mxu0 %v9162
  %9642 = vmatprep.subr.bf16.mxu0 %v9167
  %9643 = vmatpush1.bf16.msra.mxu0 %v9166
  %9644 = vmatprep.subr.bf16.mxu0 %v9171
  %9645 = vmatpush1.bf16.msra.mxu0 %v9170
  %9646 = vmatprep.subr.bf16.mxu0 %v9175
  %9647 = vmatpush1.bf16.msra.mxu0 %v9174
  %9648 = vmatprep.subr.bf16.mxu0 %v9179
  %9649 = vmatpush1.bf16.msra.mxu0 %v9178
  %9650 = vmatprep.subr.bf16.mxu0 %v9183
  %9651 = vmatpush1.bf16.msra.mxu0 %v9182
  %9652 = vmatprep.subr.bf16.mxu0 %v9187
  %9653 = vmatpush1.bf16.msra.mxu0 %v9186
  %9654 = vmatprep.subr.bf16.mxu0 %v9191
  %9655 = vmatpush1.bf16.msra.mxu0 %v9190
  %9656 = vmatprep.subr.bf16.mxu0 %v9195
  %9657 = vmatpush1.bf16.msra.mxu0 %v9194
  %9658 = vmatprep.mubr.bf16.mxu0 %v8043
  %9659 = vmatmul.mubr.bf16.gmra.mrb[0].mxu0 %v8042
  %v9660 = vpop.f32.mrb[0].mxu0
  %v9661 = vadd.f32 %v9620, %v9660
  %v9662 = vpop.f32.mrb[0].mxu0
  %v9663 = vadd.f32 %v9622, %v9662
  %v9664 = vpop.f32.mrb[0].mxu0
  %v9665 = vpop.f32.mrb[0].mxu0
  %9666 = vdwg.mxu0
  %9667 = vmatprep.subr.bf16.mxu0 %v9199
  %9668 = vmatpush1.bf16.msra.mxu0 %v9198
  %9669 = vmatprep.subr.bf16.mxu0 %v9203
  %9670 = vmatpush1.bf16.msra.mxu0 %v9202
  %9671 = vmatprep.subr.bf16.mxu0 %v9207
  %9672 = vmatpush1.bf16.msra.mxu0 %v9206
  %9673 = vmatprep.subr.bf16.mxu0 %v9211
  %9674 = vmatpush1.bf16.msra.mxu0 %v9210
  %9675 = vmatprep.subr.bf16.mxu0 %v9215
  %9676 = vmatpush1.bf16.msra.mxu0 %v9214
  %9677 = vmatprep.subr.bf16.mxu0 %v9219
  %9678 = vmatpush1.bf16.msra.mxu0 %v9218
  %9679 = vmatprep.subr.bf16.mxu0 %v9223
  %9680 = vmatpush1.bf16.msra.mxu0 %v9222
  %9681 = vmatprep.subr.bf16.mxu0 %v9227
  %9682 = vmatpush1.bf16.msra.mxu0 %v9226
  %9683 = vmatprep.subr.bf16.mxu0 %v9231
  %9684 = vmatpush1.bf16.msra.mxu0 %v9230
  %9685 = vmatprep.subr.bf16.mxu0 %v9235
  %9686 = vmatpush1.bf16.msra.mxu0 %v9234
  %9687 = vmatprep.subr.bf16.mxu0 %v9239
  %9688 = vmatpush1.bf16.msra.mxu0 %v9238
  %9689 = vmatprep.subr.bf16.mxu0 %v9243
  %9690 = vmatpush1.bf16.msra.mxu0 %v9242
  %9691 = vmatprep.subr.bf16.mxu0 %v9247
  %9692 = vmatpush1.bf16.msra.mxu0 %v9246
  %9693 = vmatprep.subr.bf16.mxu0 %v9251
  %9694 = vmatpush1.bf16.msra.mxu0 %v9250
  %9695 = vmatprep.subr.bf16.mxu0 %v9255
  %9696 = vmatpush1.bf16.msra.mxu0 %v9254
  %9697 = vmatprep.subr.bf16.mxu0 %v9259
  %9698 = vmatpush1.bf16.msra.mxu0 %v9258
  %9699 = vmatprep.mubr.bf16.mxu0 %v8045
  %9700 = vmatmul.mubr.bf16.gmra.mrb[0].mxu0 %v8044
  %v9701 = vpop.f32.mrb[0].mxu0
  %v9702 = vadd.f32 %v9661, %v9701
  %v9703 = vpop.f32.mrb[0].mxu0
  %v9704 = vadd.f32 %v9663, %v9703
  %v9705 = vpop.f32.mrb[0].mxu0
  %v9706 = vpop.f32.mrb[0].mxu0
  %9707 = vdwg.mxu0
  %9708 = vmatprep.subr.bf16.mxu0 %v9263
  %9709 = vmatpush1.bf16.msra.mxu0 %v9262
  %9710 = vmatprep.subr.bf16.mxu0 %v9267
  %9711 = vmatpush1.bf16.msra.mxu0 %v9266
  %9712 = vmatprep.subr.bf16.mxu0 %v9271
  %9713 = vmatpush1.bf16.msra.mxu0 %v9270
  %9714 = vmatprep.subr.bf16.mxu0 %v9275
  %9715 = vmatpush1.bf16.msra.mxu0 %v9274
  %9716 = vmatprep.subr.bf16.mxu0 %v9279
  %9717 = vmatpush1.bf16.msra.mxu0 %v9278
  %9718 = vmatprep.subr.bf16.mxu0 %v9283
  %9719 = vmatpush1.bf16.msra.mxu0 %v9282
  %9720 = vmatprep.subr.bf16.mxu0 %v9287
  %9721 = vmatpush1.bf16.msra.mxu0 %v9286
  %9722 = vmatprep.subr.bf16.mxu0 %v9291
  %9723 = vmatpush1.bf16.msra.mxu0 %v9290
  %9724 = vmatprep.subr.bf16.mxu0 %v9295
  %9725 = vmatpush1.bf16.msra.mxu0 %v9294
  %9726 = vmatprep.subr.bf16.mxu0 %v9299
  %9727 = vmatpush1.bf16.msra.mxu0 %v9298
  %9728 = vmatprep.subr.bf16.mxu0 %v9303
  %9729 = vmatpush1.bf16.msra.mxu0 %v9302
  %9730 = vmatprep.subr.bf16.mxu0 %v9307
  %9731 = vmatpush1.bf16.msra.mxu0 %v9306
  %9732 = vmatprep.subr.bf16.mxu0 %v9311
  %9733 = vmatpush1.bf16.msra.mxu0 %v9310
  %9734 = vmatprep.subr.bf16.mxu0 %v9315
  %9735 = vmatpush1.bf16.msra.mxu0 %v9314
  %9736 = vmatprep.subr.bf16.mxu0 %v9577
  %9737 = vmatpush1.bf16.msra.mxu0 %v9574
  %9738 = vmatprep.subr.bf16.mxu0 0
  %9739 = vmatpush1.bf16.msra.mxu0 0
  %9740 = vmatprep.mubr.bf16.mxu0 %v9571
  %9741 = vmatmul.mubr.bf16.gmra.mrb[0].mxu0 %v8046
  %v9742 = vpop.f32.mrb[0].mxu0
  %v9743 = vadd.f32 %v9702, %v9742
  %v9744 = vpop.f32.mrb[0].mxu0
  %v9745 = vadd.f32 %v9704, %v9744
  %v9746 = vpop.f32.mrb[0].mxu0
  %v9747 = vpop.f32.mrb[0].mxu0
  %9748 = vdwg.mxu0
  %9749 = vmatprep.subr.bf16.mxu0 %v9073
  %9750 = vmatpush1.bf16.msra.mxu0 %v9072
  %9751 = vmatprep.subr.bf16.mxu0 %v9077
  %9752 = vmatpush1.bf16.msra.mxu0 %v9076
  %9753 = vmatprep.subr.bf16.mxu0 %v9081
  %9754 = vmatpush1.bf16.msra.mxu0 %v9080
  %9755 = vmatprep.subr.bf16.mxu0 %v9085
  %9756 = vmatpush1.bf16.msra.mxu0 %v9084
  %9757 = vmatprep.subr.bf16.mxu0 %v9089
  %9758 = vmatpush1.bf16.msra.mxu0 %v9088
  %9759 = vmatprep.subr.bf16.mxu0 %v9093
  %9760 = vmatpush1.bf16.msra.mxu0 %v9092
  %9761 = vmatprep.subr.bf16.mxu0 %v9097
  %9762 = vmatpush1.bf16.msra.mxu0 %v9096
  %9763 = vmatprep.subr.bf16.mxu0 %v9101
  %9764 = vmatpush1.bf16.msra.mxu0 %v9100
  %9765 = vmatprep.subr.bf16.mxu0 %v9105
  %9766 = vmatpush1.bf16.msra.mxu0 %v9104
  %9767 = vmatprep.subr.bf16.mxu0 %v9109
  %9768 = vmatpush1.bf16.msra.mxu0 %v9108
  %9769 = vmatprep.subr.bf16.mxu0 %v9113
  %9770 = vmatpush1.bf16.msra.mxu0 %v9112
  %9771 = vmatprep.subr.bf16.mxu0 %v9117
  %9772 = vmatpush1.bf16.msra.mxu0 %v9116
  %9773 = vmatprep.subr.bf16.mxu0 %v9121
  %9774 = vmatpush1.bf16.msra.mxu0 %v9120
  %9775 = vmatprep.subr.bf16.mxu0 %v9125
  %9776 = vmatpush1.bf16.msra.mxu0 %v9124
  %9777 = vmatprep.subr.bf16.mxu0 %v9129
  %9778 = vmatpush1.bf16.msra.mxu0 %v9128
  %9779 = vmatprep.subr.bf16.mxu0 %v9133
  %9780 = vmatpush1.bf16.msra.mxu0 %v9132
  %9781 = vmatprep.mubr.bf16.mxu0 %v8041
  %9782 = vmatmul.mubr.bf16.gmra.mrb[0].mxu0 %v8040
  %v9783 = vpop.f32.mrb[0].mxu0
  %v9784 = vadd.f32 %v8311, %v9783
  %v9785 = vpop.f32.mrb[0].mxu0
  %v9786 = vadd.f32 %v8315, %v9785
  %v9787 = vpop.f32.mrb[0].mxu0
  %v9788 = vpop.f32.mrb[0].mxu0
  %9789 = vdwg.mxu0
  %9790 = vmatprep.subr.bf16.mxu0 %v9137
  %9791 = vmatpush1.bf16.msra.mxu0 %v9136
  %9792 = vmatprep.subr.bf16.mxu0 %v9141
  %9793 = vmatpush1.bf16.msra.mxu0 %v9140
  %9794 = vmatprep.subr.bf16.mxu0 %v9145
  %9795 = vmatpush1.bf16.msra.mxu0 %v9144
  %9796 = vmatprep.subr.bf16.mxu0 %v9149
  %9797 = vmatpush1.bf16.msra.mxu0 %v9148
  %9798 = vmatprep.subr.bf16.mxu0 %v9153
  %9799 = vmatpush1.bf16.msra.mxu0 %v9152
  %9800 = vmatprep.subr.bf16.mxu0 %v9157
  %9801 = vmatpush1.bf16.msra.mxu0 %v9156
  %9802 = vmatprep.subr.bf16.mxu0 %v9161
  %9803 = vmatpush1.bf16.msra.mxu0 %v9160
  %9804 = vmatprep.subr.bf16.mxu0 %v9165
  %9805 = vmatpush1.bf16.msra.mxu0 %v9164
  %9806 = vmatprep.subr.bf16.mxu0 %v9169
  %9807 = vmatpush1.bf16.msra.mxu0 %v9168
  %9808 = vmatprep.subr.bf16.mxu0 %v9173
  %9809 = vmatpush1.bf16.msra.mxu0 %v9172
  %9810 = vmatprep.subr.bf16.mxu0 %v9177
  %9811 = vmatpush1.bf16.msra.mxu0 %v9176
  %9812 = vmatprep.subr.bf16.mxu0 %v9181
  %9813 = vmatpush1.bf16.msra.mxu0 %v9180
  %9814 = vmatprep.subr.bf16.mxu0 %v9185
  %9815 = vmatpush1.bf16.msra.mxu0 %v9184
  %9816 = vmatprep.subr.bf16.mxu0 %v9189
  %9817 = vmatpush1.bf16.msra.mxu0 %v9188
  %9818 = vmatprep.subr.bf16.mxu0 %v9193
  %9819 = vmatpush1.bf16.msra.mxu0 %v9192
  %9820 = vmatprep.subr.bf16.mxu0 %v9197
  %9821 = vmatpush1.bf16.msra.mxu0 %v9196
  %9822 = vmatprep.mubr.bf16.mxu0 %v8043
  %9823 = vmatmul.mubr.bf16.gmra.mrb[0].mxu0 %v8042
  %v9824 = vpop.f32.mrb[0].mxu0
  %v9825 = vadd.f32 %v9784, %v9824
  %v9826 = vpop.f32.mrb[0].mxu0
  %v9827 = vadd.f32 %v9786, %v9826
  %v9828 = vpop.f32.mrb[0].mxu0
  %v9829 = vpop.f32.mrb[0].mxu0
  %9830 = vdwg.mxu0
  %9831 = vmatprep.subr.bf16.mxu0 %v9201
  %9832 = vmatpush1.bf16.msra.mxu0 %v9200
  %9833 = vmatprep.subr.bf16.mxu0 %v9205
  %9834 = vmatpush1.bf16.msra.mxu0 %v9204
  %9835 = vmatprep.subr.bf16.mxu0 %v9209
  %9836 = vmatpush1.bf16.msra.mxu0 %v9208
  %9837 = vmatprep.subr.bf16.mxu0 %v9213
  %9838 = vmatpush1.bf16.msra.mxu0 %v9212
  %9839 = vmatprep.subr.bf16.mxu0 %v9217
  %9840 = vmatpush1.bf16.msra.mxu0 %v9216
  %9841 = vmatprep.subr.bf16.mxu0 %v9221
  %9842 = vmatpush1.bf16.msra.mxu0 %v9220
  %9843 = vmatprep.subr.bf16.mxu0 %v9225
  %9844 = vmatpush1.bf16.msra.mxu0 %v9224
  %9845 = vmatprep.subr.bf16.mxu0 %v9229
  %9846 = vmatpush1.bf16.msra.mxu0 %v9228
  %9847 = vmatprep.subr.bf16.mxu0 %v9233
  %9848 = vmatpush1.bf16.msra.mxu0 %v9232
  %9849 = vmatprep.subr.bf16.mxu0 %v9237
  %9850 = vmatpush1.bf16.msra.mxu0 %v9236
  %9851 = vmatprep.subr.bf16.mxu0 %v9241
  %9852 = vmatpush1.bf16.msra.mxu0 %v9240
  %9853 = vmatprep.subr.bf16.mxu0 %v9245
  %9854 = vmatpush1.bf16.msra.mxu0 %v9244
  %9855 = vmatprep.subr.bf16.mxu0 %v9249
  %9856 = vmatpush1.bf16.msra.mxu0 %v9248
  %9857 = vmatprep.subr.bf16.mxu0 %v9253
  %9858 = vmatpush1.bf16.msra.mxu0 %v9252
  %9859 = vmatprep.subr.bf16.mxu0 %v9257
  %9860 = vmatpush1.bf16.msra.mxu0 %v9256
  %9861 = vmatprep.subr.bf16.mxu0 %v9261
  %9862 = vmatpush1.bf16.msra.mxu0 %v9260
  %9863 = vmatprep.mubr.bf16.mxu0 %v8045
  %9864 = vmatmul.mubr.bf16.gmra.mrb[0].mxu0 %v8044
  %v9865 = vpop.f32.mrb[0].mxu0
  %v9866 = vadd.f32 %v9825, %v9865
  %v9867 = vpop.f32.mrb[0].mxu0
  %v9868 = vadd.f32 %v9827, %v9867
  %v9869 = vpop.f32.mrb[0].mxu0
  %v9870 = vpop.f32.mrb[0].mxu0
  %9871 = vdwg.mxu0
  %9872 = vmatprep.subr.bf16.mxu0 %v9265
  %9873 = vmatpush1.bf16.msra.mxu0 %v9264
  %9874 = vmatprep.subr.bf16.mxu0 %v9269
  %9875 = vmatpush1.bf16.msra.mxu0 %v9268
  %9876 = vmatprep.subr.bf16.mxu0 %v9273
  %9877 = vmatpush1.bf16.msra.mxu0 %v9272
  %9878 = vmatprep.subr.bf16.mxu0 %v9277
  %9879 = vmatpush1.bf16.msra.mxu0 %v9276
  %9880 = vmatprep.subr.bf16.mxu0 %v9281
  %9881 = vmatpush1.bf16.msra.mxu0 %v9280
  %9882 = vmatprep.subr.bf16.mxu0 %v9285
  %9883 = vmatpush1.bf16.msra.mxu0 %v9284
  %9884 = vmatprep.subr.bf16.mxu0 %v9289
  %9885 = vmatpush1.bf16.msra.mxu0 %v9288
  %9886 = vmatprep.subr.bf16.mxu0 %v9293
  %9887 = vmatpush1.bf16.msra.mxu0 %v9292
  %9888 = vmatprep.subr.bf16.mxu0 %v9297
  %9889 = vmatpush1.bf16.msra.mxu0 %v9296
  %9890 = vmatprep.subr.bf16.mxu0 %v9301
  %9891 = vmatpush1.bf16.msra.mxu0 %v9300
  %9892 = vmatprep.subr.bf16.mxu0 %v9305
  %9893 = vmatpush1.bf16.msra.mxu0 %v9304
  %9894 = vmatprep.subr.bf16.mxu0 %v9309
  %9895 = vmatpush1.bf16.msra.mxu0 %v9308
  %9896 = vmatprep.subr.bf16.mxu0 %v9313
  %9897 = vmatpush1.bf16.msra.mxu0 %v9312
  %9898 = vmatprep.subr.bf16.mxu0 %v9317
  %9899 = vmatpush1.bf16.msra.mxu0 %v9316
  %9900 = vmatprep.subr.bf16.mxu0 %v9583
  %9901 = vmatpush1.bf16.msra.mxu0 %v9580
  %9902 = vmatprep.subr.bf16.mxu0 0
  %9903 = vmatpush1.bf16.msra.mxu0 0
  %9904 = vmatprep.mubr.bf16.mxu0 %v9571
  %9905 = vmatmul.mubr.bf16.gmra.mrb[0].mxu0 %v8046
  %v9906 = vpop.f32.mrb[0].mxu0
  %v9907 = vadd.f32 %v9866, %v9906
  %v9908 = vpop.f32.mrb[0].mxu0
  %v9909 = vadd.f32 %v9868, %v9908
  %v9910 = vpop.f32.mrb[0].mxu0
  %v9911 = vpop.f32.mrb[0].mxu0
  %9912 = vdwg.mxu0
  %v9913 = vmax.f32 %v9743, 0.0
  %v9914 = vmax.f32 %v9745, 0.0
  %v9915 = vmax.f32 %v9907, 0.0
  %v9916 = vmax.f32 %v9909, 0.0
  %v9917 = vld [vmem:[%s13] sm:$0xff]
  %v9918 = vld [vmem:[%s13 + $0x8] sm:$0xff]
  %v9919 = vld [vmem:[%s13 + $0x10] sm:$0xff]
  %v9920 = vld [vmem:[%s13 + $0x18] sm:$0xff]
  %v9921 = vld [vmem:[%s13 + $0x20] sm:$0xff]
  %v9922 = vld [vmem:[%s13 + $0x28] sm:$0xff]
  %v9923 = vld [vmem:[%s13 + $0x30] sm:$0xff]
  %v9924 = vld [vmem:[%s13 + $0x38] sm:$0xff]
  %v9925 = vld [vmem:[%s13 + $0x40] sm:$0xff]
  %v9926 = vld [vmem:[%s13 + $0x48] sm:$0xff]
  %v9927 = vld [vmem:[%s13 + $0x50] sm:$0xff]
  %v9928 = vld [vmem:[%s13 + $0x58] sm:$0xff]
  %v9929 = vld [vmem:[%s13 + $0x60] sm:$0xff]
  %v9930 = vld [vmem:[%s13 + $0x68] sm:$0xff]
  %v9931 = vld [vmem:[%s13 + $0x70] sm:$0xff]
  %v9932 = vld [vmem:[%s13 + $0x78] sm:$0xff]
  %v9933 = vld [vmem:[%s13 + $0x80] sm:$0xff]
  %v9934 = vld [vmem:[%s13 + $0x88] sm:$0xff]
  %v9935 = vld [vmem:[%s13 + $0x90] sm:$0xff]
  %v9936 = vld [vmem:[%s13 + $0x98] sm:$0xff]
  %v9937 = vld [vmem:[%s13 + $0xa0] sm:$0xff]
  %v9938 = vld [vmem:[%s13 + $0xa8] sm:$0xff]
  %v9939 = vld [vmem:[%s13 + $0xb0] sm:$0xff]
  %v9940 = vld [vmem:[%s13 + $0xb8] sm:$0xff]
  %v9941 = vld [vmem:[%s13 + $0xc0] sm:$0xff]
  %v9942 = vld [vmem:[%s13 + $0xc8] sm:$0xff]
  %v9943 = vld [vmem:[%s13 + $0xd0] sm:$0xff]
  %v9944 = vld [vmem:[%s13 + $0xd8] sm:$0xff]
  %v9945 = vld [vmem:[%s13 + $0xe0] sm:$0xff]
  %v9946 = vld [vmem:[%s13 + $0xe8] sm:$0xff]
  %v9947 = vld [vmem:[%s13 + $0xf0] sm:$0xff]
  %v9948 = vld [vmem:[%s13 + $0xf8] sm:$0xff]
  %v9949 = vld [vmem:[%s13 + $0x100] sm:$0xff]
  %v9950 = vld [vmem:[%s13 + $0x108] sm:$0xff]
  %v9951 = vld [vmem:[%s13 + $0x110] sm:$0xff]
  %v9952 = vld [vmem:[%s13 + $0x118] sm:$0xff]
  %v9953 = vld [vmem:[%s13 + $0x120] sm:$0xff]
  %v9954 = vld [vmem:[%s13 + $0x128] sm:$0xff]
  %v9955 = vld [vmem:[%s13 + $0x130] sm:$0xff]
  %v9956 = vld [vmem:[%s13 + $0x138] sm:$0xff]
  %v9957 = vld [vmem:[%s13 + $0x140] sm:$0xff]
  %v9958 = vld [vmem:[%s13 + $0x148] sm:$0xff]
  %v9959 = vld [vmem:[%s13 + $0x150] sm:$0xff]
  %v9960 = vld [vmem:[%s13 + $0x158] sm:$0xff]
  %v9961 = vld [vmem:[%s13 + $0x160] sm:$0xff]
  %v9962 = vld [vmem:[%s13 + $0x168] sm:$0xff]
  %v9963 = vld [vmem:[%s13 + $0x170] sm:$0xff]
  %v9964 = vld [vmem:[%s13 + $0x178] sm:$0xff]
  %v9965 = vld [vmem:[%s13 + $0x180] sm:$0xff]
  %v9966 = vld [vmem:[%s13 + $0x188] sm:$0xff]
  %v9967 = vld [vmem:[%s13 + $0x190] sm:$0xff]
  %v9968 = vld [vmem:[%s13 + $0x198] sm:$0xff]
  %v9969 = vld [vmem:[%s13 + $0x1a0] sm:$0xff]
  %v9970 = vld [vmem:[%s13 + $0x1a8] sm:$0xff]
  %v9971 = vld [vmem:[%s13 + $0x1b0] sm:$0xff]
  %v9972 = vld [vmem:[%s13 + $0x1b8] sm:$0xff]
  %v9973 = vld [vmem:[%s13 + $0x1c0] sm:$0xff]
  %v9974 = vld [vmem:[%s13 + $0x1c8] sm:$0xff]
  %v9975 = vld [vmem:[%s13 + $0x1d0] sm:$0xff]
  %v9976 = vld [vmem:[%s13 + $0x1d8] sm:$0xff]
  %v9977 = vld [vmem:[%s13 + $0x1e0] sm:$0xff]
  %v9978 = vld [vmem:[%s13 + $0x1e8] sm:$0xff]
  %v9979 = vld [vmem:[%s13 + $0x1f0] sm:$0xf]
  %v9980 = vld [vmem:[#allocation2] sm:$0x1]
  %v9982 = vlaneseq
  %v9983 = vshrl.u32 %v9982, 7
  %v9984 = vsub.s32 0, %v9983
  %v9985 = vrot.slane %v9980, %v9984
  %vm9987 = vcmask 949248
  %v9989 = vsel %vm9987, %v9916, 0
  %v9992 = vsel %vm7780, %v9979, 0
  %9994 = vmatprep.subr.mxu0 0.0
  %9995 = vmatpush1.msra.mxu0 %v9917
  %9996 = vmatprep.subr.mxu0 0.0
  %9997 = vmatpush1.msra.mxu0 %v9918
  %9998 = vmatprep.subr.mxu0 0.0
  %9999 = vmatpush1.msra.mxu0 %v9919
  %10000 = vmatprep.subr.mxu0 0.0
  %10001 = vmatpush1.msra.mxu0 %v9920
  %10002 = vmatprep.subr.mxu0 0.0
  %10003 = vmatpush1.msra.mxu0 %v9921
  %10004 = vmatprep.subr.mxu0 0.0
  %10005 = vmatpush1.msra.mxu0 %v9922
  %10006 = vmatprep.subr.mxu0 0.0
  %10007 = vmatpush1.msra.mxu0 %v9923
  %10008 = vmatprep.subr.mxu0 0.0
  %10009 = vmatpush1.msra.mxu0 %v9924
  %10010 = vmatprep.subr.mxu0 0.0
  %10011 = vmatpush1.msra.mxu0 %v9925
  %10012 = vmatprep.subr.mxu0 0.0
  %10013 = vmatpush1.msra.mxu0 %v9926
  %10014 = vmatprep.subr.mxu0 0.0
  %10015 = vmatpush1.msra.mxu0 %v9927
  %10016 = vmatprep.subr.mxu0 0.0
  %10017 = vmatpush1.msra.mxu0 %v9928
  %10018 = vmatprep.subr.mxu0 0.0
  %10019 = vmatpush1.msra.mxu0 %v9929
  %10020 = vmatprep.subr.mxu0 0.0
  %10021 = vmatpush1.msra.mxu0 %v9930
  %10022 = vmatprep.subr.mxu0 0.0
  %10023 = vmatpush1.msra.mxu0 %v9931
  %10024 = vmatprep.subr.mxu0 0.0
  %10025 = vmatpush1.msra.mxu0 %v9932
  %10026 = vmatprep.subr.mxu0 0.0
  %10027 = vmatpush1.msra.mxu0 %v9933
  %10028 = vmatprep.subr.mxu0 0.0
  %10029 = vmatpush1.msra.mxu0 %v9934
  %10030 = vmatprep.subr.mxu0 0.0
  %10031 = vmatpush1.msra.mxu0 %v9935
  %10032 = vmatprep.subr.mxu0 0.0
  %10033 = vmatpush1.msra.mxu0 %v9936
  %10034 = vmatprep.subr.mxu0 0.0
  %10035 = vmatpush1.msra.mxu0 %v9937
  %10036 = vmatprep.subr.mxu0 0.0
  %10037 = vmatpush1.msra.mxu0 %v9938
  %10038 = vmatprep.subr.mxu0 0.0
  %10039 = vmatpush1.msra.mxu0 %v9939
  %10040 = vmatprep.subr.mxu0 0.0
  %10041 = vmatpush1.msra.mxu0 %v9940
  %10042 = vmatprep.subr.mxu0 0.0
  %10043 = vmatpush1.msra.mxu0 %v9941
  %10044 = vmatprep.subr.mxu0 0.0
  %10045 = vmatpush1.msra.mxu0 %v9942
  %10046 = vmatprep.subr.mxu0 0.0
  %10047 = vmatpush1.msra.mxu0 %v9943
  %10048 = vmatprep.subr.mxu0 0.0
  %10049 = vmatpush1.msra.mxu0 %v9944
  %10050 = vmatprep.subr.mxu0 0.0
  %10051 = vmatpush1.msra.mxu0 %v9945
  %10052 = vmatprep.subr.mxu0 0.0
  %10053 = vmatpush1.msra.mxu0 %v9946
  %10054 = vmatprep.subr.mxu0 0.0
  %10055 = vmatpush1.msra.mxu0 %v9947
  %10056 = vmatprep.subr.mxu0 0.0
  %10057 = vmatpush1.msra.mxu0 %v9948
  %10058 = vmatprep.mubr.f32.mxu0 %v9914
  %10059 = vmatmul.mubr.f32.gmra.mrb[0].mxu0 %v9913
  %v10060 = vpop.f32.mrb[0].mxu0
  %v10061 = vadd.f32 %v9985, %v10060
  %v10062 = vpop.f32.mrb[0].mxu0
  %10063 = vdwg.mxu0
  %10064 = vmatprep.subr.mxu0 0.0
  %10065 = vmatpush1.msra.mxu0 %v9949
  %10066 = vmatprep.subr.mxu0 0.0
  %10067 = vmatpush1.msra.mxu0 %v9950
  %10068 = vmatprep.subr.mxu0 0.0
  %10069 = vmatpush1.msra.mxu0 %v9951
  %10070 = vmatprep.subr.mxu0 0.0
  %10071 = vmatpush1.msra.mxu0 %v9952
  %10072 = vmatprep.subr.mxu0 0.0
  %10073 = vmatpush1.msra.mxu0 %v9953
  %10074 = vmatprep.subr.mxu0 0.0
  %10075 = vmatpush1.msra.mxu0 %v9954
  %10076 = vmatprep.subr.mxu0 0.0
  %10077 = vmatpush1.msra.mxu0 %v9955
  %10078 = vmatprep.subr.mxu0 0.0
  %10079 = vmatpush1.msra.mxu0 %v9956
  %10080 = vmatprep.subr.mxu0 0.0
  %10081 = vmatpush1.msra.mxu0 %v9957
  %10082 = vmatprep.subr.mxu0 0.0
  %10083 = vmatpush1.msra.mxu0 %v9958
  %10084 = vmatprep.subr.mxu0 0.0
  %10085 = vmatpush1.msra.mxu0 %v9959
  %10086 = vmatprep.subr.mxu0 0.0
  %10087 = vmatpush1.msra.mxu0 %v9960
  %10088 = vmatprep.subr.mxu0 0.0
  %10089 = vmatpush1.msra.mxu0 %v9961
  %10090 = vmatprep.subr.mxu0 0.0
  %10091 = vmatpush1.msra.mxu0 %v9962
  %10092 = vmatprep.subr.mxu0 0.0
  %10093 = vmatpush1.msra.mxu0 %v9963
  %10094 = vmatprep.subr.mxu0 0.0
  %10095 = vmatpush1.msra.mxu0 %v9964
  %10096 = vmatprep.subr.mxu0 0.0
  %10097 = vmatpush1.msra.mxu0 %v9965
  %10098 = vmatprep.subr.mxu0 0.0
  %10099 = vmatpush1.msra.mxu0 %v9966
  %10100 = vmatprep.subr.mxu0 0.0
  %10101 = vmatpush1.msra.mxu0 %v9967
  %10102 = vmatprep.subr.mxu0 0.0
  %10103 = vmatpush1.msra.mxu0 %v9968
  %10104 = vmatprep.subr.mxu0 0.0
  %10105 = vmatpush1.msra.mxu0 %v9969
  %10106 = vmatprep.subr.mxu0 0.0
  %10107 = vmatpush1.msra.mxu0 %v9970
  %10108 = vmatprep.subr.mxu0 0.0
  %10109 = vmatpush1.msra.mxu0 %v9971
  %10110 = vmatprep.subr.mxu0 0.0
  %10111 = vmatpush1.msra.mxu0 %v9972
  %10112 = vmatprep.subr.mxu0 0.0
  %10113 = vmatpush1.msra.mxu0 %v9973
  %10114 = vmatprep.subr.mxu0 0.0
  %10115 = vmatpush1.msra.mxu0 %v9974
  %10116 = vmatprep.subr.mxu0 0.0
  %10117 = vmatpush1.msra.mxu0 %v9975
  %10118 = vmatprep.subr.mxu0 0.0
  %10119 = vmatpush1.msra.mxu0 %v9976
  %10120 = vmatprep.subr.mxu0 0.0
  %10121 = vmatpush1.msra.mxu0 %v9977
  %10122 = vmatprep.subr.mxu0 0.0
  %10123 = vmatpush1.msra.mxu0 %v9978
  %10124 = vmatprep.subr.mxu0 0.0
  %10125 = vmatpush1.msra.mxu0 %v9992
  %10126 = vmatprep.subr.mxu0 0.0
  %10127 = vmatpush1.msra.mxu0 0.0
  %10128 = vmatprep.mubr.f32.mxu0 %v9989
  %10129 = vmatmul.mubr.f32.gmra.mrb[0].mxu0 %v9915
  %v10130 = vpop.f32.mrb[0].mxu0
  %v10131 = vadd.f32 %v10061, %v10130
  %v10132 = vpop.f32.mrb[0].mxu0
  %10133 = vdwg.mxu0
  %vm10134 = vcmask 1024
  %10135 = vst.msk [vmem:[%s15] sm:$0x3] %vm10134, %v10131
  // Predicated region
  $region62: #{sandnet_forward.1} parent=0 // pred_check
    _
  $region63: #{sandnet_forward.1} parent=0 // pred_check_branch
    %10137 = sbr.rel (0) target = $region65
  $region64: #{sandnet_forward.1} parent=0 // pred_region
    _
  $region65: #{sandnet_forward.1} parent=0 // pred_fallthru
    _
  // Predicated region
  $region66: #{sandnet_forward.1} parent=0 // pred_check
    _
  $region67: #{sandnet_forward.1} parent=0 // pred_check_branch
    %10139 = sbr.rel (0) target = $region69
  $region68: #{sandnet_forward.1} parent=0 // pred_region
    _
  $region69: #{sandnet_forward.1} parent=0 // pred_fallthru
    _

</llo_original>
